<compile_context>
chip_gen: v7x
topology: tpu7x:2x2x1
jax: 0.10.0
libtpu: 0.0.40
codegen_flags: <defaults>
</compile_context>

<pallas_src>
import math
import functools

import jax
import jax.numpy as jnp
from jax.experimental import pallas as pl
from jax.experimental.pallas import tpu as pltpu


# -----------------------------------------------------------------------------
# Pallas kernels
# -----------------------------------------------------------------------------
def _head_linear_kernel(x_ref, hw1_ref, hb1_ref, hw2_ref, hb2_ref, lw_ref, lb_ref,
                        head_ref, lin_ref):
    """Fused: (conv1x1 -> relu -> conv1x1 -> L2 norm) head  AND  a plain linear, same input."""
    x = x_ref[...]
    h = jnp.maximum(jnp.dot(x, hw1_ref[...], preferred_element_type=jnp.float32)
                    + hb1_ref[...], 0.0)
    y = jnp.dot(h, hw2_ref[...], preferred_element_type=jnp.float32) + hb2_ref[...]
    ssq = jnp.sum(y * y, axis=-1, keepdims=True)
    head_ref[...] = (y * jax.lax.rsqrt(jnp.maximum(ssq, 1e-24))).astype(head_ref.dtype)
    lin_ref[...] = (jnp.dot(x, lw_ref[...], preferred_element_type=jnp.float32)
                    + lb_ref[...]).astype(lin_ref.dtype)


def pallas_head_and_linear(x, hw1, hb1, hw2, hb2, lw, lb, tile_r=256):
    """Row-tiled fused head + linear over stacked rows x: (R, Cin)."""
    R, Cin = x.shape
    Ch = hw2.shape[1]
    Cl = lw.shape[1]
    tr = R if R <= tile_r else tile_r

    def wspec(a):
        return pl.BlockSpec(a.shape, lambda i: (0, 0))

    head, lin = pl.pallas_call(
        _head_linear_kernel,
        out_shape=(jax.ShapeDtypeStruct((R, Ch), jnp.float32),
                   jax.ShapeDtypeStruct((R, Cl), jnp.float32)),
        grid=(pl.cdiv(R, tr),),
        in_specs=[
            pl.BlockSpec((tr, Cin), lambda i: (i, 0)),
            wspec(hw1), wspec(hb1), wspec(hw2), wspec(hb2), wspec(lw), wspec(lb),
        ],
        out_specs=[pl.BlockSpec((tr, Ch), lambda i: (i, 0)),
                   pl.BlockSpec((tr, Cl), lambda i: (i, 0))],
        compiler_params=pltpu.CompilerParams(dimension_semantics=("parallel",)),
    )(x, hw1, hb1, hw2, hb2, lw, lb)
    return head, lin


def _layer_kernel(src_ref, dst_ref, sp_ref, dp_ref, sb_ref, db_ref,
                  sa_wqk_ref, sa_bqk_ref, sa_wv_ref, sa_bv_ref, sa_wo_ref, sa_bo_ref,
                  ca_wqk_ref, ca_bqk_ref, ca_wv_ref, ca_bv_ref, ca_wo_ref, ca_bo_ref,
                  f1w_ref, f1b_ref, f2w_ref, f2b_ref, ln_ref,
                  src_out_ref, dst_out_ref, *, d, scale):
    """Entire DescriptorAttentionLayer (both src & dst branches) for one batch element."""
    src = src_ref[0]            # (M, D)
    dst = dst_ref[0]            # (N, D)
    sp = sp_ref[0]              # (M, D)  positional embedding
    dp = dp_ref[0]              # (N, D)
    sbias = sb_ref[0]           # (1, M)  additive key-padding bias when src are keys
    dbias = db_ref[0]           # (1, N)
    ln = ln_ref[...]            # (6, D)  rows: [g1, b1, g2, b2, g3, b3]

    def layer_norm(x, g, b):
        mu = jnp.mean(x, axis=-1, keepdims=True)
        xc = x - mu
        var = jnp.mean(xc * xc, axis=-1, keepdims=True)
        return xc * jax.lax.rsqrt(var + 1e-5) * g + b

    def attend(q, k, v, kbias):
        s = jnp.dot(q, k.T, preferred_element_type=jnp.float32) * scale + kbias
        s = s - jnp.max(s, axis=-1, keepdims=True)
        p = jnp.exp(s)
        p = p * pl.reciprocal(jnp.sum(p, axis=-1, keepdims=True), approx=True)
        return jnp.dot(p, v, preferred_element_type=jnp.float32)

    def attn_block(wqk_ref, bqk_ref, wv_ref, bv_ref, wo_ref, bo_ref,
                   cur_src, cur_dst, cross):
        wqk = wqk_ref[...]
        bqk = bqk_ref[...]
        wv = wv_ref[...]
        bv = bv_ref[...]
        wo = wo_ref[...]
        bo = bo_ref[...]
        sq_in = cur_src + sp
        dq_in = cur_dst + dp
        # fused Q|K projection (weights shared between src and dst branches)
        s_qk = jnp.dot(sq_in, wqk, preferred_element_type=jnp.float32) + bqk   # (M, 2D)
        d_qk = jnp.dot(dq_in, wqk, preferred_element_type=jnp.float32) + bqk   # (N, 2D)
        s_v = jnp.dot(cur_src, wv, preferred_element_type=jnp.float32) + bv
        d_v = jnp.dot(cur_dst, wv, preferred_element_type=jnp.float32) + bv
        if cross:
            s_att = attend(s_qk[:, :d], d_qk[:, d:], d_v, dbias)
            d_att = attend(d_qk[:, :d], s_qk[:, d:], s_v, sbias)
        else:
            s_att = attend(s_qk[:, :d], s_qk[:, d:], s_v, sbias)
            d_att = attend(d_qk[:, :d], d_qk[:, d:], d_v, dbias)
        s_att = jnp.dot(s_att, wo, preferred_element_type=jnp.float32) + bo
        d_att = jnp.dot(d_att, wo, preferred_element_type=jnp.float32) + bo
        return s_att, d_att

    # self attention + LN1
    s_sa, d_sa = attn_block(sa_wqk_ref, sa_bqk_ref, sa_wv_ref, sa_bv_ref,
                            sa_wo_ref, sa_bo_ref, src, dst, cross=False)
    src = layer_norm(src + s_sa, ln[0:1], ln[1:2])
    dst = layer_norm(dst + d_sa, ln[0:1], ln[1:2])

    # cross attention + LN2
    s_ca, d_ca = attn_block(ca_wqk_ref, ca_bqk_ref, ca_wv_ref, ca_bv_ref,
                            ca_wo_ref, ca_bo_ref, src, dst, cross=True)
    src = layer_norm(src + s_ca, ln[2:3], ln[3:4])
    dst = layer_norm(dst + d_ca, ln[2:3], ln[3:4])

    # feed forward + LN3
    f1w = f1w_ref[...]
    f1b = f1b_ref[...]
    f2w = f2w_ref[...]
    f2b = f2b_ref[...]

    def ffn(x):
        h = jnp.maximum(jnp.dot(x, f1w, preferred_element_type=jnp.float32) + f1b, 0.0)
        return jnp.dot(h, f2w, preferred_element_type=jnp.float32) + f2b

    src = layer_norm(src + ffn(src), ln[4:5], ln[5:6])
    dst = layer_norm(dst + ffn(dst), ln[4:5], ln[5:6])

    src_out_ref[0] = src.astype(src_out_ref.dtype)
    dst_out_ref[0] = dst.astype(dst_out_ref.dtype)


def pallas_attention_layer(lp, src, dst, src_pos, dst_pos, src_bias, dst_bias):
    B, M, D = src.shape
    N = dst.shape[1]
    kernel = functools.partial(_layer_kernel, d=D, scale=1.0 / math.sqrt(D))

    def full2(a):
        return pl.BlockSpec(a.shape, lambda b: (0, 0))

    def data3(shp):
        return pl.BlockSpec((1,) + shp, lambda b: (b, 0, 0))

    in_specs = [
        data3((M, D)), data3((N, D)), data3((M, D)), data3((N, D)),
        data3((1, M)), data3((1, N)),
        full2(lp["sa_wqk"]), full2(lp["sa_bqk"]), full2(lp["sa_wv"]), full2(lp["sa_bv"]),
        full2(lp["sa_wo"]), full2(lp["sa_bo"]),
        full2(lp["ca_wqk"]), full2(lp["ca_bqk"]), full2(lp["ca_wv"]), full2(lp["ca_bv"]),
        full2(lp["ca_wo"]), full2(lp["ca_bo"]),
        full2(lp["f1_w"]), full2(lp["f1_b"]), full2(lp["f2_w"]), full2(lp["f2_b"]),
        full2(lp["ln"]),
    ]
    out_specs = [data3((M, D)), data3((N, D))]
    out_shape = (jax.ShapeDtypeStruct((B, M, D), jnp.float32),
                 jax.ShapeDtypeStruct((B, N, D), jnp.float32))
    return pl.pallas_call(
        kernel,
        out_shape=out_shape,
        grid=(B,),
        in_specs=in_specs,
        out_specs=out_specs,
        compiler_params=pltpu.CompilerParams(dimension_semantics=("parallel",)),
    )(src, dst, src_pos, dst_pos, src_bias, dst_bias,
      lp["sa_wqk"], lp["sa_bqk"], lp["sa_wv"], lp["sa_bv"], lp["sa_wo"], lp["sa_bo"],
      lp["ca_wqk"], lp["ca_bqk"], lp["ca_wv"], lp["ca_bv"], lp["ca_wo"], lp["ca_bo"],
      lp["f1_w"], lp["f1_b"], lp["f2_w"], lp["f2_b"], lp["ln"])


def _offset_pair_kernel(w2b_ref, a_s_ref, b_s_ref, a_dT_ref, b_dT_ref,
                        src_aux_ref, dst_aux_ref, src_res_ref, dst_res_ref,
                        *, hdim, eps2):
    """Pairwise offset head + masking + gt subtraction over a (TM, TN) pair tile.

    a_s : (TM, H) = src_fea @ W1a + b1      b_s : (TM, H) = src_fea @ W1b
    a_dT: (H, TN) = (dst_fea @ W1a + b1)^T  b_dT: (H, TN) = (dst_fea @ W1b)^T
    src_aux: (TM, 8) cols [gt_x, gt_y, gt_z, (R^T gt)_xyz, valid, 0]
    dst_aux: (8, TN) rows [gt_x, gt_y, gt_z, (R^T gt)_xyz, valid, 0]
    w2b (SMEM): (H+1, 3), last row = bias of the second conv.
    outputs: (1, 3, TM, TN) channel-first residuals (lane-dense stores).
    """
    a_s = a_s_ref[0]
    b_s = b_s_ref[0]
    a_dT = a_dT_ref[0]
    b_dT = b_dT_ref[0]
    s_aux = src_aux_ref[0]
    d_aux = dst_aux_ref[0]

    # pairwise ground-truth geometry, one lane-dense (TM, TN) slab per coordinate
    dxyz = [d_aux[c:c + 1, :] - s_aux[:, c:c + 1] for c in range(3)]          # dst_gt - src_gt
    gt_s = [d_aux[3 + c:4 + c, :] - s_aux[:, 3 + c:4 + c] for c in range(3)]  # R^T (dst - src)
    dist = dxyz[0] * dxyz[0] + dxyz[1] * dxyz[1] + dxyz[2] * dxyz[2]
    valid = (dist <= eps2) & (s_aux[:, 6:7] > 0.5) & (d_aux[6:7, :] > 0.5)

    # relu(a[m] + b[n]) @ W2, accumulated per output coordinate on the VPU so every
    # intermediate stays a lane-dense (TM, TN) slab (no (M,N,2D) tensor, no relayouts).
    offs = [jnp.zeros_like(dist) for _ in range(3)]
    offd = [jnp.zeros_like(dist) for _ in range(3)]
    for h in range(hdim):
        t_s = jnp.maximum(a_s[:, h:h + 1] + b_dT[h:h + 1, :], 0.0)   # s2d hidden unit h
        t_d = jnp.maximum(b_s[:, h:h + 1] + a_dT[h:h + 1, :], 0.0)   # d2s hidden unit h
        for c in range(3):
            w = w2b_ref[h, c]
            offs[c] = offs[c] + t_s * w
            offd[c] = offd[c] + t_d * w

    for c in range(3):
        b2c = w2b_ref[hdim, c]
        src_res_ref[0, c] = jnp.where(valid, offs[c] + b2c - gt_s[c], 0.0)
        dst_res_ref[0, c] = jnp.where(valid, offd[c] + b2c + dxyz[c], 0.0)


def pallas_pairwise_offset(w2b, a_s, b_s, a_dT, b_dT, src_aux, dst_aux, eps2):
    B, M, H = a_s.shape
    N = a_dT.shape[2]
    TM = M if M <= 128 else 128
    TN = N if N <= 256 else 256
    grid = (B, pl.cdiv(M, TM), pl.cdiv(N, TN))
    kernel = functools.partial(_offset_pair_kernel, hdim=H, eps2=float(eps2))

    def row_spec(shp):
        return pl.BlockSpec((1,) + shp, lambda b, i, j: (b, i, 0))

    def col_spec(shp):
        return pl.BlockSpec((1,) + shp, lambda b, i, j: (b, 0, j))

    out_spec = pl.BlockSpec((1, 3, TM, TN), lambda b, i, j: (b, 0, i, j))
    out_shape = (jax.ShapeDtypeStruct((B, 3, M, N), jnp.float32),
                 jax.ShapeDtypeStruct((B, 3, M, N), jnp.float32))
    return pl.pallas_call(
        kernel,
        out_shape=out_shape,
        grid=grid,
        in_specs=[
            pl.BlockSpec(memory_space=pltpu.MemorySpace.SMEM),   # W2|b2 scalar table
            row_spec((TM, H)), row_spec((TM, H)),
            col_spec((H, TN)), col_spec((H, TN)),
            row_spec((TM, 8)), col_spec((8, TN)),
        ],
        out_specs=[out_spec, out_spec],
        compiler_params=pltpu.CompilerParams(
            dimension_semantics=("parallel", "parallel", "parallel")),
    )(w2b, a_s, b_s, a_dT, b_dT, src_aux, dst_aux)


# -----------------------------------------------------------------------------
# JAX glue (pos embedding, parameter init)
# -----------------------------------------------------------------------------
def pos_embedding_sine(xyz_bn3, emb_dim, temperature=10000.0):
    """PositionEmbeddingCoordsSine: sine/cos frequency encoding of xyz -> emb_dim."""
    B, Np, _ = xyz_bn3.shape
    n_freq = -(-emb_dim // 6)
    dim_t = temperature ** (jnp.arange(n_freq, dtype=jnp.float32) / n_freq)
    pos = xyz_bn3[..., :, None] / dim_t
    emb = jnp.concatenate([jnp.sin(pos), jnp.cos(pos)], axis=-1)
    emb = emb.reshape(B, Np, 3 * 2 * n_freq)
    return emb[..., :emb_dim]


def init_params(key, cin, d, n_layers):
    keys = iter(jax.random.split(key, 256))

    def lin(ci, co):
        k1, k2 = jax.random.split(next(keys))
        w = jax.random.normal(k1, (ci, co), jnp.float32) / math.sqrt(ci)
        b = 0.01 * jax.random.normal(k2, (1, co), jnp.float32)
        return w, b

    proj_w, proj_b = lin(cin, d)
    cw1, cb1 = lin(cin, cin)
    cw2, cb2 = lin(cin, cin)
    sw1, sb1 = lin(d, d)
    sw2, sb2 = lin(d, d)
    ow1, ob1 = lin(2 * d, d)
    ow2, ob2 = lin(d, 3)

    params = {
        "proj_w": proj_w, "proj_b": proj_b,
        "coarse_w1": cw1, "coarse_b1": cb1, "coarse_w2": cw2, "coarse_b2": cb2,
        "sim_w1": sw1, "sim_b1": sb1, "sim_w2": sw2, "sim_b2": sb2,
        "off_w1": ow1, "off_b1": ob1, "off_w2": ow2, "off_b2": ob2,
        "layers": [],
    }
    ones = jnp.ones((d,), jnp.float32)
    zeros = jnp.zeros((d,), jnp.float32)
    for _ in range(n_layers):
        sa_wq, sa_bq = lin(d, d)
        sa_wk, sa_bk = lin(d, d)
        sa_wv, sa_bv = lin(d, d)
        sa_wo, sa_bo = lin(d, d)
        ca_wq, ca_bq = lin(d, d)
        ca_wk, ca_bk = lin(d, d)
        ca_wv, ca_bv = lin(d, d)
        ca_wo, ca_bo = lin(d, d)
        f1_w, f1_b = lin(d, 2 * d)
        f2_w, f2_b = lin(2 * d, d)
        lp = {
            "sa_wqk": jnp.concatenate([sa_wq, sa_wk], axis=1),
            "sa_bqk": jnp.concatenate([sa_bq, sa_bk], axis=1),
            "sa_wv": sa_wv, "sa_bv": sa_bv, "sa_wo": sa_wo, "sa_bo": sa_bo,
            "ca_wqk": jnp.concatenate([ca_wq, ca_wk], axis=1),
            "ca_bqk": jnp.concatenate([ca_bq, ca_bk], axis=1),
            "ca_wv": ca_wv, "ca_bv": ca_bv, "ca_wo": ca_wo, "ca_bo": ca_bo,
            "f1_w": f1_w, "f1_b": f1_b, "f2_w": f2_w, "f2_b": f2_b,
            "ln": jnp.stack([ones, zeros, ones, zeros, ones, zeros], axis=0),
        }
        params["layers"].append(lp)
    return params


# -----------------------------------------------------------------------------
# Decoder._train_forward
# -----------------------------------------------------------------------------
@functools.partial(jax.jit, static_argnums=(1, 2))
def decoder_train_forward(params, eps_offset, emb_dim,
                          src_descriptor, dst_descriptor,
                          src_padding_mask, dst_padding_mask, gt_R, gt_T):
    # PyTorch layout: descriptor (B, C+3, N), mask (B, N) bool (True = padded)
    B = src_descriptor.shape[0]
    src_fea0 = src_descriptor[:, :-3, :]
    dst_fea0 = dst_descriptor[:, :-3, :]
    src_xyz = src_descriptor[:, -3:, :]                       # (B, 3, M)
    dst_xyz = dst_descriptor[:, -3:, :]
    Cin = src_fea0.shape[1]
    M = src_fea0.shape[2]
    N = dst_fea0.shape[2]

    src_fea0_t = jnp.transpose(src_fea0, (0, 2, 1))           # (B, M, Cin)
    dst_fea0_t = jnp.transpose(dst_fea0, (0, 2, 1))
    rows0 = jnp.concatenate([src_fea0_t.reshape(B * M, Cin),
                             dst_fea0_t.reshape(B * N, Cin)], axis=0)

    # ---- stage 1: coarse pairing head + input projection (one fused kernel, one read of rows0)
    D = params["proj_w"].shape[1]
    coarse_all, proj_all = pallas_head_and_linear(
        rows0, params["coarse_w1"], params["coarse_b1"],
        params["coarse_w2"], params["coarse_b2"],
        params["proj_w"], params["proj_b"])
    src_coarse = coarse_all[:B * M].reshape(B, M, Cin)
    dst_coarse = coarse_all[B * M:].reshape(B, N, Cin)
    src_fea = proj_all[:B * M].reshape(B, M, D)
    dst_fea = proj_all[B * M:].reshape(B, N, D)

    # ---- fused attention layers (positional embedding + key-padding bias precomputed once)
    src_xyz_t = jnp.transpose(src_xyz, (0, 2, 1))             # (B, M, 3)
    dst_xyz_t = jnp.transpose(dst_xyz, (0, 2, 1))
    src_pos = pos_embedding_sine(src_xyz_t, emb_dim)
    dst_pos = pos_embedding_sine(dst_xyz_t, emb_dim)
    src_bias = jnp.where(src_padding_mask, -1e9, 0.0)[:, None, :].astype(jnp.float32)
    dst_bias = jnp.where(dst_padding_mask, -1e9, 0.0)[:, None, :].astype(jnp.float32)

    for lp in params["layers"]:
        src_fea, dst_fea = pallas_attention_layer(
            lp, src_fea, dst_fea, src_pos, dst_pos, src_bias, dst_bias)

    # ---- stage 2: similarity head + offset pre-projection (one fused kernel, one read)
    H = params["off_w1"].shape[1]
    w_cat = jnp.concatenate([params["off_w1"][:D], params["off_w1"][D:]], axis=1)   # (D, 2H)
    b_cat = jnp.concatenate([params["off_b1"],
                             jnp.zeros((1, H), jnp.float32)], axis=1)               # (1, 2H)
    rows_corr = jnp.concatenate([src_fea.reshape(B * M, D),
                                 dst_fea.reshape(B * N, D)], axis=0)
    sim_all, ab = pallas_head_and_linear(
        rows_corr, params["sim_w1"], params["sim_b1"],
        params["sim_w2"], params["sim_b2"], w_cat, b_cat)
    src_pairing_fea = sim_all[:B * M].reshape(B, M, D)
    dst_pairing_fea = sim_all[B * M:].reshape(B, N, D)

    src_ab = ab[:B * M].reshape(B, M, 2 * H)
    dst_ab = ab[B * M:].reshape(B, N, 2 * H)
    a_s, b_s = src_ab[..., :H], src_ab[..., H:]
    a_dT = jnp.transpose(dst_ab[..., :H], (0, 2, 1))                                # (B, H, N)
    b_dT = jnp.transpose(dst_ab[..., H:], (0, 2, 1))

    # ---- ground-truth geometry (tiny, XLA)
    src_gt = jnp.transpose(jnp.einsum("bij,bjm->bim", gt_R, src_xyz) + gt_T, (0, 2, 1))  # (B,M,3)
    dst_gt = dst_xyz_t                                                                   # (B,N,3)
    u_src = jnp.einsum("bmj,bji->bmi", src_gt, gt_R)          # R^T @ src_gt per point
    v_dst = jnp.einsum("bnj,bji->bni", dst_gt, gt_R)          # R^T @ dst_gt per point
    src_valid = (~src_padding_mask).astype(jnp.float32)[..., None]
    dst_valid = (~dst_padding_mask).astype(jnp.float32)[..., None]
    src_aux = jnp.concatenate([src_gt, u_src, src_valid,
                               jnp.zeros((B, M, 1), jnp.float32)], axis=-1)          # (B, M, 8)
    dst_aux = jnp.transpose(
        jnp.concatenate([dst_gt, v_dst, dst_valid,
                         jnp.zeros((B, N, 1), jnp.float32)], axis=-1), (0, 2, 1))    # (B, 8, N)
    w2b = jnp.concatenate([params["off_w2"], params["off_b2"]], axis=0)              # (H+1, 3)

    # ---- pairwise offset residuals (never builds the (B, M, N, 2D) concatenation)
    src_res_cf, dst_res_cf = pallas_pairwise_offset(
        w2b, a_s, b_s, a_dT, b_dT, src_aux, dst_aux, eps_offset ** 2)

    # TODO(synk): torch.nonzero yields a dynamically-sized (P, 3, 1) pair list; here the
    # residuals are returned densely as (B, M, N, 3) with non-pair entries masked to zero.
    src_offset_res = jnp.transpose(src_res_cf, (0, 2, 3, 1))
    dst_offset_res = jnp.transpose(dst_res_cf, (0, 2, 3, 1))

    return [
        jnp.transpose(src_pairing_fea, (0, 2, 1)),   # (B, D, M)
        jnp.transpose(dst_pairing_fea, (0, 2, 1)),   # (B, D, N)
        jnp.transpose(src_coarse, (0, 2, 1)),        # (B, Cin, M)
        jnp.transpose(dst_coarse, (0, 2, 1)),        # (B, Cin, N)
        src_offset_res,                              # (B, M, N, 3)
        dst_offset_res,                              # (B, M, N, 3)
    ]


# -----------------------------------------------------------------------------
# main
# -----------------------------------------------------------------------------
if __name__ == "__main__":
    B = 2
    IN_CHANNEL = 32          # decoder_cfg.in_channel
    MODEL_CHANNEL = 32       # decoder_cfg.model_channel
    ATTENTION_LAYERS = 2     # decoder_cfg.attention_layers
    EPS_OFFSET = 1.0         # args.loss.eps_offset
    M = N = 16               # number of descriptors per scan

    key = jax.random.PRNGKey(0)
    k_src, k_dst, k_t = jax.random.split(key, 3)
    src_descriptor = jax.random.normal(k_src, (B, IN_CHANNEL + 3, M), jnp.float32)
    dst_descriptor = jax.random.normal(k_dst, (B, IN_CHANNEL + 3, N), jnp.float32)

    # last two descriptors of every scan are padding
    src_padding_mask = jnp.tile((jnp.arange(M) >= M - 2)[None, :], (B, 1))
    dst_padding_mask = jnp.tile((jnp.arange(N) >= N - 2)[None, :], (B, 1))

    # deterministic ground-truth transforms (rotation about z + small translation)
    angles = jnp.array([0.1, -0.2], jnp.float32)
    c, s = jnp.cos(angles), jnp.sin(angles)
    gt_R = jnp.stack([
        jnp.stack([c, -s, jnp.zeros_like(c)], axis=-1),
        jnp.stack([s, c, jnp.zeros_like(c)], axis=-1),
        jnp.stack([jnp.zeros_like(c), jnp.zeros_like(c), jnp.ones_like(c)], axis=-1),
    ], axis=1)                                                   # (B, 3, 3)
    gt_T = 0.1 * jax.random.normal(k_t, (B, 3, 1), jnp.float32)

    params = init_params(jax.random.PRNGKey(42), IN_CHANNEL, MODEL_CHANNEL, ATTENTION_LAYERS)

    outs = decoder_train_forward(params, EPS_OFFSET, MODEL_CHANNEL,
                                 src_descriptor, dst_descriptor,
                                 src_padding_mask, dst_padding_mask, gt_R, gt_T)
    jax.block_until_ready(outs)

    expected_shapes = [(B, MODEL_CHANNEL, M), (B, MODEL_CHANNEL, N),
                       (B, IN_CHANNEL, M), (B, IN_CHANNEL, N),
                       (B, M, N, 3), (B, M, N, 3)]
    assert all(o.shape == es for o, es in zip(outs, expected_shapes))
    assert all(bool(jnp.all(jnp.isfinite(o))) for o in outs)
    print("KERNEL_OK")
</pallas_src>

<mosaic_0001>
module attributes {stable_mosaic.version = 11 : i64} {
  func.func @_head_linear_kernel(%arg0: i32, %arg1: memref<64x32xf32, #tpu.memory_space<vmem>>, %arg2: memref<32x32xf32, #tpu.memory_space<vmem>>, %arg3: memref<1x32xf32, #tpu.memory_space<vmem>>, %arg4: memref<32x32xf32, #tpu.memory_space<vmem>>, %arg5: memref<1x32xf32, #tpu.memory_space<vmem>>, %arg6: memref<32x32xf32, #tpu.memory_space<vmem>>, %arg7: memref<1x32xf32, #tpu.memory_space<vmem>>, %arg8: memref<64x32xf32, #tpu.memory_space<vmem>>, %arg9: memref<64x32xf32, #tpu.memory_space<vmem>>) attributes {dimension_semantics = [#tpu.dimension_semantics<parallel>], iteration_bounds = array<i64: 1>, scalar_prefetch = 0 : i64, scratch_operands = 0 : i64, tpu.core_type = #tpu.core_type<tc>, window_params = [{transform_indices = @transform_0, window_bounds = array<i64: 64, 32>}, {pipeline_mode = #tpu.pipeline_mode<synchronous>, transform_indices = @transform_1, window_bounds = array<i64: 32, 32>}, {pipeline_mode = #tpu.pipeline_mode<synchronous>, transform_indices = @transform_2, window_bounds = array<i64: 1, 32>}, {pipeline_mode = #tpu.pipeline_mode<synchronous>, transform_indices = @transform_3, window_bounds = array<i64: 32, 32>}, {pipeline_mode = #tpu.pipeline_mode<synchronous>, transform_indices = @transform_4, window_bounds = array<i64: 1, 32>}, {pipeline_mode = #tpu.pipeline_mode<synchronous>, transform_indices = @transform_5, window_bounds = array<i64: 32, 32>}, {pipeline_mode = #tpu.pipeline_mode<synchronous>, transform_indices = @transform_6, window_bounds = array<i64: 1, 32>}, {transform_indices = @transform_7, window_bounds = array<i64: 64, 32>}, {transform_indices = @transform_8, window_bounds = array<i64: 64, 32>}]} {
    %c0 = arith.constant 0 : index
    %c0_0 = arith.constant 0 : index
    %0 = vector.load %arg1[%c0, %c0_0] : memref<64x32xf32, #tpu.memory_space<vmem>>, vector<64x32xf32>
    %c0_1 = arith.constant 0 : index
    %c0_2 = arith.constant 0 : index
    %1 = vector.load %arg2[%c0_1, %c0_2] : memref<32x32xf32, #tpu.memory_space<vmem>>, vector<32x32xf32>
    %cst = arith.constant dense<0.000000e+00> : vector<64x32xf32>
    %2 = tpu.matmul %0, %1, %cst {dimension_numbers = #tpu.dot_dimension_numbers<[1], [0], [0], [1], [0, 0, 1, 1], [], []>} : vector<64x32xf32>, vector<32x32xf32>, vector<64x32xf32> -> vector<64x32xf32>
    %c0_3 = arith.constant 0 : index
    %c0_4 = arith.constant 0 : index
    %3 = vector.load %arg3[%c0_3, %c0_4] : memref<1x32xf32, #tpu.memory_space<vmem>>, vector<1x32xf32>
    %4 = vector.broadcast %3 : vector<1x32xf32> to vector<64x32xf32>
    %5 = arith.addf %2, %4 : vector<64x32xf32>
    %cst_5 = arith.constant 0.000000e+00 : f32
    %6 = vector.broadcast %cst_5 : f32 to vector<64x32xf32>
    %7 = arith.maximumf %5, %6 : vector<64x32xf32>
    %c0_6 = arith.constant 0 : index
    %c0_7 = arith.constant 0 : index
    %8 = vector.load %arg4[%c0_6, %c0_7] : memref<32x32xf32, #tpu.memory_space<vmem>>, vector<32x32xf32>
    %cst_8 = arith.constant dense<0.000000e+00> : vector<64x32xf32>
    %9 = tpu.matmul %7, %8, %cst_8 {dimension_numbers = #tpu.dot_dimension_numbers<[1], [0], [0], [1], [0, 0, 1, 1], [], []>} : vector<64x32xf32>, vector<32x32xf32>, vector<64x32xf32> -> vector<64x32xf32>
    %c0_9 = arith.constant 0 : index
    %c0_10 = arith.constant 0 : index
    %10 = vector.load %arg5[%c0_9, %c0_10] : memref<1x32xf32, #tpu.memory_space<vmem>>, vector<1x32xf32>
    %11 = vector.broadcast %10 : vector<1x32xf32> to vector<64x32xf32>
    %12 = arith.addf %9, %11 : vector<64x32xf32>
    %13 = arith.mulf %12, %12 : vector<64x32xf32>
    %cst_11 = arith.constant dense<0.000000e+00> : vector<64xf32>
    %14 = vector.multi_reduction <add>, %13, %cst_11 [1] : vector<64x32xf32> to vector<64xf32>
    %15 = vector.shape_cast %14 : vector<64xf32> to vector<64x1xf32>
    %cst_12 = arith.constant 1.000000e-24 : f32
    %16 = vector.broadcast %cst_12 : f32 to vector<64x1xf32>
    %17 = arith.maximumf %15, %16 : vector<64x1xf32>
    %18 = math.rsqrt %17 : vector<64x1xf32>
    %19 = vector.broadcast %18 : vector<64x1xf32> to vector<64x32xf32>
    %20 = arith.mulf %12, %19 : vector<64x32xf32>
    %c0_13 = arith.constant 0 : index
    %c0_14 = arith.constant 0 : index
    %21 = vector.load %arg8[%c0_13, %c0_14] : memref<64x32xf32, #tpu.memory_space<vmem>>, vector<64x32xf32>
    tpu.vector_store %arg8[%c0_13, %c0_14], %20 {strides = array<i32>} : memref<64x32xf32, #tpu.memory_space<vmem>>, vector<64x32xf32>,
    %c0_15 = arith.constant 0 : index
    %c0_16 = arith.constant 0 : index
    %22 = vector.load %arg6[%c0_15, %c0_16] : memref<32x32xf32, #tpu.memory_space<vmem>>, vector<32x32xf32>
    %cst_17 = arith.constant dense<0.000000e+00> : vector<64x32xf32>
    %23 = tpu.matmul %0, %22, %cst_17 {dimension_numbers = #tpu.dot_dimension_numbers<[1], [0], [0], [1], [0, 0, 1, 1], [], []>} : vector<64x32xf32>, vector<32x32xf32>, vector<64x32xf32> -> vector<64x32xf32>
    %c0_18 = arith.constant 0 : index
    %c0_19 = arith.constant 0 : index
    %24 = vector.load %arg7[%c0_18, %c0_19] : memref<1x32xf32, #tpu.memory_space<vmem>>, vector<1x32xf32>
    %25 = vector.broadcast %24 : vector<1x32xf32> to vector<64x32xf32>
    %26 = arith.addf %23, %25 : vector<64x32xf32>
    %c0_20 = arith.constant 0 : index
    %c0_21 = arith.constant 0 : index
    %27 = vector.load %arg9[%c0_20, %c0_21] : memref<64x32xf32, #tpu.memory_space<vmem>>, vector<64x32xf32>
    tpu.vector_store %arg9[%c0_20, %c0_21], %26 {strides = array<i32>} : memref<64x32xf32, #tpu.memory_space<vmem>>, vector<64x32xf32>,
    return
  }
  func.func @transform_0(%arg0: i32) -> (i32, i32) {
    %c0_i32 = arith.constant 0 : i32
    %c0_i32_0 = arith.constant 0 : i32
    return %arg0, %c0_i32 : i32, i32
  }
  func.func @transform_1(%arg0: i32) -> (i32, i32) {
    %c0_i32 = arith.constant 0 : i32
    %c0_i32_0 = arith.constant 0 : i32
    %c0_i32_1 = arith.constant 0 : i32
    return %c0_i32, %c0_i32_0 : i32, i32
  }
  func.func @transform_2(%arg0: i32) -> (i32, i32) {
    %c0_i32 = arith.constant 0 : i32
    %c0_i32_0 = arith.constant 0 : i32
    %c0_i32_1 = arith.constant 0 : i32
    return %c0_i32, %c0_i32_0 : i32, i32
  }
  func.func @transform_3(%arg0: i32) -> (i32, i32) {
    %c0_i32 = arith.constant 0 : i32
    %c0_i32_0 = arith.constant 0 : i32
    %c0_i32_1 = arith.constant 0 : i32
    return %c0_i32, %c0_i32_0 : i32, i32
  }
  func.func @transform_4(%arg0: i32) -> (i32, i32) {
    %c0_i32 = arith.constant 0 : i32
    %c0_i32_0 = arith.constant 0 : i32
    %c0_i32_1 = arith.constant 0 : i32
    return %c0_i32, %c0_i32_0 : i32, i32
  }
  func.func @transform_5(%arg0: i32) -> (i32, i32) {
    %c0_i32 = arith.constant 0 : i32
    %c0_i32_0 = arith.constant 0 : i32
    %c0_i32_1 = arith.constant 0 : i32
    return %c0_i32, %c0_i32_0 : i32, i32
  }
  func.func @transform_6(%arg0: i32) -> (i32, i32) {
    %c0_i32 = arith.constant 0 : i32
    %c0_i32_0 = arith.constant 0 : i32
    %c0_i32_1 = arith.constant 0 : i32
    return %c0_i32, %c0_i32_0 : i32, i32
  }
  func.func @transform_7(%arg0: i32) -> (i32, i32) {
    %c0_i32 = arith.constant 0 : i32
    %c0_i32_0 = arith.constant 0 : i32
    return %arg0, %c0_i32 : i32, i32
  }
  func.func @transform_8(%arg0: i32) -> (i32, i32) {
    %c0_i32 = arith.constant 0 : i32
    %c0_i32_0 = arith.constant 0 : i32
    return %arg0, %c0_i32 : i32, i32
  }
}

module attributes {stable_mosaic.version = 11 : i64} {
  func.func @_layer_kernel(%arg0: i32, %arg1: memref<1x16x32xf32, #tpu.memory_space<vmem>>, %arg2: memref<1x16x32xf32, #tpu.memory_space<vmem>>, %arg3: memref<1x16x32xf32, #tpu.memory_space<vmem>>, %arg4: memref<1x16x32xf32, #tpu.memory_space<vmem>>, %arg5: memref<1x1x16xf32, #tpu.memory_space<vmem>>, %arg6: memref<1x1x16xf32, #tpu.memory_space<vmem>>, %arg7: memref<32x64xf32, #tpu.memory_space<vmem>>, %arg8: memref<1x64xf32, #tpu.memory_space<vmem>>, %arg9: memref<32x32xf32, #tpu.memory_space<vmem>>, %arg10: memref<1x32xf32, #tpu.memory_space<vmem>>, %arg11: memref<32x32xf32, #tpu.memory_space<vmem>>, %arg12: memref<1x32xf32, #tpu.memory_space<vmem>>, %arg13: memref<32x64xf32, #tpu.memory_space<vmem>>, %arg14: memref<1x64xf32, #tpu.memory_space<vmem>>, %arg15: memref<32x32xf32, #tpu.memory_space<vmem>>, %arg16: memref<1x32xf32, #tpu.memory_space<vmem>>, %arg17: memref<32x32xf32, #tpu.memory_space<vmem>>, %arg18: memref<1x32xf32, #tpu.memory_space<vmem>>, %arg19: memref<32x64xf32, #tpu.memory_space<vmem>>, %arg20: memref<1x64xf32, #tpu.memory_space<vmem>>, %arg21: memref<64x32xf32, #tpu.memory_space<vmem>>, %arg22: memref<1x32xf32, #tpu.memory_space<vmem>>, %arg23: memref<6x32xf32, #tpu.memory_space<vmem>>, %arg24: memref<1x16x32xf32, #tpu.memory_space<vmem>>, %arg25: memref<1x16x32xf32, #tpu.memory_space<vmem>>) attributes {dimension_semantics = [#tpu.dimension_semantics<parallel>], iteration_bounds = array<i64: 2>, scalar_prefetch = 0 : i64, scratch_operands = 0 : i64, tpu.core_type = #tpu.core_type<tc>, window_params = [{transform_indices = @transform_0, window_bounds = array<i64: 1, 16, 32>}, {transform_indices = @transform_1, window_bounds = array<i64: 1, 16, 32>}, {transform_indices = @transform_2, window_bounds = array<i64: 1, 16, 32>}, {transform_indices = @transform_3, window_bounds = array<i64: 1, 16, 32>}, {transform_indices = @transform_4, window_bounds = array<i64: 1, 1, 16>}, {transform_indices = @transform_5, window_bounds = array<i64: 1, 1, 16>}, {pipeline_mode = #tpu.pipeline_mode<synchronous>, transform_indices = @transform_6, window_bounds = array<i64: 32, 64>}, {pipeline_mode = #tpu.pipeline_mode<synchronous>, transform_indices = @transform_7, window_bounds = array<i64: 1, 64>}, {pipeline_mode = #tpu.pipeline_mode<synchronous>, transform_indices = @transform_8, window_bounds = array<i64: 32, 32>}, {pipeline_mode = #tpu.pipeline_mode<synchronous>, transform_indices = @transform_9, window_bounds = array<i64: 1, 32>}, {pipeline_mode = #tpu.pipeline_mode<synchronous>, transform_indices = @transform_10, window_bounds = array<i64: 32, 32>}, {pipeline_mode = #tpu.pipeline_mode<synchronous>, transform_indices = @transform_11, window_bounds = array<i64: 1, 32>}, {pipeline_mode = #tpu.pipeline_mode<synchronous>, transform_indices = @transform_12, window_bounds = array<i64: 32, 64>}, {pipeline_mode = #tpu.pipeline_mode<synchronous>, transform_indices = @transform_13, window_bounds = array<i64: 1, 64>}, {pipeline_mode = #tpu.pipeline_mode<synchronous>, transform_indices = @transform_14, window_bounds = array<i64: 32, 32>}, {pipeline_mode = #tpu.pipeline_mode<synchronous>, transform_indices = @transform_15, window_bounds = array<i64: 1, 32>}, {pipeline_mode = #tpu.pipeline_mode<synchronous>, transform_indices = @transform_16, window_bounds = array<i64: 32, 32>}, {pipeline_mode = #tpu.pipeline_mode<synchronous>, transform_indices = @transform_17, window_bounds = array<i64: 1, 32>}, {pipeline_mode = #tpu.pipeline_mode<synchronous>, transform_indices = @transform_18, window_bounds = array<i64: 32, 64>}, {pipeline_mode = #tpu.pipeline_mode<synchronous>, transform_indices = @transform_19, window_bounds = array<i64: 1, 64>}, {pipeline_mode = #tpu.pipeline_mode<synchronous>, transform_indices = @transform_20, window_bounds = array<i64: 64, 32>}, {pipeline_mode = #tpu.pipeline_mode<synchronous>, transform_indices = @transform_21, window_bounds = array<i64: 1, 32>}, {pipeline_mode = #tpu.pipeline_mode<synchronous>, transform_indices = @transform_22, window_bounds = array<i64: 6, 32>}, {transform_indices = @transform_23, window_bounds = array<i64: 1, 16, 32>}, {transform_indices = @transform_24, window_bounds = array<i64: 1, 16, 32>}]} {
    %c0 = arith.constant 0 : index
    %c0_0 = arith.constant 0 : index
    %c0_1 = arith.constant 0 : index
    %0 = vector.load %arg1[%c0, %c0_0, %c0_1] : memref<1x16x32xf32, #tpu.memory_space<vmem>>, vector<1x16x32xf32>
    %1 = vector.shape_cast %0 : vector<1x16x32xf32> to vector<16x32xf32>
    %c0_2 = arith.constant 0 : index
    %c0_3 = arith.constant 0 : index
    %c0_4 = arith.constant 0 : index
    %2 = vector.load %arg2[%c0_2, %c0_3, %c0_4] : memref<1x16x32xf32, #tpu.memory_space<vmem>>, vector<1x16x32xf32>
    %3 = vector.shape_cast %2 : vector<1x16x32xf32> to vector<16x32xf32>
    %c0_5 = arith.constant 0 : index
    %c0_6 = arith.constant 0 : index
    %c0_7 = arith.constant 0 : index
    %4 = vector.load %arg3[%c0_5, %c0_6, %c0_7] : memref<1x16x32xf32, #tpu.memory_space<vmem>>, vector<1x16x32xf32>
    %5 = vector.shape_cast %4 : vector<1x16x32xf32> to vector<16x32xf32>
    %c0_8 = arith.constant 0 : index
    %c0_9 = arith.constant 0 : index
    %c0_10 = arith.constant 0 : index
    %6 = vector.load %arg4[%c0_8, %c0_9, %c0_10] : memref<1x16x32xf32, #tpu.memory_space<vmem>>, vector<1x16x32xf32>
    %7 = vector.shape_cast %6 : vector<1x16x32xf32> to vector<16x32xf32>
    %c0_11 = arith.constant 0 : index
    %c0_12 = arith.constant 0 : index
    %c0_13 = arith.constant 0 : index
    %8 = vector.load %arg5[%c0_11, %c0_12, %c0_13] : memref<1x1x16xf32, #tpu.memory_space<vmem>>, vector<1x1x16xf32>
    %9 = vector.shape_cast %8 : vector<1x1x16xf32> to vector<1x16xf32>
    %c0_14 = arith.constant 0 : index
    %c0_15 = arith.constant 0 : index
    %c0_16 = arith.constant 0 : index
    %10 = vector.load %arg6[%c0_14, %c0_15, %c0_16] : memref<1x1x16xf32, #tpu.memory_space<vmem>>, vector<1x1x16xf32>
    %11 = vector.shape_cast %10 : vector<1x1x16xf32> to vector<1x16xf32>
    %c0_17 = arith.constant 0 : index
    %c0_18 = arith.constant 0 : index
    %12 = vector.load %arg23[%c0_17, %c0_18] : memref<6x32xf32, #tpu.memory_space<vmem>>, vector<6x32xf32>
    %c0_19 = arith.constant 0 : index
    %c0_20 = arith.constant 0 : index
    %13 = vector.load %arg7[%c0_19, %c0_20] : memref<32x64xf32, #tpu.memory_space<vmem>>, vector<32x64xf32>
    %c0_21 = arith.constant 0 : index
    %c0_22 = arith.constant 0 : index
    %14 = vector.load %arg8[%c0_21, %c0_22] : memref<1x64xf32, #tpu.memory_space<vmem>>, vector<1x64xf32>
    %c0_23 = arith.constant 0 : index
    %c0_24 = arith.constant 0 : index
    %15 = vector.load %arg9[%c0_23, %c0_24] : memref<32x32xf32, #tpu.memory_space<vmem>>, vector<32x32xf32>
    %c0_25 = arith.constant 0 : index
    %c0_26 = arith.constant 0 : index
    %16 = vector.load %arg10[%c0_25, %c0_26] : memref<1x32xf32, #tpu.memory_space<vmem>>, vector<1x32xf32>
    %c0_27 = arith.constant 0 : index
    %c0_28 = arith.constant 0 : index
    %17 = vector.load %arg11[%c0_27, %c0_28] : memref<32x32xf32, #tpu.memory_space<vmem>>, vector<32x32xf32>
    %c0_29 = arith.constant 0 : index
    %c0_30 = arith.constant 0 : index
    %18 = vector.load %arg12[%c0_29, %c0_30] : memref<1x32xf32, #tpu.memory_space<vmem>>, vector<1x32xf32>
    %19 = arith.addf %1, %5 : vector<16x32xf32>
    %20 = arith.addf %3, %7 : vector<16x32xf32>
    %cst = arith.constant dense<0.000000e+00> : vector<16x64xf32>
    %21 = tpu.matmul %19, %13, %cst {dimension_numbers = #tpu.dot_dimension_numbers<[1], [0], [0], [1], [0, 0, 1, 1], [], []>} : vector<16x32xf32>, vector<32x64xf32>, vector<16x64xf32> -> vector<16x64xf32>
    %22 = vector.broadcast %14 : vector<1x64xf32> to vector<16x64xf32>
    %23 = arith.addf %21, %22 : vector<16x64xf32>
    %cst_31 = arith.constant dense<0.000000e+00> : vector<16x64xf32>
    %24 = tpu.matmul %20, %13, %cst_31 {dimension_numbers = #tpu.dot_dimension_numbers<[1], [0], [0], [1], [0, 0, 1, 1], [], []>} : vector<16x32xf32>, vector<32x64xf32>, vector<16x64xf32> -> vector<16x64xf32>
    %25 = vector.broadcast %14 : vector<1x64xf32> to vector<16x64xf32>
    %26 = arith.addf %24, %25 : vector<16x64xf32>
    %cst_32 = arith.constant dense<0.000000e+00> : vector<16x32xf32>
    %27 = tpu.matmul %1, %15, %cst_32 {dimension_numbers = #tpu.dot_dimension_numbers<[1], [0], [0], [1], [0, 0, 1, 1], [], []>} : vector<16x32xf32>, vector<32x32xf32>, vector<16x32xf32> -> vector<16x32xf32>
    %28 = vector.broadcast %16 : vector<1x32xf32> to vector<16x32xf32>
    %29 = arith.addf %27, %28 : vector<16x32xf32>
    %cst_33 = arith.constant dense<0.000000e+00> : vector<16x32xf32>
    %30 = tpu.matmul %3, %15, %cst_33 {dimension_numbers = #tpu.dot_dimension_numbers<[1], [0], [0], [1], [0, 0, 1, 1], [], []>} : vector<16x32xf32>, vector<32x32xf32>, vector<16x32xf32> -> vector<16x32xf32>
    %31 = vector.broadcast %16 : vector<1x32xf32> to vector<16x32xf32>
    %32 = arith.addf %30, %31 : vector<16x32xf32>
    %33 = vector.extract_strided_slice %23 {offsets = [0, 0], sizes = [16, 32], strides = [1, 1]} : vector<16x64xf32> to vector<16x32xf32>
    %34 = vector.extract_strided_slice %23 {offsets = [0, 32], sizes = [16, 32], strides = [1, 1]} : vector<16x64xf32> to vector<16x32xf32>
    %35 = tpu.transpose %34, [1, 0] : vector<16x32xf32> -> vector<32x16xf32>
    %cst_34 = arith.constant dense<0.000000e+00> : vector<16x16xf32>
    %36 = tpu.matmul %33, %35, %cst_34 {dimension_numbers = #tpu.dot_dimension_numbers<[1], [0], [0], [1], [0, 0, 1, 1], [], []>} : vector<16x32xf32>, vector<32x16xf32>, vector<16x16xf32> -> vector<16x16xf32>
    %cst_35 = arith.constant 0.176776692 : f32
    %37 = vector.broadcast %cst_35 : f32 to vector<16x16xf32>
    %38 = arith.mulf %36, %37 : vector<16x16xf32>
    %39 = vector.broadcast %9 : vector<1x16xf32> to vector<16x16xf32>
    %40 = arith.addf %38, %39 : vector<16x16xf32>
    %cst_36 = arith.constant dense<0xFF800000> : vector<16xf32>
    %41 = vector.multi_reduction <maximumf>, %40, %cst_36 [1] : vector<16x16xf32> to vector<16xf32>
    %42 = vector.shape_cast %41 : vector<16xf32> to vector<16x1xf32>
    %43 = vector.broadcast %42 : vector<16x1xf32> to vector<16x16xf32>
    %44 = arith.subf %40, %43 : vector<16x16xf32>
    %45 = math.exp %44 : vector<16x16xf32>
    %cst_37 = arith.constant dense<0.000000e+00> : vector<16xf32>
    %46 = vector.multi_reduction <add>, %45, %cst_37 [1] : vector<16x16xf32> to vector<16xf32>
    %47 = vector.shape_cast %46 : vector<16xf32> to vector<16x1xf32>
    %48 = tpu.reciprocal %47 {approx = true} : vector<16x1xf32> -> vector<16x1xf32>
    %49 = vector.broadcast %48 : vector<16x1xf32> to vector<16x16xf32>
    %50 = arith.mulf %45, %49 : vector<16x16xf32>
    %cst_38 = arith.constant dense<0.000000e+00> : vector<16x32xf32>
    %51 = tpu.matmul %50, %29, %cst_38 {dimension_numbers = #tpu.dot_dimension_numbers<[1], [0], [0], [1], [0, 0, 1, 1], [], []>} : vector<16x16xf32>, vector<16x32xf32>, vector<16x32xf32> -> vector<16x32xf32>
    %52 = vector.extract_strided_slice %26 {offsets = [0, 0], sizes = [16, 32], strides = [1, 1]} : vector<16x64xf32> to vector<16x32xf32>
    %53 = vector.extract_strided_slice %26 {offsets = [0, 32], sizes = [16, 32], strides = [1, 1]} : vector<16x64xf32> to vector<16x32xf32>
    %54 = tpu.transpose %53, [1, 0] : vector<16x32xf32> -> vector<32x16xf32>
    %cst_39 = arith.constant dense<0.000000e+00> : vector<16x16xf32>
    %55 = tpu.matmul %52, %54, %cst_39 {dimension_numbers = #tpu.dot_dimension_numbers<[1], [0], [0], [1], [0, 0, 1, 1], [], []>} : vector<16x32xf32>, vector<32x16xf32>, vector<16x16xf32> -> vector<16x16xf32>
    %cst_40 = arith.constant 0.176776692 : f32
    %56 = vector.broadcast %cst_40 : f32 to vector<16x16xf32>
    %57 = arith.mulf %55, %56 : vector<16x16xf32>
    %58 = vector.broadcast %11 : vector<1x16xf32> to vector<16x16xf32>
    %59 = arith.addf %57, %58 : vector<16x16xf32>
    %cst_41 = arith.constant dense<0xFF800000> : vector<16xf32>
    %60 = vector.multi_reduction <maximumf>, %59, %cst_41 [1] : vector<16x16xf32> to vector<16xf32>
    %61 = vector.shape_cast %60 : vector<16xf32> to vector<16x1xf32>
    %62 = vector.broadcast %61 : vector<16x1xf32> to vector<16x16xf32>
    %63 = arith.subf %59, %62 : vector<16x16xf32>
    %64 = math.exp %63 : vector<16x16xf32>
    %cst_42 = arith.constant dense<0.000000e+00> : vector<16xf32>
    %65 = vector.multi_reduction <add>, %64, %cst_42 [1] : vector<16x16xf32> to vector<16xf32>
    %66 = vector.shape_cast %65 : vector<16xf32> to vector<16x1xf32>
    %67 = tpu.reciprocal %66 {approx = true} : vector<16x1xf32> -> vector<16x1xf32>
    %68 = vector.broadcast %67 : vector<16x1xf32> to vector<16x16xf32>
    %69 = arith.mulf %64, %68 : vector<16x16xf32>
    %cst_43 = arith.constant dense<0.000000e+00> : vector<16x32xf32>
    %70 = tpu.matmul %69, %32, %cst_43 {dimension_numbers = #tpu.dot_dimension_numbers<[1], [0], [0], [1], [0, 0, 1, 1], [], []>} : vector<16x16xf32>, vector<16x32xf32>, vector<16x32xf32> -> vector<16x32xf32>
    %cst_44 = arith.constant dense<0.000000e+00> : vector<16x32xf32>
    %71 = tpu.matmul %51, %17, %cst_44 {dimension_numbers = #tpu.dot_dimension_numbers<[1], [0], [0], [1], [0, 0, 1, 1], [], []>} : vector<16x32xf32>, vector<32x32xf32>, vector<16x32xf32> -> vector<16x32xf32>
    %72 = vector.broadcast %18 : vector<1x32xf32> to vector<16x32xf32>
    %73 = arith.addf %71, %72 : vector<16x32xf32>
    %cst_45 = arith.constant dense<0.000000e+00> : vector<16x32xf32>
    %74 = tpu.matmul %70, %17, %cst_45 {dimension_numbers = #tpu.dot_dimension_numbers<[1], [0], [0], [1], [0, 0, 1, 1], [], []>} : vector<16x32xf32>, vector<32x32xf32>, vector<16x32xf32> -> vector<16x32xf32>
    %75 = vector.broadcast %18 : vector<1x32xf32> to vector<16x32xf32>
    %76 = arith.addf %74, %75 : vector<16x32xf32>
    %77 = arith.addf %1, %73 : vector<16x32xf32>
    %78 = vector.extract_strided_slice %12 {offsets = [0, 0], sizes = [1, 32], strides = [1, 1]} : vector<6x32xf32> to vector<1x32xf32>
    %79 = vector.extract_strided_slice %12 {offsets = [1, 0], sizes = [1, 32], strides = [1, 1]} : vector<6x32xf32> to vector<1x32xf32>
    %cst_46 = arith.constant dense<0.000000e+00> : vector<16xf32>
    %80 = vector.multi_reduction <add>, %77, %cst_46 [1] : vector<16x32xf32> to vector<16xf32>
    %81 = vector.shape_cast %80 : vector<16xf32> to vector<16x1xf32>
    %cst_47 = arith.constant 3.200000e+01 : f32
    %82 = vector.broadcast %cst_47 : f32 to vector<16x1xf32>
    %83 = arith.divf %81, %82 : vector<16x1xf32>
    %84 = vector.broadcast %83 : vector<16x1xf32> to vector<16x32xf32>
    %85 = arith.subf %77, %84 : vector<16x32xf32>
    %86 = arith.mulf %85, %85 : vector<16x32xf32>
    %cst_48 = arith.constant dense<0.000000e+00> : vector<16xf32>
    %87 = vector.multi_reduction <add>, %86, %cst_48 [1] : vector<16x32xf32> to vector<16xf32>
    %88 = vector.shape_cast %87 : vector<16xf32> to vector<16x1xf32>
    %cst_49 = arith.constant 3.200000e+01 : f32
    %89 = vector.broadcast %cst_49 : f32 to vector<16x1xf32>
    %90 = arith.divf %88, %89 : vector<16x1xf32>
    %cst_50 = arith.constant 9.99999974E-6 : f32
    %91 = vector.broadcast %cst_50 : f32 to vector<16x1xf32>
    %92 = arith.addf %90, %91 : vector<16x1xf32>
    %93 = math.rsqrt %92 : vector<16x1xf32>
    %94 = vector.broadcast %93 : vector<16x1xf32> to vector<16x32xf32>
    %95 = arith.mulf %85, %94 : vector<16x32xf32>
    %96 = vector.broadcast %78 : vector<1x32xf32> to vector<16x32xf32>
    %97 = arith.mulf %95, %96 : vector<16x32xf32>
    %98 = vector.broadcast %79 : vector<1x32xf32> to vector<16x32xf32>
    %99 = arith.addf %97, %98 : vector<16x32xf32>
    %100 = arith.addf %3, %76 : vector<16x32xf32>
    %101 = vector.extract_strided_slice %12 {offsets = [0, 0], sizes = [1, 32], strides = [1, 1]} : vector<6x32xf32> to vector<1x32xf32>
    %102 = vector.extract_strided_slice %12 {offsets = [1, 0], sizes = [1, 32], strides = [1, 1]} : vector<6x32xf32> to vector<1x32xf32>
    %cst_51 = arith.constant dense<0.000000e+00> : vector<16xf32>
    %103 = vector.multi_reduction <add>, %100, %cst_51 [1] : vector<16x32xf32> to vector<16xf32>
    %104 = vector.shape_cast %103 : vector<16xf32> to vector<16x1xf32>
    %cst_52 = arith.constant 3.200000e+01 : f32
    %105 = vector.broadcast %cst_52 : f32 to vector<16x1xf32>
    %106 = arith.divf %104, %105 : vector<16x1xf32>
    %107 = vector.broadcast %106 : vector<16x1xf32> to vector<16x32xf32>
    %108 = arith.subf %100, %107 : vector<16x32xf32>
    %109 = arith.mulf %108, %108 : vector<16x32xf32>
    %cst_53 = arith.constant dense<0.000000e+00> : vector<16xf32>
    %110 = vector.multi_reduction <add>, %109, %cst_53 [1] : vector<16x32xf32> to vector<16xf32>
    %111 = vector.shape_cast %110 : vector<16xf32> to vector<16x1xf32>
    %cst_54 = arith.constant 3.200000e+01 : f32
    %112 = vector.broadcast %cst_54 : f32 to vector<16x1xf32>
    %113 = arith.divf %111, %112 : vector<16x1xf32>
    %cst_55 = arith.constant 9.99999974E-6 : f32
    %114 = vector.broadcast %cst_55 : f32 to vector<16x1xf32>
    %115 = arith.addf %113, %114 : vector<16x1xf32>
    %116 = math.rsqrt %115 : vector<16x1xf32>
    %117 = vector.broadcast %116 : vector<16x1xf32> to vector<16x32xf32>
    %118 = arith.mulf %108, %117 : vector<16x32xf32>
    %119 = vector.broadcast %101 : vector<1x32xf32> to vector<16x32xf32>
    %120 = arith.mulf %118, %119 : vector<16x32xf32>
    %121 = vector.broadcast %102 : vector<1x32xf32> to vector<16x32xf32>
    %122 = arith.addf %120, %121 : vector<16x32xf32>
    %c0_56 = arith.constant 0 : index
    %c0_57 = arith.constant 0 : index
    %123 = vector.load %arg13[%c0_56, %c0_57] : memref<32x64xf32, #tpu.memory_space<vmem>>, vector<32x64xf32>
    %c0_58 = arith.constant 0 : index
    %c0_59 = arith.constant 0 : index
    %124 = vector.load %arg14[%c0_58, %c0_59] : memref<1x64xf32, #tpu.memory_space<vmem>>, vector<1x64xf32>
    %c0_60 = arith.constant 0 : index
    %c0_61 = arith.constant 0 : index
    %125 = vector.load %arg15[%c0_60, %c0_61] : memref<32x32xf32, #tpu.memory_space<vmem>>, vector<32x32xf32>
    %c0_62 = arith.constant 0 : index
    %c0_63 = arith.constant 0 : index
    %126 = vector.load %arg16[%c0_62, %c0_63] : memref<1x32xf32, #tpu.memory_space<vmem>>, vector<1x32xf32>
    %c0_64 = arith.constant 0 : index
    %c0_65 = arith.constant 0 : index
    %127 = vector.load %arg17[%c0_64, %c0_65] : memref<32x32xf32, #tpu.memory_space<vmem>>, vector<32x32xf32>
    %c0_66 = arith.constant 0 : index
    %c0_67 = arith.constant 0 : index
    %128 = vector.load %arg18[%c0_66, %c0_67] : memref<1x32xf32, #tpu.memory_space<vmem>>, vector<1x32xf32>
    %129 = arith.addf %99, %5 : vector<16x32xf32>
    %130 = arith.addf %122, %7 : vector<16x32xf32>
    %cst_68 = arith.constant dense<0.000000e+00> : vector<16x64xf32>
    %131 = tpu.matmul %129, %123, %cst_68 {dimension_numbers = #tpu.dot_dimension_numbers<[1], [0], [0], [1], [0, 0, 1, 1], [], []>} : vector<16x32xf32>, vector<32x64xf32>, vector<16x64xf32> -> vector<16x64xf32>
    %132 = vector.broadcast %124 : vector<1x64xf32> to vector<16x64xf32>
    %133 = arith.addf %131, %132 : vector<16x64xf32>
    %cst_69 = arith.constant dense<0.000000e+00> : vector<16x64xf32>
    %134 = tpu.matmul %130, %123, %cst_69 {dimension_numbers = #tpu.dot_dimension_numbers<[1], [0], [0], [1], [0, 0, 1, 1], [], []>} : vector<16x32xf32>, vector<32x64xf32>, vector<16x64xf32> -> vector<16x64xf32>
    %135 = vector.broadcast %124 : vector<1x64xf32> to vector<16x64xf32>
    %136 = arith.addf %134, %135 : vector<16x64xf32>
    %cst_70 = arith.constant dense<0.000000e+00> : vector<16x32xf32>
    %137 = tpu.matmul %99, %125, %cst_70 {dimension_numbers = #tpu.dot_dimension_numbers<[1], [0], [0], [1], [0, 0, 1, 1], [], []>} : vector<16x32xf32>, vector<32x32xf32>, vector<16x32xf32> -> vector<16x32xf32>
    %138 = vector.broadcast %126 : vector<1x32xf32> to vector<16x32xf32>
    %139 = arith.addf %137, %138 : vector<16x32xf32>
    %cst_71 = arith.constant dense<0.000000e+00> : vector<16x32xf32>
    %140 = tpu.matmul %122, %125, %cst_71 {dimension_numbers = #tpu.dot_dimension_numbers<[1], [0], [0], [1], [0, 0, 1, 1], [], []>} : vector<16x32xf32>, vector<32x32xf32>, vector<16x32xf32> -> vector<16x32xf32>
    %141 = vector.broadcast %126 : vector<1x32xf32> to vector<16x32xf32>
    %142 = arith.addf %140, %141 : vector<16x32xf32>
    %143 = vector.extract_strided_slice %133 {offsets = [0, 0], sizes = [16, 32], strides = [1, 1]} : vector<16x64xf32> to vector<16x32xf32>
    %144 = vector.extract_strided_slice %136 {offsets = [0, 32], sizes = [16, 32], strides = [1, 1]} : vector<16x64xf32> to vector<16x32xf32>
    %145 = tpu.transpose %144, [1, 0] : vector<16x32xf32> -> vector<32x16xf32>
    %cst_72 = arith.constant dense<0.000000e+00> : vector<16x16xf32>
    %146 = tpu.matmul %143, %145, %cst_72 {dimension_numbers = #tpu.dot_dimension_numbers<[1], [0], [0], [1], [0, 0, 1, 1], [], []>} : vector<16x32xf32>, vector<32x16xf32>, vector<16x16xf32> -> vector<16x16xf32>
    %cst_73 = arith.constant 0.176776692 : f32
    %147 = vector.broadcast %cst_73 : f32 to vector<16x16xf32>
    %148 = arith.mulf %146, %147 : vector<16x16xf32>
    %149 = vector.broadcast %11 : vector<1x16xf32> to vector<16x16xf32>
    %150 = arith.addf %148, %149 : vector<16x16xf32>
    %cst_74 = arith.constant dense<0xFF800000> : vector<16xf32>
    %151 = vector.multi_reduction <maximumf>, %150, %cst_74 [1] : vector<16x16xf32> to vector<16xf32>
    %152 = vector.shape_cast %151 : vector<16xf32> to vector<16x1xf32>
    %153 = vector.broadcast %152 : vector<16x1xf32> to vector<16x16xf32>
    %154 = arith.subf %150, %153 : vector<16x16xf32>
    %155 = math.exp %154 : vector<16x16xf32>
    %cst_75 = arith.constant dense<0.000000e+00> : vector<16xf32>
    %156 = vector.multi_reduction <add>, %155, %cst_75 [1] : vector<16x16xf32> to vector<16xf32>
    %157 = vector.shape_cast %156 : vector<16xf32> to vector<16x1xf32>
    %158 = tpu.reciprocal %157 {approx = true} : vector<16x1xf32> -> vector<16x1xf32>
    %159 = vector.broadcast %158 : vector<16x1xf32> to vector<16x16xf32>
    %160 = arith.mulf %155, %159 : vector<16x16xf32>
    %cst_76 = arith.constant dense<0.000000e+00> : vector<16x32xf32>
    %161 = tpu.matmul %160, %142, %cst_76 {dimension_numbers = #tpu.dot_dimension_numbers<[1], [0], [0], [1], [0, 0, 1, 1], [], []>} : vector<16x16xf32>, vector<16x32xf32>, vector<16x32xf32> -> vector<16x32xf32>
    %162 = vector.extract_strided_slice %136 {offsets = [0, 0], sizes = [16, 32], strides = [1, 1]} : vector<16x64xf32> to vector<16x32xf32>
    %163 = vector.extract_strided_slice %133 {offsets = [0, 32], sizes = [16, 32], strides = [1, 1]} : vector<16x64xf32> to vector<16x32xf32>
    %164 = tpu.transpose %163, [1, 0] : vector<16x32xf32> -> vector<32x16xf32>
    %cst_77 = arith.constant dense<0.000000e+00> : vector<16x16xf32>
    %165 = tpu.matmul %162, %164, %cst_77 {dimension_numbers = #tpu.dot_dimension_numbers<[1], [0], [0], [1], [0, 0, 1, 1], [], []>} : vector<16x32xf32>, vector<32x16xf32>, vector<16x16xf32> -> vector<16x16xf32>
    %cst_78 = arith.constant 0.176776692 : f32
    %166 = vector.broadcast %cst_78 : f32 to vector<16x16xf32>
    %167 = arith.mulf %165, %166 : vector<16x16xf32>
    %168 = vector.broadcast %9 : vector<1x16xf32> to vector<16x16xf32>
    %169 = arith.addf %167, %168 : vector<16x16xf32>
    %cst_79 = arith.constant dense<0xFF800000> : vector<16xf32>
    %170 = vector.multi_reduction <maximumf>, %169, %cst_79 [1] : vector<16x16xf32> to vector<16xf32>
    %171 = vector.shape_cast %170 : vector<16xf32> to vector<16x1xf32>
    %172 = vector.broadcast %171 : vector<16x1xf32> to vector<16x16xf32>
    %173 = arith.subf %169, %172 : vector<16x16xf32>
    %174 = math.exp %173 : vector<16x16xf32>
    %cst_80 = arith.constant dense<0.000000e+00> : vector<16xf32>
    %175 = vector.multi_reduction <add>, %174, %cst_80 [1] : vector<16x16xf32> to vector<16xf32>
    %176 = vector.shape_cast %175 : vector<16xf32> to vector<16x1xf32>
    %177 = tpu.reciprocal %176 {approx = true} : vector<16x1xf32> -> vector<16x1xf32>
    %178 = vector.broadcast %177 : vector<16x1xf32> to vector<16x16xf32>
    %179 = arith.mulf %174, %178 : vector<16x16xf32>
    %cst_81 = arith.constant dense<0.000000e+00> : vector<16x32xf32>
    %180 = tpu.matmul %179, %139, %cst_81 {dimension_numbers = #tpu.dot_dimension_numbers<[1], [0], [0], [1], [0, 0, 1, 1], [], []>} : vector<16x16xf32>, vector<16x32xf32>, vector<16x32xf32> -> vector<16x32xf32>
    %cst_82 = arith.constant dense<0.000000e+00> : vector<16x32xf32>
    %181 = tpu.matmul %161, %127, %cst_82 {dimension_numbers = #tpu.dot_dimension_numbers<[1], [0], [0], [1], [0, 0, 1, 1], [], []>} : vector<16x32xf32>, vector<32x32xf32>, vector<16x32xf32> -> vector<16x32xf32>
    %182 = vector.broadcast %128 : vector<1x32xf32> to vector<16x32xf32>
    %183 = arith.addf %181, %182 : vector<16x32xf32>
    %cst_83 = arith.constant dense<0.000000e+00> : vector<16x32xf32>
    %184 = tpu.matmul %180, %127, %cst_83 {dimension_numbers = #tpu.dot_dimension_numbers<[1], [0], [0], [1], [0, 0, 1, 1], [], []>} : vector<16x32xf32>, vector<32x32xf32>, vector<16x32xf32> -> vector<16x32xf32>
    %185 = vector.broadcast %128 : vector<1x32xf32> to vector<16x32xf32>
    %186 = arith.addf %184, %185 : vector<16x32xf32>
    %187 = arith.addf %99, %183 : vector<16x32xf32>
    %188 = vector.extract_strided_slice %12 {offsets = [2, 0], sizes = [1, 32], strides = [1, 1]} : vector<6x32xf32> to vector<1x32xf32>
    %189 = vector.extract_strided_slice %12 {offsets = [3, 0], sizes = [1, 32], strides = [1, 1]} : vector<6x32xf32> to vector<1x32xf32>
    %cst_84 = arith.constant dense<0.000000e+00> : vector<16xf32>
    %190 = vector.multi_reduction <add>, %187, %cst_84 [1] : vector<16x32xf32> to vector<16xf32>
    %191 = vector.shape_cast %190 : vector<16xf32> to vector<16x1xf32>
    %cst_85 = arith.constant 3.200000e+01 : f32
    %192 = vector.broadcast %cst_85 : f32 to vector<16x1xf32>
    %193 = arith.divf %191, %192 : vector<16x1xf32>
    %194 = vector.broadcast %193 : vector<16x1xf32> to vector<16x32xf32>
    %195 = arith.subf %187, %194 : vector<16x32xf32>
    %196 = arith.mulf %195, %195 : vector<16x32xf32>
    %cst_86 = arith.constant dense<0.000000e+00> : vector<16xf32>
    %197 = vector.multi_reduction <add>, %196, %cst_86 [1] : vector<16x32xf32> to vector<16xf32>
    %198 = vector.shape_cast %197 : vector<16xf32> to vector<16x1xf32>
    %cst_87 = arith.constant 3.200000e+01 : f32
    %199 = vector.broadcast %cst_87 : f32 to vector<16x1xf32>
    %200 = arith.divf %198, %199 : vector<16x1xf32>
    %cst_88 = arith.constant 9.99999974E-6 : f32
    %201 = vector.broadcast %cst_88 : f32 to vector<16x1xf32>
    %202 = arith.addf %200, %201 : vector<16x1xf32>
    %203 = math.rsqrt %202 : vector<16x1xf32>
    %204 = vector.broadcast %203 : vector<16x1xf32> to vector<16x32xf32>
    %205 = arith.mulf %195, %204 : vector<16x32xf32>
    %206 = vector.broadcast %188 : vector<1x32xf32> to vector<16x32xf32>
    %207 = arith.mulf %205, %206 : vector<16x32xf32>
    %208 = vector.broadcast %189 : vector<1x32xf32> to vector<16x32xf32>
    %209 = arith.addf %207, %208 : vector<16x32xf32>
    %210 = arith.addf %122, %186 : vector<16x32xf32>
    %211 = vector.extract_strided_slice %12 {offsets = [2, 0], sizes = [1, 32], strides = [1, 1]} : vector<6x32xf32> to vector<1x32xf32>
    %212 = vector.extract_strided_slice %12 {offsets = [3, 0], sizes = [1, 32], strides = [1, 1]} : vector<6x32xf32> to vector<1x32xf32>
    %cst_89 = arith.constant dense<0.000000e+00> : vector<16xf32>
    %213 = vector.multi_reduction <add>, %210, %cst_89 [1] : vector<16x32xf32> to vector<16xf32>
    %214 = vector.shape_cast %213 : vector<16xf32> to vector<16x1xf32>
    %cst_90 = arith.constant 3.200000e+01 : f32
    %215 = vector.broadcast %cst_90 : f32 to vector<16x1xf32>
    %216 = arith.divf %214, %215 : vector<16x1xf32>
    %217 = vector.broadcast %216 : vector<16x1xf32> to vector<16x32xf32>
    %218 = arith.subf %210, %217 : vector<16x32xf32>
    %219 = arith.mulf %218, %218 : vector<16x32xf32>
    %cst_91 = arith.constant dense<0.000000e+00> : vector<16xf32>
    %220 = vector.multi_reduction <add>, %219, %cst_91 [1] : vector<16x32xf32> to vector<16xf32>
    %221 = vector.shape_cast %220 : vector<16xf32> to vector<16x1xf32>
    %cst_92 = arith.constant 3.200000e+01 : f32
    %222 = vector.broadcast %cst_92 : f32 to vector<16x1xf32>
    %223 = arith.divf %221, %222 : vector<16x1xf32>
    %cst_93 = arith.constant 9.99999974E-6 : f32
    %224 = vector.broadcast %cst_93 : f32 to vector<16x1xf32>
    %225 = arith.addf %223, %224 : vector<16x1xf32>
    %226 = math.rsqrt %225 : vector<16x1xf32>
    %227 = vector.broadcast %226 : vector<16x1xf32> to vector<16x32xf32>
    %228 = arith.mulf %218, %227 : vector<16x32xf32>
    %229 = vector.broadcast %211 : vector<1x32xf32> to vector<16x32xf32>
    %230 = arith.mulf %228, %229 : vector<16x32xf32>
    %231 = vector.broadcast %212 : vector<1x32xf32> to vector<16x32xf32>
    %232 = arith.addf %230, %231 : vector<16x32xf32>
    %c0_94 = arith.constant 0 : index
    %c0_95 = arith.constant 0 : index
    %233 = vector.load %arg19[%c0_94, %c0_95] : memref<32x64xf32, #tpu.memory_space<vmem>>, vector<32x64xf32>
    %c0_96 = arith.constant 0 : index
    %c0_97 = arith.constant 0 : index
    %234 = vector.load %arg20[%c0_96, %c0_97] : memref<1x64xf32, #tpu.memory_space<vmem>>, vector<1x64xf32>
    %c0_98 = arith.constant 0 : index
    %c0_99 = arith.constant 0 : index
    %235 = vector.load %arg21[%c0_98, %c0_99] : memref<64x32xf32, #tpu.memory_space<vmem>>, vector<64x32xf32>
    %c0_100 = arith.constant 0 : index
    %c0_101 = arith.constant 0 : index
    %236 = vector.load %arg22[%c0_100, %c0_101] : memref<1x32xf32, #tpu.memory_space<vmem>>, vector<1x32xf32>
    %cst_102 = arith.constant dense<0.000000e+00> : vector<16x64xf32>
    %237 = tpu.matmul %209, %233, %cst_102 {dimension_numbers = #tpu.dot_dimension_numbers<[1], [0], [0], [1], [0, 0, 1, 1], [], []>} : vector<16x32xf32>, vector<32x64xf32>, vector<16x64xf32> -> vector<16x64xf32>
    %238 = vector.broadcast %234 : vector<1x64xf32> to vector<16x64xf32>
    %239 = arith.addf %237, %238 : vector<16x64xf32>
    %cst_103 = arith.constant 0.000000e+00 : f32
    %240 = vector.broadcast %cst_103 : f32 to vector<16x64xf32>
    %241 = arith.maximumf %239, %240 : vector<16x64xf32>
    %cst_104 = arith.constant dense<0.000000e+00> : vector<16x32xf32>
    %242 = tpu.matmul %241, %235, %cst_104 {dimension_numbers = #tpu.dot_dimension_numbers<[1], [0], [0], [1], [0, 0, 1, 1], [], []>} : vector<16x64xf32>, vector<64x32xf32>, vector<16x32xf32> -> vector<16x32xf32>
    %243 = vector.broadcast %236 : vector<1x32xf32> to vector<16x32xf32>
    %244 = arith.addf %242, %243 : vector<16x32xf32>
    %245 = arith.addf %209, %244 : vector<16x32xf32>
    %246 = vector.extract_strided_slice %12 {offsets = [4, 0], sizes = [1, 32], strides = [1, 1]} : vector<6x32xf32> to vector<1x32xf32>
    %247 = vector.extract_strided_slice %12 {offsets = [5, 0], sizes = [1, 32], strides = [1, 1]} : vector<6x32xf32> to vector<1x32xf32>
    %cst_105 = arith.constant dense<0.000000e+00> : vector<16xf32>
    %248 = vector.multi_reduction <add>, %245, %cst_105 [1] : vector<16x32xf32> to vector<16xf32>
    %249 = vector.shape_cast %248 : vector<16xf32> to vector<16x1xf32>
    %cst_106 = arith.constant 3.200000e+01 : f32
    %250 = vector.broadcast %cst_106 : f32 to vector<16x1xf32>
    %251 = arith.divf %249, %250 : vector<16x1xf32>
    %252 = vector.broadcast %251 : vector<16x1xf32> to vector<16x32xf32>
    %253 = arith.subf %245, %252 : vector<16x32xf32>
    %254 = arith.mulf %253, %253 : vector<16x32xf32>
    %cst_107 = arith.constant dense<0.000000e+00> : vector<16xf32>
    %255 = vector.multi_reduction <add>, %254, %cst_107 [1] : vector<16x32xf32> to vector<16xf32>
    %256 = vector.shape_cast %255 : vector<16xf32> to vector<16x1xf32>
    %cst_108 = arith.constant 3.200000e+01 : f32
    %257 = vector.broadcast %cst_108 : f32 to vector<16x1xf32>
    %258 = arith.divf %256, %257 : vector<16x1xf32>
    %cst_109 = arith.constant 9.99999974E-6 : f32
    %259 = vector.broadcast %cst_109 : f32 to vector<16x1xf32>
    %260 = arith.addf %258, %259 : vector<16x1xf32>
    %261 = math.rsqrt %260 : vector<16x1xf32>
    %262 = vector.broadcast %261 : vector<16x1xf32> to vector<16x32xf32>
    %263 = arith.mulf %253, %262 : vector<16x32xf32>
    %264 = vector.broadcast %246 : vector<1x32xf32> to vector<16x32xf32>
    %265 = arith.mulf %263, %264 : vector<16x32xf32>
    %266 = vector.broadcast %247 : vector<1x32xf32> to vector<16x32xf32>
    %267 = arith.addf %265, %266 : vector<16x32xf32>
    %cst_110 = arith.constant dense<0.000000e+00> : vector<16x64xf32>
    %268 = tpu.matmul %232, %233, %cst_110 {dimension_numbers = #tpu.dot_dimension_numbers<[1], [0], [0], [1], [0, 0, 1, 1], [], []>} : vector<16x32xf32>, vector<32x64xf32>, vector<16x64xf32> -> vector<16x64xf32>
    %269 = vector.broadcast %234 : vector<1x64xf32> to vector<16x64xf32>
    %270 = arith.addf %268, %269 : vector<16x64xf32>
    %cst_111 = arith.constant 0.000000e+00 : f32
    %271 = vector.broadcast %cst_111 : f32 to vector<16x64xf32>
    %272 = arith.maximumf %270, %271 : vector<16x64xf32>
    %cst_112 = arith.constant dense<0.000000e+00> : vector<16x32xf32>
    %273 = tpu.matmul %272, %235, %cst_112 {dimension_numbers = #tpu.dot_dimension_numbers<[1], [0], [0], [1], [0, 0, 1, 1], [], []>} : vector<16x64xf32>, vector<64x32xf32>, vector<16x32xf32> -> vector<16x32xf32>
    %274 = vector.broadcast %236 : vector<1x32xf32> to vector<16x32xf32>
    %275 = arith.addf %273, %274 : vector<16x32xf32>
    %276 = arith.addf %232, %275 : vector<16x32xf32>
    %277 = vector.extract_strided_slice %12 {offsets = [4, 0], sizes = [1, 32], strides = [1, 1]} : vector<6x32xf32> to vector<1x32xf32>
    %278 = vector.extract_strided_slice %12 {offsets = [5, 0], sizes = [1, 32], strides = [1, 1]} : vector<6x32xf32> to vector<1x32xf32>
    %cst_113 = arith.constant dense<0.000000e+00> : vector<16xf32>
    %279 = vector.multi_reduction <add>, %276, %cst_113 [1] : vector<16x32xf32> to vector<16xf32>
    %280 = vector.shape_cast %279 : vector<16xf32> to vector<16x1xf32>
    %cst_114 = arith.constant 3.200000e+01 : f32
    %281 = vector.broadcast %cst_114 : f32 to vector<16x1xf32>
    %282 = arith.divf %280, %281 : vector<16x1xf32>
    %283 = vector.broadcast %282 : vector<16x1xf32> to vector<16x32xf32>
    %284 = arith.subf %276, %283 : vector<16x32xf32>
    %285 = arith.mulf %284, %284 : vector<16x32xf32>
    %cst_115 = arith.constant dense<0.000000e+00> : vector<16xf32>
    %286 = vector.multi_reduction <add>, %285, %cst_115 [1] : vector<16x32xf32> to vector<16xf32>
    %287 = vector.shape_cast %286 : vector<16xf32> to vector<16x1xf32>
    %cst_116 = arith.constant 3.200000e+01 : f32
    %288 = vector.broadcast %cst_116 : f32 to vector<16x1xf32>
    %289 = arith.divf %287, %288 : vector<16x1xf32>
    %cst_117 = arith.constant 9.99999974E-6 : f32
    %290 = vector.broadcast %cst_117 : f32 to vector<16x1xf32>
    %291 = arith.addf %289, %290 : vector<16x1xf32>
    %292 = math.rsqrt %291 : vector<16x1xf32>
    %293 = vector.broadcast %292 : vector<16x1xf32> to vector<16x32xf32>
    %294 = arith.mulf %284, %293 : vector<16x32xf32>
    %295 = vector.broadcast %277 : vector<1x32xf32> to vector<16x32xf32>
    %296 = arith.mulf %294, %295 : vector<16x32xf32>
    %297 = vector.broadcast %278 : vector<1x32xf32> to vector<16x32xf32>
    %298 = arith.addf %296, %297 : vector<16x32xf32>
    %c0_118 = arith.constant 0 : index
    %c0_119 = arith.constant 0 : index
    %c0_120 = arith.constant 0 : index
    %299 = vector.load %arg24[%c0_118, %c0_119, %c0_120] : memref<1x16x32xf32, #tpu.memory_space<vmem>>, vector<1x16x32xf32>
    %300 = vector.shape_cast %299 : vector<1x16x32xf32> to vector<16x32xf32>
    %301 = vector.shape_cast %267 : vector<16x32xf32> to vector<1x16x32xf32>
    tpu.vector_store %arg24[%c0_118, %c0_119, %c0_120], %301 {strides = array<i32>} : memref<1x16x32xf32, #tpu.memory_space<vmem>>, vector<1x16x32xf32>,
    %c0_121 = arith.constant 0 : index
    %c0_122 = arith.constant 0 : index
    %c0_123 = arith.constant 0 : index
    %302 = vector.load %arg25[%c0_121, %c0_122, %c0_123] : memref<1x16x32xf32, #tpu.memory_space<vmem>>, vector<1x16x32xf32>
    %303 = vector.shape_cast %302 : vector<1x16x32xf32> to vector<16x32xf32>
    %304 = vector.shape_cast %298 : vector<16x32xf32> to vector<1x16x32xf32>
    tpu.vector_store %arg25[%c0_121, %c0_122, %c0_123], %304 {strides = array<i32>} : memref<1x16x32xf32, #tpu.memory_space<vmem>>, vector<1x16x32xf32>,
    return
  }
  func.func @transform_0(%arg0: i32) -> (i32, i32, i32) {
    %c0_i32 = arith.constant 0 : i32
    %c0_i32_0 = arith.constant 0 : i32
    %c0_i32_1 = arith.constant 0 : i32
    return %arg0, %c0_i32, %c0_i32_0 : i32, i32, i32
  }
  func.func @transform_1(%arg0: i32) -> (i32, i32, i32) {
    %c0_i32 = arith.constant 0 : i32
    %c0_i32_0 = arith.constant 0 : i32
    %c0_i32_1 = arith.constant 0 : i32
    return %arg0, %c0_i32, %c0_i32_0 : i32, i32, i32
  }
  func.func @transform_2(%arg0: i32) -> (i32, i32, i32) {
    %c0_i32 = arith.constant 0 : i32
    %c0_i32_0 = arith.constant 0 : i32
    %c0_i32_1 = arith.constant 0 : i32
    return %arg0, %c0_i32, %c0_i32_0 : i32, i32, i32
  }
  func.func @transform_3(%arg0: i32) -> (i32, i32, i32) {
    %c0_i32 = arith.constant 0 : i32
    %c0_i32_0 = arith.constant 0 : i32
    %c0_i32_1 = arith.constant 0 : i32
    return %arg0, %c0_i32, %c0_i32_0 : i32, i32, i32
  }
  func.func @transform_4(%arg0: i32) -> (i32, i32, i32) {
    %c0_i32 = arith.constant 0 : i32
    %c0_i32_0 = arith.constant 0 : i32
    %c0_i32_1 = arith.constant 0 : i32
    return %arg0, %c0_i32, %c0_i32_0 : i32, i32, i32
  }
  func.func @transform_5(%arg0: i32) -> (i32, i32, i32) {
    %c0_i32 = arith.constant 0 : i32
    %c0_i32_0 = arith.constant 0 : i32
    %c0_i32_1 = arith.constant 0 : i32
    return %arg0, %c0_i32, %c0_i32_0 : i32, i32, i32
  }
  func.func @transform_6(%arg0: i32) -> (i32, i32) {
    %c0_i32 = arith.constant 0 : i32
    %c0_i32_0 = arith.constant 0 : i32
    %c0_i32_1 = arith.constant 0 : i32
    return %c0_i32, %c0_i32_0 : i32, i32
  }
  func.func @transform_7(%arg0: i32) -> (i32, i32) {
    %c0_i32 = arith.constant 0 : i32
    %c0_i32_0 = arith.constant 0 : i32
    %c0_i32_1 = arith.constant 0 : i32
    return %c0_i32, %c0_i32_0 : i32, i32
  }
  func.func @transform_8(%arg0: i32) -> (i32, i32) {
    %c0_i32 = arith.constant 0 : i32
    %c0_i32_0 = arith.constant 0 : i32
    %c0_i32_1 = arith.constant 0 : i32
    return %c0_i32, %c0_i32_0 : i32, i32
  }
  func.func @transform_9(%arg0: i32) -> (i32, i32) {
    %c0_i32 = arith.constant 0 : i32
    %c0_i32_0 = arith.constant 0 : i32
    %c0_i32_1 = arith.constant 0 : i32
    return %c0_i32, %c0_i32_0 : i32, i32
  }
  func.func @transform_10(%arg0: i32) -> (i32, i32) {
    %c0_i32 = arith.constant 0 : i32
    %c0_i32_0 = arith.constant 0 : i32
    %c0_i32_1 = arith.constant 0 : i32
    return %c0_i32, %c0_i32_0 : i32, i32
  }
  func.func @transform_11(%arg0: i32) -> (i32, i32) {
    %c0_i32 = arith.constant 0 : i32
    %c0_i32_0 = arith.constant 0 : i32
    %c0_i32_1 = arith.constant 0 : i32
    return %c0_i32, %c0_i32_0 : i32, i32
  }
  func.func @transform_12(%arg0: i32) -> (i32, i32) {
    %c0_i32 = arith.constant 0 : i32
    %c0_i32_0 = arith.constant 0 : i32
    %c0_i32_1 = arith.constant 0 : i32
    return %c0_i32, %c0_i32_0 : i32, i32
  }
  func.func @transform_13(%arg0: i32) -> (i32, i32) {
    %c0_i32 = arith.constant 0 : i32
    %c0_i32_0 = arith.constant 0 : i32
    %c0_i32_1 = arith.constant 0 : i32
    return %c0_i32, %c0_i32_0 : i32, i32
  }
  func.func @transform_14(%arg0: i32) -> (i32, i32) {
    %c0_i32 = arith.constant 0 : i32
    %c0_i32_0 = arith.constant 0 : i32
    %c0_i32_1 = arith.constant 0 : i32
    return %c0_i32, %c0_i32_0 : i32, i32
  }
  func.func @transform_15(%arg0: i32) -> (i32, i32) {
    %c0_i32 = arith.constant 0 : i32
    %c0_i32_0 = arith.constant 0 : i32
    %c0_i32_1 = arith.constant 0 : i32
    return %c0_i32, %c0_i32_0 : i32, i32
  }
  func.func @transform_16(%arg0: i32) -> (i32, i32) {
    %c0_i32 = arith.constant 0 : i32
    %c0_i32_0 = arith.constant 0 : i32
    %c0_i32_1 = arith.constant 0 : i32
    return %c0_i32, %c0_i32_0 : i32, i32
  }
  func.func @transform_17(%arg0: i32) -> (i32, i32) {
    %c0_i32 = arith.constant 0 : i32
    %c0_i32_0 = arith.constant 0 : i32
    %c0_i32_1 = arith.constant 0 : i32
    return %c0_i32, %c0_i32_0 : i32, i32
  }
  func.func @transform_18(%arg0: i32) -> (i32, i32) {
    %c0_i32 = arith.constant 0 : i32
    %c0_i32_0 = arith.constant 0 : i32
    %c0_i32_1 = arith.constant 0 : i32
    return %c0_i32, %c0_i32_0 : i32, i32
  }
  func.func @transform_19(%arg0: i32) -> (i32, i32) {
    %c0_i32 = arith.constant 0 : i32
    %c0_i32_0 = arith.constant 0 : i32
    %c0_i32_1 = arith.constant 0 : i32
    return %c0_i32, %c0_i32_0 : i32, i32
  }
  func.func @transform_20(%arg0: i32) -> (i32, i32) {
    %c0_i32 = arith.constant 0 : i32
    %c0_i32_0 = arith.constant 0 : i32
    %c0_i32_1 = arith.constant 0 : i32
    return %c0_i32, %c0_i32_0 : i32, i32
  }
  func.func @transform_21(%arg0: i32) -> (i32, i32) {
    %c0_i32 = arith.constant 0 : i32
    %c0_i32_0 = arith.constant 0 : i32
    %c0_i32_1 = arith.constant 0 : i32
    return %c0_i32, %c0_i32_0 : i32, i32
  }
  func.func @transform_22(%arg0: i32) -> (i32, i32) {
    %c0_i32 = arith.constant 0 : i32
    %c0_i32_0 = arith.constant 0 : i32
    %c0_i32_1 = arith.constant 0 : i32
    return %c0_i32, %c0_i32_0 : i32, i32
  }
  func.func @transform_23(%arg0: i32) -> (i32, i32, i32) {
    %c0_i32 = arith.constant 0 : i32
    %c0_i32_0 = arith.constant 0 : i32
    %c0_i32_1 = arith.constant 0 : i32
    return %arg0, %c0_i32, %c0_i32_0 : i32, i32, i32
  }
  func.func @transform_24(%arg0: i32) -> (i32, i32, i32) {
    %c0_i32 = arith.constant 0 : i32
    %c0_i32_0 = arith.constant 0 : i32
    %c0_i32_1 = arith.constant 0 : i32
    return %arg0, %c0_i32, %c0_i32_0 : i32, i32, i32
  }
}

module attributes {stable_mosaic.version = 11 : i64} {
  func.func @_head_linear_kernel(%arg0: i32, %arg1: memref<64x32xf32, #tpu.memory_space<vmem>>, %arg2: memref<32x32xf32, #tpu.memory_space<vmem>>, %arg3: memref<1x32xf32, #tpu.memory_space<vmem>>, %arg4: memref<32x32xf32, #tpu.memory_space<vmem>>, %arg5: memref<1x32xf32, #tpu.memory_space<vmem>>, %arg6: memref<32x64xf32, #tpu.memory_space<vmem>>, %arg7: memref<1x64xf32, #tpu.memory_space<vmem>>, %arg8: memref<64x32xf32, #tpu.memory_space<vmem>>, %arg9: memref<64x64xf32, #tpu.memory_space<vmem>>) attributes {dimension_semantics = [#tpu.dimension_semantics<parallel>], iteration_bounds = array<i64: 1>, scalar_prefetch = 0 : i64, scratch_operands = 0 : i64, tpu.core_type = #tpu.core_type<tc>, window_params = [{transform_indices = @transform_0, window_bounds = array<i64: 64, 32>}, {pipeline_mode = #tpu.pipeline_mode<synchronous>, transform_indices = @transform_1, window_bounds = array<i64: 32, 32>}, {pipeline_mode = #tpu.pipeline_mode<synchronous>, transform_indices = @transform_2, window_bounds = array<i64: 1, 32>}, {pipeline_mode = #tpu.pipeline_mode<synchronous>, transform_indices = @transform_3, window_bounds = array<i64: 32, 32>}, {pipeline_mode = #tpu.pipeline_mode<synchronous>, transform_indices = @transform_4, window_bounds = array<i64: 1, 32>}, {pipeline_mode = #tpu.pipeline_mode<synchronous>, transform_indices = @transform_5, window_bounds = array<i64: 32, 64>}, {pipeline_mode = #tpu.pipeline_mode<synchronous>, transform_indices = @transform_6, window_bounds = array<i64: 1, 64>}, {transform_indices = @transform_7, window_bounds = array<i64: 64, 32>}, {transform_indices = @transform_8, window_bounds = array<i64: 64, 64>}]} {
    %c0 = arith.constant 0 : index
    %c0_0 = arith.constant 0 : index
    %0 = vector.load %arg1[%c0, %c0_0] : memref<64x32xf32, #tpu.memory_space<vmem>>, vector<64x32xf32>
    %c0_1 = arith.constant 0 : index
    %c0_2 = arith.constant 0 : index
    %1 = vector.load %arg2[%c0_1, %c0_2] : memref<32x32xf32, #tpu.memory_space<vmem>>, vector<32x32xf32>
    %cst = arith.constant dense<0.000000e+00> : vector<64x32xf32>
    %2 = tpu.matmul %0, %1, %cst {dimension_numbers = #tpu.dot_dimension_numbers<[1], [0], [0], [1], [0, 0, 1, 1], [], []>} : vector<64x32xf32>, vector<32x32xf32>, vector<64x32xf32> -> vector<64x32xf32>
    %c0_3 = arith.constant 0 : index
    %c0_4 = arith.constant 0 : index
    %3 = vector.load %arg3[%c0_3, %c0_4] : memref<1x32xf32, #tpu.memory_space<vmem>>, vector<1x32xf32>
    %4 = vector.broadcast %3 : vector<1x32xf32> to vector<64x32xf32>
    %5 = arith.addf %2, %4 : vector<64x32xf32>
    %cst_5 = arith.constant 0.000000e+00 : f32
    %6 = vector.broadcast %cst_5 : f32 to vector<64x32xf32>
    %7 = arith.maximumf %5, %6 : vector<64x32xf32>
    %c0_6 = arith.constant 0 : index
    %c0_7 = arith.constant 0 : index
    %8 = vector.load %arg4[%c0_6, %c0_7] : memref<32x32xf32, #tpu.memory_space<vmem>>, vector<32x32xf32>
    %cst_8 = arith.constant dense<0.000000e+00> : vector<64x32xf32>
    %9 = tpu.matmul %7, %8, %cst_8 {dimension_numbers = #tpu.dot_dimension_numbers<[1], [0], [0], [1], [0, 0, 1, 1], [], []>} : vector<64x32xf32>, vector<32x32xf32>, vector<64x32xf32> -> vector<64x32xf32>
    %c0_9 = arith.constant 0 : index
    %c0_10 = arith.constant 0 : index
    %10 = vector.load %arg5[%c0_9, %c0_10] : memref<1x32xf32, #tpu.memory_space<vmem>>, vector<1x32xf32>
    %11 = vector.broadcast %10 : vector<1x32xf32> to vector<64x32xf32>
    %12 = arith.addf %9, %11 : vector<64x32xf32>
    %13 = arith.mulf %12, %12 : vector<64x32xf32>
    %cst_11 = arith.constant dense<0.000000e+00> : vector<64xf32>
    %14 = vector.multi_reduction <add>, %13, %cst_11 [1] : vector<64x32xf32> to vector<64xf32>
    %15 = vector.shape_cast %14 : vector<64xf32> to vector<64x1xf32>
    %cst_12 = arith.constant 1.000000e-24 : f32
    %16 = vector.broadcast %cst_12 : f32 to vector<64x1xf32>
    %17 = arith.maximumf %15, %16 : vector<64x1xf32>
    %18 = math.rsqrt %17 : vector<64x1xf32>
    %19 = vector.broadcast %18 : vector<64x1xf32> to vector<64x32xf32>
    %20 = arith.mulf %12, %19 : vector<64x32xf32>
    %c0_13 = arith.constant 0 : index
    %c0_14 = arith.constant 0 : index
    %21 = vector.load %arg8[%c0_13, %c0_14] : memref<64x32xf32, #tpu.memory_space<vmem>>, vector<64x32xf32>
    tpu.vector_store %arg8[%c0_13, %c0_14], %20 {strides = array<i32>} : memref<64x32xf32, #tpu.memory_space<vmem>>, vector<64x32xf32>,
    %c0_15 = arith.constant 0 : index
    %c0_16 = arith.constant 0 : index
    %22 = vector.load %arg6[%c0_15, %c0_16] : memref<32x64xf32, #tpu.memory_space<vmem>>, vector<32x64xf32>
    %cst_17 = arith.constant dense<0.000000e+00> : vector<64x64xf32>
    %23 = tpu.matmul %0, %22, %cst_17 {dimension_numbers = #tpu.dot_dimension_numbers<[1], [0], [0], [1], [0, 0, 1, 1], [], []>} : vector<64x32xf32>, vector<32x64xf32>, vector<64x64xf32> -> vector<64x64xf32>
    %c0_18 = arith.constant 0 : index
    %c0_19 = arith.constant 0 : index
    %24 = vector.load %arg7[%c0_18, %c0_19] : memref<1x64xf32, #tpu.memory_space<vmem>>, vector<1x64xf32>
    %25 = vector.broadcast %24 : vector<1x64xf32> to vector<64x64xf32>
    %26 = arith.addf %23, %25 : vector<64x64xf32>
    %c0_20 = arith.constant 0 : index
    %c0_21 = arith.constant 0 : index
    %27 = vector.load %arg9[%c0_20, %c0_21] : memref<64x64xf32, #tpu.memory_space<vmem>>, vector<64x64xf32>
    tpu.vector_store %arg9[%c0_20, %c0_21], %26 {strides = array<i32>} : memref<64x64xf32, #tpu.memory_space<vmem>>, vector<64x64xf32>,
    return
  }
  func.func @transform_0(%arg0: i32) -> (i32, i32) {
    %c0_i32 = arith.constant 0 : i32
    %c0_i32_0 = arith.constant 0 : i32
    return %arg0, %c0_i32 : i32, i32
  }
  func.func @transform_1(%arg0: i32) -> (i32, i32) {
    %c0_i32 = arith.constant 0 : i32
    %c0_i32_0 = arith.constant 0 : i32
    %c0_i32_1 = arith.constant 0 : i32
    return %c0_i32, %c0_i32_0 : i32, i32
  }
  func.func @transform_2(%arg0: i32) -> (i32, i32) {
    %c0_i32 = arith.constant 0 : i32
    %c0_i32_0 = arith.constant 0 : i32
    %c0_i32_1 = arith.constant 0 : i32
    return %c0_i32, %c0_i32_0 : i32, i32
  }
  func.func @transform_3(%arg0: i32) -> (i32, i32) {
    %c0_i32 = arith.constant 0 : i32
    %c0_i32_0 = arith.constant 0 : i32
    %c0_i32_1 = arith.constant 0 : i32
    return %c0_i32, %c0_i32_0 : i32, i32
  }
  func.func @transform_4(%arg0: i32) -> (i32, i32) {
    %c0_i32 = arith.constant 0 : i32
    %c0_i32_0 = arith.constant 0 : i32
    %c0_i32_1 = arith.constant 0 : i32
    return %c0_i32, %c0_i32_0 : i32, i32
  }
  func.func @transform_5(%arg0: i32) -> (i32, i32) {
    %c0_i32 = arith.constant 0 : i32
    %c0_i32_0 = arith.constant 0 : i32
    %c0_i32_1 = arith.constant 0 : i32
    return %c0_i32, %c0_i32_0 : i32, i32
  }
  func.func @transform_6(%arg0: i32) -> (i32, i32) {
    %c0_i32 = arith.constant 0 : i32
    %c0_i32_0 = arith.constant 0 : i32
    %c0_i32_1 = arith.constant 0 : i32
    return %c0_i32, %c0_i32_0 : i32, i32
  }
  func.func @transform_7(%arg0: i32) -> (i32, i32) {
    %c0_i32 = arith.constant 0 : i32
    %c0_i32_0 = arith.constant 0 : i32
    return %arg0, %c0_i32 : i32, i32
  }
  func.func @transform_8(%arg0: i32) -> (i32, i32) {
    %c0_i32 = arith.constant 0 : i32
    %c0_i32_0 = arith.constant 0 : i32
    return %arg0, %c0_i32 : i32, i32
  }
}

module attributes {stable_mosaic.version = 11 : i64} {
  func.func @_offset_pair_kernel(%arg0: i32, %arg1: i32, %arg2: i32, %arg3: memref<33x3xf32, #tpu.memory_space<smem>>, %arg4: memref<1x16x32xf32, #tpu.memory_space<vmem>>, %arg5: memref<1x16x32xf32, #tpu.memory_space<vmem>>, %arg6: memref<1x32x16xf32, #tpu.memory_space<vmem>>, %arg7: memref<1x32x16xf32, #tpu.memory_space<vmem>>, %arg8: memref<1x16x8xf32, #tpu.memory_space<vmem>>, %arg9: memref<1x8x16xf32, #tpu.memory_space<vmem>>, %arg10: memref<1x3x16x16xf32, #tpu.memory_space<vmem>>, %arg11: memref<1x3x16x16xf32, #tpu.memory_space<vmem>>) attributes {dimension_semantics = [#tpu.dimension_semantics<parallel>, #tpu.dimension_semantics<parallel>, #tpu.dimension_semantics<parallel>], iteration_bounds = array<i64: 2, 1, 1>, scalar_prefetch = 0 : i64, scratch_operands = 0 : i64, tpu.core_type = #tpu.core_type<tc>, window_params = [{transform_indices = @transform_0, window_bounds = array<i64: 33, 3>}, {transform_indices = @transform_1, window_bounds = array<i64: 1, 16, 32>}, {transform_indices = @transform_2, window_bounds = array<i64: 1, 16, 32>}, {transform_indices = @transform_3, window_bounds = array<i64: 1, 32, 16>}, {transform_indices = @transform_4, window_bounds = array<i64: 1, 32, 16>}, {transform_indices = @transform_5, window_bounds = array<i64: 1, 16, 8>}, {transform_indices = @transform_6, window_bounds = array<i64: 1, 8, 16>}, {transform_indices = @transform_7, window_bounds = array<i64: 1, 3, 16, 16>}, {transform_indices = @transform_8, window_bounds = array<i64: 1, 3, 16, 16>}]} {
    %c0 = arith.constant 0 : index
    %c0_0 = arith.constant 0 : index
    %c0_1 = arith.constant 0 : index
    %0 = vector.load %arg4[%c0, %c0_0, %c0_1] : memref<1x16x32xf32, #tpu.memory_space<vmem>>, vector<1x16x32xf32>
    %1 = vector.shape_cast %0 : vector<1x16x32xf32> to vector<16x32xf32>
    %c0_2 = arith.constant 0 : index
    %c0_3 = arith.constant 0 : index
    %c0_4 = arith.constant 0 : index
    %2 = vector.load %arg5[%c0_2, %c0_3, %c0_4] : memref<1x16x32xf32, #tpu.memory_space<vmem>>, vector<1x16x32xf32>
    %3 = vector.shape_cast %2 : vector<1x16x32xf32> to vector<16x32xf32>
    %c0_5 = arith.constant 0 : index
    %c0_6 = arith.constant 0 : index
    %c0_7 = arith.constant 0 : index
    %4 = vector.load %arg6[%c0_5, %c0_6, %c0_7] : memref<1x32x16xf32, #tpu.memory_space<vmem>>, vector<1x32x16xf32>
    %5 = vector.shape_cast %4 : vector<1x32x16xf32> to vector<32x16xf32>
    %c0_8 = arith.constant 0 : index
    %c0_9 = arith.constant 0 : index
    %c0_10 = arith.constant 0 : index
    %6 = vector.load %arg7[%c0_8, %c0_9, %c0_10] : memref<1x32x16xf32, #tpu.memory_space<vmem>>, vector<1x32x16xf32>
    %7 = vector.shape_cast %6 : vector<1x32x16xf32> to vector<32x16xf32>
    %c0_11 = arith.constant 0 : index
    %c0_12 = arith.constant 0 : index
    %c0_13 = arith.constant 0 : index
    %8 = vector.load %arg8[%c0_11, %c0_12, %c0_13] : memref<1x16x8xf32, #tpu.memory_space<vmem>>, vector<1x16x8xf32>
    %9 = vector.shape_cast %8 : vector<1x16x8xf32> to vector<16x8xf32>
    %c0_14 = arith.constant 0 : index
    %c0_15 = arith.constant 0 : index
    %c0_16 = arith.constant 0 : index
    %10 = vector.load %arg9[%c0_14, %c0_15, %c0_16] : memref<1x8x16xf32, #tpu.memory_space<vmem>>, vector<1x8x16xf32>
    %11 = vector.shape_cast %10 : vector<1x8x16xf32> to vector<8x16xf32>
    %12 = vector.extract_strided_slice %11 {offsets = [0, 0], sizes = [1, 16], strides = [1, 1]} : vector<8x16xf32> to vector<1x16xf32>
    %13 = vector.extract_strided_slice %9 {offsets = [0, 0], sizes = [16, 1], strides = [1, 1]} : vector<16x8xf32> to vector<16x1xf32>
    %14 = vector.broadcast %12 : vector<1x16xf32> to vector<16x16xf32>
    %15 = vector.broadcast %13 : vector<16x1xf32> to vector<16x16xf32>
    %16 = arith.subf %14, %15 : vector<16x16xf32>
    %17 = vector.extract_strided_slice %11 {offsets = [1, 0], sizes = [1, 16], strides = [1, 1]} : vector<8x16xf32> to vector<1x16xf32>
    %18 = vector.extract_strided_slice %9 {offsets = [0, 1], sizes = [16, 1], strides = [1, 1]} : vector<16x8xf32> to vector<16x1xf32>
    %19 = vector.broadcast %17 : vector<1x16xf32> to vector<16x16xf32>
    %20 = vector.broadcast %18 : vector<16x1xf32> to vector<16x16xf32>
    %21 = arith.subf %19, %20 : vector<16x16xf32>
    %22 = vector.extract_strided_slice %11 {offsets = [2, 0], sizes = [1, 16], strides = [1, 1]} : vector<8x16xf32> to vector<1x16xf32>
    %23 = vector.extract_strided_slice %9 {offsets = [0, 2], sizes = [16, 1], strides = [1, 1]} : vector<16x8xf32> to vector<16x1xf32>
    %24 = vector.broadcast %22 : vector<1x16xf32> to vector<16x16xf32>
    %25 = vector.broadcast %23 : vector<16x1xf32> to vector<16x16xf32>
    %26 = arith.subf %24, %25 : vector<16x16xf32>
    %27 = vector.extract_strided_slice %11 {offsets = [3, 0], sizes = [1, 16], strides = [1, 1]} : vector<8x16xf32> to vector<1x16xf32>
    %28 = vector.extract_strided_slice %9 {offsets = [0, 3], sizes = [16, 1], strides = [1, 1]} : vector<16x8xf32> to vector<16x1xf32>
    %29 = vector.broadcast %27 : vector<1x16xf32> to vector<16x16xf32>
    %30 = vector.broadcast %28 : vector<16x1xf32> to vector<16x16xf32>
    %31 = arith.subf %29, %30 : vector<16x16xf32>
    %32 = vector.extract_strided_slice %11 {offsets = [4, 0], sizes = [1, 16], strides = [1, 1]} : vector<8x16xf32> to vector<1x16xf32>
    %33 = vector.extract_strided_slice %9 {offsets = [0, 4], sizes = [16, 1], strides = [1, 1]} : vector<16x8xf32> to vector<16x1xf32>
    %34 = vector.broadcast %32 : vector<1x16xf32> to vector<16x16xf32>
    %35 = vector.broadcast %33 : vector<16x1xf32> to vector<16x16xf32>
    %36 = arith.subf %34, %35 : vector<16x16xf32>
    %37 = vector.extract_strided_slice %11 {offsets = [5, 0], sizes = [1, 16], strides = [1, 1]} : vector<8x16xf32> to vector<1x16xf32>
    %38 = vector.extract_strided_slice %9 {offsets = [0, 5], sizes = [16, 1], strides = [1, 1]} : vector<16x8xf32> to vector<16x1xf32>
    %39 = vector.broadcast %37 : vector<1x16xf32> to vector<16x16xf32>
    %40 = vector.broadcast %38 : vector<16x1xf32> to vector<16x16xf32>
    %41 = arith.subf %39, %40 : vector<16x16xf32>
    %42 = arith.mulf %16, %16 : vector<16x16xf32>
    %43 = arith.mulf %21, %21 : vector<16x16xf32>
    %44 = arith.addf %42, %43 : vector<16x16xf32>
    %45 = arith.mulf %26, %26 : vector<16x16xf32>
    %46 = arith.addf %44, %45 : vector<16x16xf32>
    %cst = arith.constant 1.000000e+00 : f32
    %47 = vector.broadcast %cst : f32 to vector<16x16xf32>
    %48 = arith.cmpf ole, %46, %47 : vector<16x16xf32>
    %49 = vector.extract_strided_slice %9 {offsets = [0, 6], sizes = [16, 1], strides = [1, 1]} : vector<16x8xf32> to vector<16x1xf32>
    %cst_17 = arith.constant 5.000000e-01 : f32
    %50 = vector.broadcast %cst_17 : f32 to vector<16x1xf32>
    %51 = arith.cmpf ogt, %49, %50 : vector<16x1xf32>
    %52 = vector.broadcast %51 : vector<16x1xi1> to vector<16x16xi1>
    %53 = arith.andi %48, %52 : vector<16x16xi1>
    %54 = vector.extract_strided_slice %11 {offsets = [6, 0], sizes = [1, 16], strides = [1, 1]} : vector<8x16xf32> to vector<1x16xf32>
    %cst_18 = arith.constant 5.000000e-01 : f32
    %55 = vector.broadcast %cst_18 : f32 to vector<1x16xf32>
    %56 = arith.cmpf ogt, %54, %55 : vector<1x16xf32>
    %57 = vector.broadcast %56 : vector<1x16xi1> to vector<16x16xi1>
    %58 = arith.andi %53, %57 : vector<16x16xi1>
    %cst_19 = arith.constant 0.000000e+00 : f32
    %59 = vector.broadcast %cst_19 : f32 to vector<16x16xf32>
    %cst_20 = arith.constant 0.000000e+00 : f32
    %60 = vector.broadcast %cst_20 : f32 to vector<16x16xf32>
    %cst_21 = arith.constant 0.000000e+00 : f32
    %61 = vector.broadcast %cst_21 : f32 to vector<16x16xf32>
    %cst_22 = arith.constant 0.000000e+00 : f32
    %62 = vector.broadcast %cst_22 : f32 to vector<16x16xf32>
    %cst_23 = arith.constant 0.000000e+00 : f32
    %63 = vector.broadcast %cst_23 : f32 to vector<16x16xf32>
    %cst_24 = arith.constant 0.000000e+00 : f32
    %64 = vector.broadcast %cst_24 : f32 to vector<16x16xf32>
    %65 = vector.extract_strided_slice %1 {offsets = [0, 0], sizes = [16, 1], strides = [1, 1]} : vector<16x32xf32> to vector<16x1xf32>
    %66 = vector.extract_strided_slice %7 {offsets = [0, 0], sizes = [1, 16], strides = [1, 1]} : vector<32x16xf32> to vector<1x16xf32>
    %67 = vector.broadcast %65 : vector<16x1xf32> to vector<16x16xf32>
    %68 = vector.broadcast %66 : vector<1x16xf32> to vector<16x16xf32>
    %69 = arith.addf %67, %68 : vector<16x16xf32>
    %cst_25 = arith.constant 0.000000e+00 : f32
    %70 = vector.broadcast %cst_25 : f32 to vector<16x16xf32>
    %71 = arith.maximumf %69, %70 : vector<16x16xf32>
    %72 = vector.extract_strided_slice %3 {offsets = [0, 0], sizes = [16, 1], strides = [1, 1]} : vector<16x32xf32> to vector<16x1xf32>
    %73 = vector.extract_strided_slice %5 {offsets = [0, 0], sizes = [1, 16], strides = [1, 1]} : vector<32x16xf32> to vector<1x16xf32>
    %74 = vector.broadcast %72 : vector<16x1xf32> to vector<16x16xf32>
    %75 = vector.broadcast %73 : vector<1x16xf32> to vector<16x16xf32>
    %76 = arith.addf %74, %75 : vector<16x16xf32>
    %cst_26 = arith.constant 0.000000e+00 : f32
    %77 = vector.broadcast %cst_26 : f32 to vector<16x16xf32>
    %78 = arith.maximumf %76, %77 : vector<16x16xf32>
    %c0_27 = arith.constant 0 : index
    %c0_28 = arith.constant 0 : index
    %79 = memref.load %arg3[%c0_27, %c0_28] : memref<33x3xf32, #tpu.memory_space<smem>>
    %80 = vector.broadcast %79 : f32 to vector<16x16xf32>
    %81 = arith.mulf %71, %80 : vector<16x16xf32>
    %82 = arith.addf %59, %81 : vector<16x16xf32>
    %83 = vector.broadcast %79 : f32 to vector<16x16xf32>
    %84 = arith.mulf %78, %83 : vector<16x16xf32>
    %85 = arith.addf %62, %84 : vector<16x16xf32>
    %c0_29 = arith.constant 0 : index
    %c1 = arith.constant 1 : index
    %86 = memref.load %arg3[%c0_29, %c1] : memref<33x3xf32, #tpu.memory_space<smem>>
    %87 = vector.broadcast %86 : f32 to vector<16x16xf32>
    %88 = arith.mulf %71, %87 : vector<16x16xf32>
    %89 = arith.addf %60, %88 : vector<16x16xf32>
    %90 = vector.broadcast %86 : f32 to vector<16x16xf32>
    %91 = arith.mulf %78, %90 : vector<16x16xf32>
    %92 = arith.addf %63, %91 : vector<16x16xf32>
    %c0_30 = arith.constant 0 : index
    %c2 = arith.constant 2 : index
    %93 = memref.load %arg3[%c0_30, %c2] : memref<33x3xf32, #tpu.memory_space<smem>>
    %94 = vector.broadcast %93 : f32 to vector<16x16xf32>
    %95 = arith.mulf %71, %94 : vector<16x16xf32>
    %96 = arith.addf %61, %95 : vector<16x16xf32>
    %97 = vector.broadcast %93 : f32 to vector<16x16xf32>
    %98 = arith.mulf %78, %97 : vector<16x16xf32>
    %99 = arith.addf %64, %98 : vector<16x16xf32>
    %100 = vector.extract_strided_slice %1 {offsets = [0, 1], sizes = [16, 1], strides = [1, 1]} : vector<16x32xf32> to vector<16x1xf32>
    %101 = vector.extract_strided_slice %7 {offsets = [1, 0], sizes = [1, 16], strides = [1, 1]} : vector<32x16xf32> to vector<1x16xf32>
    %102 = vector.broadcast %100 : vector<16x1xf32> to vector<16x16xf32>
    %103 = vector.broadcast %101 : vector<1x16xf32> to vector<16x16xf32>
    %104 = arith.addf %102, %103 : vector<16x16xf32>
    %cst_31 = arith.constant 0.000000e+00 : f32
    %105 = vector.broadcast %cst_31 : f32 to vector<16x16xf32>
    %106 = arith.maximumf %104, %105 : vector<16x16xf32>
    %107 = vector.extract_strided_slice %3 {offsets = [0, 1], sizes = [16, 1], strides = [1, 1]} : vector<16x32xf32> to vector<16x1xf32>
    %108 = vector.extract_strided_slice %5 {offsets = [1, 0], sizes = [1, 16], strides = [1, 1]} : vector<32x16xf32> to vector<1x16xf32>
    %109 = vector.broadcast %107 : vector<16x1xf32> to vector<16x16xf32>
    %110 = vector.broadcast %108 : vector<1x16xf32> to vector<16x16xf32>
    %111 = arith.addf %109, %110 : vector<16x16xf32>
    %cst_32 = arith.constant 0.000000e+00 : f32
    %112 = vector.broadcast %cst_32 : f32 to vector<16x16xf32>
    %113 = arith.maximumf %111, %112 : vector<16x16xf32>
    %c1_33 = arith.constant 1 : index
    %c0_34 = arith.constant 0 : index
    %114 = memref.load %arg3[%c1_33, %c0_34] : memref<33x3xf32, #tpu.memory_space<smem>>
    %115 = vector.broadcast %114 : f32 to vector<16x16xf32>
    %116 = arith.mulf %106, %115 : vector<16x16xf32>
    %117 = arith.addf %82, %116 : vector<16x16xf32>
    %118 = vector.broadcast %114 : f32 to vector<16x16xf32>
    %119 = arith.mulf %113, %118 : vector<16x16xf32>
    %120 = arith.addf %85, %119 : vector<16x16xf32>
    %c1_35 = arith.constant 1 : index
    %c1_36 = arith.constant 1 : index
    %121 = memref.load %arg3[%c1_35, %c1_36] : memref<33x3xf32, #tpu.memory_space<smem>>
    %122 = vector.broadcast %121 : f32 to vector<16x16xf32>
    %123 = arith.mulf %106, %122 : vector<16x16xf32>
    %124 = arith.addf %89, %123 : vector<16x16xf32>
    %125 = vector.broadcast %121 : f32 to vector<16x16xf32>
    %126 = arith.mulf %113, %125 : vector<16x16xf32>
    %127 = arith.addf %92, %126 : vector<16x16xf32>
    %c1_37 = arith.constant 1 : index
    %c2_38 = arith.constant 2 : index
    %128 = memref.load %arg3[%c1_37, %c2_38] : memref<33x3xf32, #tpu.memory_space<smem>>
    %129 = vector.broadcast %128 : f32 to vector<16x16xf32>
    %130 = arith.mulf %106, %129 : vector<16x16xf32>
    %131 = arith.addf %96, %130 : vector<16x16xf32>
    %132 = vector.broadcast %128 : f32 to vector<16x16xf32>
    %133 = arith.mulf %113, %132 : vector<16x16xf32>
    %134 = arith.addf %99, %133 : vector<16x16xf32>
    %135 = vector.extract_strided_slice %1 {offsets = [0, 2], sizes = [16, 1], strides = [1, 1]} : vector<16x32xf32> to vector<16x1xf32>
    %136 = vector.extract_strided_slice %7 {offsets = [2, 0], sizes = [1, 16], strides = [1, 1]} : vector<32x16xf32> to vector<1x16xf32>
    %137 = vector.broadcast %135 : vector<16x1xf32> to vector<16x16xf32>
    %138 = vector.broadcast %136 : vector<1x16xf32> to vector<16x16xf32>
    %139 = arith.addf %137, %138 : vector<16x16xf32>
    %cst_39 = arith.constant 0.000000e+00 : f32
    %140 = vector.broadcast %cst_39 : f32 to vector<16x16xf32>
    %141 = arith.maximumf %139, %140 : vector<16x16xf32>
    %142 = vector.extract_strided_slice %3 {offsets = [0, 2], sizes = [16, 1], strides = [1, 1]} : vector<16x32xf32> to vector<16x1xf32>
    %143 = vector.extract_strided_slice %5 {offsets = [2, 0], sizes = [1, 16], strides = [1, 1]} : vector<32x16xf32> to vector<1x16xf32>
    %144 = vector.broadcast %142 : vector<16x1xf32> to vector<16x16xf32>
    %145 = vector.broadcast %143 : vector<1x16xf32> to vector<16x16xf32>
    %146 = arith.addf %144, %145 : vector<16x16xf32>
    %cst_40 = arith.constant 0.000000e+00 : f32
    %147 = vector.broadcast %cst_40 : f32 to vector<16x16xf32>
    %148 = arith.maximumf %146, %147 : vector<16x16xf32>
    %c2_41 = arith.constant 2 : index
    %c0_42 = arith.constant 0 : index
    %149 = memref.load %arg3[%c2_41, %c0_42] : memref<33x3xf32, #tpu.memory_space<smem>>
    %150 = vector.broadcast %149 : f32 to vector<16x16xf32>
    %151 = arith.mulf %141, %150 : vector<16x16xf32>
    %152 = arith.addf %117, %151 : vector<16x16xf32>
    %153 = vector.broadcast %149 : f32 to vector<16x16xf32>
    %154 = arith.mulf %148, %153 : vector<16x16xf32>
    %155 = arith.addf %120, %154 : vector<16x16xf32>
    %c2_43 = arith.constant 2 : index
    %c1_44 = arith.constant 1 : index
    %156 = memref.load %arg3[%c2_43, %c1_44] : memref<33x3xf32, #tpu.memory_space<smem>>
    %157 = vector.broadcast %156 : f32 to vector<16x16xf32>
    %158 = arith.mulf %141, %157 : vector<16x16xf32>
    %159 = arith.addf %124, %158 : vector<16x16xf32>
    %160 = vector.broadcast %156 : f32 to vector<16x16xf32>
    %161 = arith.mulf %148, %160 : vector<16x16xf32>
    %162 = arith.addf %127, %161 : vector<16x16xf32>
    %c2_45 = arith.constant 2 : index
    %c2_46 = arith.constant 2 : index
    %163 = memref.load %arg3[%c2_45, %c2_46] : memref<33x3xf32, #tpu.memory_space<smem>>
    %164 = vector.broadcast %163 : f32 to vector<16x16xf32>
    %165 = arith.mulf %141, %164 : vector<16x16xf32>
    %166 = arith.addf %131, %165 : vector<16x16xf32>
    %167 = vector.broadcast %163 : f32 to vector<16x16xf32>
    %168 = arith.mulf %148, %167 : vector<16x16xf32>
    %169 = arith.addf %134, %168 : vector<16x16xf32>
    %170 = vector.extract_strided_slice %1 {offsets = [0, 3], sizes = [16, 1], strides = [1, 1]} : vector<16x32xf32> to vector<16x1xf32>
    %171 = vector.extract_strided_slice %7 {offsets = [3, 0], sizes = [1, 16], strides = [1, 1]} : vector<32x16xf32> to vector<1x16xf32>
    %172 = vector.broadcast %170 : vector<16x1xf32> to vector<16x16xf32>
    %173 = vector.broadcast %171 : vector<1x16xf32> to vector<16x16xf32>
    %174 = arith.addf %172, %173 : vector<16x16xf32>
    %cst_47 = arith.constant 0.000000e+00 : f32
    %175 = vector.broadcast %cst_47 : f32 to vector<16x16xf32>
    %176 = arith.maximumf %174, %175 : vector<16x16xf32>
    %177 = vector.extract_strided_slice %3 {offsets = [0, 3], sizes = [16, 1], strides = [1, 1]} : vector<16x32xf32> to vector<16x1xf32>
    %178 = vector.extract_strided_slice %5 {offsets = [3, 0], sizes = [1, 16], strides = [1, 1]} : vector<32x16xf32> to vector<1x16xf32>
    %179 = vector.broadcast %177 : vector<16x1xf32> to vector<16x16xf32>
    %180 = vector.broadcast %178 : vector<1x16xf32> to vector<16x16xf32>
    %181 = arith.addf %179, %180 : vector<16x16xf32>
    %cst_48 = arith.constant 0.000000e+00 : f32
    %182 = vector.broadcast %cst_48 : f32 to vector<16x16xf32>
    %183 = arith.maximumf %181, %182 : vector<16x16xf32>
    %c3 = arith.constant 3 : index
    %c0_49 = arith.constant 0 : index
    %184 = memref.load %arg3[%c3, %c0_49] : memref<33x3xf32, #tpu.memory_space<smem>>
    %185 = vector.broadcast %184 : f32 to vector<16x16xf32>
    %186 = arith.mulf %176, %185 : vector<16x16xf32>
    %187 = arith.addf %152, %186 : vector<16x16xf32>
    %188 = vector.broadcast %184 : f32 to vector<16x16xf32>
    %189 = arith.mulf %183, %188 : vector<16x16xf32>
    %190 = arith.addf %155, %189 : vector<16x16xf32>
    %c3_50 = arith.constant 3 : index
    %c1_51 = arith.constant 1 : index
    %191 = memref.load %arg3[%c3_50, %c1_51] : memref<33x3xf32, #tpu.memory_space<smem>>
    %192 = vector.broadcast %191 : f32 to vector<16x16xf32>
    %193 = arith.mulf %176, %192 : vector<16x16xf32>
    %194 = arith.addf %159, %193 : vector<16x16xf32>
    %195 = vector.broadcast %191 : f32 to vector<16x16xf32>
    %196 = arith.mulf %183, %195 : vector<16x16xf32>
    %197 = arith.addf %162, %196 : vector<16x16xf32>
    %c3_52 = arith.constant 3 : index
    %c2_53 = arith.constant 2 : index
    %198 = memref.load %arg3[%c3_52, %c2_53] : memref<33x3xf32, #tpu.memory_space<smem>>
    %199 = vector.broadcast %198 : f32 to vector<16x16xf32>
    %200 = arith.mulf %176, %199 : vector<16x16xf32>
    %201 = arith.addf %166, %200 : vector<16x16xf32>
    %202 = vector.broadcast %198 : f32 to vector<16x16xf32>
    %203 = arith.mulf %183, %202 : vector<16x16xf32>
    %204 = arith.addf %169, %203 : vector<16x16xf32>
    %205 = vector.extract_strided_slice %1 {offsets = [0, 4], sizes = [16, 1], strides = [1, 1]} : vector<16x32xf32> to vector<16x1xf32>
    %206 = vector.extract_strided_slice %7 {offsets = [4, 0], sizes = [1, 16], strides = [1, 1]} : vector<32x16xf32> to vector<1x16xf32>
    %207 = vector.broadcast %205 : vector<16x1xf32> to vector<16x16xf32>
    %208 = vector.broadcast %206 : vector<1x16xf32> to vector<16x16xf32>
    %209 = arith.addf %207, %208 : vector<16x16xf32>
    %cst_54 = arith.constant 0.000000e+00 : f32
    %210 = vector.broadcast %cst_54 : f32 to vector<16x16xf32>
    %211 = arith.maximumf %209, %210 : vector<16x16xf32>
    %212 = vector.extract_strided_slice %3 {offsets = [0, 4], sizes = [16, 1], strides = [1, 1]} : vector<16x32xf32> to vector<16x1xf32>
    %213 = vector.extract_strided_slice %5 {offsets = [4, 0], sizes = [1, 16], strides = [1, 1]} : vector<32x16xf32> to vector<1x16xf32>
    %214 = vector.broadcast %212 : vector<16x1xf32> to vector<16x16xf32>
    %215 = vector.broadcast %213 : vector<1x16xf32> to vector<16x16xf32>
    %216 = arith.addf %214, %215 : vector<16x16xf32>
    %cst_55 = arith.constant 0.000000e+00 : f32
    %217 = vector.broadcast %cst_55 : f32 to vector<16x16xf32>
    %218 = arith.maximumf %216, %217 : vector<16x16xf32>
    %c4 = arith.constant 4 : index
    %c0_56 = arith.constant 0 : index
    %219 = memref.load %arg3[%c4, %c0_56] : memref<33x3xf32, #tpu.memory_space<smem>>
    %220 = vector.broadcast %219 : f32 to vector<16x16xf32>
    %221 = arith.mulf %211, %220 : vector<16x16xf32>
    %222 = arith.addf %187, %221 : vector<16x16xf32>
    %223 = vector.broadcast %219 : f32 to vector<16x16xf32>
    %224 = arith.mulf %218, %223 : vector<16x16xf32>
    %225 = arith.addf %190, %224 : vector<16x16xf32>
    %c4_57 = arith.constant 4 : index
    %c1_58 = arith.constant 1 : index
    %226 = memref.load %arg3[%c4_57, %c1_58] : memref<33x3xf32, #tpu.memory_space<smem>>
    %227 = vector.broadcast %226 : f32 to vector<16x16xf32>
    %228 = arith.mulf %211, %227 : vector<16x16xf32>
    %229 = arith.addf %194, %228 : vector<16x16xf32>
    %230 = vector.broadcast %226 : f32 to vector<16x16xf32>
    %231 = arith.mulf %218, %230 : vector<16x16xf32>
    %232 = arith.addf %197, %231 : vector<16x16xf32>
    %c4_59 = arith.constant 4 : index
    %c2_60 = arith.constant 2 : index
    %233 = memref.load %arg3[%c4_59, %c2_60] : memref<33x3xf32, #tpu.memory_space<smem>>
    %234 = vector.broadcast %233 : f32 to vector<16x16xf32>
    %235 = arith.mulf %211, %234 : vector<16x16xf32>
    %236 = arith.addf %201, %235 : vector<16x16xf32>
    %237 = vector.broadcast %233 : f32 to vector<16x16xf32>
    %238 = arith.mulf %218, %237 : vector<16x16xf32>
    %239 = arith.addf %204, %238 : vector<16x16xf32>
    %240 = vector.extract_strided_slice %1 {offsets = [0, 5], sizes = [16, 1], strides = [1, 1]} : vector<16x32xf32> to vector<16x1xf32>
    %241 = vector.extract_strided_slice %7 {offsets = [5, 0], sizes = [1, 16], strides = [1, 1]} : vector<32x16xf32> to vector<1x16xf32>
    %242 = vector.broadcast %240 : vector<16x1xf32> to vector<16x16xf32>
    %243 = vector.broadcast %241 : vector<1x16xf32> to vector<16x16xf32>
    %244 = arith.addf %242, %243 : vector<16x16xf32>
    %cst_61 = arith.constant 0.000000e+00 : f32
    %245 = vector.broadcast %cst_61 : f32 to vector<16x16xf32>
    %246 = arith.maximumf %244, %245 : vector<16x16xf32>
    %247 = vector.extract_strided_slice %3 {offsets = [0, 5], sizes = [16, 1], strides = [1, 1]} : vector<16x32xf32> to vector<16x1xf32>
    %248 = vector.extract_strided_slice %5 {offsets = [5, 0], sizes = [1, 16], strides = [1, 1]} : vector<32x16xf32> to vector<1x16xf32>
    %249 = vector.broadcast %247 : vector<16x1xf32> to vector<16x16xf32>
    %250 = vector.broadcast %248 : vector<1x16xf32> to vector<16x16xf32>
    %251 = arith.addf %249, %250 : vector<16x16xf32>
    %cst_62 = arith.constant 0.000000e+00 : f32
    %252 = vector.broadcast %cst_62 : f32 to vector<16x16xf32>
    %253 = arith.maximumf %251, %252 : vector<16x16xf32>
    %c5 = arith.constant 5 : index
    %c0_63 = arith.constant 0 : index
    %254 = memref.load %arg3[%c5, %c0_63] : memref<33x3xf32, #tpu.memory_space<smem>>
    %255 = vector.broadcast %254 : f32 to vector<16x16xf32>
    %256 = arith.mulf %246, %255 : vector<16x16xf32>
    %257 = arith.addf %222, %256 : vector<16x16xf32>
    %258 = vector.broadcast %254 : f32 to vector<16x16xf32>
    %259 = arith.mulf %253, %258 : vector<16x16xf32>
    %260 = arith.addf %225, %259 : vector<16x16xf32>
    %c5_64 = arith.constant 5 : index
    %c1_65 = arith.constant 1 : index
    %261 = memref.load %arg3[%c5_64, %c1_65] : memref<33x3xf32, #tpu.memory_space<smem>>
    %262 = vector.broadcast %261 : f32 to vector<16x16xf32>
    %263 = arith.mulf %246, %262 : vector<16x16xf32>
    %264 = arith.addf %229, %263 : vector<16x16xf32>
    %265 = vector.broadcast %261 : f32 to vector<16x16xf32>
    %266 = arith.mulf %253, %265 : vector<16x16xf32>
    %267 = arith.addf %232, %266 : vector<16x16xf32>
    %c5_66 = arith.constant 5 : index
    %c2_67 = arith.constant 2 : index
    %268 = memref.load %arg3[%c5_66, %c2_67] : memref<33x3xf32, #tpu.memory_space<smem>>
    %269 = vector.broadcast %268 : f32 to vector<16x16xf32>
    %270 = arith.mulf %246, %269 : vector<16x16xf32>
    %271 = arith.addf %236, %270 : vector<16x16xf32>
    %272 = vector.broadcast %268 : f32 to vector<16x16xf32>
    %273 = arith.mulf %253, %272 : vector<16x16xf32>
    %274 = arith.addf %239, %273 : vector<16x16xf32>
    %275 = vector.extract_strided_slice %1 {offsets = [0, 6], sizes = [16, 1], strides = [1, 1]} : vector<16x32xf32> to vector<16x1xf32>
    %276 = vector.extract_strided_slice %7 {offsets = [6, 0], sizes = [1, 16], strides = [1, 1]} : vector<32x16xf32> to vector<1x16xf32>
    %277 = vector.broadcast %275 : vector<16x1xf32> to vector<16x16xf32>
    %278 = vector.broadcast %276 : vector<1x16xf32> to vector<16x16xf32>
    %279 = arith.addf %277, %278 : vector<16x16xf32>
    %cst_68 = arith.constant 0.000000e+00 : f32
    %280 = vector.broadcast %cst_68 : f32 to vector<16x16xf32>
    %281 = arith.maximumf %279, %280 : vector<16x16xf32>
    %282 = vector.extract_strided_slice %3 {offsets = [0, 6], sizes = [16, 1], strides = [1, 1]} : vector<16x32xf32> to vector<16x1xf32>
    %283 = vector.extract_strided_slice %5 {offsets = [6, 0], sizes = [1, 16], strides = [1, 1]} : vector<32x16xf32> to vector<1x16xf32>
    %284 = vector.broadcast %282 : vector<16x1xf32> to vector<16x16xf32>
    %285 = vector.broadcast %283 : vector<1x16xf32> to vector<16x16xf32>
    %286 = arith.addf %284, %285 : vector<16x16xf32>
    %cst_69 = arith.constant 0.000000e+00 : f32
    %287 = vector.broadcast %cst_69 : f32 to vector<16x16xf32>
    %288 = arith.maximumf %286, %287 : vector<16x16xf32>
    %c6 = arith.constant 6 : index
    %c0_70 = arith.constant 0 : index
    %289 = memref.load %arg3[%c6, %c0_70] : memref<33x3xf32, #tpu.memory_space<smem>>
    %290 = vector.broadcast %289 : f32 to vector<16x16xf32>
    %291 = arith.mulf %281, %290 : vector<16x16xf32>
    %292 = arith.addf %257, %291 : vector<16x16xf32>
    %293 = vector.broadcast %289 : f32 to vector<16x16xf32>
    %294 = arith.mulf %288, %293 : vector<16x16xf32>
    %295 = arith.addf %260, %294 : vector<16x16xf32>
    %c6_71 = arith.constant 6 : index
    %c1_72 = arith.constant 1 : index
    %296 = memref.load %arg3[%c6_71, %c1_72] : memref<33x3xf32, #tpu.memory_space<smem>>
    %297 = vector.broadcast %296 : f32 to vector<16x16xf32>
    %298 = arith.mulf %281, %297 : vector<16x16xf32>
    %299 = arith.addf %264, %298 : vector<16x16xf32>
    %300 = vector.broadcast %296 : f32 to vector<16x16xf32>
    %301 = arith.mulf %288, %300 : vector<16x16xf32>
    %302 = arith.addf %267, %301 : vector<16x16xf32>
    %c6_73 = arith.constant 6 : index
    %c2_74 = arith.constant 2 : index
    %303 = memref.load %arg3[%c6_73, %c2_74] : memref<33x3xf32, #tpu.memory_space<smem>>
    %304 = vector.broadcast %303 : f32 to vector<16x16xf32>
    %305 = arith.mulf %281, %304 : vector<16x16xf32>
    %306 = arith.addf %271, %305 : vector<16x16xf32>
    %307 = vector.broadcast %303 : f32 to vector<16x16xf32>
    %308 = arith.mulf %288, %307 : vector<16x16xf32>
    %309 = arith.addf %274, %308 : vector<16x16xf32>
    %310 = vector.extract_strided_slice %1 {offsets = [0, 7], sizes = [16, 1], strides = [1, 1]} : vector<16x32xf32> to vector<16x1xf32>
    %311 = vector.extract_strided_slice %7 {offsets = [7, 0], sizes = [1, 16], strides = [1, 1]} : vector<32x16xf32> to vector<1x16xf32>
    %312 = vector.broadcast %310 : vector<16x1xf32> to vector<16x16xf32>
    %313 = vector.broadcast %311 : vector<1x16xf32> to vector<16x16xf32>
    %314 = arith.addf %312, %313 : vector<16x16xf32>
    %cst_75 = arith.constant 0.000000e+00 : f32
    %315 = vector.broadcast %cst_75 : f32 to vector<16x16xf32>
    %316 = arith.maximumf %314, %315 : vector<16x16xf32>
    %317 = vector.extract_strided_slice %3 {offsets = [0, 7], sizes = [16, 1], strides = [1, 1]} : vector<16x32xf32> to vector<16x1xf32>
    %318 = vector.extract_strided_slice %5 {offsets = [7, 0], sizes = [1, 16], strides = [1, 1]} : vector<32x16xf32> to vector<1x16xf32>
    %319 = vector.broadcast %317 : vector<16x1xf32> to vector<16x16xf32>
    %320 = vector.broadcast %318 : vector<1x16xf32> to vector<16x16xf32>
    %321 = arith.addf %319, %320 : vector<16x16xf32>
    %cst_76 = arith.constant 0.000000e+00 : f32
    %322 = vector.broadcast %cst_76 : f32 to vector<16x16xf32>
    %323 = arith.maximumf %321, %322 : vector<16x16xf32>
    %c7 = arith.constant 7 : index
    %c0_77 = arith.constant 0 : index
    %324 = memref.load %arg3[%c7, %c0_77] : memref<33x3xf32, #tpu.memory_space<smem>>
    %325 = vector.broadcast %324 : f32 to vector<16x16xf32>
    %326 = arith.mulf %316, %325 : vector<16x16xf32>
    %327 = arith.addf %292, %326 : vector<16x16xf32>
    %328 = vector.broadcast %324 : f32 to vector<16x16xf32>
    %329 = arith.mulf %323, %328 : vector<16x16xf32>
    %330 = arith.addf %295, %329 : vector<16x16xf32>
    %c7_78 = arith.constant 7 : index
    %c1_79 = arith.constant 1 : index
    %331 = memref.load %arg3[%c7_78, %c1_79] : memref<33x3xf32, #tpu.memory_space<smem>>
    %332 = vector.broadcast %331 : f32 to vector<16x16xf32>
    %333 = arith.mulf %316, %332 : vector<16x16xf32>
    %334 = arith.addf %299, %333 : vector<16x16xf32>
    %335 = vector.broadcast %331 : f32 to vector<16x16xf32>
    %336 = arith.mulf %323, %335 : vector<16x16xf32>
    %337 = arith.addf %302, %336 : vector<16x16xf32>
    %c7_80 = arith.constant 7 : index
    %c2_81 = arith.constant 2 : index
    %338 = memref.load %arg3[%c7_80, %c2_81] : memref<33x3xf32, #tpu.memory_space<smem>>
    %339 = vector.broadcast %338 : f32 to vector<16x16xf32>
    %340 = arith.mulf %316, %339 : vector<16x16xf32>
    %341 = arith.addf %306, %340 : vector<16x16xf32>
    %342 = vector.broadcast %338 : f32 to vector<16x16xf32>
    %343 = arith.mulf %323, %342 : vector<16x16xf32>
    %344 = arith.addf %309, %343 : vector<16x16xf32>
    %345 = vector.extract_strided_slice %1 {offsets = [0, 8], sizes = [16, 1], strides = [1, 1]} : vector<16x32xf32> to vector<16x1xf32>
    %346 = vector.extract_strided_slice %7 {offsets = [8, 0], sizes = [1, 16], strides = [1, 1]} : vector<32x16xf32> to vector<1x16xf32>
    %347 = vector.broadcast %345 : vector<16x1xf32> to vector<16x16xf32>
    %348 = vector.broadcast %346 : vector<1x16xf32> to vector<16x16xf32>
    %349 = arith.addf %347, %348 : vector<16x16xf32>
    %cst_82 = arith.constant 0.000000e+00 : f32
    %350 = vector.broadcast %cst_82 : f32 to vector<16x16xf32>
    %351 = arith.maximumf %349, %350 : vector<16x16xf32>
    %352 = vector.extract_strided_slice %3 {offsets = [0, 8], sizes = [16, 1], strides = [1, 1]} : vector<16x32xf32> to vector<16x1xf32>
    %353 = vector.extract_strided_slice %5 {offsets = [8, 0], sizes = [1, 16], strides = [1, 1]} : vector<32x16xf32> to vector<1x16xf32>
    %354 = vector.broadcast %352 : vector<16x1xf32> to vector<16x16xf32>
    %355 = vector.broadcast %353 : vector<1x16xf32> to vector<16x16xf32>
    %356 = arith.addf %354, %355 : vector<16x16xf32>
    %cst_83 = arith.constant 0.000000e+00 : f32
    %357 = vector.broadcast %cst_83 : f32 to vector<16x16xf32>
    %358 = arith.maximumf %356, %357 : vector<16x16xf32>
    %c8 = arith.constant 8 : index
    %c0_84 = arith.constant 0 : index
    %359 = memref.load %arg3[%c8, %c0_84] : memref<33x3xf32, #tpu.memory_space<smem>>
    %360 = vector.broadcast %359 : f32 to vector<16x16xf32>
    %361 = arith.mulf %351, %360 : vector<16x16xf32>
    %362 = arith.addf %327, %361 : vector<16x16xf32>
    %363 = vector.broadcast %359 : f32 to vector<16x16xf32>
    %364 = arith.mulf %358, %363 : vector<16x16xf32>
    %365 = arith.addf %330, %364 : vector<16x16xf32>
    %c8_85 = arith.constant 8 : index
    %c1_86 = arith.constant 1 : index
    %366 = memref.load %arg3[%c8_85, %c1_86] : memref<33x3xf32, #tpu.memory_space<smem>>
    %367 = vector.broadcast %366 : f32 to vector<16x16xf32>
    %368 = arith.mulf %351, %367 : vector<16x16xf32>
    %369 = arith.addf %334, %368 : vector<16x16xf32>
    %370 = vector.broadcast %366 : f32 to vector<16x16xf32>
    %371 = arith.mulf %358, %370 : vector<16x16xf32>
    %372 = arith.addf %337, %371 : vector<16x16xf32>
    %c8_87 = arith.constant 8 : index
    %c2_88 = arith.constant 2 : index
    %373 = memref.load %arg3[%c8_87, %c2_88] : memref<33x3xf32, #tpu.memory_space<smem>>
    %374 = vector.broadcast %373 : f32 to vector<16x16xf32>
    %375 = arith.mulf %351, %374 : vector<16x16xf32>
    %376 = arith.addf %341, %375 : vector<16x16xf32>
    %377 = vector.broadcast %373 : f32 to vector<16x16xf32>
    %378 = arith.mulf %358, %377 : vector<16x16xf32>
    %379 = arith.addf %344, %378 : vector<16x16xf32>
    %380 = vector.extract_strided_slice %1 {offsets = [0, 9], sizes = [16, 1], strides = [1, 1]} : vector<16x32xf32> to vector<16x1xf32>
    %381 = vector.extract_strided_slice %7 {offsets = [9, 0], sizes = [1, 16], strides = [1, 1]} : vector<32x16xf32> to vector<1x16xf32>
    %382 = vector.broadcast %380 : vector<16x1xf32> to vector<16x16xf32>
    %383 = vector.broadcast %381 : vector<1x16xf32> to vector<16x16xf32>
    %384 = arith.addf %382, %383 : vector<16x16xf32>
    %cst_89 = arith.constant 0.000000e+00 : f32
    %385 = vector.broadcast %cst_89 : f32 to vector<16x16xf32>
    %386 = arith.maximumf %384, %385 : vector<16x16xf32>
    %387 = vector.extract_strided_slice %3 {offsets = [0, 9], sizes = [16, 1], strides = [1, 1]} : vector<16x32xf32> to vector<16x1xf32>
    %388 = vector.extract_strided_slice %5 {offsets = [9, 0], sizes = [1, 16], strides = [1, 1]} : vector<32x16xf32> to vector<1x16xf32>
    %389 = vector.broadcast %387 : vector<16x1xf32> to vector<16x16xf32>
    %390 = vector.broadcast %388 : vector<1x16xf32> to vector<16x16xf32>
    %391 = arith.addf %389, %390 : vector<16x16xf32>
    %cst_90 = arith.constant 0.000000e+00 : f32
    %392 = vector.broadcast %cst_90 : f32 to vector<16x16xf32>
    %393 = arith.maximumf %391, %392 : vector<16x16xf32>
    %c9 = arith.constant 9 : index
    %c0_91 = arith.constant 0 : index
    %394 = memref.load %arg3[%c9, %c0_91] : memref<33x3xf32, #tpu.memory_space<smem>>
    %395 = vector.broadcast %394 : f32 to vector<16x16xf32>
    %396 = arith.mulf %386, %395 : vector<16x16xf32>
    %397 = arith.addf %362, %396 : vector<16x16xf32>
    %398 = vector.broadcast %394 : f32 to vector<16x16xf32>
    %399 = arith.mulf %393, %398 : vector<16x16xf32>
    %400 = arith.addf %365, %399 : vector<16x16xf32>
    %c9_92 = arith.constant 9 : index
    %c1_93 = arith.constant 1 : index
    %401 = memref.load %arg3[%c9_92, %c1_93] : memref<33x3xf32, #tpu.memory_space<smem>>
    %402 = vector.broadcast %401 : f32 to vector<16x16xf32>
    %403 = arith.mulf %386, %402 : vector<16x16xf32>
    %404 = arith.addf %369, %403 : vector<16x16xf32>
    %405 = vector.broadcast %401 : f32 to vector<16x16xf32>
    %406 = arith.mulf %393, %405 : vector<16x16xf32>
    %407 = arith.addf %372, %406 : vector<16x16xf32>
    %c9_94 = arith.constant 9 : index
    %c2_95 = arith.constant 2 : index
    %408 = memref.load %arg3[%c9_94, %c2_95] : memref<33x3xf32, #tpu.memory_space<smem>>
    %409 = vector.broadcast %408 : f32 to vector<16x16xf32>
    %410 = arith.mulf %386, %409 : vector<16x16xf32>
    %411 = arith.addf %376, %410 : vector<16x16xf32>
    %412 = vector.broadcast %408 : f32 to vector<16x16xf32>
    %413 = arith.mulf %393, %412 : vector<16x16xf32>
    %414 = arith.addf %379, %413 : vector<16x16xf32>
    %415 = vector.extract_strided_slice %1 {offsets = [0, 10], sizes = [16, 1], strides = [1, 1]} : vector<16x32xf32> to vector<16x1xf32>
    %416 = vector.extract_strided_slice %7 {offsets = [10, 0], sizes = [1, 16], strides = [1, 1]} : vector<32x16xf32> to vector<1x16xf32>
    %417 = vector.broadcast %415 : vector<16x1xf32> to vector<16x16xf32>
    %418 = vector.broadcast %416 : vector<1x16xf32> to vector<16x16xf32>
    %419 = arith.addf %417, %418 : vector<16x16xf32>
    %cst_96 = arith.constant 0.000000e+00 : f32
    %420 = vector.broadcast %cst_96 : f32 to vector<16x16xf32>
    %421 = arith.maximumf %419, %420 : vector<16x16xf32>
    %422 = vector.extract_strided_slice %3 {offsets = [0, 10], sizes = [16, 1], strides = [1, 1]} : vector<16x32xf32> to vector<16x1xf32>
    %423 = vector.extract_strided_slice %5 {offsets = [10, 0], sizes = [1, 16], strides = [1, 1]} : vector<32x16xf32> to vector<1x16xf32>
    %424 = vector.broadcast %422 : vector<16x1xf32> to vector<16x16xf32>
    %425 = vector.broadcast %423 : vector<1x16xf32> to vector<16x16xf32>
    %426 = arith.addf %424, %425 : vector<16x16xf32>
    %cst_97 = arith.constant 0.000000e+00 : f32
    %427 = vector.broadcast %cst_97 : f32 to vector<16x16xf32>
    %428 = arith.maximumf %426, %427 : vector<16x16xf32>
    %c10 = arith.constant 10 : index
    %c0_98 = arith.constant 0 : index
    %429 = memref.load %arg3[%c10, %c0_98] : memref<33x3xf32, #tpu.memory_space<smem>>
    %430 = vector.broadcast %429 : f32 to vector<16x16xf32>
    %431 = arith.mulf %421, %430 : vector<16x16xf32>
    %432 = arith.addf %397, %431 : vector<16x16xf32>
    %433 = vector.broadcast %429 : f32 to vector<16x16xf32>
    %434 = arith.mulf %428, %433 : vector<16x16xf32>
    %435 = arith.addf %400, %434 : vector<16x16xf32>
    %c10_99 = arith.constant 10 : index
    %c1_100 = arith.constant 1 : index
    %436 = memref.load %arg3[%c10_99, %c1_100] : memref<33x3xf32, #tpu.memory_space<smem>>
    %437 = vector.broadcast %436 : f32 to vector<16x16xf32>
    %438 = arith.mulf %421, %437 : vector<16x16xf32>
    %439 = arith.addf %404, %438 : vector<16x16xf32>
    %440 = vector.broadcast %436 : f32 to vector<16x16xf32>
    %441 = arith.mulf %428, %440 : vector<16x16xf32>
    %442 = arith.addf %407, %441 : vector<16x16xf32>
    %c10_101 = arith.constant 10 : index
    %c2_102 = arith.constant 2 : index
    %443 = memref.load %arg3[%c10_101, %c2_102] : memref<33x3xf32, #tpu.memory_space<smem>>
    %444 = vector.broadcast %443 : f32 to vector<16x16xf32>
    %445 = arith.mulf %421, %444 : vector<16x16xf32>
    %446 = arith.addf %411, %445 : vector<16x16xf32>
    %447 = vector.broadcast %443 : f32 to vector<16x16xf32>
    %448 = arith.mulf %428, %447 : vector<16x16xf32>
    %449 = arith.addf %414, %448 : vector<16x16xf32>
    %450 = vector.extract_strided_slice %1 {offsets = [0, 11], sizes = [16, 1], strides = [1, 1]} : vector<16x32xf32> to vector<16x1xf32>
    %451 = vector.extract_strided_slice %7 {offsets = [11, 0], sizes = [1, 16], strides = [1, 1]} : vector<32x16xf32> to vector<1x16xf32>
    %452 = vector.broadcast %450 : vector<16x1xf32> to vector<16x16xf32>
    %453 = vector.broadcast %451 : vector<1x16xf32> to vector<16x16xf32>
    %454 = arith.addf %452, %453 : vector<16x16xf32>
    %cst_103 = arith.constant 0.000000e+00 : f32
    %455 = vector.broadcast %cst_103 : f32 to vector<16x16xf32>
    %456 = arith.maximumf %454, %455 : vector<16x16xf32>
    %457 = vector.extract_strided_slice %3 {offsets = [0, 11], sizes = [16, 1], strides = [1, 1]} : vector<16x32xf32> to vector<16x1xf32>
    %458 = vector.extract_strided_slice %5 {offsets = [11, 0], sizes = [1, 16], strides = [1, 1]} : vector<32x16xf32> to vector<1x16xf32>
    %459 = vector.broadcast %457 : vector<16x1xf32> to vector<16x16xf32>
    %460 = vector.broadcast %458 : vector<1x16xf32> to vector<16x16xf32>
    %461 = arith.addf %459, %460 : vector<16x16xf32>
    %cst_104 = arith.constant 0.000000e+00 : f32
    %462 = vector.broadcast %cst_104 : f32 to vector<16x16xf32>
    %463 = arith.maximumf %461, %462 : vector<16x16xf32>
    %c11 = arith.constant 11 : index
    %c0_105 = arith.constant 0 : index
    %464 = memref.load %arg3[%c11, %c0_105] : memref<33x3xf32, #tpu.memory_space<smem>>
    %465 = vector.broadcast %464 : f32 to vector<16x16xf32>
    %466 = arith.mulf %456, %465 : vector<16x16xf32>
    %467 = arith.addf %432, %466 : vector<16x16xf32>
    %468 = vector.broadcast %464 : f32 to vector<16x16xf32>
    %469 = arith.mulf %463, %468 : vector<16x16xf32>
    %470 = arith.addf %435, %469 : vector<16x16xf32>
    %c11_106 = arith.constant 11 : index
    %c1_107 = arith.constant 1 : index
    %471 = memref.load %arg3[%c11_106, %c1_107] : memref<33x3xf32, #tpu.memory_space<smem>>
    %472 = vector.broadcast %471 : f32 to vector<16x16xf32>
    %473 = arith.mulf %456, %472 : vector<16x16xf32>
    %474 = arith.addf %439, %473 : vector<16x16xf32>
    %475 = vector.broadcast %471 : f32 to vector<16x16xf32>
    %476 = arith.mulf %463, %475 : vector<16x16xf32>
    %477 = arith.addf %442, %476 : vector<16x16xf32>
    %c11_108 = arith.constant 11 : index
    %c2_109 = arith.constant 2 : index
    %478 = memref.load %arg3[%c11_108, %c2_109] : memref<33x3xf32, #tpu.memory_space<smem>>
    %479 = vector.broadcast %478 : f32 to vector<16x16xf32>
    %480 = arith.mulf %456, %479 : vector<16x16xf32>
    %481 = arith.addf %446, %480 : vector<16x16xf32>
    %482 = vector.broadcast %478 : f32 to vector<16x16xf32>
    %483 = arith.mulf %463, %482 : vector<16x16xf32>
    %484 = arith.addf %449, %483 : vector<16x16xf32>
    %485 = vector.extract_strided_slice %1 {offsets = [0, 12], sizes = [16, 1], strides = [1, 1]} : vector<16x32xf32> to vector<16x1xf32>
    %486 = vector.extract_strided_slice %7 {offsets = [12, 0], sizes = [1, 16], strides = [1, 1]} : vector<32x16xf32> to vector<1x16xf32>
    %487 = vector.broadcast %485 : vector<16x1xf32> to vector<16x16xf32>
    %488 = vector.broadcast %486 : vector<1x16xf32> to vector<16x16xf32>
    %489 = arith.addf %487, %488 : vector<16x16xf32>
    %cst_110 = arith.constant 0.000000e+00 : f32
    %490 = vector.broadcast %cst_110 : f32 to vector<16x16xf32>
    %491 = arith.maximumf %489, %490 : vector<16x16xf32>
    %492 = vector.extract_strided_slice %3 {offsets = [0, 12], sizes = [16, 1], strides = [1, 1]} : vector<16x32xf32> to vector<16x1xf32>
    %493 = vector.extract_strided_slice %5 {offsets = [12, 0], sizes = [1, 16], strides = [1, 1]} : vector<32x16xf32> to vector<1x16xf32>
    %494 = vector.broadcast %492 : vector<16x1xf32> to vector<16x16xf32>
    %495 = vector.broadcast %493 : vector<1x16xf32> to vector<16x16xf32>
    %496 = arith.addf %494, %495 : vector<16x16xf32>
    %cst_111 = arith.constant 0.000000e+00 : f32
    %497 = vector.broadcast %cst_111 : f32 to vector<16x16xf32>
    %498 = arith.maximumf %496, %497 : vector<16x16xf32>
    %c12 = arith.constant 12 : index
    %c0_112 = arith.constant 0 : index
    %499 = memref.load %arg3[%c12, %c0_112] : memref<33x3xf32, #tpu.memory_space<smem>>
    %500 = vector.broadcast %499 : f32 to vector<16x16xf32>
    %501 = arith.mulf %491, %500 : vector<16x16xf32>
    %502 = arith.addf %467, %501 : vector<16x16xf32>
    %503 = vector.broadcast %499 : f32 to vector<16x16xf32>
    %504 = arith.mulf %498, %503 : vector<16x16xf32>
    %505 = arith.addf %470, %504 : vector<16x16xf32>
    %c12_113 = arith.constant 12 : index
    %c1_114 = arith.constant 1 : index
    %506 = memref.load %arg3[%c12_113, %c1_114] : memref<33x3xf32, #tpu.memory_space<smem>>
    %507 = vector.broadcast %506 : f32 to vector<16x16xf32>
    %508 = arith.mulf %491, %507 : vector<16x16xf32>
    %509 = arith.addf %474, %508 : vector<16x16xf32>
    %510 = vector.broadcast %506 : f32 to vector<16x16xf32>
    %511 = arith.mulf %498, %510 : vector<16x16xf32>
    %512 = arith.addf %477, %511 : vector<16x16xf32>
    %c12_115 = arith.constant 12 : index
    %c2_116 = arith.constant 2 : index
    %513 = memref.load %arg3[%c12_115, %c2_116] : memref<33x3xf32, #tpu.memory_space<smem>>
    %514 = vector.broadcast %513 : f32 to vector<16x16xf32>
    %515 = arith.mulf %491, %514 : vector<16x16xf32>
    %516 = arith.addf %481, %515 : vector<16x16xf32>
    %517 = vector.broadcast %513 : f32 to vector<16x16xf32>
    %518 = arith.mulf %498, %517 : vector<16x16xf32>
    %519 = arith.addf %484, %518 : vector<16x16xf32>
    %520 = vector.extract_strided_slice %1 {offsets = [0, 13], sizes = [16, 1], strides = [1, 1]} : vector<16x32xf32> to vector<16x1xf32>
    %521 = vector.extract_strided_slice %7 {offsets = [13, 0], sizes = [1, 16], strides = [1, 1]} : vector<32x16xf32> to vector<1x16xf32>
    %522 = vector.broadcast %520 : vector<16x1xf32> to vector<16x16xf32>
    %523 = vector.broadcast %521 : vector<1x16xf32> to vector<16x16xf32>
    %524 = arith.addf %522, %523 : vector<16x16xf32>
    %cst_117 = arith.constant 0.000000e+00 : f32
    %525 = vector.broadcast %cst_117 : f32 to vector<16x16xf32>
    %526 = arith.maximumf %524, %525 : vector<16x16xf32>
    %527 = vector.extract_strided_slice %3 {offsets = [0, 13], sizes = [16, 1], strides = [1, 1]} : vector<16x32xf32> to vector<16x1xf32>
    %528 = vector.extract_strided_slice %5 {offsets = [13, 0], sizes = [1, 16], strides = [1, 1]} : vector<32x16xf32> to vector<1x16xf32>
    %529 = vector.broadcast %527 : vector<16x1xf32> to vector<16x16xf32>
    %530 = vector.broadcast %528 : vector<1x16xf32> to vector<16x16xf32>
    %531 = arith.addf %529, %530 : vector<16x16xf32>
    %cst_118 = arith.constant 0.000000e+00 : f32
    %532 = vector.broadcast %cst_118 : f32 to vector<16x16xf32>
    %533 = arith.maximumf %531, %532 : vector<16x16xf32>
    %c13 = arith.constant 13 : index
    %c0_119 = arith.constant 0 : index
    %534 = memref.load %arg3[%c13, %c0_119] : memref<33x3xf32, #tpu.memory_space<smem>>
    %535 = vector.broadcast %534 : f32 to vector<16x16xf32>
    %536 = arith.mulf %526, %535 : vector<16x16xf32>
    %537 = arith.addf %502, %536 : vector<16x16xf32>
    %538 = vector.broadcast %534 : f32 to vector<16x16xf32>
    %539 = arith.mulf %533, %538 : vector<16x16xf32>
    %540 = arith.addf %505, %539 : vector<16x16xf32>
    %c13_120 = arith.constant 13 : index
    %c1_121 = arith.constant 1 : index
    %541 = memref.load %arg3[%c13_120, %c1_121] : memref<33x3xf32, #tpu.memory_space<smem>>
    %542 = vector.broadcast %541 : f32 to vector<16x16xf32>
    %543 = arith.mulf %526, %542 : vector<16x16xf32>
    %544 = arith.addf %509, %543 : vector<16x16xf32>
    %545 = vector.broadcast %541 : f32 to vector<16x16xf32>
    %546 = arith.mulf %533, %545 : vector<16x16xf32>
    %547 = arith.addf %512, %546 : vector<16x16xf32>
    %c13_122 = arith.constant 13 : index
    %c2_123 = arith.constant 2 : index
    %548 = memref.load %arg3[%c13_122, %c2_123] : memref<33x3xf32, #tpu.memory_space<smem>>
    %549 = vector.broadcast %548 : f32 to vector<16x16xf32>
    %550 = arith.mulf %526, %549 : vector<16x16xf32>
    %551 = arith.addf %516, %550 : vector<16x16xf32>
    %552 = vector.broadcast %548 : f32 to vector<16x16xf32>
    %553 = arith.mulf %533, %552 : vector<16x16xf32>
    %554 = arith.addf %519, %553 : vector<16x16xf32>
    %555 = vector.extract_strided_slice %1 {offsets = [0, 14], sizes = [16, 1], strides = [1, 1]} : vector<16x32xf32> to vector<16x1xf32>
    %556 = vector.extract_strided_slice %7 {offsets = [14, 0], sizes = [1, 16], strides = [1, 1]} : vector<32x16xf32> to vector<1x16xf32>
    %557 = vector.broadcast %555 : vector<16x1xf32> to vector<16x16xf32>
    %558 = vector.broadcast %556 : vector<1x16xf32> to vector<16x16xf32>
    %559 = arith.addf %557, %558 : vector<16x16xf32>
    %cst_124 = arith.constant 0.000000e+00 : f32
    %560 = vector.broadcast %cst_124 : f32 to vector<16x16xf32>
    %561 = arith.maximumf %559, %560 : vector<16x16xf32>
    %562 = vector.extract_strided_slice %3 {offsets = [0, 14], sizes = [16, 1], strides = [1, 1]} : vector<16x32xf32> to vector<16x1xf32>
    %563 = vector.extract_strided_slice %5 {offsets = [14, 0], sizes = [1, 16], strides = [1, 1]} : vector<32x16xf32> to vector<1x16xf32>
    %564 = vector.broadcast %562 : vector<16x1xf32> to vector<16x16xf32>
    %565 = vector.broadcast %563 : vector<1x16xf32> to vector<16x16xf32>
    %566 = arith.addf %564, %565 : vector<16x16xf32>
    %cst_125 = arith.constant 0.000000e+00 : f32
    %567 = vector.broadcast %cst_125 : f32 to vector<16x16xf32>
    %568 = arith.maximumf %566, %567 : vector<16x16xf32>
    %c14 = arith.constant 14 : index
    %c0_126 = arith.constant 0 : index
    %569 = memref.load %arg3[%c14, %c0_126] : memref<33x3xf32, #tpu.memory_space<smem>>
    %570 = vector.broadcast %569 : f32 to vector<16x16xf32>
    %571 = arith.mulf %561, %570 : vector<16x16xf32>
    %572 = arith.addf %537, %571 : vector<16x16xf32>
    %573 = vector.broadcast %569 : f32 to vector<16x16xf32>
    %574 = arith.mulf %568, %573 : vector<16x16xf32>
    %575 = arith.addf %540, %574 : vector<16x16xf32>
    %c14_127 = arith.constant 14 : index
    %c1_128 = arith.constant 1 : index
    %576 = memref.load %arg3[%c14_127, %c1_128] : memref<33x3xf32, #tpu.memory_space<smem>>
    %577 = vector.broadcast %576 : f32 to vector<16x16xf32>
    %578 = arith.mulf %561, %577 : vector<16x16xf32>
    %579 = arith.addf %544, %578 : vector<16x16xf32>
    %580 = vector.broadcast %576 : f32 to vector<16x16xf32>
    %581 = arith.mulf %568, %580 : vector<16x16xf32>
    %582 = arith.addf %547, %581 : vector<16x16xf32>
    %c14_129 = arith.constant 14 : index
    %c2_130 = arith.constant 2 : index
    %583 = memref.load %arg3[%c14_129, %c2_130] : memref<33x3xf32, #tpu.memory_space<smem>>
    %584 = vector.broadcast %583 : f32 to vector<16x16xf32>
    %585 = arith.mulf %561, %584 : vector<16x16xf32>
    %586 = arith.addf %551, %585 : vector<16x16xf32>
    %587 = vector.broadcast %583 : f32 to vector<16x16xf32>
    %588 = arith.mulf %568, %587 : vector<16x16xf32>
    %589 = arith.addf %554, %588 : vector<16x16xf32>
    %590 = vector.extract_strided_slice %1 {offsets = [0, 15], sizes = [16, 1], strides = [1, 1]} : vector<16x32xf32> to vector<16x1xf32>
    %591 = vector.extract_strided_slice %7 {offsets = [15, 0], sizes = [1, 16], strides = [1, 1]} : vector<32x16xf32> to vector<1x16xf32>
    %592 = vector.broadcast %590 : vector<16x1xf32> to vector<16x16xf32>
    %593 = vector.broadcast %591 : vector<1x16xf32> to vector<16x16xf32>
    %594 = arith.addf %592, %593 : vector<16x16xf32>
    %cst_131 = arith.constant 0.000000e+00 : f32
    %595 = vector.broadcast %cst_131 : f32 to vector<16x16xf32>
    %596 = arith.maximumf %594, %595 : vector<16x16xf32>
    %597 = vector.extract_strided_slice %3 {offsets = [0, 15], sizes = [16, 1], strides = [1, 1]} : vector<16x32xf32> to vector<16x1xf32>
    %598 = vector.extract_strided_slice %5 {offsets = [15, 0], sizes = [1, 16], strides = [1, 1]} : vector<32x16xf32> to vector<1x16xf32>
    %599 = vector.broadcast %597 : vector<16x1xf32> to vector<16x16xf32>
    %600 = vector.broadcast %598 : vector<1x16xf32> to vector<16x16xf32>
    %601 = arith.addf %599, %600 : vector<16x16xf32>
    %cst_132 = arith.constant 0.000000e+00 : f32
    %602 = vector.broadcast %cst_132 : f32 to vector<16x16xf32>
    %603 = arith.maximumf %601, %602 : vector<16x16xf32>
    %c15 = arith.constant 15 : index
    %c0_133 = arith.constant 0 : index
    %604 = memref.load %arg3[%c15, %c0_133] : memref<33x3xf32, #tpu.memory_space<smem>>
    %605 = vector.broadcast %604 : f32 to vector<16x16xf32>
    %606 = arith.mulf %596, %605 : vector<16x16xf32>
    %607 = arith.addf %572, %606 : vector<16x16xf32>
    %608 = vector.broadcast %604 : f32 to vector<16x16xf32>
    %609 = arith.mulf %603, %608 : vector<16x16xf32>
    %610 = arith.addf %575, %609 : vector<16x16xf32>
    %c15_134 = arith.constant 15 : index
    %c1_135 = arith.constant 1 : index
    %611 = memref.load %arg3[%c15_134, %c1_135] : memref<33x3xf32, #tpu.memory_space<smem>>
    %612 = vector.broadcast %611 : f32 to vector<16x16xf32>
    %613 = arith.mulf %596, %612 : vector<16x16xf32>
    %614 = arith.addf %579, %613 : vector<16x16xf32>
    %615 = vector.broadcast %611 : f32 to vector<16x16xf32>
    %616 = arith.mulf %603, %615 : vector<16x16xf32>
    %617 = arith.addf %582, %616 : vector<16x16xf32>
    %c15_136 = arith.constant 15 : index
    %c2_137 = arith.constant 2 : index
    %618 = memref.load %arg3[%c15_136, %c2_137] : memref<33x3xf32, #tpu.memory_space<smem>>
    %619 = vector.broadcast %618 : f32 to vector<16x16xf32>
    %620 = arith.mulf %596, %619 : vector<16x16xf32>
    %621 = arith.addf %586, %620 : vector<16x16xf32>
    %622 = vector.broadcast %618 : f32 to vector<16x16xf32>
    %623 = arith.mulf %603, %622 : vector<16x16xf32>
    %624 = arith.addf %589, %623 : vector<16x16xf32>
    %625 = vector.extract_strided_slice %1 {offsets = [0, 16], sizes = [16, 1], strides = [1, 1]} : vector<16x32xf32> to vector<16x1xf32>
    %626 = vector.extract_strided_slice %7 {offsets = [16, 0], sizes = [1, 16], strides = [1, 1]} : vector<32x16xf32> to vector<1x16xf32>
    %627 = vector.broadcast %625 : vector<16x1xf32> to vector<16x16xf32>
    %628 = vector.broadcast %626 : vector<1x16xf32> to vector<16x16xf32>
    %629 = arith.addf %627, %628 : vector<16x16xf32>
    %cst_138 = arith.constant 0.000000e+00 : f32
    %630 = vector.broadcast %cst_138 : f32 to vector<16x16xf32>
    %631 = arith.maximumf %629, %630 : vector<16x16xf32>
    %632 = vector.extract_strided_slice %3 {offsets = [0, 16], sizes = [16, 1], strides = [1, 1]} : vector<16x32xf32> to vector<16x1xf32>
    %633 = vector.extract_strided_slice %5 {offsets = [16, 0], sizes = [1, 16], strides = [1, 1]} : vector<32x16xf32> to vector<1x16xf32>
    %634 = vector.broadcast %632 : vector<16x1xf32> to vector<16x16xf32>
    %635 = vector.broadcast %633 : vector<1x16xf32> to vector<16x16xf32>
    %636 = arith.addf %634, %635 : vector<16x16xf32>
    %cst_139 = arith.constant 0.000000e+00 : f32
    %637 = vector.broadcast %cst_139 : f32 to vector<16x16xf32>
    %638 = arith.maximumf %636, %637 : vector<16x16xf32>
    %c16 = arith.constant 16 : index
    %c0_140 = arith.constant 0 : index
    %639 = memref.load %arg3[%c16, %c0_140] : memref<33x3xf32, #tpu.memory_space<smem>>
    %640 = vector.broadcast %639 : f32 to vector<16x16xf32>
    %641 = arith.mulf %631, %640 : vector<16x16xf32>
    %642 = arith.addf %607, %641 : vector<16x16xf32>
    %643 = vector.broadcast %639 : f32 to vector<16x16xf32>
    %644 = arith.mulf %638, %643 : vector<16x16xf32>
    %645 = arith.addf %610, %644 : vector<16x16xf32>
    %c16_141 = arith.constant 16 : index
    %c1_142 = arith.constant 1 : index
    %646 = memref.load %arg3[%c16_141, %c1_142] : memref<33x3xf32, #tpu.memory_space<smem>>
    %647 = vector.broadcast %646 : f32 to vector<16x16xf32>
    %648 = arith.mulf %631, %647 : vector<16x16xf32>
    %649 = arith.addf %614, %648 : vector<16x16xf32>
    %650 = vector.broadcast %646 : f32 to vector<16x16xf32>
    %651 = arith.mulf %638, %650 : vector<16x16xf32>
    %652 = arith.addf %617, %651 : vector<16x16xf32>
    %c16_143 = arith.constant 16 : index
    %c2_144 = arith.constant 2 : index
    %653 = memref.load %arg3[%c16_143, %c2_144] : memref<33x3xf32, #tpu.memory_space<smem>>
    %654 = vector.broadcast %653 : f32 to vector<16x16xf32>
    %655 = arith.mulf %631, %654 : vector<16x16xf32>
    %656 = arith.addf %621, %655 : vector<16x16xf32>
    %657 = vector.broadcast %653 : f32 to vector<16x16xf32>
    %658 = arith.mulf %638, %657 : vector<16x16xf32>
    %659 = arith.addf %624, %658 : vector<16x16xf32>
    %660 = vector.extract_strided_slice %1 {offsets = [0, 17], sizes = [16, 1], strides = [1, 1]} : vector<16x32xf32> to vector<16x1xf32>
    %661 = vector.extract_strided_slice %7 {offsets = [17, 0], sizes = [1, 16], strides = [1, 1]} : vector<32x16xf32> to vector<1x16xf32>
    %662 = vector.broadcast %660 : vector<16x1xf32> to vector<16x16xf32>
    %663 = vector.broadcast %661 : vector<1x16xf32> to vector<16x16xf32>
    %664 = arith.addf %662, %663 : vector<16x16xf32>
    %cst_145 = arith.constant 0.000000e+00 : f32
    %665 = vector.broadcast %cst_145 : f32 to vector<16x16xf32>
    %666 = arith.maximumf %664, %665 : vector<16x16xf32>
    %667 = vector.extract_strided_slice %3 {offsets = [0, 17], sizes = [16, 1], strides = [1, 1]} : vector<16x32xf32> to vector<16x1xf32>
    %668 = vector.extract_strided_slice %5 {offsets = [17, 0], sizes = [1, 16], strides = [1, 1]} : vector<32x16xf32> to vector<1x16xf32>
    %669 = vector.broadcast %667 : vector<16x1xf32> to vector<16x16xf32>
    %670 = vector.broadcast %668 : vector<1x16xf32> to vector<16x16xf32>
    %671 = arith.addf %669, %670 : vector<16x16xf32>
    %cst_146 = arith.constant 0.000000e+00 : f32
    %672 = vector.broadcast %cst_146 : f32 to vector<16x16xf32>
    %673 = arith.maximumf %671, %672 : vector<16x16xf32>
    %c17 = arith.constant 17 : index
    %c0_147 = arith.constant 0 : index
    %674 = memref.load %arg3[%c17, %c0_147] : memref<33x3xf32, #tpu.memory_space<smem>>
    %675 = vector.broadcast %674 : f32 to vector<16x16xf32>
    %676 = arith.mulf %666, %675 : vector<16x16xf32>
    %677 = arith.addf %642, %676 : vector<16x16xf32>
    %678 = vector.broadcast %674 : f32 to vector<16x16xf32>
    %679 = arith.mulf %673, %678 : vector<16x16xf32>
    %680 = arith.addf %645, %679 : vector<16x16xf32>
    %c17_148 = arith.constant 17 : index
    %c1_149 = arith.constant 1 : index
    %681 = memref.load %arg3[%c17_148, %c1_149] : memref<33x3xf32, #tpu.memory_space<smem>>
    %682 = vector.broadcast %681 : f32 to vector<16x16xf32>
    %683 = arith.mulf %666, %682 : vector<16x16xf32>
    %684 = arith.addf %649, %683 : vector<16x16xf32>
    %685 = vector.broadcast %681 : f32 to vector<16x16xf32>
    %686 = arith.mulf %673, %685 : vector<16x16xf32>
    %687 = arith.addf %652, %686 : vector<16x16xf32>
    %c17_150 = arith.constant 17 : index
    %c2_151 = arith.constant 2 : index
    %688 = memref.load %arg3[%c17_150, %c2_151] : memref<33x3xf32, #tpu.memory_space<smem>>
    %689 = vector.broadcast %688 : f32 to vector<16x16xf32>
    %690 = arith.mulf %666, %689 : vector<16x16xf32>
    %691 = arith.addf %656, %690 : vector<16x16xf32>
    %692 = vector.broadcast %688 : f32 to vector<16x16xf32>
    %693 = arith.mulf %673, %692 : vector<16x16xf32>
    %694 = arith.addf %659, %693 : vector<16x16xf32>
    %695 = vector.extract_strided_slice %1 {offsets = [0, 18], sizes = [16, 1], strides = [1, 1]} : vector<16x32xf32> to vector<16x1xf32>
    %696 = vector.extract_strided_slice %7 {offsets = [18, 0], sizes = [1, 16], strides = [1, 1]} : vector<32x16xf32> to vector<1x16xf32>
    %697 = vector.broadcast %695 : vector<16x1xf32> to vector<16x16xf32>
    %698 = vector.broadcast %696 : vector<1x16xf32> to vector<16x16xf32>
    %699 = arith.addf %697, %698 : vector<16x16xf32>
    %cst_152 = arith.constant 0.000000e+00 : f32
    %700 = vector.broadcast %cst_152 : f32 to vector<16x16xf32>
    %701 = arith.maximumf %699, %700 : vector<16x16xf32>
    %702 = vector.extract_strided_slice %3 {offsets = [0, 18], sizes = [16, 1], strides = [1, 1]} : vector<16x32xf32> to vector<16x1xf32>
    %703 = vector.extract_strided_slice %5 {offsets = [18, 0], sizes = [1, 16], strides = [1, 1]} : vector<32x16xf32> to vector<1x16xf32>
    %704 = vector.broadcast %702 : vector<16x1xf32> to vector<16x16xf32>
    %705 = vector.broadcast %703 : vector<1x16xf32> to vector<16x16xf32>
    %706 = arith.addf %704, %705 : vector<16x16xf32>
    %cst_153 = arith.constant 0.000000e+00 : f32
    %707 = vector.broadcast %cst_153 : f32 to vector<16x16xf32>
    %708 = arith.maximumf %706, %707 : vector<16x16xf32>
    %c18 = arith.constant 18 : index
    %c0_154 = arith.constant 0 : index
    %709 = memref.load %arg3[%c18, %c0_154] : memref<33x3xf32, #tpu.memory_space<smem>>
    %710 = vector.broadcast %709 : f32 to vector<16x16xf32>
    %711 = arith.mulf %701, %710 : vector<16x16xf32>
    %712 = arith.addf %677, %711 : vector<16x16xf32>
    %713 = vector.broadcast %709 : f32 to vector<16x16xf32>
    %714 = arith.mulf %708, %713 : vector<16x16xf32>
    %715 = arith.addf %680, %714 : vector<16x16xf32>
    %c18_155 = arith.constant 18 : index
    %c1_156 = arith.constant 1 : index
    %716 = memref.load %arg3[%c18_155, %c1_156] : memref<33x3xf32, #tpu.memory_space<smem>>
    %717 = vector.broadcast %716 : f32 to vector<16x16xf32>
    %718 = arith.mulf %701, %717 : vector<16x16xf32>
    %719 = arith.addf %684, %718 : vector<16x16xf32>
    %720 = vector.broadcast %716 : f32 to vector<16x16xf32>
    %721 = arith.mulf %708, %720 : vector<16x16xf32>
    %722 = arith.addf %687, %721 : vector<16x16xf32>
    %c18_157 = arith.constant 18 : index
    %c2_158 = arith.constant 2 : index
    %723 = memref.load %arg3[%c18_157, %c2_158] : memref<33x3xf32, #tpu.memory_space<smem>>
    %724 = vector.broadcast %723 : f32 to vector<16x16xf32>
    %725 = arith.mulf %701, %724 : vector<16x16xf32>
    %726 = arith.addf %691, %725 : vector<16x16xf32>
    %727 = vector.broadcast %723 : f32 to vector<16x16xf32>
    %728 = arith.mulf %708, %727 : vector<16x16xf32>
    %729 = arith.addf %694, %728 : vector<16x16xf32>
    %730 = vector.extract_strided_slice %1 {offsets = [0, 19], sizes = [16, 1], strides = [1, 1]} : vector<16x32xf32> to vector<16x1xf32>
    %731 = vector.extract_strided_slice %7 {offsets = [19, 0], sizes = [1, 16], strides = [1, 1]} : vector<32x16xf32> to vector<1x16xf32>
    %732 = vector.broadcast %730 : vector<16x1xf32> to vector<16x16xf32>
    %733 = vector.broadcast %731 : vector<1x16xf32> to vector<16x16xf32>
    %734 = arith.addf %732, %733 : vector<16x16xf32>
    %cst_159 = arith.constant 0.000000e+00 : f32
    %735 = vector.broadcast %cst_159 : f32 to vector<16x16xf32>
    %736 = arith.maximumf %734, %735 : vector<16x16xf32>
    %737 = vector.extract_strided_slice %3 {offsets = [0, 19], sizes = [16, 1], strides = [1, 1]} : vector<16x32xf32> to vector<16x1xf32>
    %738 = vector.extract_strided_slice %5 {offsets = [19, 0], sizes = [1, 16], strides = [1, 1]} : vector<32x16xf32> to vector<1x16xf32>
    %739 = vector.broadcast %737 : vector<16x1xf32> to vector<16x16xf32>
    %740 = vector.broadcast %738 : vector<1x16xf32> to vector<16x16xf32>
    %741 = arith.addf %739, %740 : vector<16x16xf32>
    %cst_160 = arith.constant 0.000000e+00 : f32
    %742 = vector.broadcast %cst_160 : f32 to vector<16x16xf32>
    %743 = arith.maximumf %741, %742 : vector<16x16xf32>
    %c19 = arith.constant 19 : index
    %c0_161 = arith.constant 0 : index
    %744 = memref.load %arg3[%c19, %c0_161] : memref<33x3xf32, #tpu.memory_space<smem>>
    %745 = vector.broadcast %744 : f32 to vector<16x16xf32>
    %746 = arith.mulf %736, %745 : vector<16x16xf32>
    %747 = arith.addf %712, %746 : vector<16x16xf32>
    %748 = vector.broadcast %744 : f32 to vector<16x16xf32>
    %749 = arith.mulf %743, %748 : vector<16x16xf32>
    %750 = arith.addf %715, %749 : vector<16x16xf32>
    %c19_162 = arith.constant 19 : index
    %c1_163 = arith.constant 1 : index
    %751 = memref.load %arg3[%c19_162, %c1_163] : memref<33x3xf32, #tpu.memory_space<smem>>
    %752 = vector.broadcast %751 : f32 to vector<16x16xf32>
    %753 = arith.mulf %736, %752 : vector<16x16xf32>
    %754 = arith.addf %719, %753 : vector<16x16xf32>
    %755 = vector.broadcast %751 : f32 to vector<16x16xf32>
    %756 = arith.mulf %743, %755 : vector<16x16xf32>
    %757 = arith.addf %722, %756 : vector<16x16xf32>
    %c19_164 = arith.constant 19 : index
    %c2_165 = arith.constant 2 : index
    %758 = memref.load %arg3[%c19_164, %c2_165] : memref<33x3xf32, #tpu.memory_space<smem>>
    %759 = vector.broadcast %758 : f32 to vector<16x16xf32>
    %760 = arith.mulf %736, %759 : vector<16x16xf32>
    %761 = arith.addf %726, %760 : vector<16x16xf32>
    %762 = vector.broadcast %758 : f32 to vector<16x16xf32>
    %763 = arith.mulf %743, %762 : vector<16x16xf32>
    %764 = arith.addf %729, %763 : vector<16x16xf32>
    %765 = vector.extract_strided_slice %1 {offsets = [0, 20], sizes = [16, 1], strides = [1, 1]} : vector<16x32xf32> to vector<16x1xf32>
    %766 = vector.extract_strided_slice %7 {offsets = [20, 0], sizes = [1, 16], strides = [1, 1]} : vector<32x16xf32> to vector<1x16xf32>
    %767 = vector.broadcast %765 : vector<16x1xf32> to vector<16x16xf32>
    %768 = vector.broadcast %766 : vector<1x16xf32> to vector<16x16xf32>
    %769 = arith.addf %767, %768 : vector<16x16xf32>
    %cst_166 = arith.constant 0.000000e+00 : f32
    %770 = vector.broadcast %cst_166 : f32 to vector<16x16xf32>
    %771 = arith.maximumf %769, %770 : vector<16x16xf32>
    %772 = vector.extract_strided_slice %3 {offsets = [0, 20], sizes = [16, 1], strides = [1, 1]} : vector<16x32xf32> to vector<16x1xf32>
    %773 = vector.extract_strided_slice %5 {offsets = [20, 0], sizes = [1, 16], strides = [1, 1]} : vector<32x16xf32> to vector<1x16xf32>
    %774 = vector.broadcast %772 : vector<16x1xf32> to vector<16x16xf32>
    %775 = vector.broadcast %773 : vector<1x16xf32> to vector<16x16xf32>
    %776 = arith.addf %774, %775 : vector<16x16xf32>
    %cst_167 = arith.constant 0.000000e+00 : f32
    %777 = vector.broadcast %cst_167 : f32 to vector<16x16xf32>
    %778 = arith.maximumf %776, %777 : vector<16x16xf32>
    %c20 = arith.constant 20 : index
    %c0_168 = arith.constant 0 : index
    %779 = memref.load %arg3[%c20, %c0_168] : memref<33x3xf32, #tpu.memory_space<smem>>
    %780 = vector.broadcast %779 : f32 to vector<16x16xf32>
    %781 = arith.mulf %771, %780 : vector<16x16xf32>
    %782 = arith.addf %747, %781 : vector<16x16xf32>
    %783 = vector.broadcast %779 : f32 to vector<16x16xf32>
    %784 = arith.mulf %778, %783 : vector<16x16xf32>
    %785 = arith.addf %750, %784 : vector<16x16xf32>
    %c20_169 = arith.constant 20 : index
    %c1_170 = arith.constant 1 : index
    %786 = memref.load %arg3[%c20_169, %c1_170] : memref<33x3xf32, #tpu.memory_space<smem>>
    %787 = vector.broadcast %786 : f32 to vector<16x16xf32>
    %788 = arith.mulf %771, %787 : vector<16x16xf32>
    %789 = arith.addf %754, %788 : vector<16x16xf32>
    %790 = vector.broadcast %786 : f32 to vector<16x16xf32>
    %791 = arith.mulf %778, %790 : vector<16x16xf32>
    %792 = arith.addf %757, %791 : vector<16x16xf32>
    %c20_171 = arith.constant 20 : index
    %c2_172 = arith.constant 2 : index
    %793 = memref.load %arg3[%c20_171, %c2_172] : memref<33x3xf32, #tpu.memory_space<smem>>
    %794 = vector.broadcast %793 : f32 to vector<16x16xf32>
    %795 = arith.mulf %771, %794 : vector<16x16xf32>
    %796 = arith.addf %761, %795 : vector<16x16xf32>
    %797 = vector.broadcast %793 : f32 to vector<16x16xf32>
    %798 = arith.mulf %778, %797 : vector<16x16xf32>
    %799 = arith.addf %764, %798 : vector<16x16xf32>
    %800 = vector.extract_strided_slice %1 {offsets = [0, 21], sizes = [16, 1], strides = [1, 1]} : vector<16x32xf32> to vector<16x1xf32>
    %801 = vector.extract_strided_slice %7 {offsets = [21, 0], sizes = [1, 16], strides = [1, 1]} : vector<32x16xf32> to vector<1x16xf32>
    %802 = vector.broadcast %800 : vector<16x1xf32> to vector<16x16xf32>
    %803 = vector.broadcast %801 : vector<1x16xf32> to vector<16x16xf32>
    %804 = arith.addf %802, %803 : vector<16x16xf32>
    %cst_173 = arith.constant 0.000000e+00 : f32
    %805 = vector.broadcast %cst_173 : f32 to vector<16x16xf32>
    %806 = arith.maximumf %804, %805 : vector<16x16xf32>
    %807 = vector.extract_strided_slice %3 {offsets = [0, 21], sizes = [16, 1], strides = [1, 1]} : vector<16x32xf32> to vector<16x1xf32>
    %808 = vector.extract_strided_slice %5 {offsets = [21, 0], sizes = [1, 16], strides = [1, 1]} : vector<32x16xf32> to vector<1x16xf32>
    %809 = vector.broadcast %807 : vector<16x1xf32> to vector<16x16xf32>
    %810 = vector.broadcast %808 : vector<1x16xf32> to vector<16x16xf32>
    %811 = arith.addf %809, %810 : vector<16x16xf32>
    %cst_174 = arith.constant 0.000000e+00 : f32
    %812 = vector.broadcast %cst_174 : f32 to vector<16x16xf32>
    %813 = arith.maximumf %811, %812 : vector<16x16xf32>
    %c21 = arith.constant 21 : index
    %c0_175 = arith.constant 0 : index
    %814 = memref.load %arg3[%c21, %c0_175] : memref<33x3xf32, #tpu.memory_space<smem>>
    %815 = vector.broadcast %814 : f32 to vector<16x16xf32>
    %816 = arith.mulf %806, %815 : vector<16x16xf32>
    %817 = arith.addf %782, %816 : vector<16x16xf32>
    %818 = vector.broadcast %814 : f32 to vector<16x16xf32>
    %819 = arith.mulf %813, %818 : vector<16x16xf32>
    %820 = arith.addf %785, %819 : vector<16x16xf32>
    %c21_176 = arith.constant 21 : index
    %c1_177 = arith.constant 1 : index
    %821 = memref.load %arg3[%c21_176, %c1_177] : memref<33x3xf32, #tpu.memory_space<smem>>
    %822 = vector.broadcast %821 : f32 to vector<16x16xf32>
    %823 = arith.mulf %806, %822 : vector<16x16xf32>
    %824 = arith.addf %789, %823 : vector<16x16xf32>
    %825 = vector.broadcast %821 : f32 to vector<16x16xf32>
    %826 = arith.mulf %813, %825 : vector<16x16xf32>
    %827 = arith.addf %792, %826 : vector<16x16xf32>
    %c21_178 = arith.constant 21 : index
    %c2_179 = arith.constant 2 : index
    %828 = memref.load %arg3[%c21_178, %c2_179] : memref<33x3xf32, #tpu.memory_space<smem>>
    %829 = vector.broadcast %828 : f32 to vector<16x16xf32>
    %830 = arith.mulf %806, %829 : vector<16x16xf32>
    %831 = arith.addf %796, %830 : vector<16x16xf32>
    %832 = vector.broadcast %828 : f32 to vector<16x16xf32>
    %833 = arith.mulf %813, %832 : vector<16x16xf32>
    %834 = arith.addf %799, %833 : vector<16x16xf32>
    %835 = vector.extract_strided_slice %1 {offsets = [0, 22], sizes = [16, 1], strides = [1, 1]} : vector<16x32xf32> to vector<16x1xf32>
    %836 = vector.extract_strided_slice %7 {offsets = [22, 0], sizes = [1, 16], strides = [1, 1]} : vector<32x16xf32> to vector<1x16xf32>
    %837 = vector.broadcast %835 : vector<16x1xf32> to vector<16x16xf32>
    %838 = vector.broadcast %836 : vector<1x16xf32> to vector<16x16xf32>
    %839 = arith.addf %837, %838 : vector<16x16xf32>
    %cst_180 = arith.constant 0.000000e+00 : f32
    %840 = vector.broadcast %cst_180 : f32 to vector<16x16xf32>
    %841 = arith.maximumf %839, %840 : vector<16x16xf32>
    %842 = vector.extract_strided_slice %3 {offsets = [0, 22], sizes = [16, 1], strides = [1, 1]} : vector<16x32xf32> to vector<16x1xf32>
    %843 = vector.extract_strided_slice %5 {offsets = [22, 0], sizes = [1, 16], strides = [1, 1]} : vector<32x16xf32> to vector<1x16xf32>
    %844 = vector.broadcast %842 : vector<16x1xf32> to vector<16x16xf32>
    %845 = vector.broadcast %843 : vector<1x16xf32> to vector<16x16xf32>
    %846 = arith.addf %844, %845 : vector<16x16xf32>
    %cst_181 = arith.constant 0.000000e+00 : f32
    %847 = vector.broadcast %cst_181 : f32 to vector<16x16xf32>
    %848 = arith.maximumf %846, %847 : vector<16x16xf32>
    %c22 = arith.constant 22 : index
    %c0_182 = arith.constant 0 : index
    %849 = memref.load %arg3[%c22, %c0_182] : memref<33x3xf32, #tpu.memory_space<smem>>
    %850 = vector.broadcast %849 : f32 to vector<16x16xf32>
    %851 = arith.mulf %841, %850 : vector<16x16xf32>
    %852 = arith.addf %817, %851 : vector<16x16xf32>
    %853 = vector.broadcast %849 : f32 to vector<16x16xf32>
    %854 = arith.mulf %848, %853 : vector<16x16xf32>
    %855 = arith.addf %820, %854 : vector<16x16xf32>
    %c22_183 = arith.constant 22 : index
    %c1_184 = arith.constant 1 : index
    %856 = memref.load %arg3[%c22_183, %c1_184] : memref<33x3xf32, #tpu.memory_space<smem>>
    %857 = vector.broadcast %856 : f32 to vector<16x16xf32>
    %858 = arith.mulf %841, %857 : vector<16x16xf32>
    %859 = arith.addf %824, %858 : vector<16x16xf32>
    %860 = vector.broadcast %856 : f32 to vector<16x16xf32>
    %861 = arith.mulf %848, %860 : vector<16x16xf32>
    %862 = arith.addf %827, %861 : vector<16x16xf32>
    %c22_185 = arith.constant 22 : index
    %c2_186 = arith.constant 2 : index
    %863 = memref.load %arg3[%c22_185, %c2_186] : memref<33x3xf32, #tpu.memory_space<smem>>
    %864 = vector.broadcast %863 : f32 to vector<16x16xf32>
    %865 = arith.mulf %841, %864 : vector<16x16xf32>
    %866 = arith.addf %831, %865 : vector<16x16xf32>
    %867 = vector.broadcast %863 : f32 to vector<16x16xf32>
    %868 = arith.mulf %848, %867 : vector<16x16xf32>
    %869 = arith.addf %834, %868 : vector<16x16xf32>
    %870 = vector.extract_strided_slice %1 {offsets = [0, 23], sizes = [16, 1], strides = [1, 1]} : vector<16x32xf32> to vector<16x1xf32>
    %871 = vector.extract_strided_slice %7 {offsets = [23, 0], sizes = [1, 16], strides = [1, 1]} : vector<32x16xf32> to vector<1x16xf32>
    %872 = vector.broadcast %870 : vector<16x1xf32> to vector<16x16xf32>
    %873 = vector.broadcast %871 : vector<1x16xf32> to vector<16x16xf32>
    %874 = arith.addf %872, %873 : vector<16x16xf32>
    %cst_187 = arith.constant 0.000000e+00 : f32
    %875 = vector.broadcast %cst_187 : f32 to vector<16x16xf32>
    %876 = arith.maximumf %874, %875 : vector<16x16xf32>
    %877 = vector.extract_strided_slice %3 {offsets = [0, 23], sizes = [16, 1], strides = [1, 1]} : vector<16x32xf32> to vector<16x1xf32>
    %878 = vector.extract_strided_slice %5 {offsets = [23, 0], sizes = [1, 16], strides = [1, 1]} : vector<32x16xf32> to vector<1x16xf32>
    %879 = vector.broadcast %877 : vector<16x1xf32> to vector<16x16xf32>
    %880 = vector.broadcast %878 : vector<1x16xf32> to vector<16x16xf32>
    %881 = arith.addf %879, %880 : vector<16x16xf32>
    %cst_188 = arith.constant 0.000000e+00 : f32
    %882 = vector.broadcast %cst_188 : f32 to vector<16x16xf32>
    %883 = arith.maximumf %881, %882 : vector<16x16xf32>
    %c23 = arith.constant 23 : index
    %c0_189 = arith.constant 0 : index
    %884 = memref.load %arg3[%c23, %c0_189] : memref<33x3xf32, #tpu.memory_space<smem>>
    %885 = vector.broadcast %884 : f32 to vector<16x16xf32>
    %886 = arith.mulf %876, %885 : vector<16x16xf32>
    %887 = arith.addf %852, %886 : vector<16x16xf32>
    %888 = vector.broadcast %884 : f32 to vector<16x16xf32>
    %889 = arith.mulf %883, %888 : vector<16x16xf32>
    %890 = arith.addf %855, %889 : vector<16x16xf32>
    %c23_190 = arith.constant 23 : index
    %c1_191 = arith.constant 1 : index
    %891 = memref.load %arg3[%c23_190, %c1_191] : memref<33x3xf32, #tpu.memory_space<smem>>
    %892 = vector.broadcast %891 : f32 to vector<16x16xf32>
    %893 = arith.mulf %876, %892 : vector<16x16xf32>
    %894 = arith.addf %859, %893 : vector<16x16xf32>
    %895 = vector.broadcast %891 : f32 to vector<16x16xf32>
    %896 = arith.mulf %883, %895 : vector<16x16xf32>
    %897 = arith.addf %862, %896 : vector<16x16xf32>
    %c23_192 = arith.constant 23 : index
    %c2_193 = arith.constant 2 : index
    %898 = memref.load %arg3[%c23_192, %c2_193] : memref<33x3xf32, #tpu.memory_space<smem>>
    %899 = vector.broadcast %898 : f32 to vector<16x16xf32>
    %900 = arith.mulf %876, %899 : vector<16x16xf32>
    %901 = arith.addf %866, %900 : vector<16x16xf32>
    %902 = vector.broadcast %898 : f32 to vector<16x16xf32>
    %903 = arith.mulf %883, %902 : vector<16x16xf32>
    %904 = arith.addf %869, %903 : vector<16x16xf32>
    %905 = vector.extract_strided_slice %1 {offsets = [0, 24], sizes = [16, 1], strides = [1, 1]} : vector<16x32xf32> to vector<16x1xf32>
    %906 = vector.extract_strided_slice %7 {offsets = [24, 0], sizes = [1, 16], strides = [1, 1]} : vector<32x16xf32> to vector<1x16xf32>
    %907 = vector.broadcast %905 : vector<16x1xf32> to vector<16x16xf32>
    %908 = vector.broadcast %906 : vector<1x16xf32> to vector<16x16xf32>
    %909 = arith.addf %907, %908 : vector<16x16xf32>
    %cst_194 = arith.constant 0.000000e+00 : f32
    %910 = vector.broadcast %cst_194 : f32 to vector<16x16xf32>
    %911 = arith.maximumf %909, %910 : vector<16x16xf32>
    %912 = vector.extract_strided_slice %3 {offsets = [0, 24], sizes = [16, 1], strides = [1, 1]} : vector<16x32xf32> to vector<16x1xf32>
    %913 = vector.extract_strided_slice %5 {offsets = [24, 0], sizes = [1, 16], strides = [1, 1]} : vector<32x16xf32> to vector<1x16xf32>
    %914 = vector.broadcast %912 : vector<16x1xf32> to vector<16x16xf32>
    %915 = vector.broadcast %913 : vector<1x16xf32> to vector<16x16xf32>
    %916 = arith.addf %914, %915 : vector<16x16xf32>
    %cst_195 = arith.constant 0.000000e+00 : f32
    %917 = vector.broadcast %cst_195 : f32 to vector<16x16xf32>
    %918 = arith.maximumf %916, %917 : vector<16x16xf32>
    %c24 = arith.constant 24 : index
    %c0_196 = arith.constant 0 : index
    %919 = memref.load %arg3[%c24, %c0_196] : memref<33x3xf32, #tpu.memory_space<smem>>
    %920 = vector.broadcast %919 : f32 to vector<16x16xf32>
    %921 = arith.mulf %911, %920 : vector<16x16xf32>
    %922 = arith.addf %887, %921 : vector<16x16xf32>
    %923 = vector.broadcast %919 : f32 to vector<16x16xf32>
    %924 = arith.mulf %918, %923 : vector<16x16xf32>
    %925 = arith.addf %890, %924 : vector<16x16xf32>
    %c24_197 = arith.constant 24 : index
    %c1_198 = arith.constant 1 : index
    %926 = memref.load %arg3[%c24_197, %c1_198] : memref<33x3xf32, #tpu.memory_space<smem>>
    %927 = vector.broadcast %926 : f32 to vector<16x16xf32>
    %928 = arith.mulf %911, %927 : vector<16x16xf32>
    %929 = arith.addf %894, %928 : vector<16x16xf32>
    %930 = vector.broadcast %926 : f32 to vector<16x16xf32>
    %931 = arith.mulf %918, %930 : vector<16x16xf32>
    %932 = arith.addf %897, %931 : vector<16x16xf32>
    %c24_199 = arith.constant 24 : index
    %c2_200 = arith.constant 2 : index
    %933 = memref.load %arg3[%c24_199, %c2_200] : memref<33x3xf32, #tpu.memory_space<smem>>
    %934 = vector.broadcast %933 : f32 to vector<16x16xf32>
    %935 = arith.mulf %911, %934 : vector<16x16xf32>
    %936 = arith.addf %901, %935 : vector<16x16xf32>
    %937 = vector.broadcast %933 : f32 to vector<16x16xf32>
    %938 = arith.mulf %918, %937 : vector<16x16xf32>
    %939 = arith.addf %904, %938 : vector<16x16xf32>
    %940 = vector.extract_strided_slice %1 {offsets = [0, 25], sizes = [16, 1], strides = [1, 1]} : vector<16x32xf32> to vector<16x1xf32>
    %941 = vector.extract_strided_slice %7 {offsets = [25, 0], sizes = [1, 16], strides = [1, 1]} : vector<32x16xf32> to vector<1x16xf32>
    %942 = vector.broadcast %940 : vector<16x1xf32> to vector<16x16xf32>
    %943 = vector.broadcast %941 : vector<1x16xf32> to vector<16x16xf32>
    %944 = arith.addf %942, %943 : vector<16x16xf32>
    %cst_201 = arith.constant 0.000000e+00 : f32
    %945 = vector.broadcast %cst_201 : f32 to vector<16x16xf32>
    %946 = arith.maximumf %944, %945 : vector<16x16xf32>
    %947 = vector.extract_strided_slice %3 {offsets = [0, 25], sizes = [16, 1], strides = [1, 1]} : vector<16x32xf32> to vector<16x1xf32>
    %948 = vector.extract_strided_slice %5 {offsets = [25, 0], sizes = [1, 16], strides = [1, 1]} : vector<32x16xf32> to vector<1x16xf32>
    %949 = vector.broadcast %947 : vector<16x1xf32> to vector<16x16xf32>
    %950 = vector.broadcast %948 : vector<1x16xf32> to vector<16x16xf32>
    %951 = arith.addf %949, %950 : vector<16x16xf32>
    %cst_202 = arith.constant 0.000000e+00 : f32
    %952 = vector.broadcast %cst_202 : f32 to vector<16x16xf32>
    %953 = arith.maximumf %951, %952 : vector<16x16xf32>
    %c25 = arith.constant 25 : index
    %c0_203 = arith.constant 0 : index
    %954 = memref.load %arg3[%c25, %c0_203] : memref<33x3xf32, #tpu.memory_space<smem>>
    %955 = vector.broadcast %954 : f32 to vector<16x16xf32>
    %956 = arith.mulf %946, %955 : vector<16x16xf32>
    %957 = arith.addf %922, %956 : vector<16x16xf32>
    %958 = vector.broadcast %954 : f32 to vector<16x16xf32>
    %959 = arith.mulf %953, %958 : vector<16x16xf32>
    %960 = arith.addf %925, %959 : vector<16x16xf32>
    %c25_204 = arith.constant 25 : index
    %c1_205 = arith.constant 1 : index
    %961 = memref.load %arg3[%c25_204, %c1_205] : memref<33x3xf32, #tpu.memory_space<smem>>
    %962 = vector.broadcast %961 : f32 to vector<16x16xf32>
    %963 = arith.mulf %946, %962 : vector<16x16xf32>
    %964 = arith.addf %929, %963 : vector<16x16xf32>
    %965 = vector.broadcast %961 : f32 to vector<16x16xf32>
    %966 = arith.mulf %953, %965 : vector<16x16xf32>
    %967 = arith.addf %932, %966 : vector<16x16xf32>
    %c25_206 = arith.constant 25 : index
    %c2_207 = arith.constant 2 : index
    %968 = memref.load %arg3[%c25_206, %c2_207] : memref<33x3xf32, #tpu.memory_space<smem>>
    %969 = vector.broadcast %968 : f32 to vector<16x16xf32>
    %970 = arith.mulf %946, %969 : vector<16x16xf32>
    %971 = arith.addf %936, %970 : vector<16x16xf32>
    %972 = vector.broadcast %968 : f32 to vector<16x16xf32>
    %973 = arith.mulf %953, %972 : vector<16x16xf32>
    %974 = arith.addf %939, %973 : vector<16x16xf32>
    %975 = vector.extract_strided_slice %1 {offsets = [0, 26], sizes = [16, 1], strides = [1, 1]} : vector<16x32xf32> to vector<16x1xf32>
    %976 = vector.extract_strided_slice %7 {offsets = [26, 0], sizes = [1, 16], strides = [1, 1]} : vector<32x16xf32> to vector<1x16xf32>
    %977 = vector.broadcast %975 : vector<16x1xf32> to vector<16x16xf32>
    %978 = vector.broadcast %976 : vector<1x16xf32> to vector<16x16xf32>
    %979 = arith.addf %977, %978 : vector<16x16xf32>
    %cst_208 = arith.constant 0.000000e+00 : f32
    %980 = vector.broadcast %cst_208 : f32 to vector<16x16xf32>
    %981 = arith.maximumf %979, %980 : vector<16x16xf32>
    %982 = vector.extract_strided_slice %3 {offsets = [0, 26], sizes = [16, 1], strides = [1, 1]} : vector<16x32xf32> to vector<16x1xf32>
    %983 = vector.extract_strided_slice %5 {offsets = [26, 0], sizes = [1, 16], strides = [1, 1]} : vector<32x16xf32> to vector<1x16xf32>
    %984 = vector.broadcast %982 : vector<16x1xf32> to vector<16x16xf32>
    %985 = vector.broadcast %983 : vector<1x16xf32> to vector<16x16xf32>
    %986 = arith.addf %984, %985 : vector<16x16xf32>
    %cst_209 = arith.constant 0.000000e+00 : f32
    %987 = vector.broadcast %cst_209 : f32 to vector<16x16xf32>
    %988 = arith.maximumf %986, %987 : vector<16x16xf32>
    %c26 = arith.constant 26 : index
    %c0_210 = arith.constant 0 : index
    %989 = memref.load %arg3[%c26, %c0_210] : memref<33x3xf32, #tpu.memory_space<smem>>
    %990 = vector.broadcast %989 : f32 to vector<16x16xf32>
    %991 = arith.mulf %981, %990 : vector<16x16xf32>
    %992 = arith.addf %957, %991 : vector<16x16xf32>
    %993 = vector.broadcast %989 : f32 to vector<16x16xf32>
    %994 = arith.mulf %988, %993 : vector<16x16xf32>
    %995 = arith.addf %960, %994 : vector<16x16xf32>
    %c26_211 = arith.constant 26 : index
    %c1_212 = arith.constant 1 : index
    %996 = memref.load %arg3[%c26_211, %c1_212] : memref<33x3xf32, #tpu.memory_space<smem>>
    %997 = vector.broadcast %996 : f32 to vector<16x16xf32>
    %998 = arith.mulf %981, %997 : vector<16x16xf32>
    %999 = arith.addf %964, %998 : vector<16x16xf32>
    %1000 = vector.broadcast %996 : f32 to vector<16x16xf32>
    %1001 = arith.mulf %988, %1000 : vector<16x16xf32>
    %1002 = arith.addf %967, %1001 : vector<16x16xf32>
    %c26_213 = arith.constant 26 : index
    %c2_214 = arith.constant 2 : index
    %1003 = memref.load %arg3[%c26_213, %c2_214] : memref<33x3xf32, #tpu.memory_space<smem>>
    %1004 = vector.broadcast %1003 : f32 to vector<16x16xf32>
    %1005 = arith.mulf %981, %1004 : vector<16x16xf32>
    %1006 = arith.addf %971, %1005 : vector<16x16xf32>
    %1007 = vector.broadcast %1003 : f32 to vector<16x16xf32>
    %1008 = arith.mulf %988, %1007 : vector<16x16xf32>
    %1009 = arith.addf %974, %1008 : vector<16x16xf32>
    %1010 = vector.extract_strided_slice %1 {offsets = [0, 27], sizes = [16, 1], strides = [1, 1]} : vector<16x32xf32> to vector<16x1xf32>
    %1011 = vector.extract_strided_slice %7 {offsets = [27, 0], sizes = [1, 16], strides = [1, 1]} : vector<32x16xf32> to vector<1x16xf32>
    %1012 = vector.broadcast %1010 : vector<16x1xf32> to vector<16x16xf32>
    %1013 = vector.broadcast %1011 : vector<1x16xf32> to vector<16x16xf32>
    %1014 = arith.addf %1012, %1013 : vector<16x16xf32>
    %cst_215 = arith.constant 0.000000e+00 : f32
    %1015 = vector.broadcast %cst_215 : f32 to vector<16x16xf32>
    %1016 = arith.maximumf %1014, %1015 : vector<16x16xf32>
    %1017 = vector.extract_strided_slice %3 {offsets = [0, 27], sizes = [16, 1], strides = [1, 1]} : vector<16x32xf32> to vector<16x1xf32>
    %1018 = vector.extract_strided_slice %5 {offsets = [27, 0], sizes = [1, 16], strides = [1, 1]} : vector<32x16xf32> to vector<1x16xf32>
    %1019 = vector.broadcast %1017 : vector<16x1xf32> to vector<16x16xf32>
    %1020 = vector.broadcast %1018 : vector<1x16xf32> to vector<16x16xf32>
    %1021 = arith.addf %1019, %1020 : vector<16x16xf32>
    %cst_216 = arith.constant 0.000000e+00 : f32
    %1022 = vector.broadcast %cst_216 : f32 to vector<16x16xf32>
    %1023 = arith.maximumf %1021, %1022 : vector<16x16xf32>
    %c27 = arith.constant 27 : index
    %c0_217 = arith.constant 0 : index
    %1024 = memref.load %arg3[%c27, %c0_217] : memref<33x3xf32, #tpu.memory_space<smem>>
    %1025 = vector.broadcast %1024 : f32 to vector<16x16xf32>
    %1026 = arith.mulf %1016, %1025 : vector<16x16xf32>
    %1027 = arith.addf %992, %1026 : vector<16x16xf32>
    %1028 = vector.broadcast %1024 : f32 to vector<16x16xf32>
    %1029 = arith.mulf %1023, %1028 : vector<16x16xf32>
    %1030 = arith.addf %995, %1029 : vector<16x16xf32>
    %c27_218 = arith.constant 27 : index
    %c1_219 = arith.constant 1 : index
    %1031 = memref.load %arg3[%c27_218, %c1_219] : memref<33x3xf32, #tpu.memory_space<smem>>
    %1032 = vector.broadcast %1031 : f32 to vector<16x16xf32>
    %1033 = arith.mulf %1016, %1032 : vector<16x16xf32>
    %1034 = arith.addf %999, %1033 : vector<16x16xf32>
    %1035 = vector.broadcast %1031 : f32 to vector<16x16xf32>
    %1036 = arith.mulf %1023, %1035 : vector<16x16xf32>
    %1037 = arith.addf %1002, %1036 : vector<16x16xf32>
    %c27_220 = arith.constant 27 : index
    %c2_221 = arith.constant 2 : index
    %1038 = memref.load %arg3[%c27_220, %c2_221] : memref<33x3xf32, #tpu.memory_space<smem>>
    %1039 = vector.broadcast %1038 : f32 to vector<16x16xf32>
    %1040 = arith.mulf %1016, %1039 : vector<16x16xf32>
    %1041 = arith.addf %1006, %1040 : vector<16x16xf32>
    %1042 = vector.broadcast %1038 : f32 to vector<16x16xf32>
    %1043 = arith.mulf %1023, %1042 : vector<16x16xf32>
    %1044 = arith.addf %1009, %1043 : vector<16x16xf32>
    %1045 = vector.extract_strided_slice %1 {offsets = [0, 28], sizes = [16, 1], strides = [1, 1]} : vector<16x32xf32> to vector<16x1xf32>
    %1046 = vector.extract_strided_slice %7 {offsets = [28, 0], sizes = [1, 16], strides = [1, 1]} : vector<32x16xf32> to vector<1x16xf32>
    %1047 = vector.broadcast %1045 : vector<16x1xf32> to vector<16x16xf32>
    %1048 = vector.broadcast %1046 : vector<1x16xf32> to vector<16x16xf32>
    %1049 = arith.addf %1047, %1048 : vector<16x16xf32>
    %cst_222 = arith.constant 0.000000e+00 : f32
    %1050 = vector.broadcast %cst_222 : f32 to vector<16x16xf32>
    %1051 = arith.maximumf %1049, %1050 : vector<16x16xf32>
    %1052 = vector.extract_strided_slice %3 {offsets = [0, 28], sizes = [16, 1], strides = [1, 1]} : vector<16x32xf32> to vector<16x1xf32>
    %1053 = vector.extract_strided_slice %5 {offsets = [28, 0], sizes = [1, 16], strides = [1, 1]} : vector<32x16xf32> to vector<1x16xf32>
    %1054 = vector.broadcast %1052 : vector<16x1xf32> to vector<16x16xf32>
    %1055 = vector.broadcast %1053 : vector<1x16xf32> to vector<16x16xf32>
    %1056 = arith.addf %1054, %1055 : vector<16x16xf32>
    %cst_223 = arith.constant 0.000000e+00 : f32
    %1057 = vector.broadcast %cst_223 : f32 to vector<16x16xf32>
    %1058 = arith.maximumf %1056, %1057 : vector<16x16xf32>
    %c28 = arith.constant 28 : index
    %c0_224 = arith.constant 0 : index
    %1059 = memref.load %arg3[%c28, %c0_224] : memref<33x3xf32, #tpu.memory_space<smem>>
    %1060 = vector.broadcast %1059 : f32 to vector<16x16xf32>
    %1061 = arith.mulf %1051, %1060 : vector<16x16xf32>
    %1062 = arith.addf %1027, %1061 : vector<16x16xf32>
    %1063 = vector.broadcast %1059 : f32 to vector<16x16xf32>
    %1064 = arith.mulf %1058, %1063 : vector<16x16xf32>
    %1065 = arith.addf %1030, %1064 : vector<16x16xf32>
    %c28_225 = arith.constant 28 : index
    %c1_226 = arith.constant 1 : index
    %1066 = memref.load %arg3[%c28_225, %c1_226] : memref<33x3xf32, #tpu.memory_space<smem>>
    %1067 = vector.broadcast %1066 : f32 to vector<16x16xf32>
    %1068 = arith.mulf %1051, %1067 : vector<16x16xf32>
    %1069 = arith.addf %1034, %1068 : vector<16x16xf32>
    %1070 = vector.broadcast %1066 : f32 to vector<16x16xf32>
    %1071 = arith.mulf %1058, %1070 : vector<16x16xf32>
    %1072 = arith.addf %1037, %1071 : vector<16x16xf32>
    %c28_227 = arith.constant 28 : index
    %c2_228 = arith.constant 2 : index
    %1073 = memref.load %arg3[%c28_227, %c2_228] : memref<33x3xf32, #tpu.memory_space<smem>>
    %1074 = vector.broadcast %1073 : f32 to vector<16x16xf32>
    %1075 = arith.mulf %1051, %1074 : vector<16x16xf32>
    %1076 = arith.addf %1041, %1075 : vector<16x16xf32>
    %1077 = vector.broadcast %1073 : f32 to vector<16x16xf32>
    %1078 = arith.mulf %1058, %1077 : vector<16x16xf32>
    %1079 = arith.addf %1044, %1078 : vector<16x16xf32>
    %1080 = vector.extract_strided_slice %1 {offsets = [0, 29], sizes = [16, 1], strides = [1, 1]} : vector<16x32xf32> to vector<16x1xf32>
    %1081 = vector.extract_strided_slice %7 {offsets = [29, 0], sizes = [1, 16], strides = [1, 1]} : vector<32x16xf32> to vector<1x16xf32>
    %1082 = vector.broadcast %1080 : vector<16x1xf32> to vector<16x16xf32>
    %1083 = vector.broadcast %1081 : vector<1x16xf32> to vector<16x16xf32>
    %1084 = arith.addf %1082, %1083 : vector<16x16xf32>
    %cst_229 = arith.constant 0.000000e+00 : f32
    %1085 = vector.broadcast %cst_229 : f32 to vector<16x16xf32>
    %1086 = arith.maximumf %1084, %1085 : vector<16x16xf32>
    %1087 = vector.extract_strided_slice %3 {offsets = [0, 29], sizes = [16, 1], strides = [1, 1]} : vector<16x32xf32> to vector<16x1xf32>
    %1088 = vector.extract_strided_slice %5 {offsets = [29, 0], sizes = [1, 16], strides = [1, 1]} : vector<32x16xf32> to vector<1x16xf32>
    %1089 = vector.broadcast %1087 : vector<16x1xf32> to vector<16x16xf32>
    %1090 = vector.broadcast %1088 : vector<1x16xf32> to vector<16x16xf32>
    %1091 = arith.addf %1089, %1090 : vector<16x16xf32>
    %cst_230 = arith.constant 0.000000e+00 : f32
    %1092 = vector.broadcast %cst_230 : f32 to vector<16x16xf32>
    %1093 = arith.maximumf %1091, %1092 : vector<16x16xf32>
    %c29 = arith.constant 29 : index
    %c0_231 = arith.constant 0 : index
    %1094 = memref.load %arg3[%c29, %c0_231] : memref<33x3xf32, #tpu.memory_space<smem>>
    %1095 = vector.broadcast %1094 : f32 to vector<16x16xf32>
    %1096 = arith.mulf %1086, %1095 : vector<16x16xf32>
    %1097 = arith.addf %1062, %1096 : vector<16x16xf32>
    %1098 = vector.broadcast %1094 : f32 to vector<16x16xf32>
    %1099 = arith.mulf %1093, %1098 : vector<16x16xf32>
    %1100 = arith.addf %1065, %1099 : vector<16x16xf32>
    %c29_232 = arith.constant 29 : index
    %c1_233 = arith.constant 1 : index
    %1101 = memref.load %arg3[%c29_232, %c1_233] : memref<33x3xf32, #tpu.memory_space<smem>>
    %1102 = vector.broadcast %1101 : f32 to vector<16x16xf32>
    %1103 = arith.mulf %1086, %1102 : vector<16x16xf32>
    %1104 = arith.addf %1069, %1103 : vector<16x16xf32>
    %1105 = vector.broadcast %1101 : f32 to vector<16x16xf32>
    %1106 = arith.mulf %1093, %1105 : vector<16x16xf32>
    %1107 = arith.addf %1072, %1106 : vector<16x16xf32>
    %c29_234 = arith.constant 29 : index
    %c2_235 = arith.constant 2 : index
    %1108 = memref.load %arg3[%c29_234, %c2_235] : memref<33x3xf32, #tpu.memory_space<smem>>
    %1109 = vector.broadcast %1108 : f32 to vector<16x16xf32>
    %1110 = arith.mulf %1086, %1109 : vector<16x16xf32>
    %1111 = arith.addf %1076, %1110 : vector<16x16xf32>
    %1112 = vector.broadcast %1108 : f32 to vector<16x16xf32>
    %1113 = arith.mulf %1093, %1112 : vector<16x16xf32>
    %1114 = arith.addf %1079, %1113 : vector<16x16xf32>
    %1115 = vector.extract_strided_slice %1 {offsets = [0, 30], sizes = [16, 1], strides = [1, 1]} : vector<16x32xf32> to vector<16x1xf32>
    %1116 = vector.extract_strided_slice %7 {offsets = [30, 0], sizes = [1, 16], strides = [1, 1]} : vector<32x16xf32> to vector<1x16xf32>
    %1117 = vector.broadcast %1115 : vector<16x1xf32> to vector<16x16xf32>
    %1118 = vector.broadcast %1116 : vector<1x16xf32> to vector<16x16xf32>
    %1119 = arith.addf %1117, %1118 : vector<16x16xf32>
    %cst_236 = arith.constant 0.000000e+00 : f32
    %1120 = vector.broadcast %cst_236 : f32 to vector<16x16xf32>
    %1121 = arith.maximumf %1119, %1120 : vector<16x16xf32>
    %1122 = vector.extract_strided_slice %3 {offsets = [0, 30], sizes = [16, 1], strides = [1, 1]} : vector<16x32xf32> to vector<16x1xf32>
    %1123 = vector.extract_strided_slice %5 {offsets = [30, 0], sizes = [1, 16], strides = [1, 1]} : vector<32x16xf32> to vector<1x16xf32>
    %1124 = vector.broadcast %1122 : vector<16x1xf32> to vector<16x16xf32>
    %1125 = vector.broadcast %1123 : vector<1x16xf32> to vector<16x16xf32>
    %1126 = arith.addf %1124, %1125 : vector<16x16xf32>
    %cst_237 = arith.constant 0.000000e+00 : f32
    %1127 = vector.broadcast %cst_237 : f32 to vector<16x16xf32>
    %1128 = arith.maximumf %1126, %1127 : vector<16x16xf32>
    %c30 = arith.constant 30 : index
    %c0_238 = arith.constant 0 : index
    %1129 = memref.load %arg3[%c30, %c0_238] : memref<33x3xf32, #tpu.memory_space<smem>>
    %1130 = vector.broadcast %1129 : f32 to vector<16x16xf32>
    %1131 = arith.mulf %1121, %1130 : vector<16x16xf32>
    %1132 = arith.addf %1097, %1131 : vector<16x16xf32>
    %1133 = vector.broadcast %1129 : f32 to vector<16x16xf32>
    %1134 = arith.mulf %1128, %1133 : vector<16x16xf32>
    %1135 = arith.addf %1100, %1134 : vector<16x16xf32>
    %c30_239 = arith.constant 30 : index
    %c1_240 = arith.constant 1 : index
    %1136 = memref.load %arg3[%c30_239, %c1_240] : memref<33x3xf32, #tpu.memory_space<smem>>
    %1137 = vector.broadcast %1136 : f32 to vector<16x16xf32>
    %1138 = arith.mulf %1121, %1137 : vector<16x16xf32>
    %1139 = arith.addf %1104, %1138 : vector<16x16xf32>
    %1140 = vector.broadcast %1136 : f32 to vector<16x16xf32>
    %1141 = arith.mulf %1128, %1140 : vector<16x16xf32>
    %1142 = arith.addf %1107, %1141 : vector<16x16xf32>
    %c30_241 = arith.constant 30 : index
    %c2_242 = arith.constant 2 : index
    %1143 = memref.load %arg3[%c30_241, %c2_242] : memref<33x3xf32, #tpu.memory_space<smem>>
    %1144 = vector.broadcast %1143 : f32 to vector<16x16xf32>
    %1145 = arith.mulf %1121, %1144 : vector<16x16xf32>
    %1146 = arith.addf %1111, %1145 : vector<16x16xf32>
    %1147 = vector.broadcast %1143 : f32 to vector<16x16xf32>
    %1148 = arith.mulf %1128, %1147 : vector<16x16xf32>
    %1149 = arith.addf %1114, %1148 : vector<16x16xf32>
    %1150 = vector.extract_strided_slice %1 {offsets = [0, 31], sizes = [16, 1], strides = [1, 1]} : vector<16x32xf32> to vector<16x1xf32>
    %1151 = vector.extract_strided_slice %7 {offsets = [31, 0], sizes = [1, 16], strides = [1, 1]} : vector<32x16xf32> to vector<1x16xf32>
    %1152 = vector.broadcast %1150 : vector<16x1xf32> to vector<16x16xf32>
    %1153 = vector.broadcast %1151 : vector<1x16xf32> to vector<16x16xf32>
    %1154 = arith.addf %1152, %1153 : vector<16x16xf32>
    %cst_243 = arith.constant 0.000000e+00 : f32
    %1155 = vector.broadcast %cst_243 : f32 to vector<16x16xf32>
    %1156 = arith.maximumf %1154, %1155 : vector<16x16xf32>
    %1157 = vector.extract_strided_slice %3 {offsets = [0, 31], sizes = [16, 1], strides = [1, 1]} : vector<16x32xf32> to vector<16x1xf32>
    %1158 = vector.extract_strided_slice %5 {offsets = [31, 0], sizes = [1, 16], strides = [1, 1]} : vector<32x16xf32> to vector<1x16xf32>
    %1159 = vector.broadcast %1157 : vector<16x1xf32> to vector<16x16xf32>
    %1160 = vector.broadcast %1158 : vector<1x16xf32> to vector<16x16xf32>
    %1161 = arith.addf %1159, %1160 : vector<16x16xf32>
    %cst_244 = arith.constant 0.000000e+00 : f32
    %1162 = vector.broadcast %cst_244 : f32 to vector<16x16xf32>
    %1163 = arith.maximumf %1161, %1162 : vector<16x16xf32>
    %c31 = arith.constant 31 : index
    %c0_245 = arith.constant 0 : index
    %1164 = memref.load %arg3[%c31, %c0_245] : memref<33x3xf32, #tpu.memory_space<smem>>
    %1165 = vector.broadcast %1164 : f32 to vector<16x16xf32>
    %1166 = arith.mulf %1156, %1165 : vector<16x16xf32>
    %1167 = arith.addf %1132, %1166 : vector<16x16xf32>
    %1168 = vector.broadcast %1164 : f32 to vector<16x16xf32>
    %1169 = arith.mulf %1163, %1168 : vector<16x16xf32>
    %1170 = arith.addf %1135, %1169 : vector<16x16xf32>
    %c31_246 = arith.constant 31 : index
    %c1_247 = arith.constant 1 : index
    %1171 = memref.load %arg3[%c31_246, %c1_247] : memref<33x3xf32, #tpu.memory_space<smem>>
    %1172 = vector.broadcast %1171 : f32 to vector<16x16xf32>
    %1173 = arith.mulf %1156, %1172 : vector<16x16xf32>
    %1174 = arith.addf %1139, %1173 : vector<16x16xf32>
    %1175 = vector.broadcast %1171 : f32 to vector<16x16xf32>
    %1176 = arith.mulf %1163, %1175 : vector<16x16xf32>
    %1177 = arith.addf %1142, %1176 : vector<16x16xf32>
    %c31_248 = arith.constant 31 : index
    %c2_249 = arith.constant 2 : index
    %1178 = memref.load %arg3[%c31_248, %c2_249] : memref<33x3xf32, #tpu.memory_space<smem>>
    %1179 = vector.broadcast %1178 : f32 to vector<16x16xf32>
    %1180 = arith.mulf %1156, %1179 : vector<16x16xf32>
    %1181 = arith.addf %1146, %1180 : vector<16x16xf32>
    %1182 = vector.broadcast %1178 : f32 to vector<16x16xf32>
    %1183 = arith.mulf %1163, %1182 : vector<16x16xf32>
    %1184 = arith.addf %1149, %1183 : vector<16x16xf32>
    %c32 = arith.constant 32 : index
    %c0_250 = arith.constant 0 : index
    %1185 = memref.load %arg3[%c32, %c0_250] : memref<33x3xf32, #tpu.memory_space<smem>>
    %1186 = vector.broadcast %1185 : f32 to vector<16x16xf32>
    %1187 = arith.addf %1167, %1186 : vector<16x16xf32>
    %1188 = arith.subf %1187, %31 : vector<16x16xf32>
    %cst_251 = arith.constant 0.000000e+00 : f32
    %1189 = vector.broadcast %cst_251 : f32 to vector<16x16xf32>
    %1190 = arith.select %58, %1188, %1189 : vector<16x16xi1>, vector<16x16xf32>
    %c0_252 = arith.constant 0 : index
    %c0_253 = arith.constant 0 : index
    %c0_254 = arith.constant 0 : index
    %c0_255 = arith.constant 0 : index
    %1191 = vector.load %arg10[%c0_252, %c0_253, %c0_254, %c0_255] : memref<1x3x16x16xf32, #tpu.memory_space<vmem>>, vector<1x1x16x16xf32>
    %1192 = vector.shape_cast %1191 : vector<1x1x16x16xf32> to vector<16x16xf32>
    %1193 = vector.shape_cast %1190 : vector<16x16xf32> to vector<1x1x16x16xf32>
    tpu.vector_store %arg10[%c0_252, %c0_253, %c0_254, %c0_255], %1193 {strides = array<i32>} : memref<1x3x16x16xf32, #tpu.memory_space<vmem>>, vector<1x1x16x16xf32>,
    %1194 = vector.broadcast %1185 : f32 to vector<16x16xf32>
    %1195 = arith.addf %1170, %1194 : vector<16x16xf32>
    %1196 = arith.addf %1195, %16 : vector<16x16xf32>
    %cst_256 = arith.constant 0.000000e+00 : f32
    %1197 = vector.broadcast %cst_256 : f32 to vector<16x16xf32>
    %1198 = arith.select %58, %1196, %1197 : vector<16x16xi1>, vector<16x16xf32>
    %c0_257 = arith.constant 0 : index
    %c0_258 = arith.constant 0 : index
    %c0_259 = arith.constant 0 : index
    %c0_260 = arith.constant 0 : index
    %1199 = vector.load %arg11[%c0_257, %c0_258, %c0_259, %c0_260] : memref<1x3x16x16xf32, #tpu.memory_space<vmem>>, vector<1x1x16x16xf32>
    %1200 = vector.shape_cast %1199 : vector<1x1x16x16xf32> to vector<16x16xf32>
    %1201 = vector.shape_cast %1198 : vector<16x16xf32> to vector<1x1x16x16xf32>
    tpu.vector_store %arg11[%c0_257, %c0_258, %c0_259, %c0_260], %1201 {strides = array<i32>} : memref<1x3x16x16xf32, #tpu.memory_space<vmem>>, vector<1x1x16x16xf32>,
    %c32_261 = arith.constant 32 : index
    %c1_262 = arith.constant 1 : index
    %1202 = memref.load %arg3[%c32_261, %c1_262] : memref<33x3xf32, #tpu.memory_space<smem>>
    %1203 = vector.broadcast %1202 : f32 to vector<16x16xf32>
    %1204 = arith.addf %1174, %1203 : vector<16x16xf32>
    %1205 = arith.subf %1204, %36 : vector<16x16xf32>
    %cst_263 = arith.constant 0.000000e+00 : f32
    %1206 = vector.broadcast %cst_263 : f32 to vector<16x16xf32>
    %1207 = arith.select %58, %1205, %1206 : vector<16x16xi1>, vector<16x16xf32>
    %c0_264 = arith.constant 0 : index
    %c1_265 = arith.constant 1 : index
    %c0_266 = arith.constant 0 : index
    %c0_267 = arith.constant 0 : index
    %1208 = vector.load %arg10[%c0_264, %c1_265, %c0_266, %c0_267] : memref<1x3x16x16xf32, #tpu.memory_space<vmem>>, vector<1x1x16x16xf32>
    %1209 = vector.shape_cast %1208 : vector<1x1x16x16xf32> to vector<16x16xf32>
    %1210 = vector.shape_cast %1207 : vector<16x16xf32> to vector<1x1x16x16xf32>
    tpu.vector_store %arg10[%c0_264, %c1_265, %c0_266, %c0_267], %1210 {strides = array<i32>} : memref<1x3x16x16xf32, #tpu.memory_space<vmem>>, vector<1x1x16x16xf32>,
    %1211 = vector.broadcast %1202 : f32 to vector<16x16xf32>
    %1212 = arith.addf %1177, %1211 : vector<16x16xf32>
    %1213 = arith.addf %1212, %21 : vector<16x16xf32>
    %cst_268 = arith.constant 0.000000e+00 : f32
    %1214 = vector.broadcast %cst_268 : f32 to vector<16x16xf32>
    %1215 = arith.select %58, %1213, %1214 : vector<16x16xi1>, vector<16x16xf32>
    %c0_269 = arith.constant 0 : index
    %c1_270 = arith.constant 1 : index
    %c0_271 = arith.constant 0 : index
    %c0_272 = arith.constant 0 : index
    %1216 = vector.load %arg11[%c0_269, %c1_270, %c0_271, %c0_272] : memref<1x3x16x16xf32, #tpu.memory_space<vmem>>, vector<1x1x16x16xf32>
    %1217 = vector.shape_cast %1216 : vector<1x1x16x16xf32> to vector<16x16xf32>
    %1218 = vector.shape_cast %1215 : vector<16x16xf32> to vector<1x1x16x16xf32>
    tpu.vector_store %arg11[%c0_269, %c1_270, %c0_271, %c0_272], %1218 {strides = array<i32>} : memref<1x3x16x16xf32, #tpu.memory_space<vmem>>, vector<1x1x16x16xf32>,
    %c32_273 = arith.constant 32 : index
    %c2_274 = arith.constant 2 : index
    %1219 = memref.load %arg3[%c32_273, %c2_274] : memref<33x3xf32, #tpu.memory_space<smem>>
    %1220 = vector.broadcast %1219 : f32 to vector<16x16xf32>
    %1221 = arith.addf %1181, %1220 : vector<16x16xf32>
    %1222 = arith.subf %1221, %41 : vector<16x16xf32>
    %cst_275 = arith.constant 0.000000e+00 : f32
    %1223 = vector.broadcast %cst_275 : f32 to vector<16x16xf32>
    %1224 = arith.select %58, %1222, %1223 : vector<16x16xi1>, vector<16x16xf32>
    %c0_276 = arith.constant 0 : index
    %c2_277 = arith.constant 2 : index
    %c0_278 = arith.constant 0 : index
    %c0_279 = arith.constant 0 : index
    %1225 = vector.load %arg10[%c0_276, %c2_277, %c0_278, %c0_279] : memref<1x3x16x16xf32, #tpu.memory_space<vmem>>, vector<1x1x16x16xf32>
    %1226 = vector.shape_cast %1225 : vector<1x1x16x16xf32> to vector<16x16xf32>
    %1227 = vector.shape_cast %1224 : vector<16x16xf32> to vector<1x1x16x16xf32>
    tpu.vector_store %arg10[%c0_276, %c2_277, %c0_278, %c0_279], %1227 {strides = array<i32>} : memref<1x3x16x16xf32, #tpu.memory_space<vmem>>, vector<1x1x16x16xf32>,
    %1228 = vector.broadcast %1219 : f32 to vector<16x16xf32>
    %1229 = arith.addf %1184, %1228 : vector<16x16xf32>
    %1230 = arith.addf %1229, %26 : vector<16x16xf32>
    %cst_280 = arith.constant 0.000000e+00 : f32
    %1231 = vector.broadcast %cst_280 : f32 to vector<16x16xf32>
    %1232 = arith.select %58, %1230, %1231 : vector<16x16xi1>, vector<16x16xf32>
    %c0_281 = arith.constant 0 : index
    %c2_282 = arith.constant 2 : index
    %c0_283 = arith.constant 0 : index
    %c0_284 = arith.constant 0 : index
    %1233 = vector.load %arg11[%c0_281, %c2_282, %c0_283, %c0_284] : memref<1x3x16x16xf32, #tpu.memory_space<vmem>>, vector<1x1x16x16xf32>
    %1234 = vector.shape_cast %1233 : vector<1x1x16x16xf32> to vector<16x16xf32>
    %1235 = vector.shape_cast %1232 : vector<16x16xf32> to vector<1x1x16x16xf32>
    tpu.vector_store %arg11[%c0_281, %c2_282, %c0_283, %c0_284], %1235 {strides = array<i32>} : memref<1x3x16x16xf32, #tpu.memory_space<vmem>>, vector<1x1x16x16xf32>,
    return
  }
  func.func @transform_0(%arg0: i32, %arg1: i32, %arg2: i32) -> (i32, i32) {
    %c0_i32 = arith.constant 0 : i32
    %c0_i32_0 = arith.constant 0 : i32
    %c0_i32_1 = arith.constant 0 : i32
    return %c0_i32, %c0_i32_0 : i32, i32
  }
  func.func @transform_1(%arg0: i32, %arg1: i32, %arg2: i32) -> (i32, i32, i32) {
    %c0_i32 = arith.constant 0 : i32
    %c0_i32_0 = arith.constant 0 : i32
    return %arg0, %arg1, %c0_i32 : i32, i32, i32
  }
  func.func @transform_2(%arg0: i32, %arg1: i32, %arg2: i32) -> (i32, i32, i32) {
    %c0_i32 = arith.constant 0 : i32
    %c0_i32_0 = arith.constant 0 : i32
    return %arg0, %arg1, %c0_i32 : i32, i32, i32
  }
  func.func @transform_3(%arg0: i32, %arg1: i32, %arg2: i32) -> (i32, i32, i32) {
    %c0_i32 = arith.constant 0 : i32
    %c0_i32_0 = arith.constant 0 : i32
    return %arg0, %c0_i32, %arg2 : i32, i32, i32
  }
  func.func @transform_4(%arg0: i32, %arg1: i32, %arg2: i32) -> (i32, i32, i32) {
    %c0_i32 = arith.constant 0 : i32
    %c0_i32_0 = arith.constant 0 : i32
    return %arg0, %c0_i32, %arg2 : i32, i32, i32
  }
  func.func @transform_5(%arg0: i32, %arg1: i32, %arg2: i32) -> (i32, i32, i32) {
    %c0_i32 = arith.constant 0 : i32
    %c0_i32_0 = arith.constant 0 : i32
    return %arg0, %arg1, %c0_i32 : i32, i32, i32
  }
  func.func @transform_6(%arg0: i32, %arg1: i32, %arg2: i32) -> (i32, i32, i32) {
    %c0_i32 = arith.constant 0 : i32
    %c0_i32_0 = arith.constant 0 : i32
    return %arg0, %c0_i32, %arg2 : i32, i32, i32
  }
  func.func @transform_7(%arg0: i32, %arg1: i32, %arg2: i32) -> (i32, i32, i32, i32) {
    %c0_i32 = arith.constant 0 : i32
    %c0_i32_0 = arith.constant 0 : i32
    return %arg0, %c0_i32, %arg1, %arg2 : i32, i32, i32, i32
  }
  func.func @transform_8(%arg0: i32, %arg1: i32, %arg2: i32) -> (i32, i32, i32, i32) {
    %c0_i32 = arith.constant 0 : i32
    %c0_i32_0 = arith.constant 0 : i32
    return %arg0, %c0_i32, %arg1, %arg2 : i32, i32, i32, i32
  }
}

</mosaic_0001>

<llo_original>
// kernel: decoder_train_forward.5
$region0: #{decoder_train_forward.5}
  #allocation0 [shape = 'u32[]', space=smem, size = 0x4, offset = 0x4, fixed_abs, tag = 'smem constant byte address 0x4 - core index']
  #allocation1 [shape = 'u32[144,128]{1,0:T(1,128)}', space=vmem, size = 0x12000, scoped, tag = 'internal scratch']
  %s0 = inlined_call_operand.vmem [shape: f32[64,32], index: 0, kind: input, shape index: {}]
  %s1 = inlined_call_operand.vmem [shape: f32[32,32], index: 1, kind: input, shape index: {}]
  %s2 = inlined_call_operand.vmem [shape: f32[1,32], index: 2, kind: input, shape index: {}]
  %s3 = inlined_call_operand.vmem [shape: f32[32,32], index: 3, kind: input, shape index: {}]
  %s4 = inlined_call_operand.vmem [shape: f32[1,32], index: 4, kind: input, shape index: {}]
  %s5 = inlined_call_operand.vmem [shape: f32[32,32], index: 5, kind: input, shape index: {}]
  %s6 = inlined_call_operand.vmem [shape: f32[1,32], index: 6, kind: input, shape index: {}]
  %s7 = inlined_call_operand.vmem [shape: f32[64,32], index: 7, kind: output, shape index: {0}]
  %s8 = inlined_call_operand.vmem [shape: f32[64,32], index: 8, kind: output, shape index: {1}]
  %9 = xla_tuple %s7, %s8
  %s10 = sld [smem:[#allocation0]]
  $region46: #{decoder_train_forward.5} parent=0
    _
  %s12 = ssub.s32 1, %s10
  %s13 = scalar_select 0, %s12, %s10
  // Predicated region
  $region2: #{decoder_train_forward.5} parent=0 // pred_check
    _
  $region3: #{decoder_train_forward.5} parent=0 // pred_check_branch
    %15 = sbr.rel (0) target = $region5
  $region4: #{decoder_train_forward.5} parent=0 // pred_region
    _
  $region5: #{decoder_train_forward.5} parent=0 // pred_fallthru
    _
  // Predicated region
  $region6: #{decoder_train_forward.5} parent=0 // pred_check
    _
  $region7: #{decoder_train_forward.5} parent=0 // pred_check_branch
    %17 = sbr.rel (0) target = $region9
  $region8: #{decoder_train_forward.5} parent=0 // pred_region
    _
  $region9: #{decoder_train_forward.5} parent=0 // pred_fallthru
    _
  // Predicated region
  $region10: #{decoder_train_forward.5} parent=0 // pred_check
    _
  $region11: #{decoder_train_forward.5} parent=0 // pred_check_branch
    %19 = sbr.rel (0) target = $region13
  $region12: #{decoder_train_forward.5} parent=0 // pred_region
    _
  $region13: #{decoder_train_forward.5} parent=0 // pred_fallthru
    _
  // Predicated region
  $region14: #{decoder_train_forward.5} parent=0 // pred_check
    _
  $region15: #{decoder_train_forward.5} parent=0 // pred_check_branch
    %21 = sbr.rel (0) target = $region17
  $region16: #{decoder_train_forward.5} parent=0 // pred_region
    _
  $region17: #{decoder_train_forward.5} parent=0 // pred_fallthru
    _
  // Predicated region
  $region18: #{decoder_train_forward.5} parent=0 // pred_check
    _
  $region19: #{decoder_train_forward.5} parent=0 // pred_check_branch
    %23 = sbr.rel (0) target = $region21
  $region20: #{decoder_train_forward.5} parent=0 // pred_region
    _
  $region21: #{decoder_train_forward.5} parent=0 // pred_fallthru
    _
  // Predicated region
  $region22: #{decoder_train_forward.5} parent=0 // pred_check
    _
  $region23: #{decoder_train_forward.5} parent=0 // pred_check_branch
    %25 = sbr.rel (0) target = $region25
  $region24: #{decoder_train_forward.5} parent=0 // pred_region
    _
  $region25: #{decoder_train_forward.5} parent=0 // pred_fallthru
    _
  // Predicated region
  $region26: #{decoder_train_forward.5} parent=0 // pred_check
    _
  $region27: #{decoder_train_forward.5} parent=0 // pred_check_branch
    %27 = sbr.rel (0) target = $region29
  $region28: #{decoder_train_forward.5} parent=0 // pred_region
    _
  $region29: #{decoder_train_forward.5} parent=0 // pred_fallthru
    _
  %v28 = vld [vmem:[%s0] sm:$0xff]
  %v29 = vld [vmem:[%s0 + $0x8] sm:$0xff]
  %v30 = vld [vmem:[%s0 + $0x10] sm:$0xff]
  %v31 = vld [vmem:[%s0 + $0x18] sm:$0xff]
  %v32 = vld [vmem:[%s0 + $0x20] sm:$0xff]
  %v33 = vld [vmem:[%s0 + $0x28] sm:$0xff]
  %v34 = vld [vmem:[%s0 + $0x30] sm:$0xff]
  %v35 = vld [vmem:[%s0 + $0x38] sm:$0xff]
  %v36 = vld [vmem:[%s1] sm:$0xff]
  %v37 = vld [vmem:[%s1 + $0x8] sm:$0xff]
  %v38 = vld [vmem:[%s1 + $0x10] sm:$0xff]
  %v39 = vld [vmem:[%s1 + $0x18] sm:$0xff]
  %v40 = vld [vmem:[%s2] sm:$0x1]
  %v42 = vlaneseq
  %v43 = vshrl.u32 %v42, 7
  %v44 = vsub.s32 0, %v43
  %v45 = vrot.slane %v40, %v44
  %vm47 = vcmask 261120
  %v49 = vsel %vm47, %v28, 0
  %v52 = vsel %vm47, %v29, 0
  %v55 = vsel %vm47, %v30, 0
  %v58 = vsel %vm47, %v31, 0
  %v61 = vsel %vm47, %v32, 0
  %v64 = vsel %vm47, %v33, 0
  %v67 = vsel %vm47, %v34, 0
  %v70 = vsel %vm47, %v35, 0
  %72 = vmatprep.subr.mxu0 0.0
  %73 = vmatpush1.msra.mxu0 %v36
  %74 = vmatprep.subr.mxu0 0.0
  %75 = vmatpush1.msra.mxu0 %v37
  %76 = vmatprep.subr.mxu0 0.0
  %77 = vmatpush1.msra.mxu0 %v38
  %78 = vmatprep.subr.mxu0 0.0
  %79 = vmatpush1.msra.mxu0 %v39
  %80 = vmatprep.subr.mxu0 0.0
  %81 = vmatpush1.msra.mxu0 0.0
  %82 = vmatprep.subr.mxu0 0.0
  %83 = vmatpush1.msra.mxu0 0.0
  %84 = vmatprep.subr.mxu0 0.0
  %85 = vmatpush1.msra.mxu0 0.0
  %86 = vmatprep.subr.mxu0 0.0
  %87 = vmatpush1.msra.mxu0 0.0
  %88 = vmatprep.subr.mxu0 0.0
  %89 = vmatpush1.msra.mxu0 0.0
  %90 = vmatprep.subr.mxu0 0.0
  %91 = vmatpush1.msra.mxu0 0.0
  %92 = vmatprep.subr.mxu0 0.0
  %93 = vmatpush1.msra.mxu0 0.0
  %94 = vmatprep.subr.mxu0 0.0
  %95 = vmatpush1.msra.mxu0 0.0
  %96 = vmatprep.subr.mxu0 0.0
  %97 = vmatpush1.msra.mxu0 0.0
  %98 = vmatprep.subr.mxu0 0.0
  %99 = vmatpush1.msra.mxu0 0.0
  %100 = vmatprep.subr.mxu0 0.0
  %101 = vmatpush1.msra.mxu0 0.0
  %102 = vmatprep.subr.mxu0 0.0
  %103 = vmatpush1.msra.mxu0 0.0
  %104 = vmatprep.subr.mxu0 0.0
  %105 = vmatpush1.msra.mxu0 0.0
  %106 = vmatprep.subr.mxu0 0.0
  %107 = vmatpush1.msra.mxu0 0.0
  %108 = vmatprep.subr.mxu0 0.0
  %109 = vmatpush1.msra.mxu0 0.0
  %110 = vmatprep.subr.mxu0 0.0
  %111 = vmatpush1.msra.mxu0 0.0
  %112 = vmatprep.subr.mxu0 0.0
  %113 = vmatpush1.msra.mxu0 0.0
  %114 = vmatprep.subr.mxu0 0.0
  %115 = vmatpush1.msra.mxu0 0.0
  %116 = vmatprep.subr.mxu0 0.0
  %117 = vmatpush1.msra.mxu0 0.0
  %118 = vmatprep.subr.mxu0 0.0
  %119 = vmatpush1.msra.mxu0 0.0
  %120 = vmatprep.subr.mxu0 0.0
  %121 = vmatpush1.msra.mxu0 0.0
  %122 = vmatprep.subr.mxu0 0.0
  %123 = vmatpush1.msra.mxu0 0.0
  %124 = vmatprep.subr.mxu0 0.0
  %125 = vmatpush1.msra.mxu0 0.0
  %126 = vmatprep.subr.mxu0 0.0
  %127 = vmatpush1.msra.mxu0 0.0
  %128 = vmatprep.subr.mxu0 0.0
  %129 = vmatpush1.msra.mxu0 0.0
  %130 = vmatprep.subr.mxu0 0.0
  %131 = vmatpush1.msra.mxu0 0.0
  %132 = vmatprep.subr.mxu0 0.0
  %133 = vmatpush1.msra.mxu0 0.0
  %134 = vmatprep.subr.mxu0 0.0
  %135 = vmatpush1.msra.mxu0 0.0
  %136 = vmatprep.mubr.f32.mxu0 0.0
  %137 = vmatmul.mubr.f32.gmra.mrb[0].mxu0 %v49
  %v138 = vpop.f32.mrb[0].mxu0
  %v139 = vadd.f32 %v45, %v138
  %v140 = vpop.f32.mrb[0].mxu0
  %141 = vmatprep.mubr.f32.mxu0 0.0
  %142 = vmatmul.mubr.f32.gmra.mrb[0].mxu0 %v52
  %v143 = vpop.f32.mrb[0].mxu0
  %v144 = vadd.f32 %v45, %v143
  %v145 = vpop.f32.mrb[0].mxu0
  %146 = vmatprep.mubr.f32.mxu0 0.0
  %147 = vmatmul.mubr.f32.gmra.mrb[0].mxu0 %v55
  %v148 = vpop.f32.mrb[0].mxu0
  %v149 = vadd.f32 %v45, %v148
  %v150 = vpop.f32.mrb[0].mxu0
  %151 = vmatprep.mubr.f32.mxu0 0.0
  %152 = vmatmul.mubr.f32.gmra.mrb[0].mxu0 %v58
  %v153 = vpop.f32.mrb[0].mxu0
  %v154 = vadd.f32 %v45, %v153
  %v155 = vpop.f32.mrb[0].mxu0
  %156 = vmatprep.mubr.f32.mxu0 0.0
  %157 = vmatmul.mubr.f32.gmra.mrb[0].mxu0 %v61
  %v158 = vpop.f32.mrb[0].mxu0
  %v159 = vadd.f32 %v45, %v158
  %v160 = vpop.f32.mrb[0].mxu0
  %161 = vmatprep.mubr.f32.mxu0 0.0
  %162 = vmatmul.mubr.f32.gmra.mrb[0].mxu0 %v64
  %v163 = vpop.f32.mrb[0].mxu0
  %v164 = vadd.f32 %v45, %v163
  %v165 = vpop.f32.mrb[0].mxu0
  %166 = vmatprep.mubr.f32.mxu0 0.0
  %167 = vmatmul.mubr.f32.gmra.mrb[0].mxu0 %v67
  %v168 = vpop.f32.mrb[0].mxu0
  %v169 = vadd.f32 %v45, %v168
  %v170 = vpop.f32.mrb[0].mxu0
  %171 = vmatprep.mubr.f32.mxu0 0.0
  %172 = vmatmul.mubr.f32.gmra.mrb[0].mxu0 %v70
  %v173 = vpop.f32.mrb[0].mxu0
  %v174 = vadd.f32 %v45, %v173
  %v175 = vpop.f32.mrb[0].mxu0
  %176 = vdwg.mxu0
  %v177 = vmax.f32 %v139, 0.0
  %v178 = vmax.f32 %v144, 0.0
  %v179 = vmax.f32 %v149, 0.0
  %v180 = vmax.f32 %v154, 0.0
  %v181 = vmax.f32 %v159, 0.0
  %v182 = vmax.f32 %v164, 0.0
  %v183 = vmax.f32 %v169, 0.0
  %v184 = vmax.f32 %v174, 0.0
  %v185 = vld [vmem:[%s3] sm:$0xff]
  %v186 = vld [vmem:[%s3 + $0x8] sm:$0xff]
  %v187 = vld [vmem:[%s3 + $0x10] sm:$0xff]
  %v188 = vld [vmem:[%s3 + $0x18] sm:$0xff]
  %v189 = vld [vmem:[%s4] sm:$0x1]
  %v191 = vlaneseq
  %v192 = vshrl.u32 %v191, 7
  %v193 = vsub.s32 0, %v192
  %v194 = vrot.slane %v189, %v193
  %v197 = vsel %vm47, %v177, 0
  %v200 = vsel %vm47, %v178, 0
  %v203 = vsel %vm47, %v179, 0
  %v206 = vsel %vm47, %v180, 0
  %v209 = vsel %vm47, %v181, 0
  %v212 = vsel %vm47, %v182, 0
  %v215 = vsel %vm47, %v183, 0
  %v218 = vsel %vm47, %v184, 0
  %220 = vmatprep.subr.mxu0 0.0
  %221 = vmatpush1.msra.mxu0 %v185
  %222 = vmatprep.subr.mxu0 0.0
  %223 = vmatpush1.msra.mxu0 %v186
  %224 = vmatprep.subr.mxu0 0.0
  %225 = vmatpush1.msra.mxu0 %v187
  %226 = vmatprep.subr.mxu0 0.0
  %227 = vmatpush1.msra.mxu0 %v188
  %228 = vmatprep.subr.mxu0 0.0
  %229 = vmatpush1.msra.mxu0 0.0
  %230 = vmatprep.subr.mxu0 0.0
  %231 = vmatpush1.msra.mxu0 0.0
  %232 = vmatprep.subr.mxu0 0.0
  %233 = vmatpush1.msra.mxu0 0.0
  %234 = vmatprep.subr.mxu0 0.0
  %235 = vmatpush1.msra.mxu0 0.0
  %236 = vmatprep.subr.mxu0 0.0
  %237 = vmatpush1.msra.mxu0 0.0
  %238 = vmatprep.subr.mxu0 0.0
  %239 = vmatpush1.msra.mxu0 0.0
  %240 = vmatprep.subr.mxu0 0.0
  %241 = vmatpush1.msra.mxu0 0.0
  %242 = vmatprep.subr.mxu0 0.0
  %243 = vmatpush1.msra.mxu0 0.0
  %244 = vmatprep.subr.mxu0 0.0
  %245 = vmatpush1.msra.mxu0 0.0
  %246 = vmatprep.subr.mxu0 0.0
  %247 = vmatpush1.msra.mxu0 0.0
  %248 = vmatprep.subr.mxu0 0.0
  %249 = vmatpush1.msra.mxu0 0.0
  %250 = vmatprep.subr.mxu0 0.0
  %251 = vmatpush1.msra.mxu0 0.0
  %252 = vmatprep.subr.mxu0 0.0
  %253 = vmatpush1.msra.mxu0 0.0
  %254 = vmatprep.subr.mxu0 0.0
  %255 = vmatpush1.msra.mxu0 0.0
  %256 = vmatprep.subr.mxu0 0.0
  %257 = vmatpush1.msra.mxu0 0.0
  %258 = vmatprep.subr.mxu0 0.0
  %259 = vmatpush1.msra.mxu0 0.0
  %260 = vmatprep.subr.mxu0 0.0
  %261 = vmatpush1.msra.mxu0 0.0
  %262 = vmatprep.subr.mxu0 0.0
  %263 = vmatpush1.msra.mxu0 0.0
  %264 = vmatprep.subr.mxu0 0.0
  %265 = vmatpush1.msra.mxu0 0.0
  %266 = vmatprep.subr.mxu0 0.0
  %267 = vmatpush1.msra.mxu0 0.0
  %268 = vmatprep.subr.mxu0 0.0
  %269 = vmatpush1.msra.mxu0 0.0
  %270 = vmatprep.subr.mxu0 0.0
  %271 = vmatpush1.msra.mxu0 0.0
  %272 = vmatprep.subr.mxu0 0.0
  %273 = vmatpush1.msra.mxu0 0.0
  %274 = vmatprep.subr.mxu0 0.0
  %275 = vmatpush1.msra.mxu0 0.0
  %276 = vmatprep.subr.mxu0 0.0
  %277 = vmatpush1.msra.mxu0 0.0
  %278 = vmatprep.subr.mxu0 0.0
  %279 = vmatpush1.msra.mxu0 0.0
  %280 = vmatprep.subr.mxu0 0.0
  %281 = vmatpush1.msra.mxu0 0.0
  %282 = vmatprep.subr.mxu0 0.0
  %283 = vmatpush1.msra.mxu0 0.0
  %284 = vmatprep.mubr.f32.mxu0 0.0
  %285 = vmatmul.mubr.f32.gmra.mrb[0].mxu0 %v197
  %v286 = vpop.f32.mrb[0].mxu0
  %v287 = vadd.f32 %v194, %v286
  %v288 = vpop.f32.mrb[0].mxu0
  %289 = vmatprep.mubr.f32.mxu0 0.0
  %290 = vmatmul.mubr.f32.gmra.mrb[0].mxu0 %v200
  %v291 = vpop.f32.mrb[0].mxu0
  %v292 = vadd.f32 %v194, %v291
  %v293 = vpop.f32.mrb[0].mxu0
  %294 = vmatprep.mubr.f32.mxu0 0.0
  %295 = vmatmul.mubr.f32.gmra.mrb[0].mxu0 %v203
  %v296 = vpop.f32.mrb[0].mxu0
  %v297 = vadd.f32 %v194, %v296
  %v298 = vpop.f32.mrb[0].mxu0
  %299 = vmatprep.mubr.f32.mxu0 0.0
  %300 = vmatmul.mubr.f32.gmra.mrb[0].mxu0 %v206
  %v301 = vpop.f32.mrb[0].mxu0
  %v302 = vadd.f32 %v194, %v301
  %v303 = vpop.f32.mrb[0].mxu0
  %304 = vmatprep.mubr.f32.mxu0 0.0
  %305 = vmatmul.mubr.f32.gmra.mrb[0].mxu0 %v209
  %v306 = vpop.f32.mrb[0].mxu0
  %v307 = vadd.f32 %v194, %v306
  %v308 = vpop.f32.mrb[0].mxu0
  %309 = vmatprep.mubr.f32.mxu0 0.0
  %310 = vmatmul.mubr.f32.gmra.mrb[0].mxu0 %v212
  %v311 = vpop.f32.mrb[0].mxu0
  %v312 = vadd.f32 %v194, %v311
  %v313 = vpop.f32.mrb[0].mxu0
  %314 = vmatprep.mubr.f32.mxu0 0.0
  %315 = vmatmul.mubr.f32.gmra.mrb[0].mxu0 %v215
  %v316 = vpop.f32.mrb[0].mxu0
  %v317 = vadd.f32 %v194, %v316
  %v318 = vpop.f32.mrb[0].mxu0
  %319 = vmatprep.mubr.f32.mxu0 0.0
  %320 = vmatmul.mubr.f32.gmra.mrb[0].mxu0 %v218
  %v321 = vpop.f32.mrb[0].mxu0
  %v322 = vadd.f32 %v194, %v321
  %v323 = vpop.f32.mrb[0].mxu0
  %324 = vdwg.mxu0
  %v325 = vmul.f32 %v287, %v287
  %v326 = vmul.f32 %v292, %v292
  %v327 = vmul.f32 %v297, %v297
  %v328 = vmul.f32 %v302, %v302
  %v329 = vmul.f32 %v307, %v307
  %v330 = vmul.f32 %v312, %v312
  %v331 = vmul.f32 %v317, %v317
  %v332 = vmul.f32 %v322, %v322
  %v333 = vsel %vm47, %v325, 0.0
  %334 = vadd.xlane.f32.xlu0 %v333
  %v335 = vpop.xlane.xlu0 %334
  %v336 = vsel %vm47, %v326, 0.0
  %337 = vadd.xlane.f32.xlu0 %v336
  %v338 = vpop.xlane.xlu0 %337
  %v339 = vsel %vm47, %v327, 0.0
  %340 = vadd.xlane.f32.xlu0 %v339
  %v341 = vpop.xlane.xlu0 %340
  %v342 = vsel %vm47, %v328, 0.0
  %343 = vadd.xlane.f32.xlu0 %v342
  %v344 = vpop.xlane.xlu0 %343
  %v345 = vsel %vm47, %v329, 0.0
  %346 = vadd.xlane.f32.xlu0 %v345
  %v347 = vpop.xlane.xlu0 %346
  %v348 = vsel %vm47, %v330, 0.0
  %349 = vadd.xlane.f32.xlu0 %v348
  %v350 = vpop.xlane.xlu0 %349
  %v351 = vsel %vm47, %v331, 0.0
  %352 = vadd.xlane.f32.xlu0 %v351
  %v353 = vpop.xlane.xlu0 %352
  %v354 = vsel %vm47, %v332, 0.0
  %355 = vadd.xlane.f32.xlu0 %v354
  %v356 = vpop.xlane.xlu0 %355
  %v357 = vmax.f32 %v335, 1e-24
  %v358 = vmax.f32 %v338, 1e-24
  %v359 = vmax.f32 %v341, 1e-24
  %v360 = vmax.f32 %v344, 1e-24
  %v361 = vmax.f32 %v347, 1e-24
  %v362 = vmax.f32 %v350, 1e-24
  %v363 = vmax.f32 %v353, 1e-24
  %v364 = vmax.f32 %v356, 1e-24
  %v365 = vrsqrt.pop %v357
  %v366 = vrsqrt.pop %v358
  %v367 = vrsqrt.pop %v359
  %v368 = vrsqrt.pop %v360
  %v369 = vrsqrt.pop %v361
  %v370 = vrsqrt.pop %v362
  %v371 = vrsqrt.pop %v363
  %v372 = vrsqrt.pop %v364
  %v373 = vmul.f32 %v287, %v365
  %v374 = vmul.f32 %v292, %v366
  %v375 = vmul.f32 %v297, %v367
  %v376 = vmul.f32 %v302, %v368
  %v377 = vmul.f32 %v307, %v369
  %v378 = vmul.f32 %v312, %v370
  %v379 = vmul.f32 %v317, %v371
  %v380 = vmul.f32 %v322, %v372
  %381 = vst.msk [vmem:[%s7] sm:$0xff] %vm47, %v373
  %382 = vst.msk [vmem:[%s7 + $0x8] sm:$0xff] %vm47, %v374
  %383 = vst.msk [vmem:[%s7 + $0x10] sm:$0xff] %vm47, %v375
  %384 = vst.msk [vmem:[%s7 + $0x18] sm:$0xff] %vm47, %v376
  %385 = vst.msk [vmem:[%s7 + $0x20] sm:$0xff] %vm47, %v377
  %386 = vst.msk [vmem:[%s7 + $0x28] sm:$0xff] %vm47, %v378
  %387 = vst.msk [vmem:[%s7 + $0x30] sm:$0xff] %vm47, %v379
  %388 = vst.msk [vmem:[%s7 + $0x38] sm:$0xff] %vm47, %v380
  %v389 = vld [vmem:[%s5] sm:$0xff]
  %v390 = vld [vmem:[%s5 + $0x8] sm:$0xff]
  %v391 = vld [vmem:[%s5 + $0x10] sm:$0xff]
  %v392 = vld [vmem:[%s5 + $0x18] sm:$0xff]
  %v393 = vld [vmem:[%s6] sm:$0x1]
  %v395 = vlaneseq
  %v396 = vshrl.u32 %v395, 7
  %v397 = vsub.s32 0, %v396
  %v398 = vrot.slane %v393, %v397
  %400 = vmatprep.subr.mxu0 0.0
  %401 = vmatpush1.msra.mxu0 %v389
  %402 = vmatprep.subr.mxu0 0.0
  %403 = vmatpush1.msra.mxu0 %v390
  %404 = vmatprep.subr.mxu0 0.0
  %405 = vmatpush1.msra.mxu0 %v391
  %406 = vmatprep.subr.mxu0 0.0
  %407 = vmatpush1.msra.mxu0 %v392
  %408 = vmatprep.subr.mxu0 0.0
  %409 = vmatpush1.msra.mxu0 0.0
  %410 = vmatprep.subr.mxu0 0.0
  %411 = vmatpush1.msra.mxu0 0.0
  %412 = vmatprep.subr.mxu0 0.0
  %413 = vmatpush1.msra.mxu0 0.0
  %414 = vmatprep.subr.mxu0 0.0
  %415 = vmatpush1.msra.mxu0 0.0
  %416 = vmatprep.subr.mxu0 0.0
  %417 = vmatpush1.msra.mxu0 0.0
  %418 = vmatprep.subr.mxu0 0.0
  %419 = vmatpush1.msra.mxu0 0.0
  %420 = vmatprep.subr.mxu0 0.0
  %421 = vmatpush1.msra.mxu0 0.0
  %422 = vmatprep.subr.mxu0 0.0
  %423 = vmatpush1.msra.mxu0 0.0
  %424 = vmatprep.subr.mxu0 0.0
  %425 = vmatpush1.msra.mxu0 0.0
  %426 = vmatprep.subr.mxu0 0.0
  %427 = vmatpush1.msra.mxu0 0.0
  %428 = vmatprep.subr.mxu0 0.0
  %429 = vmatpush1.msra.mxu0 0.0
  %430 = vmatprep.subr.mxu0 0.0
  %431 = vmatpush1.msra.mxu0 0.0
  %432 = vmatprep.subr.mxu0 0.0
  %433 = vmatpush1.msra.mxu0 0.0
  %434 = vmatprep.subr.mxu0 0.0
  %435 = vmatpush1.msra.mxu0 0.0
  %436 = vmatprep.subr.mxu0 0.0
  %437 = vmatpush1.msra.mxu0 0.0
  %438 = vmatprep.subr.mxu0 0.0
  %439 = vmatpush1.msra.mxu0 0.0
  %440 = vmatprep.subr.mxu0 0.0
  %441 = vmatpush1.msra.mxu0 0.0
  %442 = vmatprep.subr.mxu0 0.0
  %443 = vmatpush1.msra.mxu0 0.0
  %444 = vmatprep.subr.mxu0 0.0
  %445 = vmatpush1.msra.mxu0 0.0
  %446 = vmatprep.subr.mxu0 0.0
  %447 = vmatpush1.msra.mxu0 0.0
  %448 = vmatprep.subr.mxu0 0.0
  %449 = vmatpush1.msra.mxu0 0.0
  %450 = vmatprep.subr.mxu0 0.0
  %451 = vmatpush1.msra.mxu0 0.0
  %452 = vmatprep.subr.mxu0 0.0
  %453 = vmatpush1.msra.mxu0 0.0
  %454 = vmatprep.subr.mxu0 0.0
  %455 = vmatpush1.msra.mxu0 0.0
  %456 = vmatprep.subr.mxu0 0.0
  %457 = vmatpush1.msra.mxu0 0.0
  %458 = vmatprep.subr.mxu0 0.0
  %459 = vmatpush1.msra.mxu0 0.0
  %460 = vmatprep.subr.mxu0 0.0
  %461 = vmatpush1.msra.mxu0 0.0
  %462 = vmatprep.subr.mxu0 0.0
  %463 = vmatpush1.msra.mxu0 0.0
  %464 = vmatprep.mubr.f32.mxu0 0.0
  %465 = vmatmul.mubr.f32.gmra.mrb[0].mxu0 %v49
  %v466 = vpop.f32.mrb[0].mxu0
  %v467 = vadd.f32 %v398, %v466
  %v468 = vpop.f32.mrb[0].mxu0
  %469 = vmatprep.mubr.f32.mxu0 0.0
  %470 = vmatmul.mubr.f32.gmra.mrb[0].mxu0 %v52
  %v471 = vpop.f32.mrb[0].mxu0
  %v472 = vadd.f32 %v398, %v471
  %v473 = vpop.f32.mrb[0].mxu0
  %474 = vmatprep.mubr.f32.mxu0 0.0
  %475 = vmatmul.mubr.f32.gmra.mrb[0].mxu0 %v55
  %v476 = vpop.f32.mrb[0].mxu0
  %v477 = vadd.f32 %v398, %v476
  %v478 = vpop.f32.mrb[0].mxu0
  %479 = vmatprep.mubr.f32.mxu0 0.0
  %480 = vmatmul.mubr.f32.gmra.mrb[0].mxu0 %v58
  %v481 = vpop.f32.mrb[0].mxu0
  %v482 = vadd.f32 %v398, %v481
  %v483 = vpop.f32.mrb[0].mxu0
  %484 = vmatprep.mubr.f32.mxu0 0.0
  %485 = vmatmul.mubr.f32.gmra.mrb[0].mxu0 %v61
  %v486 = vpop.f32.mrb[0].mxu0
  %v487 = vadd.f32 %v398, %v486
  %v488 = vpop.f32.mrb[0].mxu0
  %489 = vmatprep.mubr.f32.mxu0 0.0
  %490 = vmatmul.mubr.f32.gmra.mrb[0].mxu0 %v64
  %v491 = vpop.f32.mrb[0].mxu0
  %v492 = vadd.f32 %v398, %v491
  %v493 = vpop.f32.mrb[0].mxu0
  %494 = vmatprep.mubr.f32.mxu0 0.0
  %495 = vmatmul.mubr.f32.gmra.mrb[0].mxu0 %v67
  %v496 = vpop.f32.mrb[0].mxu0
  %v497 = vadd.f32 %v398, %v496
  %v498 = vpop.f32.mrb[0].mxu0
  %499 = vmatprep.mubr.f32.mxu0 0.0
  %500 = vmatmul.mubr.f32.gmra.mrb[0].mxu0 %v70
  %v501 = vpop.f32.mrb[0].mxu0
  %v502 = vadd.f32 %v398, %v501
  %v503 = vpop.f32.mrb[0].mxu0
  %504 = vdwg.mxu0
  %505 = vst.msk [vmem:[%s8] sm:$0xff] %vm47, %v467
  %506 = vst.msk [vmem:[%s8 + $0x8] sm:$0xff] %vm47, %v472
  %507 = vst.msk [vmem:[%s8 + $0x10] sm:$0xff] %vm47, %v477
  %508 = vst.msk [vmem:[%s8 + $0x18] sm:$0xff] %vm47, %v482
  %509 = vst.msk [vmem:[%s8 + $0x20] sm:$0xff] %vm47, %v487
  %510 = vst.msk [vmem:[%s8 + $0x28] sm:$0xff] %vm47, %v492
  %511 = vst.msk [vmem:[%s8 + $0x30] sm:$0xff] %vm47, %v497
  %512 = vst.msk [vmem:[%s8 + $0x38] sm:$0xff] %vm47, %v502
  // Predicated region
  $region30: #{decoder_train_forward.5} parent=0 // pred_check
    _
  $region31: #{decoder_train_forward.5} parent=0 // pred_check_branch
    %514 = sbr.rel (0) target = $region33
  $region32: #{decoder_train_forward.5} parent=0 // pred_region
    _
  $region33: #{decoder_train_forward.5} parent=0 // pred_fallthru
    _
  // Predicated region
  $region34: #{decoder_train_forward.5} parent=0 // pred_check
    _
  $region35: #{decoder_train_forward.5} parent=0 // pred_check_branch
    %516 = sbr.rel (0) target = $region37
  $region36: #{decoder_train_forward.5} parent=0 // pred_region
    _
  $region37: #{decoder_train_forward.5} parent=0 // pred_fallthru
    _
  // Predicated region
  $region38: #{decoder_train_forward.5} parent=0 // pred_check
    _
  $region39: #{decoder_train_forward.5} parent=0 // pred_check_branch
    %518 = sbr.rel (0) target = $region41
  $region40: #{decoder_train_forward.5} parent=0 // pred_region
    _
  $region41: #{decoder_train_forward.5} parent=0 // pred_fallthru
    _
  // Predicated region
  $region42: #{decoder_train_forward.5} parent=0 // pred_check
    _
  $region43: #{decoder_train_forward.5} parent=0 // pred_check_branch
    %520 = sbr.rel (0) target = $region45
  $region44: #{decoder_train_forward.5} parent=0 // pred_region
    _
  $region45: #{decoder_train_forward.5} parent=0 // pred_fallthru
    _

// kernel: decoder_train_forward.8
$region0: #{decoder_train_forward.8}
  #allocation0 [shape = 'u32[]', space=smem, size = 0x4, offset = 0x4, fixed_abs, tag = 'smem constant byte address 0x4 - core index']
  #allocation1 [shape = 'u32[144,128]{1,0:T(1,128)}', space=vmem, size = 0x12000, scoped, tag = 'internal scratch']
  %s0 = inlined_call_operand.vmem [shape: f32[64,32], index: 0, kind: input, shape index: {}]
  %s1 = inlined_call_operand.vmem [shape: f32[32,32], index: 1, kind: input, shape index: {}]
  %s2 = inlined_call_operand.vmem [shape: f32[1,32], index: 2, kind: input, shape index: {}]
  %s3 = inlined_call_operand.vmem [shape: f32[32,32], index: 3, kind: input, shape index: {}]
  %s4 = inlined_call_operand.vmem [shape: f32[1,32], index: 4, kind: input, shape index: {}]
  %s5 = inlined_call_operand.vmem [shape: f32[32,64], index: 5, kind: input, shape index: {}]
  %s6 = inlined_call_operand.vmem [shape: f32[1,64], index: 6, kind: input, shape index: {}]
  %s7 = inlined_call_operand.vmem [shape: f32[64,32], index: 7, kind: output, shape index: {0}]
  %s8 = inlined_call_operand.vmem [shape: f32[64,64], index: 8, kind: output, shape index: {1}]
  %9 = xla_tuple %s7, %s8
  %s10 = sld [smem:[#allocation0]]
  $region46: #{decoder_train_forward.8} parent=0
    _
  %s12 = ssub.s32 1, %s10
  %s13 = scalar_select 0, %s12, %s10
  // Predicated region
  $region2: #{decoder_train_forward.8} parent=0 // pred_check
    _
  $region3: #{decoder_train_forward.8} parent=0 // pred_check_branch
    %15 = sbr.rel (0) target = $region5
  $region4: #{decoder_train_forward.8} parent=0 // pred_region
    _
  $region5: #{decoder_train_forward.8} parent=0 // pred_fallthru
    _
  // Predicated region
  $region6: #{decoder_train_forward.8} parent=0 // pred_check
    _
  $region7: #{decoder_train_forward.8} parent=0 // pred_check_branch
    %17 = sbr.rel (0) target = $region9
  $region8: #{decoder_train_forward.8} parent=0 // pred_region
    _
  $region9: #{decoder_train_forward.8} parent=0 // pred_fallthru
    _
  // Predicated region
  $region10: #{decoder_train_forward.8} parent=0 // pred_check
    _
  $region11: #{decoder_train_forward.8} parent=0 // pred_check_branch
    %19 = sbr.rel (0) target = $region13
  $region12: #{decoder_train_forward.8} parent=0 // pred_region
    _
  $region13: #{decoder_train_forward.8} parent=0 // pred_fallthru
    _
  // Predicated region
  $region14: #{decoder_train_forward.8} parent=0 // pred_check
    _
  $region15: #{decoder_train_forward.8} parent=0 // pred_check_branch
    %21 = sbr.rel (0) target = $region17
  $region16: #{decoder_train_forward.8} parent=0 // pred_region
    _
  $region17: #{decoder_train_forward.8} parent=0 // pred_fallthru
    _
  // Predicated region
  $region18: #{decoder_train_forward.8} parent=0 // pred_check
    _
  $region19: #{decoder_train_forward.8} parent=0 // pred_check_branch
    %23 = sbr.rel (0) target = $region21
  $region20: #{decoder_train_forward.8} parent=0 // pred_region
    _
  $region21: #{decoder_train_forward.8} parent=0 // pred_fallthru
    _
  // Predicated region
  $region22: #{decoder_train_forward.8} parent=0 // pred_check
    _
  $region23: #{decoder_train_forward.8} parent=0 // pred_check_branch
    %25 = sbr.rel (0) target = $region25
  $region24: #{decoder_train_forward.8} parent=0 // pred_region
    _
  $region25: #{decoder_train_forward.8} parent=0 // pred_fallthru
    _
  // Predicated region
  $region26: #{decoder_train_forward.8} parent=0 // pred_check
    _
  $region27: #{decoder_train_forward.8} parent=0 // pred_check_branch
    %27 = sbr.rel (0) target = $region29
  $region28: #{decoder_train_forward.8} parent=0 // pred_region
    _
  $region29: #{decoder_train_forward.8} parent=0 // pred_fallthru
    _
  %v28 = vld [vmem:[%s0] sm:$0xff]
  %v29 = vld [vmem:[%s0 + $0x8] sm:$0xff]
  %v30 = vld [vmem:[%s0 + $0x10] sm:$0xff]
  %v31 = vld [vmem:[%s0 + $0x18] sm:$0xff]
  %v32 = vld [vmem:[%s0 + $0x20] sm:$0xff]
  %v33 = vld [vmem:[%s0 + $0x28] sm:$0xff]
  %v34 = vld [vmem:[%s0 + $0x30] sm:$0xff]
  %v35 = vld [vmem:[%s0 + $0x38] sm:$0xff]
  %v36 = vld [vmem:[%s1] sm:$0xff]
  %v37 = vld [vmem:[%s1 + $0x8] sm:$0xff]
  %v38 = vld [vmem:[%s1 + $0x10] sm:$0xff]
  %v39 = vld [vmem:[%s1 + $0x18] sm:$0xff]
  %v40 = vld [vmem:[%s2] sm:$0x1]
  %v42 = vlaneseq
  %v43 = vshrl.u32 %v42, 7
  %v44 = vsub.s32 0, %v43
  %v45 = vrot.slane %v40, %v44
  %vm47 = vcmask 261120
  %v49 = vsel %vm47, %v28, 0
  %v52 = vsel %vm47, %v29, 0
  %v55 = vsel %vm47, %v30, 0
  %v58 = vsel %vm47, %v31, 0
  %v61 = vsel %vm47, %v32, 0
  %v64 = vsel %vm47, %v33, 0
  %v67 = vsel %vm47, %v34, 0
  %v70 = vsel %vm47, %v35, 0
  %72 = vmatprep.subr.mxu0 0.0
  %73 = vmatpush1.msra.mxu0 %v36
  %74 = vmatprep.subr.mxu0 0.0
  %75 = vmatpush1.msra.mxu0 %v37
  %76 = vmatprep.subr.mxu0 0.0
  %77 = vmatpush1.msra.mxu0 %v38
  %78 = vmatprep.subr.mxu0 0.0
  %79 = vmatpush1.msra.mxu0 %v39
  %80 = vmatprep.subr.mxu0 0.0
  %81 = vmatpush1.msra.mxu0 0.0
  %82 = vmatprep.subr.mxu0 0.0
  %83 = vmatpush1.msra.mxu0 0.0
  %84 = vmatprep.subr.mxu0 0.0
  %85 = vmatpush1.msra.mxu0 0.0
  %86 = vmatprep.subr.mxu0 0.0
  %87 = vmatpush1.msra.mxu0 0.0
  %88 = vmatprep.subr.mxu0 0.0
  %89 = vmatpush1.msra.mxu0 0.0
  %90 = vmatprep.subr.mxu0 0.0
  %91 = vmatpush1.msra.mxu0 0.0
  %92 = vmatprep.subr.mxu0 0.0
  %93 = vmatpush1.msra.mxu0 0.0
  %94 = vmatprep.subr.mxu0 0.0
  %95 = vmatpush1.msra.mxu0 0.0
  %96 = vmatprep.subr.mxu0 0.0
  %97 = vmatpush1.msra.mxu0 0.0
  %98 = vmatprep.subr.mxu0 0.0
  %99 = vmatpush1.msra.mxu0 0.0
  %100 = vmatprep.subr.mxu0 0.0
  %101 = vmatpush1.msra.mxu0 0.0
  %102 = vmatprep.subr.mxu0 0.0
  %103 = vmatpush1.msra.mxu0 0.0
  %104 = vmatprep.subr.mxu0 0.0
  %105 = vmatpush1.msra.mxu0 0.0
  %106 = vmatprep.subr.mxu0 0.0
  %107 = vmatpush1.msra.mxu0 0.0
  %108 = vmatprep.subr.mxu0 0.0
  %109 = vmatpush1.msra.mxu0 0.0
  %110 = vmatprep.subr.mxu0 0.0
  %111 = vmatpush1.msra.mxu0 0.0
  %112 = vmatprep.subr.mxu0 0.0
  %113 = vmatpush1.msra.mxu0 0.0
  %114 = vmatprep.subr.mxu0 0.0
  %115 = vmatpush1.msra.mxu0 0.0
  %116 = vmatprep.subr.mxu0 0.0
  %117 = vmatpush1.msra.mxu0 0.0
  %118 = vmatprep.subr.mxu0 0.0
  %119 = vmatpush1.msra.mxu0 0.0
  %120 = vmatprep.subr.mxu0 0.0
  %121 = vmatpush1.msra.mxu0 0.0
  %122 = vmatprep.subr.mxu0 0.0
  %123 = vmatpush1.msra.mxu0 0.0
  %124 = vmatprep.subr.mxu0 0.0
  %125 = vmatpush1.msra.mxu0 0.0
  %126 = vmatprep.subr.mxu0 0.0
  %127 = vmatpush1.msra.mxu0 0.0
  %128 = vmatprep.subr.mxu0 0.0
  %129 = vmatpush1.msra.mxu0 0.0
  %130 = vmatprep.subr.mxu0 0.0
  %131 = vmatpush1.msra.mxu0 0.0
  %132 = vmatprep.subr.mxu0 0.0
  %133 = vmatpush1.msra.mxu0 0.0
  %134 = vmatprep.subr.mxu0 0.0
  %135 = vmatpush1.msra.mxu0 0.0
  %136 = vmatprep.mubr.f32.mxu0 0.0
  %137 = vmatmul.mubr.f32.gmra.mrb[0].mxu0 %v49
  %v138 = vpop.f32.mrb[0].mxu0
  %v139 = vadd.f32 %v45, %v138
  %v140 = vpop.f32.mrb[0].mxu0
  %141 = vmatprep.mubr.f32.mxu0 0.0
  %142 = vmatmul.mubr.f32.gmra.mrb[0].mxu0 %v52
  %v143 = vpop.f32.mrb[0].mxu0
  %v144 = vadd.f32 %v45, %v143
  %v145 = vpop.f32.mrb[0].mxu0
  %146 = vmatprep.mubr.f32.mxu0 0.0
  %147 = vmatmul.mubr.f32.gmra.mrb[0].mxu0 %v55
  %v148 = vpop.f32.mrb[0].mxu0
  %v149 = vadd.f32 %v45, %v148
  %v150 = vpop.f32.mrb[0].mxu0
  %151 = vmatprep.mubr.f32.mxu0 0.0
  %152 = vmatmul.mubr.f32.gmra.mrb[0].mxu0 %v58
  %v153 = vpop.f32.mrb[0].mxu0
  %v154 = vadd.f32 %v45, %v153
  %v155 = vpop.f32.mrb[0].mxu0
  %156 = vmatprep.mubr.f32.mxu0 0.0
  %157 = vmatmul.mubr.f32.gmra.mrb[0].mxu0 %v61
  %v158 = vpop.f32.mrb[0].mxu0
  %v159 = vadd.f32 %v45, %v158
  %v160 = vpop.f32.mrb[0].mxu0
  %161 = vmatprep.mubr.f32.mxu0 0.0
  %162 = vmatmul.mubr.f32.gmra.mrb[0].mxu0 %v64
  %v163 = vpop.f32.mrb[0].mxu0
  %v164 = vadd.f32 %v45, %v163
  %v165 = vpop.f32.mrb[0].mxu0
  %166 = vmatprep.mubr.f32.mxu0 0.0
  %167 = vmatmul.mubr.f32.gmra.mrb[0].mxu0 %v67
  %v168 = vpop.f32.mrb[0].mxu0
  %v169 = vadd.f32 %v45, %v168
  %v170 = vpop.f32.mrb[0].mxu0
  %171 = vmatprep.mubr.f32.mxu0 0.0
  %172 = vmatmul.mubr.f32.gmra.mrb[0].mxu0 %v70
  %v173 = vpop.f32.mrb[0].mxu0
  %v174 = vadd.f32 %v45, %v173
  %v175 = vpop.f32.mrb[0].mxu0
  %176 = vdwg.mxu0
  %v177 = vmax.f32 %v139, 0.0
  %v178 = vmax.f32 %v144, 0.0
  %v179 = vmax.f32 %v149, 0.0
  %v180 = vmax.f32 %v154, 0.0
  %v181 = vmax.f32 %v159, 0.0
  %v182 = vmax.f32 %v164, 0.0
  %v183 = vmax.f32 %v169, 0.0
  %v184 = vmax.f32 %v174, 0.0
  %v185 = vld [vmem:[%s3] sm:$0xff]
  %v186 = vld [vmem:[%s3 + $0x8] sm:$0xff]
  %v187 = vld [vmem:[%s3 + $0x10] sm:$0xff]
  %v188 = vld [vmem:[%s3 + $0x18] sm:$0xff]
  %v189 = vld [vmem:[%s4] sm:$0x1]
  %v191 = vlaneseq
  %v192 = vshrl.u32 %v191, 7
  %v193 = vsub.s32 0, %v192
  %v194 = vrot.slane %v189, %v193
  %v197 = vsel %vm47, %v177, 0
  %v200 = vsel %vm47, %v178, 0
  %v203 = vsel %vm47, %v179, 0
  %v206 = vsel %vm47, %v180, 0
  %v209 = vsel %vm47, %v181, 0
  %v212 = vsel %vm47, %v182, 0
  %v215 = vsel %vm47, %v183, 0
  %v218 = vsel %vm47, %v184, 0
  %220 = vmatprep.subr.mxu0 0.0
  %221 = vmatpush1.msra.mxu0 %v185
  %222 = vmatprep.subr.mxu0 0.0
  %223 = vmatpush1.msra.mxu0 %v186
  %224 = vmatprep.subr.mxu0 0.0
  %225 = vmatpush1.msra.mxu0 %v187
  %226 = vmatprep.subr.mxu0 0.0
  %227 = vmatpush1.msra.mxu0 %v188
  %228 = vmatprep.subr.mxu0 0.0
  %229 = vmatpush1.msra.mxu0 0.0
  %230 = vmatprep.subr.mxu0 0.0
  %231 = vmatpush1.msra.mxu0 0.0
  %232 = vmatprep.subr.mxu0 0.0
  %233 = vmatpush1.msra.mxu0 0.0
  %234 = vmatprep.subr.mxu0 0.0
  %235 = vmatpush1.msra.mxu0 0.0
  %236 = vmatprep.subr.mxu0 0.0
  %237 = vmatpush1.msra.mxu0 0.0
  %238 = vmatprep.subr.mxu0 0.0
  %239 = vmatpush1.msra.mxu0 0.0
  %240 = vmatprep.subr.mxu0 0.0
  %241 = vmatpush1.msra.mxu0 0.0
  %242 = vmatprep.subr.mxu0 0.0
  %243 = vmatpush1.msra.mxu0 0.0
  %244 = vmatprep.subr.mxu0 0.0
  %245 = vmatpush1.msra.mxu0 0.0
  %246 = vmatprep.subr.mxu0 0.0
  %247 = vmatpush1.msra.mxu0 0.0
  %248 = vmatprep.subr.mxu0 0.0
  %249 = vmatpush1.msra.mxu0 0.0
  %250 = vmatprep.subr.mxu0 0.0
  %251 = vmatpush1.msra.mxu0 0.0
  %252 = vmatprep.subr.mxu0 0.0
  %253 = vmatpush1.msra.mxu0 0.0
  %254 = vmatprep.subr.mxu0 0.0
  %255 = vmatpush1.msra.mxu0 0.0
  %256 = vmatprep.subr.mxu0 0.0
  %257 = vmatpush1.msra.mxu0 0.0
  %258 = vmatprep.subr.mxu0 0.0
  %259 = vmatpush1.msra.mxu0 0.0
  %260 = vmatprep.subr.mxu0 0.0
  %261 = vmatpush1.msra.mxu0 0.0
  %262 = vmatprep.subr.mxu0 0.0
  %263 = vmatpush1.msra.mxu0 0.0
  %264 = vmatprep.subr.mxu0 0.0
  %265 = vmatpush1.msra.mxu0 0.0
  %266 = vmatprep.subr.mxu0 0.0
  %267 = vmatpush1.msra.mxu0 0.0
  %268 = vmatprep.subr.mxu0 0.0
  %269 = vmatpush1.msra.mxu0 0.0
  %270 = vmatprep.subr.mxu0 0.0
  %271 = vmatpush1.msra.mxu0 0.0
  %272 = vmatprep.subr.mxu0 0.0
  %273 = vmatpush1.msra.mxu0 0.0
  %274 = vmatprep.subr.mxu0 0.0
  %275 = vmatpush1.msra.mxu0 0.0
  %276 = vmatprep.subr.mxu0 0.0
  %277 = vmatpush1.msra.mxu0 0.0
  %278 = vmatprep.subr.mxu0 0.0
  %279 = vmatpush1.msra.mxu0 0.0
  %280 = vmatprep.subr.mxu0 0.0
  %281 = vmatpush1.msra.mxu0 0.0
  %282 = vmatprep.subr.mxu0 0.0
  %283 = vmatpush1.msra.mxu0 0.0
  %284 = vmatprep.mubr.f32.mxu0 0.0
  %285 = vmatmul.mubr.f32.gmra.mrb[0].mxu0 %v197
  %v286 = vpop.f32.mrb[0].mxu0
  %v287 = vadd.f32 %v194, %v286
  %v288 = vpop.f32.mrb[0].mxu0
  %289 = vmatprep.mubr.f32.mxu0 0.0
  %290 = vmatmul.mubr.f32.gmra.mrb[0].mxu0 %v200
  %v291 = vpop.f32.mrb[0].mxu0
  %v292 = vadd.f32 %v194, %v291
  %v293 = vpop.f32.mrb[0].mxu0
  %294 = vmatprep.mubr.f32.mxu0 0.0
  %295 = vmatmul.mubr.f32.gmra.mrb[0].mxu0 %v203
  %v296 = vpop.f32.mrb[0].mxu0
  %v297 = vadd.f32 %v194, %v296
  %v298 = vpop.f32.mrb[0].mxu0
  %299 = vmatprep.mubr.f32.mxu0 0.0
  %300 = vmatmul.mubr.f32.gmra.mrb[0].mxu0 %v206
  %v301 = vpop.f32.mrb[0].mxu0
  %v302 = vadd.f32 %v194, %v301
  %v303 = vpop.f32.mrb[0].mxu0
  %304 = vmatprep.mubr.f32.mxu0 0.0
  %305 = vmatmul.mubr.f32.gmra.mrb[0].mxu0 %v209
  %v306 = vpop.f32.mrb[0].mxu0
  %v307 = vadd.f32 %v194, %v306
  %v308 = vpop.f32.mrb[0].mxu0
  %309 = vmatprep.mubr.f32.mxu0 0.0
  %310 = vmatmul.mubr.f32.gmra.mrb[0].mxu0 %v212
  %v311 = vpop.f32.mrb[0].mxu0
  %v312 = vadd.f32 %v194, %v311
  %v313 = vpop.f32.mrb[0].mxu0
  %314 = vmatprep.mubr.f32.mxu0 0.0
  %315 = vmatmul.mubr.f32.gmra.mrb[0].mxu0 %v215
  %v316 = vpop.f32.mrb[0].mxu0
  %v317 = vadd.f32 %v194, %v316
  %v318 = vpop.f32.mrb[0].mxu0
  %319 = vmatprep.mubr.f32.mxu0 0.0
  %320 = vmatmul.mubr.f32.gmra.mrb[0].mxu0 %v218
  %v321 = vpop.f32.mrb[0].mxu0
  %v322 = vadd.f32 %v194, %v321
  %v323 = vpop.f32.mrb[0].mxu0
  %324 = vdwg.mxu0
  %v325 = vmul.f32 %v287, %v287
  %v326 = vmul.f32 %v292, %v292
  %v327 = vmul.f32 %v297, %v297
  %v328 = vmul.f32 %v302, %v302
  %v329 = vmul.f32 %v307, %v307
  %v330 = vmul.f32 %v312, %v312
  %v331 = vmul.f32 %v317, %v317
  %v332 = vmul.f32 %v322, %v322
  %v333 = vsel %vm47, %v325, 0.0
  %334 = vadd.xlane.f32.xlu0 %v333
  %v335 = vpop.xlane.xlu0 %334
  %v336 = vsel %vm47, %v326, 0.0
  %337 = vadd.xlane.f32.xlu0 %v336
  %v338 = vpop.xlane.xlu0 %337
  %v339 = vsel %vm47, %v327, 0.0
  %340 = vadd.xlane.f32.xlu0 %v339
  %v341 = vpop.xlane.xlu0 %340
  %v342 = vsel %vm47, %v328, 0.0
  %343 = vadd.xlane.f32.xlu0 %v342
  %v344 = vpop.xlane.xlu0 %343
  %v345 = vsel %vm47, %v329, 0.0
  %346 = vadd.xlane.f32.xlu0 %v345
  %v347 = vpop.xlane.xlu0 %346
  %v348 = vsel %vm47, %v330, 0.0
  %349 = vadd.xlane.f32.xlu0 %v348
  %v350 = vpop.xlane.xlu0 %349
  %v351 = vsel %vm47, %v331, 0.0
  %352 = vadd.xlane.f32.xlu0 %v351
  %v353 = vpop.xlane.xlu0 %352
  %v354 = vsel %vm47, %v332, 0.0
  %355 = vadd.xlane.f32.xlu0 %v354
  %v356 = vpop.xlane.xlu0 %355
  %v357 = vmax.f32 %v335, 1e-24
  %v358 = vmax.f32 %v338, 1e-24
  %v359 = vmax.f32 %v341, 1e-24
  %v360 = vmax.f32 %v344, 1e-24
  %v361 = vmax.f32 %v347, 1e-24
  %v362 = vmax.f32 %v350, 1e-24
  %v363 = vmax.f32 %v353, 1e-24
  %v364 = vmax.f32 %v356, 1e-24
  %v365 = vrsqrt.pop %v357
  %v366 = vrsqrt.pop %v358
  %v367 = vrsqrt.pop %v359
  %v368 = vrsqrt.pop %v360
  %v369 = vrsqrt.pop %v361
  %v370 = vrsqrt.pop %v362
  %v371 = vrsqrt.pop %v363
  %v372 = vrsqrt.pop %v364
  %v373 = vmul.f32 %v287, %v365
  %v374 = vmul.f32 %v292, %v366
  %v375 = vmul.f32 %v297, %v367
  %v376 = vmul.f32 %v302, %v368
  %v377 = vmul.f32 %v307, %v369
  %v378 = vmul.f32 %v312, %v370
  %v379 = vmul.f32 %v317, %v371
  %v380 = vmul.f32 %v322, %v372
  %381 = vst.msk [vmem:[%s7] sm:$0xff] %vm47, %v373
  %382 = vst.msk [vmem:[%s7 + $0x8] sm:$0xff] %vm47, %v374
  %383 = vst.msk [vmem:[%s7 + $0x10] sm:$0xff] %vm47, %v375
  %384 = vst.msk [vmem:[%s7 + $0x18] sm:$0xff] %vm47, %v376
  %385 = vst.msk [vmem:[%s7 + $0x20] sm:$0xff] %vm47, %v377
  %386 = vst.msk [vmem:[%s7 + $0x28] sm:$0xff] %vm47, %v378
  %387 = vst.msk [vmem:[%s7 + $0x30] sm:$0xff] %vm47, %v379
  %388 = vst.msk [vmem:[%s7 + $0x38] sm:$0xff] %vm47, %v380
  %v389 = vld [vmem:[%s5] sm:$0xff]
  %v390 = vld [vmem:[%s5 + $0x8] sm:$0xff]
  %v391 = vld [vmem:[%s5 + $0x10] sm:$0xff]
  %v392 = vld [vmem:[%s5 + $0x18] sm:$0xff]
  %v393 = vld [vmem:[%s6] sm:$0x1]
  %v395 = vlaneseq
  %v396 = vshrl.u32 %v395, 7
  %v397 = vsub.s32 0, %v396
  %v398 = vrot.slane %v393, %v397
  %400 = vmatprep.subr.mxu0 0.0
  %401 = vmatpush1.msra.mxu0 %v389
  %402 = vmatprep.subr.mxu0 0.0
  %403 = vmatpush1.msra.mxu0 %v390
  %404 = vmatprep.subr.mxu0 0.0
  %405 = vmatpush1.msra.mxu0 %v391
  %406 = vmatprep.subr.mxu0 0.0
  %407 = vmatpush1.msra.mxu0 %v392
  %408 = vmatprep.subr.mxu0 0.0
  %409 = vmatpush1.msra.mxu0 0.0
  %410 = vmatprep.subr.mxu0 0.0
  %411 = vmatpush1.msra.mxu0 0.0
  %412 = vmatprep.subr.mxu0 0.0
  %413 = vmatpush1.msra.mxu0 0.0
  %414 = vmatprep.subr.mxu0 0.0
  %415 = vmatpush1.msra.mxu0 0.0
  %416 = vmatprep.subr.mxu0 0.0
  %417 = vmatpush1.msra.mxu0 0.0
  %418 = vmatprep.subr.mxu0 0.0
  %419 = vmatpush1.msra.mxu0 0.0
  %420 = vmatprep.subr.mxu0 0.0
  %421 = vmatpush1.msra.mxu0 0.0
  %422 = vmatprep.subr.mxu0 0.0
  %423 = vmatpush1.msra.mxu0 0.0
  %424 = vmatprep.subr.mxu0 0.0
  %425 = vmatpush1.msra.mxu0 0.0
  %426 = vmatprep.subr.mxu0 0.0
  %427 = vmatpush1.msra.mxu0 0.0
  %428 = vmatprep.subr.mxu0 0.0
  %429 = vmatpush1.msra.mxu0 0.0
  %430 = vmatprep.subr.mxu0 0.0
  %431 = vmatpush1.msra.mxu0 0.0
  %432 = vmatprep.subr.mxu0 0.0
  %433 = vmatpush1.msra.mxu0 0.0
  %434 = vmatprep.subr.mxu0 0.0
  %435 = vmatpush1.msra.mxu0 0.0
  %436 = vmatprep.subr.mxu0 0.0
  %437 = vmatpush1.msra.mxu0 0.0
  %438 = vmatprep.subr.mxu0 0.0
  %439 = vmatpush1.msra.mxu0 0.0
  %440 = vmatprep.subr.mxu0 0.0
  %441 = vmatpush1.msra.mxu0 0.0
  %442 = vmatprep.subr.mxu0 0.0
  %443 = vmatpush1.msra.mxu0 0.0
  %444 = vmatprep.subr.mxu0 0.0
  %445 = vmatpush1.msra.mxu0 0.0
  %446 = vmatprep.subr.mxu0 0.0
  %447 = vmatpush1.msra.mxu0 0.0
  %448 = vmatprep.subr.mxu0 0.0
  %449 = vmatpush1.msra.mxu0 0.0
  %450 = vmatprep.subr.mxu0 0.0
  %451 = vmatpush1.msra.mxu0 0.0
  %452 = vmatprep.subr.mxu0 0.0
  %453 = vmatpush1.msra.mxu0 0.0
  %454 = vmatprep.subr.mxu0 0.0
  %455 = vmatpush1.msra.mxu0 0.0
  %456 = vmatprep.subr.mxu0 0.0
  %457 = vmatpush1.msra.mxu0 0.0
  %458 = vmatprep.subr.mxu0 0.0
  %459 = vmatpush1.msra.mxu0 0.0
  %460 = vmatprep.subr.mxu0 0.0
  %461 = vmatpush1.msra.mxu0 0.0
  %462 = vmatprep.subr.mxu0 0.0
  %463 = vmatpush1.msra.mxu0 0.0
  %464 = vmatprep.mubr.f32.mxu0 0.0
  %465 = vmatmul.mubr.f32.gmra.mrb[0].mxu0 %v49
  %v466 = vpop.f32.mrb[0].mxu0
  %v467 = vadd.f32 %v398, %v466
  %v468 = vpop.f32.mrb[0].mxu0
  %469 = vmatprep.mubr.f32.mxu0 0.0
  %470 = vmatmul.mubr.f32.gmra.mrb[0].mxu0 %v52
  %v471 = vpop.f32.mrb[0].mxu0
  %v472 = vadd.f32 %v398, %v471
  %v473 = vpop.f32.mrb[0].mxu0
  %474 = vmatprep.mubr.f32.mxu0 0.0
  %475 = vmatmul.mubr.f32.gmra.mrb[0].mxu0 %v55
  %v476 = vpop.f32.mrb[0].mxu0
  %v477 = vadd.f32 %v398, %v476
  %v478 = vpop.f32.mrb[0].mxu0
  %479 = vmatprep.mubr.f32.mxu0 0.0
  %480 = vmatmul.mubr.f32.gmra.mrb[0].mxu0 %v58
  %v481 = vpop.f32.mrb[0].mxu0
  %v482 = vadd.f32 %v398, %v481
  %v483 = vpop.f32.mrb[0].mxu0
  %484 = vmatprep.mubr.f32.mxu0 0.0
  %485 = vmatmul.mubr.f32.gmra.mrb[0].mxu0 %v61
  %v486 = vpop.f32.mrb[0].mxu0
  %v487 = vadd.f32 %v398, %v486
  %v488 = vpop.f32.mrb[0].mxu0
  %489 = vmatprep.mubr.f32.mxu0 0.0
  %490 = vmatmul.mubr.f32.gmra.mrb[0].mxu0 %v64
  %v491 = vpop.f32.mrb[0].mxu0
  %v492 = vadd.f32 %v398, %v491
  %v493 = vpop.f32.mrb[0].mxu0
  %494 = vmatprep.mubr.f32.mxu0 0.0
  %495 = vmatmul.mubr.f32.gmra.mrb[0].mxu0 %v67
  %v496 = vpop.f32.mrb[0].mxu0
  %v497 = vadd.f32 %v398, %v496
  %v498 = vpop.f32.mrb[0].mxu0
  %499 = vmatprep.mubr.f32.mxu0 0.0
  %500 = vmatmul.mubr.f32.gmra.mrb[0].mxu0 %v70
  %v501 = vpop.f32.mrb[0].mxu0
  %v502 = vadd.f32 %v398, %v501
  %v503 = vpop.f32.mrb[0].mxu0
  %504 = vdwg.mxu0
  %vm505 = vcmask 523264
  %506 = vst.msk [vmem:[%s8] sm:$0xff] %vm505, %v467
  %507 = vst.msk [vmem:[%s8 + $0x8] sm:$0xff] %vm505, %v472
  %508 = vst.msk [vmem:[%s8 + $0x10] sm:$0xff] %vm505, %v477
  %509 = vst.msk [vmem:[%s8 + $0x18] sm:$0xff] %vm505, %v482
  %510 = vst.msk [vmem:[%s8 + $0x20] sm:$0xff] %vm505, %v487
  %511 = vst.msk [vmem:[%s8 + $0x28] sm:$0xff] %vm505, %v492
  %512 = vst.msk [vmem:[%s8 + $0x30] sm:$0xff] %vm505, %v497
  %513 = vst.msk [vmem:[%s8 + $0x38] sm:$0xff] %vm505, %v502
  // Predicated region
  $region30: #{decoder_train_forward.8} parent=0 // pred_check
    _
  $region31: #{decoder_train_forward.8} parent=0 // pred_check_branch
    %515 = sbr.rel (0) target = $region33
  $region32: #{decoder_train_forward.8} parent=0 // pred_region
    _
  $region33: #{decoder_train_forward.8} parent=0 // pred_fallthru
    _
  // Predicated region
  $region34: #{decoder_train_forward.8} parent=0 // pred_check
    _
  $region35: #{decoder_train_forward.8} parent=0 // pred_check_branch
    %517 = sbr.rel (0) target = $region37
  $region36: #{decoder_train_forward.8} parent=0 // pred_region
    _
  $region37: #{decoder_train_forward.8} parent=0 // pred_fallthru
    _
  // Predicated region
  $region38: #{decoder_train_forward.8} parent=0 // pred_check
    _
  $region39: #{decoder_train_forward.8} parent=0 // pred_check_branch
    %519 = sbr.rel (0) target = $region41
  $region40: #{decoder_train_forward.8} parent=0 // pred_region
    _
  $region41: #{decoder_train_forward.8} parent=0 // pred_fallthru
    _
  // Predicated region
  $region42: #{decoder_train_forward.8} parent=0 // pred_check
    _
  $region43: #{decoder_train_forward.8} parent=0 // pred_check_branch
    %521 = sbr.rel (0) target = $region45
  $region44: #{decoder_train_forward.8} parent=0 // pred_region
    _
  $region45: #{decoder_train_forward.8} parent=0 // pred_fallthru
    _

// kernel: decoder_train_forward.6
$region0: #{decoder_train_forward.6}
  #allocation0 [shape = 'u32[]', space=smem, size = 0x4, offset = 0x4, fixed_abs, tag = 'smem constant byte address 0x4 - core index']
  #allocation1 [shape = 'u32[144,128]{1,0:T(1,128)}', space=vmem, size = 0x12000, scoped, tag = 'internal scratch']
  %s0 = inlined_call_operand.vmem [shape: f32[2,16,32], index: 0, kind: input, shape index: {}]
  %s1 = inlined_call_operand.vmem [shape: f32[2,16,32], index: 1, kind: input, shape index: {}]
  %s2 = inlined_call_operand.vmem [shape: f32[2,16,32], index: 2, kind: input, shape index: {}]
  %s3 = inlined_call_operand.vmem [shape: f32[2,16,32], index: 3, kind: input, shape index: {}]
  %s4 = inlined_call_operand.vmem [shape: f32[2,1,16], index: 4, kind: input, shape index: {}]
  %s5 = inlined_call_operand.vmem [shape: f32[2,1,16], index: 5, kind: input, shape index: {}]
  %s6 = inlined_call_operand.vmem [shape: f32[32,64], index: 6, kind: input, shape index: {}]
  %s7 = inlined_call_operand.vmem [shape: f32[1,64], index: 7, kind: input, shape index: {}]
  %s8 = inlined_call_operand.vmem [shape: f32[32,32], index: 8, kind: input, shape index: {}]
  %s9 = inlined_call_operand.vmem [shape: f32[1,32], index: 9, kind: input, shape index: {}]
  %s10 = inlined_call_operand.vmem [shape: f32[32,32], index: 10, kind: input, shape index: {}]
  %s11 = inlined_call_operand.vmem [shape: f32[1,32], index: 11, kind: input, shape index: {}]
  %s12 = inlined_call_operand.vmem [shape: f32[32,64], index: 12, kind: input, shape index: {}]
  %s13 = inlined_call_operand.vmem [shape: f32[1,64], index: 13, kind: input, shape index: {}]
  %s14 = inlined_call_operand.vmem [shape: f32[32,32], index: 14, kind: input, shape index: {}]
  %s15 = inlined_call_operand.vmem [shape: f32[1,32], index: 15, kind: input, shape index: {}]
  %s16 = inlined_call_operand.vmem [shape: f32[32,32], index: 16, kind: input, shape index: {}]
  %s17 = inlined_call_operand.vmem [shape: f32[1,32], index: 17, kind: input, shape index: {}]
  %s18 = inlined_call_operand.vmem [shape: f32[32,64], index: 18, kind: input, shape index: {}]
  %s19 = inlined_call_operand.vmem [shape: f32[1,64], index: 19, kind: input, shape index: {}]
  %s20 = inlined_call_operand.vmem [shape: f32[64,32], index: 20, kind: input, shape index: {}]
  %s21 = inlined_call_operand.vmem [shape: f32[1,32], index: 21, kind: input, shape index: {}]
  %s22 = inlined_call_operand.vmem [shape: f32[6,32], index: 22, kind: input, shape index: {}]
  %s23 = inlined_call_operand.vmem [shape: f32[2,16,32], index: 23, kind: output, shape index: {0}]
  %s24 = inlined_call_operand.vmem [shape: f32[2,16,32], index: 24, kind: output, shape index: {1}]
  %25 = xla_tuple %s23, %s24
  %s26 = sld [smem:[#allocation0]]
  $region133: #{decoder_train_forward.6} parent=0
    _
  %s28 = ssub.s32 1, %s26
  %s29 = scalar_select 0, %s28, %s26
  loop: start=0, step=1, limit=4
  $region2: #{decoder_train_forward.6} parent=0 // loop_pre_header
    _
  $region3: #{decoder_train_forward.6} parent=0 // loop_header
    %s31 = sphi 0, %s35
    %p32 = scmp.ge.s32.totalorder %s31, 4
    %s41 = sphi 0, %s43
    %s44 = sphi 0, %s41
    %s45 = sphi 0, %s44
    %s61 = sphi 0, %s45
    %s67 = sphi 0, %s69
    %s70 = sphi 0, %s67
    %s71 = sphi 0, %s70
    %s87 = sphi 0, %s71
    %s93 = sphi 0, %s95
    %s96 = sphi 0, %s93
    %s97 = sphi 0, %s96
    %s113 = sphi 0, %s97
    %s119 = sphi 0, %s121
    %s122 = sphi 0, %s119
    %s123 = sphi 0, %s122
    %s139 = sphi 0, %s123
    %s145 = sphi 0, %s147
    %s148 = sphi 0, %s145
    %s149 = sphi 0, %s148
    %s165 = sphi 0, %s149
    %s171 = sphi 0, %s173
    %s174 = sphi 0, %s171
    %s175 = sphi 0, %s174
    %s191 = sphi 0, %s175
    %s195 = sphi 0, %s195
    %s197 = sphi 0, %s195
    %s198 = sphi 0, %s197
    %s212 = sphi 0, %s198
    %s216 = sphi 0, %s216
    %s218 = sphi 0, %s216
    %s219 = sphi 0, %s218
    %s233 = sphi 0, %s219
    %s237 = sphi 0, %s237
    %s239 = sphi 0, %s237
    %s240 = sphi 0, %s239
    %s254 = sphi 0, %s240
    %s258 = sphi 0, %s258
    %s260 = sphi 0, %s258
    %s261 = sphi 0, %s260
    %s275 = sphi 0, %s261
    %s279 = sphi 0, %s279
    %s281 = sphi 0, %s279
    %s282 = sphi 0, %s281
    %s296 = sphi 0, %s282
    %s300 = sphi 0, %s300
    %s302 = sphi 0, %s300
    %s303 = sphi 0, %s302
    %s317 = sphi 0, %s303
    %s321 = sphi 0, %s321
    %s323 = sphi 0, %s321
    %s324 = sphi 0, %s323
    %s338 = sphi 0, %s324
    %s342 = sphi 0, %s342
    %s344 = sphi 0, %s342
    %s345 = sphi 0, %s344
    %s359 = sphi 0, %s345
    %s363 = sphi 0, %s363
    %s365 = sphi 0, %s363
    %s366 = sphi 0, %s365
    %s380 = sphi 0, %s366
    %s384 = sphi 0, %s384
    %s386 = sphi 0, %s384
    %s387 = sphi 0, %s386
    %s401 = sphi 0, %s387
    %s405 = sphi 0, %s405
    %s407 = sphi 0, %s405
    %s408 = sphi 0, %s407
    %s422 = sphi 0, %s408
    %s426 = sphi 0, %s426
    %s428 = sphi 0, %s426
    %s429 = sphi 0, %s428
    %s443 = sphi 0, %s429
    %s447 = sphi 0, %s447
    %s449 = sphi 0, %s447
    %s450 = sphi 0, %s449
    %s464 = sphi 0, %s450
    %s468 = sphi 0, %s468
    %s470 = sphi 0, %s468
    %s471 = sphi 0, %s470
    %s485 = sphi 0, %s471
    %s489 = sphi 0, %s489
    %s491 = sphi 0, %s489
    %s492 = sphi 0, %s491
    %s506 = sphi 0, %s492
    %s510 = sphi 0, %s510
    %s512 = sphi 0, %s510
    %s513 = sphi 0, %s512
    %s527 = sphi 0, %s513
    %s531 = sphi 0, %s531
    %s533 = sphi 0, %s531
    %s534 = sphi 0, %s533
    %s548 = sphi 0, %s534
    %s554 = sphi 0, %s556
    %s557 = sphi 0, %s554
    %s558 = sphi 0, %s557
    %s574 = sphi 0, %s558
    %s580 = sphi 0, %s582
    %s583 = sphi 0, %s580
    %s584 = sphi 0, %s583
    %s600 = sphi 0, %s584
  $region4: #{decoder_train_forward.6} parent=0 // loop_header_branch
    %34 = sbr.rel (%p32) target = $region8
  $region5: #{decoder_train_forward.6} parent=0 // loop_body
    %s36 = ssub.s32 %s31, 1
    %s37 = ssub.s32 %s31, 2
    %s38 = sadd.s32 %s31, 1
    %s39 = ssub.s32 %s31, %s38
    %p40 = scmp.eq.s32.totalorder %s39, 0
    %s42 = sadd.s32 %s41, 1
    %s43 = scalar_select %p40, %s41, %s42
    %p46 = pneg %p40
    %p47 = scmp.eq.s32.totalorder %s31, 1
    %p48 = por %p46, %p47
    %p49 = scmp.ne.s32.totalorder %s41, %s44
    %p50 = scmp.eq.s32.totalorder %s31, 0
    %p51 = por %p49, %p50
    %p52 = scmp.ne.s32.totalorder %s41, %s44
    %p53 = scmp.eq.s32.totalorder %s36, 1
    %p54 = por %p52, %p53
    %p55 = scmp.ne.s32.totalorder %s44, %s45
    %p56 = scmp.eq.s32.totalorder %s36, 0
    %p57 = por %p55, %p56
    %p58 = scmp.ne.s32.totalorder %s44, %s45
    %p59 = scmp.eq.s32.totalorder %s37, 1
    %p60 = por %p58, %p59
    %p62 = scmp.ne.s32.totalorder %s45, %s61
    %p63 = scmp.eq.s32.totalorder %s37, 0
    %p64 = por %p62, %p63
    %s65 = ssub.s32 %s31, %s38
    %p66 = scmp.eq.s32.totalorder %s65, 0
    %s68 = sadd.s32 %s67, 1
    %s69 = scalar_select %p66, %s67, %s68
    %p72 = pneg %p66
    %p73 = scmp.eq.s32.totalorder %s31, 1
    %p74 = por %p72, %p73
    %p75 = scmp.ne.s32.totalorder %s67, %s70
    %p76 = scmp.eq.s32.totalorder %s31, 0
    %p77 = por %p75, %p76
    %p78 = scmp.ne.s32.totalorder %s67, %s70
    %p79 = scmp.eq.s32.totalorder %s36, 1
    %p80 = por %p78, %p79
    %p81 = scmp.ne.s32.totalorder %s70, %s71
    %p82 = scmp.eq.s32.totalorder %s36, 0
    %p83 = por %p81, %p82
    %p84 = scmp.ne.s32.totalorder %s70, %s71
    %p85 = scmp.eq.s32.totalorder %s37, 1
    %p86 = por %p84, %p85
    %p88 = scmp.ne.s32.totalorder %s71, %s87
    %p89 = scmp.eq.s32.totalorder %s37, 0
    %p90 = por %p88, %p89
    %s91 = ssub.s32 %s31, %s38
    %p92 = scmp.eq.s32.totalorder %s91, 0
    %s94 = sadd.s32 %s93, 1
    %s95 = scalar_select %p92, %s93, %s94
    %p98 = pneg %p92
    %p99 = scmp.eq.s32.totalorder %s31, 1
    %p100 = por %p98, %p99
    %p101 = scmp.ne.s32.totalorder %s93, %s96
    %p102 = scmp.eq.s32.totalorder %s31, 0
    %p103 = por %p101, %p102
    %p104 = scmp.ne.s32.totalorder %s93, %s96
    %p105 = scmp.eq.s32.totalorder %s36, 1
    %p106 = por %p104, %p105
    %p107 = scmp.ne.s32.totalorder %s96, %s97
    %p108 = scmp.eq.s32.totalorder %s36, 0
    %p109 = por %p107, %p108
    %p110 = scmp.ne.s32.totalorder %s96, %s97
    %p111 = scmp.eq.s32.totalorder %s37, 1
    %p112 = por %p110, %p111
    %p114 = scmp.ne.s32.totalorder %s97, %s113
    %p115 = scmp.eq.s32.totalorder %s37, 0
    %p116 = por %p114, %p115
    %s117 = ssub.s32 %s31, %s38
    %p118 = scmp.eq.s32.totalorder %s117, 0
    %s120 = sadd.s32 %s119, 1
    %s121 = scalar_select %p118, %s119, %s120
    %p124 = pneg %p118
    %p125 = scmp.eq.s32.totalorder %s31, 1
    %p126 = por %p124, %p125
    %p127 = scmp.ne.s32.totalorder %s119, %s122
    %p128 = scmp.eq.s32.totalorder %s31, 0
    %p129 = por %p127, %p128
    %p130 = scmp.ne.s32.totalorder %s119, %s122
    %p131 = scmp.eq.s32.totalorder %s36, 1
    %p132 = por %p130, %p131
    %p133 = scmp.ne.s32.totalorder %s122, %s123
    %p134 = scmp.eq.s32.totalorder %s36, 0
    %p135 = por %p133, %p134
    %p136 = scmp.ne.s32.totalorder %s122, %s123
    %p137 = scmp.eq.s32.totalorder %s37, 1
    %p138 = por %p136, %p137
    %p140 = scmp.ne.s32.totalorder %s123, %s139
    %p141 = scmp.eq.s32.totalorder %s37, 0
    %p142 = por %p140, %p141
    %s143 = ssub.s32 %s31, %s38
    %p144 = scmp.eq.s32.totalorder %s143, 0
    %s146 = sadd.s32 %s145, 1
    %s147 = scalar_select %p144, %s145, %s146
    %p150 = pneg %p144
    %p151 = scmp.eq.s32.totalorder %s31, 1
    %p152 = por %p150, %p151
    %p153 = scmp.ne.s32.totalorder %s145, %s148
    %p154 = scmp.eq.s32.totalorder %s31, 0
    %p155 = por %p153, %p154
    %p156 = scmp.ne.s32.totalorder %s145, %s148
    %p157 = scmp.eq.s32.totalorder %s36, 1
    %p158 = por %p156, %p157
    %p159 = scmp.ne.s32.totalorder %s148, %s149
    %p160 = scmp.eq.s32.totalorder %s36, 0
    %p161 = por %p159, %p160
    %p162 = scmp.ne.s32.totalorder %s148, %s149
    %p163 = scmp.eq.s32.totalorder %s37, 1
    %p164 = por %p162, %p163
    %p166 = scmp.ne.s32.totalorder %s149, %s165
    %p167 = scmp.eq.s32.totalorder %s37, 0
    %p168 = por %p166, %p167
    %s169 = ssub.s32 %s31, %s38
    %p170 = scmp.eq.s32.totalorder %s169, 0
    %s172 = sadd.s32 %s171, 1
    %s173 = scalar_select %p170, %s171, %s172
    %p176 = pneg %p170
    %p177 = scmp.eq.s32.totalorder %s31, 1
    %p178 = por %p176, %p177
    %p179 = scmp.ne.s32.totalorder %s171, %s174
    %p180 = scmp.eq.s32.totalorder %s31, 0
    %p181 = por %p179, %p180
    %p182 = scmp.ne.s32.totalorder %s171, %s174
    %p183 = scmp.eq.s32.totalorder %s36, 1
    %p184 = por %p182, %p183
    %p185 = scmp.ne.s32.totalorder %s174, %s175
    %p186 = scmp.eq.s32.totalorder %s36, 0
    %p187 = por %p185, %p186
    %p188 = scmp.ne.s32.totalorder %s174, %s175
    %p189 = scmp.eq.s32.totalorder %s37, 1
    %p190 = por %p188, %p189
    %p192 = scmp.ne.s32.totalorder %s175, %s191
    %p193 = scmp.eq.s32.totalorder %s37, 0
    %p194 = por %p192, %p193
    %s196 = sadd.s32 %s195, 1
    %p199 = scmp.eq.s32.totalorder %s31, 1
    %p200 = scmp.ne.s32.totalorder %s195, %s197
    %p201 = scmp.eq.s32.totalorder %s31, 0
    %p202 = por %p200, %p201
    %p203 = scmp.ne.s32.totalorder %s195, %s197
    %p204 = scmp.eq.s32.totalorder %s36, 1
    %p205 = por %p203, %p204
    %p206 = scmp.ne.s32.totalorder %s197, %s198
    %p207 = scmp.eq.s32.totalorder %s36, 0
    %p208 = por %p206, %p207
    %p209 = scmp.ne.s32.totalorder %s197, %s198
    %p210 = scmp.eq.s32.totalorder %s37, 1
    %p211 = por %p209, %p210
    %p213 = scmp.ne.s32.totalorder %s198, %s212
    %p214 = scmp.eq.s32.totalorder %s37, 0
    %p215 = por %p213, %p214
    %s217 = sadd.s32 %s216, 1
    %p220 = scmp.eq.s32.totalorder %s31, 1
    %p221 = scmp.ne.s32.totalorder %s216, %s218
    %p222 = scmp.eq.s32.totalorder %s31, 0
    %p223 = por %p221, %p222
    %p224 = scmp.ne.s32.totalorder %s216, %s218
    %p225 = scmp.eq.s32.totalorder %s36, 1
    %p226 = por %p224, %p225
    %p227 = scmp.ne.s32.totalorder %s218, %s219
    %p228 = scmp.eq.s32.totalorder %s36, 0
    %p229 = por %p227, %p228
    %p230 = scmp.ne.s32.totalorder %s218, %s219
    %p231 = scmp.eq.s32.totalorder %s37, 1
    %p232 = por %p230, %p231
    %p234 = scmp.ne.s32.totalorder %s219, %s233
    %p235 = scmp.eq.s32.totalorder %s37, 0
    %p236 = por %p234, %p235
    %s238 = sadd.s32 %s237, 1
    %p241 = scmp.eq.s32.totalorder %s31, 1
    %p242 = scmp.ne.s32.totalorder %s237, %s239
    %p243 = scmp.eq.s32.totalorder %s31, 0
    %p244 = por %p242, %p243
    %p245 = scmp.ne.s32.totalorder %s237, %s239
    %p246 = scmp.eq.s32.totalorder %s36, 1
    %p247 = por %p245, %p246
    %p248 = scmp.ne.s32.totalorder %s239, %s240
    %p249 = scmp.eq.s32.totalorder %s36, 0
    %p250 = por %p248, %p249
    %p251 = scmp.ne.s32.totalorder %s239, %s240
    %p252 = scmp.eq.s32.totalorder %s37, 1
    %p253 = por %p251, %p252
    %p255 = scmp.ne.s32.totalorder %s240, %s254
    %p256 = scmp.eq.s32.totalorder %s37, 0
    %p257 = por %p255, %p256
    %s259 = sadd.s32 %s258, 1
    %p262 = scmp.eq.s32.totalorder %s31, 1
    %p263 = scmp.ne.s32.totalorder %s258, %s260
    %p264 = scmp.eq.s32.totalorder %s31, 0
    %p265 = por %p263, %p264
    %p266 = scmp.ne.s32.totalorder %s258, %s260
    %p267 = scmp.eq.s32.totalorder %s36, 1
    %p268 = por %p266, %p267
    %p269 = scmp.ne.s32.totalorder %s260, %s261
    %p270 = scmp.eq.s32.totalorder %s36, 0
    %p271 = por %p269, %p270
    %p272 = scmp.ne.s32.totalorder %s260, %s261
    %p273 = scmp.eq.s32.totalorder %s37, 1
    %p274 = por %p272, %p273
    %p276 = scmp.ne.s32.totalorder %s261, %s275
    %p277 = scmp.eq.s32.totalorder %s37, 0
    %p278 = por %p276, %p277
    %s280 = sadd.s32 %s279, 1
    %p283 = scmp.eq.s32.totalorder %s31, 1
    %p284 = scmp.ne.s32.totalorder %s279, %s281
    %p285 = scmp.eq.s32.totalorder %s31, 0
    %p286 = por %p284, %p285
    %p287 = scmp.ne.s32.totalorder %s279, %s281
    %p288 = scmp.eq.s32.totalorder %s36, 1
    %p289 = por %p287, %p288
    %p290 = scmp.ne.s32.totalorder %s281, %s282
    %p291 = scmp.eq.s32.totalorder %s36, 0
    %p292 = por %p290, %p291
    %p293 = scmp.ne.s32.totalorder %s281, %s282
    %p294 = scmp.eq.s32.totalorder %s37, 1
    %p295 = por %p293, %p294
    %p297 = scmp.ne.s32.totalorder %s282, %s296
    %p298 = scmp.eq.s32.totalorder %s37, 0
    %p299 = por %p297, %p298
    %s301 = sadd.s32 %s300, 1
    %p304 = scmp.eq.s32.totalorder %s31, 1
    %p305 = scmp.ne.s32.totalorder %s300, %s302
    %p306 = scmp.eq.s32.totalorder %s31, 0
    %p307 = por %p305, %p306
    %p308 = scmp.ne.s32.totalorder %s300, %s302
    %p309 = scmp.eq.s32.totalorder %s36, 1
    %p310 = por %p308, %p309
    %p311 = scmp.ne.s32.totalorder %s302, %s303
    %p312 = scmp.eq.s32.totalorder %s36, 0
    %p313 = por %p311, %p312
    %p314 = scmp.ne.s32.totalorder %s302, %s303
    %p315 = scmp.eq.s32.totalorder %s37, 1
    %p316 = por %p314, %p315
    %p318 = scmp.ne.s32.totalorder %s303, %s317
    %p319 = scmp.eq.s32.totalorder %s37, 0
    %p320 = por %p318, %p319
    %s322 = sadd.s32 %s321, 1
    %p325 = scmp.eq.s32.totalorder %s31, 1
    %p326 = scmp.ne.s32.totalorder %s321, %s323
    %p327 = scmp.eq.s32.totalorder %s31, 0
    %p328 = por %p326, %p327
    %p329 = scmp.ne.s32.totalorder %s321, %s323
    %p330 = scmp.eq.s32.totalorder %s36, 1
    %p331 = por %p329, %p330
    %p332 = scmp.ne.s32.totalorder %s323, %s324
    %p333 = scmp.eq.s32.totalorder %s36, 0
    %p334 = por %p332, %p333
    %p335 = scmp.ne.s32.totalorder %s323, %s324
    %p336 = scmp.eq.s32.totalorder %s37, 1
    %p337 = por %p335, %p336
    %p339 = scmp.ne.s32.totalorder %s324, %s338
    %p340 = scmp.eq.s32.totalorder %s37, 0
    %p341 = por %p339, %p340
    %s343 = sadd.s32 %s342, 1
    %p346 = scmp.eq.s32.totalorder %s31, 1
    %p347 = scmp.ne.s32.totalorder %s342, %s344
    %p348 = scmp.eq.s32.totalorder %s31, 0
    %p349 = por %p347, %p348
    %p350 = scmp.ne.s32.totalorder %s342, %s344
    %p351 = scmp.eq.s32.totalorder %s36, 1
    %p352 = por %p350, %p351
    %p353 = scmp.ne.s32.totalorder %s344, %s345
    %p354 = scmp.eq.s32.totalorder %s36, 0
    %p355 = por %p353, %p354
    %p356 = scmp.ne.s32.totalorder %s344, %s345
    %p357 = scmp.eq.s32.totalorder %s37, 1
    %p358 = por %p356, %p357
    %p360 = scmp.ne.s32.totalorder %s345, %s359
    %p361 = scmp.eq.s32.totalorder %s37, 0
    %p362 = por %p360, %p361
    %s364 = sadd.s32 %s363, 1
    %p367 = scmp.eq.s32.totalorder %s31, 1
    %p368 = scmp.ne.s32.totalorder %s363, %s365
    %p369 = scmp.eq.s32.totalorder %s31, 0
    %p370 = por %p368, %p369
    %p371 = scmp.ne.s32.totalorder %s363, %s365
    %p372 = scmp.eq.s32.totalorder %s36, 1
    %p373 = por %p371, %p372
    %p374 = scmp.ne.s32.totalorder %s365, %s366
    %p375 = scmp.eq.s32.totalorder %s36, 0
    %p376 = por %p374, %p375
    %p377 = scmp.ne.s32.totalorder %s365, %s366
    %p378 = scmp.eq.s32.totalorder %s37, 1
    %p379 = por %p377, %p378
    %p381 = scmp.ne.s32.totalorder %s366, %s380
    %p382 = scmp.eq.s32.totalorder %s37, 0
    %p383 = por %p381, %p382
    %s385 = sadd.s32 %s384, 1
    %p388 = scmp.eq.s32.totalorder %s31, 1
    %p389 = scmp.ne.s32.totalorder %s384, %s386
    %p390 = scmp.eq.s32.totalorder %s31, 0
    %p391 = por %p389, %p390
    %p392 = scmp.ne.s32.totalorder %s384, %s386
    %p393 = scmp.eq.s32.totalorder %s36, 1
    %p394 = por %p392, %p393
    %p395 = scmp.ne.s32.totalorder %s386, %s387
    %p396 = scmp.eq.s32.totalorder %s36, 0
    %p397 = por %p395, %p396
    %p398 = scmp.ne.s32.totalorder %s386, %s387
    %p399 = scmp.eq.s32.totalorder %s37, 1
    %p400 = por %p398, %p399
    %p402 = scmp.ne.s32.totalorder %s387, %s401
    %p403 = scmp.eq.s32.totalorder %s37, 0
    %p404 = por %p402, %p403
    %s406 = sadd.s32 %s405, 1
    %p409 = scmp.eq.s32.totalorder %s31, 1
    %p410 = scmp.ne.s32.totalorder %s405, %s407
    %p411 = scmp.eq.s32.totalorder %s31, 0
    %p412 = por %p410, %p411
    %p413 = scmp.ne.s32.totalorder %s405, %s407
    %p414 = scmp.eq.s32.totalorder %s36, 1
    %p415 = por %p413, %p414
    %p416 = scmp.ne.s32.totalorder %s407, %s408
    %p417 = scmp.eq.s32.totalorder %s36, 0
    %p418 = por %p416, %p417
    %p419 = scmp.ne.s32.totalorder %s407, %s408
    %p420 = scmp.eq.s32.totalorder %s37, 1
    %p421 = por %p419, %p420
    %p423 = scmp.ne.s32.totalorder %s408, %s422
    %p424 = scmp.eq.s32.totalorder %s37, 0
    %p425 = por %p423, %p424
    %s427 = sadd.s32 %s426, 1
    %p430 = scmp.eq.s32.totalorder %s31, 1
    %p431 = scmp.ne.s32.totalorder %s426, %s428
    %p432 = scmp.eq.s32.totalorder %s31, 0
    %p433 = por %p431, %p432
    %p434 = scmp.ne.s32.totalorder %s426, %s428
    %p435 = scmp.eq.s32.totalorder %s36, 1
    %p436 = por %p434, %p435
    %p437 = scmp.ne.s32.totalorder %s428, %s429
    %p438 = scmp.eq.s32.totalorder %s36, 0
    %p439 = por %p437, %p438
    %p440 = scmp.ne.s32.totalorder %s428, %s429
    %p441 = scmp.eq.s32.totalorder %s37, 1
    %p442 = por %p440, %p441
    %p444 = scmp.ne.s32.totalorder %s429, %s443
    %p445 = scmp.eq.s32.totalorder %s37, 0
    %p446 = por %p444, %p445
    %s448 = sadd.s32 %s447, 1
    %p451 = scmp.eq.s32.totalorder %s31, 1
    %p452 = scmp.ne.s32.totalorder %s447, %s449
    %p453 = scmp.eq.s32.totalorder %s31, 0
    %p454 = por %p452, %p453
    %p455 = scmp.ne.s32.totalorder %s447, %s449
    %p456 = scmp.eq.s32.totalorder %s36, 1
    %p457 = por %p455, %p456
    %p458 = scmp.ne.s32.totalorder %s449, %s450
    %p459 = scmp.eq.s32.totalorder %s36, 0
    %p460 = por %p458, %p459
    %p461 = scmp.ne.s32.totalorder %s449, %s450
    %p462 = scmp.eq.s32.totalorder %s37, 1
    %p463 = por %p461, %p462
    %p465 = scmp.ne.s32.totalorder %s450, %s464
    %p466 = scmp.eq.s32.totalorder %s37, 0
    %p467 = por %p465, %p466
    %s469 = sadd.s32 %s468, 1
    %p472 = scmp.eq.s32.totalorder %s31, 1
    %p473 = scmp.ne.s32.totalorder %s468, %s470
    %p474 = scmp.eq.s32.totalorder %s31, 0
    %p475 = por %p473, %p474
    %p476 = scmp.ne.s32.totalorder %s468, %s470
    %p477 = scmp.eq.s32.totalorder %s36, 1
    %p478 = por %p476, %p477
    %p479 = scmp.ne.s32.totalorder %s470, %s471
    %p480 = scmp.eq.s32.totalorder %s36, 0
    %p481 = por %p479, %p480
    %p482 = scmp.ne.s32.totalorder %s470, %s471
    %p483 = scmp.eq.s32.totalorder %s37, 1
    %p484 = por %p482, %p483
    %p486 = scmp.ne.s32.totalorder %s471, %s485
    %p487 = scmp.eq.s32.totalorder %s37, 0
    %p488 = por %p486, %p487
    %s490 = sadd.s32 %s489, 1
    %p493 = scmp.eq.s32.totalorder %s31, 1
    %p494 = scmp.ne.s32.totalorder %s489, %s491
    %p495 = scmp.eq.s32.totalorder %s31, 0
    %p496 = por %p494, %p495
    %p497 = scmp.ne.s32.totalorder %s489, %s491
    %p498 = scmp.eq.s32.totalorder %s36, 1
    %p499 = por %p497, %p498
    %p500 = scmp.ne.s32.totalorder %s491, %s492
    %p501 = scmp.eq.s32.totalorder %s36, 0
    %p502 = por %p500, %p501
    %p503 = scmp.ne.s32.totalorder %s491, %s492
    %p504 = scmp.eq.s32.totalorder %s37, 1
    %p505 = por %p503, %p504
    %p507 = scmp.ne.s32.totalorder %s492, %s506
    %p508 = scmp.eq.s32.totalorder %s37, 0
    %p509 = por %p507, %p508
    %s511 = sadd.s32 %s510, 1
    %p514 = scmp.eq.s32.totalorder %s31, 1
    %p515 = scmp.ne.s32.totalorder %s510, %s512
    %p516 = scmp.eq.s32.totalorder %s31, 0
    %p517 = por %p515, %p516
    %p518 = scmp.ne.s32.totalorder %s510, %s512
    %p519 = scmp.eq.s32.totalorder %s36, 1
    %p520 = por %p518, %p519
    %p521 = scmp.ne.s32.totalorder %s512, %s513
    %p522 = scmp.eq.s32.totalorder %s36, 0
    %p523 = por %p521, %p522
    %p524 = scmp.ne.s32.totalorder %s512, %s513
    %p525 = scmp.eq.s32.totalorder %s37, 1
    %p526 = por %p524, %p525
    %p528 = scmp.ne.s32.totalorder %s513, %s527
    %p529 = scmp.eq.s32.totalorder %s37, 0
    %p530 = por %p528, %p529
    %s532 = sadd.s32 %s531, 1
    %p535 = scmp.eq.s32.totalorder %s31, 1
    %p536 = scmp.ne.s32.totalorder %s531, %s533
    %p537 = scmp.eq.s32.totalorder %s31, 0
    %p538 = por %p536, %p537
    %p539 = scmp.ne.s32.totalorder %s531, %s533
    %p540 = scmp.eq.s32.totalorder %s36, 1
    %p541 = por %p539, %p540
    %p542 = scmp.ne.s32.totalorder %s533, %s534
    %p543 = scmp.eq.s32.totalorder %s36, 0
    %p544 = por %p542, %p543
    %p545 = scmp.ne.s32.totalorder %s533, %s534
    %p546 = scmp.eq.s32.totalorder %s37, 1
    %p547 = por %p545, %p546
    %p549 = scmp.ne.s32.totalorder %s534, %s548
    %p550 = scmp.eq.s32.totalorder %s37, 0
    %p551 = por %p549, %p550
    %s552 = ssub.s32 %s31, %s38
    %p553 = scmp.eq.s32.totalorder %s552, 0
    %s555 = sadd.s32 %s554, 1
    %s556 = scalar_select %p553, %s554, %s555
    %p559 = pneg %p553
    %p560 = scmp.eq.s32.totalorder %s31, 1
    %p561 = por %p559, %p560
    %p562 = scmp.ne.s32.totalorder %s554, %s557
    %p563 = scmp.eq.s32.totalorder %s31, 0
    %p564 = por %p562, %p563
    %p565 = scmp.ne.s32.totalorder %s554, %s557
    %p566 = scmp.eq.s32.totalorder %s36, 1
    %p567 = por %p565, %p566
    %p568 = scmp.ne.s32.totalorder %s557, %s558
    %p569 = scmp.eq.s32.totalorder %s36, 0
    %p570 = por %p568, %p569
    %p571 = scmp.ne.s32.totalorder %s557, %s558
    %p572 = scmp.eq.s32.totalorder %s37, 1
    %p573 = por %p571, %p572
    %p575 = scmp.ne.s32.totalorder %s558, %s574
    %p576 = scmp.eq.s32.totalorder %s37, 0
    %p577 = por %p575, %p576
    %s578 = ssub.s32 %s31, %s38
    %p579 = scmp.eq.s32.totalorder %s578, 0
    %s581 = sadd.s32 %s580, 1
    %s582 = scalar_select %p579, %s580, %s581
    %p585 = pneg %p579
    %p586 = scmp.eq.s32.totalorder %s31, 1
    %p587 = por %p585, %p586
    %p588 = scmp.ne.s32.totalorder %s580, %s583
    %p589 = scmp.eq.s32.totalorder %s31, 0
    %p590 = por %p588, %p589
    %p591 = scmp.ne.s32.totalorder %s580, %s583
    %p592 = scmp.eq.s32.totalorder %s36, 1
    %p593 = por %p591, %p592
    %p594 = scmp.ne.s32.totalorder %s583, %s584
    %p595 = scmp.eq.s32.totalorder %s36, 0
    %p596 = por %p594, %p595
    %p597 = scmp.ne.s32.totalorder %s583, %s584
    %p598 = scmp.eq.s32.totalorder %s37, 1
    %p599 = por %p597, %p598
    %p601 = scmp.ne.s32.totalorder %s584, %s600
    %p602 = scmp.eq.s32.totalorder %s37, 0
    %p603 = por %p601, %p602
    %p604 = scmp.le.s32.totalorder 1, %s31
    %p605 = scmp.lt.s32.totalorder %s31, 3
    %p606 = pnand %p604, %p605
    %p607 = pneg %p606
    // Predicated region
    $region9: #{decoder_train_forward.6} parent=5 // pred_check
      _
    $region10: #{decoder_train_forward.6} parent=5 // pred_check_branch
      %609 = sbr.rel (%p606) target = $region12
    $region11: #{decoder_train_forward.6} parent=5 // pred_region
      %s610 = ssub.s32 %s31, 1
      // Predicated region
      $region13: #{decoder_train_forward.6} parent=11 // pred_check
        %p611 = pneg %p208
      $region14: #{decoder_train_forward.6} parent=11 // pred_check_branch
        %613 = sbr.rel (%p611) target = $region16
      $region15: #{decoder_train_forward.6} parent=11 // pred_region
        _
      $region16: #{decoder_train_forward.6} parent=11 // pred_fallthru
        _
      // Predicated region
      $region17: #{decoder_train_forward.6} parent=11 // pred_check
        %p614 = pneg %p229
      $region18: #{decoder_train_forward.6} parent=11 // pred_check_branch
        %616 = sbr.rel (%p614) target = $region20
      $region19: #{decoder_train_forward.6} parent=11 // pred_region
        _
      $region20: #{decoder_train_forward.6} parent=11 // pred_fallthru
        _
      // Predicated region
      $region21: #{decoder_train_forward.6} parent=11 // pred_check
        %p617 = pneg %p250
      $region22: #{decoder_train_forward.6} parent=11 // pred_check_branch
        %619 = sbr.rel (%p617) target = $region24
      $region23: #{decoder_train_forward.6} parent=11 // pred_region
        _
      $region24: #{decoder_train_forward.6} parent=11 // pred_fallthru
        _
      // Predicated region
      $region25: #{decoder_train_forward.6} parent=11 // pred_check
        %p620 = pneg %p271
      $region26: #{decoder_train_forward.6} parent=11 // pred_check_branch
        %622 = sbr.rel (%p620) target = $region28
      $region27: #{decoder_train_forward.6} parent=11 // pred_region
        _
      $region28: #{decoder_train_forward.6} parent=11 // pred_fallthru
        _
      // Predicated region
      $region29: #{decoder_train_forward.6} parent=11 // pred_check
        %p623 = pneg %p292
      $region30: #{decoder_train_forward.6} parent=11 // pred_check_branch
        %625 = sbr.rel (%p623) target = $region32
      $region31: #{decoder_train_forward.6} parent=11 // pred_region
        _
      $region32: #{decoder_train_forward.6} parent=11 // pred_fallthru
        _
      // Predicated region
      $region33: #{decoder_train_forward.6} parent=11 // pred_check
        %p626 = pneg %p313
      $region34: #{decoder_train_forward.6} parent=11 // pred_check_branch
        %628 = sbr.rel (%p626) target = $region36
      $region35: #{decoder_train_forward.6} parent=11 // pred_region
        _
      $region36: #{decoder_train_forward.6} parent=11 // pred_fallthru
        _
      // Predicated region
      $region37: #{decoder_train_forward.6} parent=11 // pred_check
        %p629 = pneg %p334
      $region38: #{decoder_train_forward.6} parent=11 // pred_check_branch
        %631 = sbr.rel (%p629) target = $region40
      $region39: #{decoder_train_forward.6} parent=11 // pred_region
        _
      $region40: #{decoder_train_forward.6} parent=11 // pred_fallthru
        _
      // Predicated region
      $region41: #{decoder_train_forward.6} parent=11 // pred_check
        %p632 = pneg %p355
      $region42: #{decoder_train_forward.6} parent=11 // pred_check_branch
        %634 = sbr.rel (%p632) target = $region44
      $region43: #{decoder_train_forward.6} parent=11 // pred_region
        _
      $region44: #{decoder_train_forward.6} parent=11 // pred_fallthru
        _
      // Predicated region
      $region45: #{decoder_train_forward.6} parent=11 // pred_check
        %p635 = pneg %p376
      $region46: #{decoder_train_forward.6} parent=11 // pred_check_branch
        %637 = sbr.rel (%p635) target = $region48
      $region47: #{decoder_train_forward.6} parent=11 // pred_region
        _
      $region48: #{decoder_train_forward.6} parent=11 // pred_fallthru
        _
      // Predicated region
      $region49: #{decoder_train_forward.6} parent=11 // pred_check
        %p638 = pneg %p397
      $region50: #{decoder_train_forward.6} parent=11 // pred_check_branch
        %640 = sbr.rel (%p638) target = $region52
      $region51: #{decoder_train_forward.6} parent=11 // pred_region
        _
      $region52: #{decoder_train_forward.6} parent=11 // pred_fallthru
        _
      // Predicated region
      $region53: #{decoder_train_forward.6} parent=11 // pred_check
        %p641 = pneg %p418
      $region54: #{decoder_train_forward.6} parent=11 // pred_check_branch
        %643 = sbr.rel (%p641) target = $region56
      $region55: #{decoder_train_forward.6} parent=11 // pred_region
        _
      $region56: #{decoder_train_forward.6} parent=11 // pred_fallthru
        _
      // Predicated region
      $region57: #{decoder_train_forward.6} parent=11 // pred_check
        %p644 = pneg %p439
      $region58: #{decoder_train_forward.6} parent=11 // pred_check_branch
        %646 = sbr.rel (%p644) target = $region60
      $region59: #{decoder_train_forward.6} parent=11 // pred_region
        _
      $region60: #{decoder_train_forward.6} parent=11 // pred_fallthru
        _
      // Predicated region
      $region61: #{decoder_train_forward.6} parent=11 // pred_check
        %p647 = pneg %p460
      $region62: #{decoder_train_forward.6} parent=11 // pred_check_branch
        %649 = sbr.rel (%p647) target = $region64
      $region63: #{decoder_train_forward.6} parent=11 // pred_region
        _
      $region64: #{decoder_train_forward.6} parent=11 // pred_fallthru
        _
      // Predicated region
      $region65: #{decoder_train_forward.6} parent=11 // pred_check
        %p650 = pneg %p481
      $region66: #{decoder_train_forward.6} parent=11 // pred_check_branch
        %652 = sbr.rel (%p650) target = $region68
      $region67: #{decoder_train_forward.6} parent=11 // pred_region
        _
      $region68: #{decoder_train_forward.6} parent=11 // pred_fallthru
        _
      // Predicated region
      $region69: #{decoder_train_forward.6} parent=11 // pred_check
        %p653 = pneg %p502
      $region70: #{decoder_train_forward.6} parent=11 // pred_check_branch
        %655 = sbr.rel (%p653) target = $region72
      $region71: #{decoder_train_forward.6} parent=11 // pred_region
        _
      $region72: #{decoder_train_forward.6} parent=11 // pred_fallthru
        _
      // Predicated region
      $region73: #{decoder_train_forward.6} parent=11 // pred_check
        %p656 = pneg %p523
      $region74: #{decoder_train_forward.6} parent=11 // pred_check_branch
        %658 = sbr.rel (%p656) target = $region76
      $region75: #{decoder_train_forward.6} parent=11 // pred_region
        _
      $region76: #{decoder_train_forward.6} parent=11 // pred_fallthru
        _
      // Predicated region
      $region77: #{decoder_train_forward.6} parent=11 // pred_check
        %p659 = pneg %p544
      $region78: #{decoder_train_forward.6} parent=11 // pred_check_branch
        %661 = sbr.rel (%p659) target = $region80
      $region79: #{decoder_train_forward.6} parent=11 // pred_region
        _
      $region80: #{decoder_train_forward.6} parent=11 // pred_fallthru
        _
    $region12: #{decoder_train_forward.6} parent=5 // pred_fallthru
      _
    %p662 = scmp.lt.s32.totalorder %s31, 2
    // Predicated region
    $region81: #{decoder_train_forward.6} parent=5 // pred_check
      %p663 = pneg %p662
    $region82: #{decoder_train_forward.6} parent=5 // pred_check_branch
      %665 = sbr.rel (%p663) target = $region84
    $region83: #{decoder_train_forward.6} parent=5 // pred_region
      // Predicated region
      $region85: #{decoder_train_forward.6} parent=83 // pred_check
        %p666 = pneg %p51
      $region86: #{decoder_train_forward.6} parent=83 // pred_check_branch
        %668 = sbr.rel (%p666) target = $region88
      $region87: #{decoder_train_forward.6} parent=83 // pred_region
        %p669 = scmp.lt.s32.totalorder %s31, 1
        %s670 = scalar_select %p669, %s31, 1
        %s671 = smul.addr %s670, 2
        %s672 = smul.addr %s671, 8
        %s673 = scalar_lea.vmem %s0, %s672
      $region88: #{decoder_train_forward.6} parent=83 // pred_fallthru
        _
      // Predicated region
      $region89: #{decoder_train_forward.6} parent=83 // pred_check
        %p674 = pneg %p77
      $region90: #{decoder_train_forward.6} parent=83 // pred_check_branch
        %676 = sbr.rel (%p674) target = $region92
      $region91: #{decoder_train_forward.6} parent=83 // pred_region
        %p677 = scmp.lt.s32.totalorder %s31, 1
        %s678 = scalar_select %p677, %s31, 1
        %s679 = smul.addr %s678, 2
        %s680 = smul.addr %s679, 8
        %s681 = scalar_lea.vmem %s1, %s680
      $region92: #{decoder_train_forward.6} parent=83 // pred_fallthru
        _
      // Predicated region
      $region93: #{decoder_train_forward.6} parent=83 // pred_check
        %p682 = pneg %p103
      $region94: #{decoder_train_forward.6} parent=83 // pred_check_branch
        %684 = sbr.rel (%p682) target = $region96
      $region95: #{decoder_train_forward.6} parent=83 // pred_region
        %p685 = scmp.lt.s32.totalorder %s31, 1
        %s686 = scalar_select %p685, %s31, 1
        %s687 = smul.addr %s686, 2
        %s688 = smul.addr %s687, 8
        %s689 = scalar_lea.vmem %s2, %s688
      $region96: #{decoder_train_forward.6} parent=83 // pred_fallthru
        _
      // Predicated region
      $region97: #{decoder_train_forward.6} parent=83 // pred_check
        %p690 = pneg %p129
      $region98: #{decoder_train_forward.6} parent=83 // pred_check_branch
        %692 = sbr.rel (%p690) target = $region100
      $region99: #{decoder_train_forward.6} parent=83 // pred_region
        %p693 = scmp.lt.s32.totalorder %s31, 1
        %s694 = scalar_select %p693, %s31, 1
        %s695 = smul.addr %s694, 2
        %s696 = smul.addr %s695, 8
        %s697 = scalar_lea.vmem %s3, %s696
      $region100: #{decoder_train_forward.6} parent=83 // pred_fallthru
        _
      // Predicated region
      $region101: #{decoder_train_forward.6} parent=83 // pred_check
        %p698 = pneg %p155
      $region102: #{decoder_train_forward.6} parent=83 // pred_check_branch
        %700 = sbr.rel (%p698) target = $region104
      $region103: #{decoder_train_forward.6} parent=83 // pred_region
        %p701 = scmp.lt.s32.totalorder %s31, 1
        %s702 = scalar_select %p701, %s31, 1
        %s703 = scalar_lea.vmem %s4, %s702
      $region104: #{decoder_train_forward.6} parent=83 // pred_fallthru
        _
      // Predicated region
      $region105: #{decoder_train_forward.6} parent=83 // pred_check
        %p704 = pneg %p181
      $region106: #{decoder_train_forward.6} parent=83 // pred_check_branch
        %706 = sbr.rel (%p704) target = $region108
      $region107: #{decoder_train_forward.6} parent=83 // pred_region
        %p707 = scmp.lt.s32.totalorder %s31, 1
        %s708 = scalar_select %p707, %s31, 1
        %s709 = scalar_lea.vmem %s5, %s708
      $region108: #{decoder_train_forward.6} parent=83 // pred_fallthru
        _
    $region84: #{decoder_train_forward.6} parent=5 // pred_fallthru
      _
    %p710 = scmp.le.s32.totalorder 1, %s31
    %p711 = scmp.lt.s32.totalorder %s31, 3
    %p712 = pnand %p710, %p711
    %p713 = pneg %p712
    // Predicated region
    $region109: #{decoder_train_forward.6} parent=5 // pred_check
      _
    $region110: #{decoder_train_forward.6} parent=5 // pred_check_branch
      %715 = sbr.rel (%p712) target = $region112
    $region111: #{decoder_train_forward.6} parent=5 // pred_region
      %s716 = ssub.s32 %s31, 1
      %p717 = scmp.lt.s32.totalorder %s36, 1
      %s718 = scalar_select %p717, %s36, 1
      %s719 = smul.addr %s718, 2
      %s720 = smul.addr %s719, 8
      %s721 = scalar_lea.vmem %s0, %s720
      %p722 = pneg %p57
      %p723 = pneg %p54
      %p724 = scmp.lt.s32.totalorder %s36, 1
      %s725 = scalar_select %p724, %s36, 1
      %s726 = smul.addr %s725, 2
      %s727 = smul.addr %s726, 8
      %s728 = scalar_lea.vmem %s1, %s727
      %p729 = pneg %p83
      %p730 = pneg %p80
      %p731 = scmp.lt.s32.totalorder %s36, 1
      %s732 = scalar_select %p731, %s36, 1
      %s733 = smul.addr %s732, 2
      %s734 = smul.addr %s733, 8
      %s735 = scalar_lea.vmem %s2, %s734
      %p736 = pneg %p109
      %p737 = pneg %p106
      %p738 = scmp.lt.s32.totalorder %s36, 1
      %s739 = scalar_select %p738, %s36, 1
      %s740 = smul.addr %s739, 2
      %s741 = smul.addr %s740, 8
      %s742 = scalar_lea.vmem %s3, %s741
      %p743 = pneg %p135
      %p744 = pneg %p132
      %p745 = scmp.lt.s32.totalorder %s36, 1
      %s746 = scalar_select %p745, %s36, 1
      %s747 = scalar_lea.vmem %s4, %s746
      %p748 = pneg %p161
      %p749 = pneg %p158
      %p750 = scmp.lt.s32.totalorder %s36, 1
      %s751 = scalar_select %p750, %s36, 1
      %s752 = scalar_lea.vmem %s5, %s751
      %p753 = pneg %p187
      %p754 = pneg %p184
      %p755 = pneg %p208
      %p756 = pneg %p205
      %p757 = pneg %p229
      %p758 = pneg %p226
      %p759 = pneg %p250
      %p760 = pneg %p247
      %p761 = pneg %p271
      %p762 = pneg %p268
      %p763 = pneg %p292
      %p764 = pneg %p289
      %p765 = pneg %p313
      %p766 = pneg %p310
      %p767 = pneg %p334
      %p768 = pneg %p331
      %p769 = pneg %p355
      %p770 = pneg %p352
      %p771 = pneg %p376
      %p772 = pneg %p373
      %p773 = pneg %p397
      %p774 = pneg %p394
      %p775 = pneg %p418
      %p776 = pneg %p415
      %p777 = pneg %p439
      %p778 = pneg %p436
      %p779 = pneg %p460
      %p780 = pneg %p457
      %p781 = pneg %p481
      %p782 = pneg %p478
      %p783 = pneg %p502
      %p784 = pneg %p499
      %p785 = pneg %p523
      %p786 = pneg %p520
      %p787 = pneg %p544
      %p788 = pneg %p541
      %p789 = pneg %p570
      %p790 = pneg %p567
      %p791 = scmp.lt.s32.totalorder %s36, 1
      %s792 = scalar_select %p791, %s36, 1
      %s793 = smul.addr %s792, 2
      %s794 = smul.addr %s793, 8
      %s795 = scalar_lea.vmem %s23, %s794
      %p796 = pneg %p596
      %p797 = pneg %p593
      %p798 = scmp.lt.s32.totalorder %s36, 1
      %s799 = scalar_select %p798, %s36, 1
      %s800 = smul.addr %s799, 2
      %s801 = smul.addr %s800, 8
      %s802 = scalar_lea.vmem %s24, %s801
      %p803 = scmp.lt.s32.totalorder %s36, 1
      %s804 = scalar_select %p803, %s36, 1
      %s805 = smul.addr %s804, 2
      %s806 = smul.addr %s805, 8
      %s807 = scalar_lea.vmem %s0, %s806
      %p808 = scmp.lt.s32.totalorder %s36, 1
      %s809 = scalar_select %p808, %s36, 1
      %s810 = smul.addr %s809, 2
      %s811 = smul.addr %s810, 8
      %s812 = scalar_lea.vmem %s1, %s811
      %p813 = scmp.lt.s32.totalorder %s36, 1
      %s814 = scalar_select %p813, %s36, 1
      %s815 = smul.addr %s814, 2
      %s816 = smul.addr %s815, 8
      %s817 = scalar_lea.vmem %s2, %s816
      %p818 = scmp.lt.s32.totalorder %s36, 1
      %s819 = scalar_select %p818, %s36, 1
      %s820 = smul.addr %s819, 2
      %s821 = smul.addr %s820, 8
      %s822 = scalar_lea.vmem %s3, %s821
      %p823 = scmp.lt.s32.totalorder %s36, 1
      %s824 = scalar_select %p823, %s36, 1
      %s825 = scalar_lea.vmem %s4, %s824
      %p826 = scmp.lt.s32.totalorder %s36, 1
      %s827 = scalar_select %p826, %s36, 1
      %s828 = scalar_lea.vmem %s5, %s827
      %p829 = scmp.lt.s32.totalorder %s36, 1
      %s830 = scalar_select %p829, %s36, 1
      %s831 = smul.addr %s830, 2
      %s832 = smul.addr %s831, 8
      %s833 = scalar_lea.vmem %s23, %s832
      %p834 = scmp.lt.s32.totalorder %s36, 1
      %s835 = scalar_select %p834, %s36, 1
      %s836 = smul.addr %s835, 2
      %s837 = smul.addr %s836, 8
      %s838 = scalar_lea.vmem %s24, %s837
      %v839 = vld [vmem:[%s807] sm:$0xff]
      %v840 = vld [vmem:[%s807 + $0x8] sm:$0xff]
      %v841 = vld [vmem:[%s812] sm:$0xff]
      %v842 = vld [vmem:[%s812 + $0x8] sm:$0xff]
      %v843 = vld [vmem:[%s817] sm:$0xff]
      %v844 = vld [vmem:[%s817 + $0x8] sm:$0xff]
      %v845 = vld [vmem:[%s822] sm:$0xff]
      %v846 = vld [vmem:[%s822 + $0x8] sm:$0xff]
      %v847 = vld [vmem:[%s825] sm:$0x1]
      %v848 = vld [vmem:[%s828] sm:$0x1]
      %v849 = vld [vmem:[%s22] sm:$0x3f]
      %v850 = vld [vmem:[%s6] sm:$0xff]
      %v851 = vld [vmem:[%s6 + $0x8] sm:$0xff]
      %v852 = vld [vmem:[%s6 + $0x10] sm:$0xff]
      %v853 = vld [vmem:[%s6 + $0x18] sm:$0xff]
      %v854 = vld [vmem:[%s7] sm:$0x1]
      %v855 = vld [vmem:[%s8] sm:$0xff]
      %v856 = vld [vmem:[%s8 + $0x8] sm:$0xff]
      %v857 = vld [vmem:[%s8 + $0x10] sm:$0xff]
      %v858 = vld [vmem:[%s8 + $0x18] sm:$0xff]
      %v859 = vld [vmem:[%s9] sm:$0x1]
      %v860 = vld [vmem:[%s10] sm:$0xff]
      %v861 = vld [vmem:[%s10 + $0x8] sm:$0xff]
      %v862 = vld [vmem:[%s10 + $0x10] sm:$0xff]
      %v863 = vld [vmem:[%s10 + $0x18] sm:$0xff]
      %v864 = vld [vmem:[%s11] sm:$0x1]
      %v865 = vadd.f32 %v839, %v843
      %v866 = vadd.f32 %v840, %v844
      %v867 = vadd.f32 %v841, %v845
      %v868 = vadd.f32 %v842, %v846
      %v870 = vlaneseq
      %v871 = vshrl.u32 %v870, 7
      %v872 = vsub.s32 0, %v871
      %v873 = vrot.slane %v854, %v872
      %vm875 = vcmask 261120
      %v877 = vsel %vm875, %v865, 0
      %v880 = vsel %vm875, %v866, 0
      %882 = vmatprep.subr.mxu0 0.0
      %883 = vmatpush1.msra.mxu0 %v850
      %884 = vmatprep.subr.mxu0 0.0
      %885 = vmatpush1.msra.mxu0 %v851
      %886 = vmatprep.subr.mxu0 0.0
      %887 = vmatpush1.msra.mxu0 %v852
      %888 = vmatprep.subr.mxu0 0.0
      %889 = vmatpush1.msra.mxu0 %v853
      %890 = vmatprep.subr.mxu0 0.0
      %891 = vmatpush1.msra.mxu0 0.0
      %892 = vmatprep.subr.mxu0 0.0
      %893 = vmatpush1.msra.mxu0 0.0
      %894 = vmatprep.subr.mxu0 0.0
      %895 = vmatpush1.msra.mxu0 0.0
      %896 = vmatprep.subr.mxu0 0.0
      %897 = vmatpush1.msra.mxu0 0.0
      %898 = vmatprep.subr.mxu0 0.0
      %899 = vmatpush1.msra.mxu0 0.0
      %900 = vmatprep.subr.mxu0 0.0
      %901 = vmatpush1.msra.mxu0 0.0
      %902 = vmatprep.subr.mxu0 0.0
      %903 = vmatpush1.msra.mxu0 0.0
      %904 = vmatprep.subr.mxu0 0.0
      %905 = vmatpush1.msra.mxu0 0.0
      %906 = vmatprep.subr.mxu0 0.0
      %907 = vmatpush1.msra.mxu0 0.0
      %908 = vmatprep.subr.mxu0 0.0
      %909 = vmatpush1.msra.mxu0 0.0
      %910 = vmatprep.subr.mxu0 0.0
      %911 = vmatpush1.msra.mxu0 0.0
      %912 = vmatprep.subr.mxu0 0.0
      %913 = vmatpush1.msra.mxu0 0.0
      %914 = vmatprep.subr.mxu0 0.0
      %915 = vmatpush1.msra.mxu0 0.0
      %916 = vmatprep.subr.mxu0 0.0
      %917 = vmatpush1.msra.mxu0 0.0
      %918 = vmatprep.subr.mxu0 0.0
      %919 = vmatpush1.msra.mxu0 0.0
      %920 = vmatprep.subr.mxu0 0.0
      %921 = vmatpush1.msra.mxu0 0.0
      %922 = vmatprep.subr.mxu0 0.0
      %923 = vmatpush1.msra.mxu0 0.0
      %924 = vmatprep.subr.mxu0 0.0
      %925 = vmatpush1.msra.mxu0 0.0
      %926 = vmatprep.subr.mxu0 0.0
      %927 = vmatpush1.msra.mxu0 0.0
      %928 = vmatprep.subr.mxu0 0.0
      %929 = vmatpush1.msra.mxu0 0.0
      %930 = vmatprep.subr.mxu0 0.0
      %931 = vmatpush1.msra.mxu0 0.0
      %932 = vmatprep.subr.mxu0 0.0
      %933 = vmatpush1.msra.mxu0 0.0
      %934 = vmatprep.subr.mxu0 0.0
      %935 = vmatpush1.msra.mxu0 0.0
      %936 = vmatprep.subr.mxu0 0.0
      %937 = vmatpush1.msra.mxu0 0.0
      %938 = vmatprep.subr.mxu0 0.0
      %939 = vmatpush1.msra.mxu0 0.0
      %940 = vmatprep.subr.mxu0 0.0
      %941 = vmatpush1.msra.mxu0 0.0
      %942 = vmatprep.subr.mxu0 0.0
      %943 = vmatpush1.msra.mxu0 0.0
      %944 = vmatprep.subr.mxu0 0.0
      %945 = vmatpush1.msra.mxu0 0.0
      %946 = vmatprep.mubr.f32.mxu0 0.0
      %947 = vmatmul.mubr.f32.gmra.mrb[0].mxu0 %v877
      %v948 = vpop.f32.mrb[0].mxu0
      %v949 = vadd.f32 %v873, %v948
      %v950 = vpop.f32.mrb[0].mxu0
      %951 = vmatprep.mubr.f32.mxu0 0.0
      %952 = vmatmul.mubr.f32.gmra.mrb[0].mxu0 %v880
      %v953 = vpop.f32.mrb[0].mxu0
      %v954 = vadd.f32 %v873, %v953
      %v955 = vpop.f32.mrb[0].mxu0
      %956 = vdwg.mxu0
      %v958 = vsel %vm875, %v867, 0
      %v961 = vsel %vm875, %v868, 0
      %963 = vmatprep.subr.mxu0 0.0
      %964 = vmatpush1.msra.mxu0 %v850
      %965 = vmatprep.subr.mxu0 0.0
      %966 = vmatpush1.msra.mxu0 %v851
      %967 = vmatprep.subr.mxu0 0.0
      %968 = vmatpush1.msra.mxu0 %v852
      %969 = vmatprep.subr.mxu0 0.0
      %970 = vmatpush1.msra.mxu0 %v853
      %971 = vmatprep.subr.mxu0 0.0
      %972 = vmatpush1.msra.mxu0 0.0
      %973 = vmatprep.subr.mxu0 0.0
      %974 = vmatpush1.msra.mxu0 0.0
      %975 = vmatprep.subr.mxu0 0.0
      %976 = vmatpush1.msra.mxu0 0.0
      %977 = vmatprep.subr.mxu0 0.0
      %978 = vmatpush1.msra.mxu0 0.0
      %979 = vmatprep.subr.mxu0 0.0
      %980 = vmatpush1.msra.mxu0 0.0
      %981 = vmatprep.subr.mxu0 0.0
      %982 = vmatpush1.msra.mxu0 0.0
      %983 = vmatprep.subr.mxu0 0.0
      %984 = vmatpush1.msra.mxu0 0.0
      %985 = vmatprep.subr.mxu0 0.0
      %986 = vmatpush1.msra.mxu0 0.0
      %987 = vmatprep.subr.mxu0 0.0
      %988 = vmatpush1.msra.mxu0 0.0
      %989 = vmatprep.subr.mxu0 0.0
      %990 = vmatpush1.msra.mxu0 0.0
      %991 = vmatprep.subr.mxu0 0.0
      %992 = vmatpush1.msra.mxu0 0.0
      %993 = vmatprep.subr.mxu0 0.0
      %994 = vmatpush1.msra.mxu0 0.0
      %995 = vmatprep.subr.mxu0 0.0
      %996 = vmatpush1.msra.mxu0 0.0
      %997 = vmatprep.subr.mxu0 0.0
      %998 = vmatpush1.msra.mxu0 0.0
      %999 = vmatprep.subr.mxu0 0.0
      %1000 = vmatpush1.msra.mxu0 0.0
      %1001 = vmatprep.subr.mxu0 0.0
      %1002 = vmatpush1.msra.mxu0 0.0
      %1003 = vmatprep.subr.mxu0 0.0
      %1004 = vmatpush1.msra.mxu0 0.0
      %1005 = vmatprep.subr.mxu0 0.0
      %1006 = vmatpush1.msra.mxu0 0.0
      %1007 = vmatprep.subr.mxu0 0.0
      %1008 = vmatpush1.msra.mxu0 0.0
      %1009 = vmatprep.subr.mxu0 0.0
      %1010 = vmatpush1.msra.mxu0 0.0
      %1011 = vmatprep.subr.mxu0 0.0
      %1012 = vmatpush1.msra.mxu0 0.0
      %1013 = vmatprep.subr.mxu0 0.0
      %1014 = vmatpush1.msra.mxu0 0.0
      %1015 = vmatprep.subr.mxu0 0.0
      %1016 = vmatpush1.msra.mxu0 0.0
      %1017 = vmatprep.subr.mxu0 0.0
      %1018 = vmatpush1.msra.mxu0 0.0
      %1019 = vmatprep.subr.mxu0 0.0
      %1020 = vmatpush1.msra.mxu0 0.0
      %1021 = vmatprep.subr.mxu0 0.0
      %1022 = vmatpush1.msra.mxu0 0.0
      %1023 = vmatprep.subr.mxu0 0.0
      %1024 = vmatpush1.msra.mxu0 0.0
      %1025 = vmatprep.subr.mxu0 0.0
      %1026 = vmatpush1.msra.mxu0 0.0
      %1027 = vmatprep.mubr.f32.mxu0 0.0
      %1028 = vmatmul.mubr.f32.gmra.mrb[0].mxu0 %v958
      %v1029 = vpop.f32.mrb[0].mxu0
      %v1030 = vadd.f32 %v873, %v1029
      %v1031 = vpop.f32.mrb[0].mxu0
      %1032 = vmatprep.mubr.f32.mxu0 0.0
      %1033 = vmatmul.mubr.f32.gmra.mrb[0].mxu0 %v961
      %v1034 = vpop.f32.mrb[0].mxu0
      %v1035 = vadd.f32 %v873, %v1034
      %v1036 = vpop.f32.mrb[0].mxu0
      %1037 = vdwg.mxu0
      %v1039 = vlaneseq
      %v1040 = vshrl.u32 %v1039, 7
      %v1041 = vsub.s32 0, %v1040
      %v1042 = vrot.slane %v859, %v1041
      %v1045 = vsel %vm875, %v839, 0
      %v1048 = vsel %vm875, %v840, 0
      %1050 = vmatprep.subr.mxu0 0.0
      %1051 = vmatpush1.msra.mxu0 %v855
      %1052 = vmatprep.subr.mxu0 0.0
      %1053 = vmatpush1.msra.mxu0 %v856
      %1054 = vmatprep.subr.mxu0 0.0
      %1055 = vmatpush1.msra.mxu0 %v857
      %1056 = vmatprep.subr.mxu0 0.0
      %1057 = vmatpush1.msra.mxu0 %v858
      %1058 = vmatprep.subr.mxu0 0.0
      %1059 = vmatpush1.msra.mxu0 0.0
      %1060 = vmatprep.subr.mxu0 0.0
      %1061 = vmatpush1.msra.mxu0 0.0
      %1062 = vmatprep.subr.mxu0 0.0
      %1063 = vmatpush1.msra.mxu0 0.0
      %1064 = vmatprep.subr.mxu0 0.0
      %1065 = vmatpush1.msra.mxu0 0.0
      %1066 = vmatprep.subr.mxu0 0.0
      %1067 = vmatpush1.msra.mxu0 0.0
      %1068 = vmatprep.subr.mxu0 0.0
      %1069 = vmatpush1.msra.mxu0 0.0
      %1070 = vmatprep.subr.mxu0 0.0
      %1071 = vmatpush1.msra.mxu0 0.0
      %1072 = vmatprep.subr.mxu0 0.0
      %1073 = vmatpush1.msra.mxu0 0.0
      %1074 = vmatprep.subr.mxu0 0.0
      %1075 = vmatpush1.msra.mxu0 0.0
      %1076 = vmatprep.subr.mxu0 0.0
      %1077 = vmatpush1.msra.mxu0 0.0
      %1078 = vmatprep.subr.mxu0 0.0
      %1079 = vmatpush1.msra.mxu0 0.0
      %1080 = vmatprep.subr.mxu0 0.0
      %1081 = vmatpush1.msra.mxu0 0.0
      %1082 = vmatprep.subr.mxu0 0.0
      %1083 = vmatpush1.msra.mxu0 0.0
      %1084 = vmatprep.subr.mxu0 0.0
      %1085 = vmatpush1.msra.mxu0 0.0
      %1086 = vmatprep.subr.mxu0 0.0
      %1087 = vmatpush1.msra.mxu0 0.0
      %1088 = vmatprep.subr.mxu0 0.0
      %1089 = vmatpush1.msra.mxu0 0.0
      %1090 = vmatprep.subr.mxu0 0.0
      %1091 = vmatpush1.msra.mxu0 0.0
      %1092 = vmatprep.subr.mxu0 0.0
      %1093 = vmatpush1.msra.mxu0 0.0
      %1094 = vmatprep.subr.mxu0 0.0
      %1095 = vmatpush1.msra.mxu0 0.0
      %1096 = vmatprep.subr.mxu0 0.0
      %1097 = vmatpush1.msra.mxu0 0.0
      %1098 = vmatprep.subr.mxu0 0.0
      %1099 = vmatpush1.msra.mxu0 0.0
      %1100 = vmatprep.subr.mxu0 0.0
      %1101 = vmatpush1.msra.mxu0 0.0
      %1102 = vmatprep.subr.mxu0 0.0
      %1103 = vmatpush1.msra.mxu0 0.0
      %1104 = vmatprep.subr.mxu0 0.0
      %1105 = vmatpush1.msra.mxu0 0.0
      %1106 = vmatprep.subr.mxu0 0.0
      %1107 = vmatpush1.msra.mxu0 0.0
      %1108 = vmatprep.subr.mxu0 0.0
      %1109 = vmatpush1.msra.mxu0 0.0
      %1110 = vmatprep.subr.mxu0 0.0
      %1111 = vmatpush1.msra.mxu0 0.0
      %1112 = vmatprep.subr.mxu0 0.0
      %1113 = vmatpush1.msra.mxu0 0.0
      %1114 = vmatprep.mubr.f32.mxu0 0.0
      %1115 = vmatmul.mubr.f32.gmra.mrb[0].mxu0 %v1045
      %v1116 = vpop.f32.mrb[0].mxu0
      %v1117 = vadd.f32 %v1042, %v1116
      %v1118 = vpop.f32.mrb[0].mxu0
      %1119 = vmatprep.mubr.f32.mxu0 0.0
      %1120 = vmatmul.mubr.f32.gmra.mrb[0].mxu0 %v1048
      %v1121 = vpop.f32.mrb[0].mxu0
      %v1122 = vadd.f32 %v1042, %v1121
      %v1123 = vpop.f32.mrb[0].mxu0
      %1124 = vdwg.mxu0
      %v1126 = vsel %vm875, %v841, 0
      %v1129 = vsel %vm875, %v842, 0
      %1131 = vmatprep.subr.mxu0 0.0
      %1132 = vmatpush1.msra.mxu0 %v855
      %1133 = vmatprep.subr.mxu0 0.0
      %1134 = vmatpush1.msra.mxu0 %v856
      %1135 = vmatprep.subr.mxu0 0.0
      %1136 = vmatpush1.msra.mxu0 %v857
      %1137 = vmatprep.subr.mxu0 0.0
      %1138 = vmatpush1.msra.mxu0 %v858
      %1139 = vmatprep.subr.mxu0 0.0
      %1140 = vmatpush1.msra.mxu0 0.0
      %1141 = vmatprep.subr.mxu0 0.0
      %1142 = vmatpush1.msra.mxu0 0.0
      %1143 = vmatprep.subr.mxu0 0.0
      %1144 = vmatpush1.msra.mxu0 0.0
      %1145 = vmatprep.subr.mxu0 0.0
      %1146 = vmatpush1.msra.mxu0 0.0
      %1147 = vmatprep.subr.mxu0 0.0
      %1148 = vmatpush1.msra.mxu0 0.0
      %1149 = vmatprep.subr.mxu0 0.0
      %1150 = vmatpush1.msra.mxu0 0.0
      %1151 = vmatprep.subr.mxu0 0.0
      %1152 = vmatpush1.msra.mxu0 0.0
      %1153 = vmatprep.subr.mxu0 0.0
      %1154 = vmatpush1.msra.mxu0 0.0
      %1155 = vmatprep.subr.mxu0 0.0
      %1156 = vmatpush1.msra.mxu0 0.0
      %1157 = vmatprep.subr.mxu0 0.0
      %1158 = vmatpush1.msra.mxu0 0.0
      %1159 = vmatprep.subr.mxu0 0.0
      %1160 = vmatpush1.msra.mxu0 0.0
      %1161 = vmatprep.subr.mxu0 0.0
      %1162 = vmatpush1.msra.mxu0 0.0
      %1163 = vmatprep.subr.mxu0 0.0
      %1164 = vmatpush1.msra.mxu0 0.0
      %1165 = vmatprep.subr.mxu0 0.0
      %1166 = vmatpush1.msra.mxu0 0.0
      %1167 = vmatprep.subr.mxu0 0.0
      %1168 = vmatpush1.msra.mxu0 0.0
      %1169 = vmatprep.subr.mxu0 0.0
      %1170 = vmatpush1.msra.mxu0 0.0
      %1171 = vmatprep.subr.mxu0 0.0
      %1172 = vmatpush1.msra.mxu0 0.0
      %1173 = vmatprep.subr.mxu0 0.0
      %1174 = vmatpush1.msra.mxu0 0.0
      %1175 = vmatprep.subr.mxu0 0.0
      %1176 = vmatpush1.msra.mxu0 0.0
      %1177 = vmatprep.subr.mxu0 0.0
      %1178 = vmatpush1.msra.mxu0 0.0
      %1179 = vmatprep.subr.mxu0 0.0
      %1180 = vmatpush1.msra.mxu0 0.0
      %1181 = vmatprep.subr.mxu0 0.0
      %1182 = vmatpush1.msra.mxu0 0.0
      %1183 = vmatprep.subr.mxu0 0.0
      %1184 = vmatpush1.msra.mxu0 0.0
      %1185 = vmatprep.subr.mxu0 0.0
      %1186 = vmatpush1.msra.mxu0 0.0
      %1187 = vmatprep.subr.mxu0 0.0
      %1188 = vmatpush1.msra.mxu0 0.0
      %1189 = vmatprep.subr.mxu0 0.0
      %1190 = vmatpush1.msra.mxu0 0.0
      %1191 = vmatprep.subr.mxu0 0.0
      %1192 = vmatpush1.msra.mxu0 0.0
      %1193 = vmatprep.subr.mxu0 0.0
      %1194 = vmatpush1.msra.mxu0 0.0
      %1195 = vmatprep.mubr.f32.mxu0 0.0
      %1196 = vmatmul.mubr.f32.gmra.mrb[0].mxu0 %v1126
      %v1197 = vpop.f32.mrb[0].mxu0
      %v1198 = vadd.f32 %v1042, %v1197
      %v1199 = vpop.f32.mrb[0].mxu0
      %1200 = vmatprep.mubr.f32.mxu0 0.0
      %1201 = vmatmul.mubr.f32.gmra.mrb[0].mxu0 %v1129
      %v1202 = vpop.f32.mrb[0].mxu0
      %v1203 = vadd.f32 %v1042, %v1202
      %v1204 = vpop.f32.mrb[0].mxu0
      %1205 = vdwg.mxu0
      %1208 = vrot.lane.b32.xlu0 %v949, 96
      %v1209 = vpop.permute.xlu0 %1208
      %1210 = vrot.lane.b32.xlu0 %v954, 96
      %v1211 = vpop.permute.xlu0 %1210
      %v1212 = vsel %vm875, %v949, 0
      %v1214 = vsel %vm875, %v954, 0
      %v1216 = vsel %vm875, %v1209, 0
      %v1218 = vsel %vm875, %v1211, 0
      %1220 = vmatprep.subr.mxu0 0.0
      %1221 = vmatpush1.xpose.msra.mxu0 %v1216
      %1222 = vmatprep.subr.mxu0 0.0
      %1223 = vmatpush1.xpose.msra.mxu0 %v1218
      %1224 = vmatprep.subr.mxu0 0.0
      %1225 = vmatpush1.xpose.msra.mxu0 0.0
      %1226 = vmatprep.subr.mxu0 0.0
      %1227 = vmatpush1.xpose.msra.mxu0 0.0
      %1228 = vmatprep.subr.mxu0 0.0
      %1229 = vmatpush1.xpose.msra.mxu0 0.0
      %1230 = vmatprep.subr.mxu0 0.0
      %1231 = vmatpush1.xpose.msra.mxu0 0.0
      %1232 = vmatprep.subr.mxu0 0.0
      %1233 = vmatpush1.xpose.msra.mxu0 0.0
      %1234 = vmatprep.subr.mxu0 0.0
      %1235 = vmatpush1.xpose.msra.mxu0 0.0
      %1236 = vmatprep.subr.mxu0 0.0
      %1237 = vmatpush1.xpose.msra.mxu0 0.0
      %1238 = vmatprep.subr.mxu0 0.0
      %1239 = vmatpush1.xpose.msra.mxu0 0.0
      %1240 = vmatprep.subr.mxu0 0.0
      %1241 = vmatpush1.xpose.msra.mxu0 0.0
      %1242 = vmatprep.subr.mxu0 0.0
      %1243 = vmatpush1.xpose.msra.mxu0 0.0
      %1244 = vmatprep.subr.mxu0 0.0
      %1245 = vmatpush1.xpose.msra.mxu0 0.0
      %1246 = vmatprep.subr.mxu0 0.0
      %1247 = vmatpush1.xpose.msra.mxu0 0.0
      %1248 = vmatprep.subr.mxu0 0.0
      %1249 = vmatpush1.xpose.msra.mxu0 0.0
      %1250 = vmatprep.subr.mxu0 0.0
      %1251 = vmatpush1.xpose.msra.mxu0 0.0
      %1252 = vmatprep.subr.mxu0 0.0
      %1253 = vmatpush1.xpose.msra.mxu0 0.0
      %1254 = vmatprep.subr.mxu0 0.0
      %1255 = vmatpush1.xpose.msra.mxu0 0.0
      %1256 = vmatprep.subr.mxu0 0.0
      %1257 = vmatpush1.xpose.msra.mxu0 0.0
      %1258 = vmatprep.subr.mxu0 0.0
      %1259 = vmatpush1.xpose.msra.mxu0 0.0
      %1260 = vmatprep.subr.mxu0 0.0
      %1261 = vmatpush1.xpose.msra.mxu0 0.0
      %1262 = vmatprep.subr.mxu0 0.0
      %1263 = vmatpush1.xpose.msra.mxu0 0.0
      %1264 = vmatprep.subr.mxu0 0.0
      %1265 = vmatpush1.xpose.msra.mxu0 0.0
      %1266 = vmatprep.subr.mxu0 0.0
      %1267 = vmatpush1.xpose.msra.mxu0 0.0
      %1268 = vmatprep.subr.mxu0 0.0
      %1269 = vmatpush1.xpose.msra.mxu0 0.0
      %1270 = vmatprep.subr.mxu0 0.0
      %1271 = vmatpush1.xpose.msra.mxu0 0.0
      %1272 = vmatprep.subr.mxu0 0.0
      %1273 = vmatpush1.xpose.msra.mxu0 0.0
      %1274 = vmatprep.subr.mxu0 0.0
      %1275 = vmatpush1.xpose.msra.mxu0 0.0
      %1276 = vmatprep.subr.mxu0 0.0
      %1277 = vmatpush1.xpose.msra.mxu0 0.0
      %1278 = vmatprep.subr.mxu0 0.0
      %1279 = vmatpush1.xpose.msra.mxu0 0.0
      %1280 = vmatprep.subr.mxu0 0.0
      %1281 = vmatpush1.xpose.msra.mxu0 0.0
      %1282 = vmatprep.subr.mxu0 0.0
      %1283 = vmatpush1.xpose.msra.mxu0 0.0
      %1284 = vmatprep.mubr.f32.mxu0 0.0
      %1285 = vmatmul.mubr.f32.gmra.mrb[0].mxu0 %v1212
      %v1286 = vpop.f32.mrb[0].mxu0
      %v1287 = vadd.f32 0.0, %v1286
      %v1288 = vpop.f32.mrb[0].mxu0
      %1289 = vmatprep.mubr.f32.mxu0 0.0
      %1290 = vmatmul.mubr.f32.gmra.mrb[0].mxu0 %v1214
      %v1291 = vpop.f32.mrb[0].mxu0
      %v1292 = vadd.f32 0.0, %v1291
      %v1293 = vpop.f32.mrb[0].mxu0
      %1294 = vdwg.mxu0
      %v1295 = vmul.f32 %v1287, 0.17677669
      %v1296 = vmul.f32 %v1292, 0.17677669
      %v1298 = vlaneseq
      %v1299 = vshrl.u32 %v1298, 7
      %v1300 = vsub.s32 0, %v1299
      %v1301 = vrot.slane %v847, %v1300
      %v1303 = vadd.f32 %v1295, %v1301
      %v1304 = vadd.f32 %v1296, %v1301
      %vm1305 = vcmask 130048
      %v1306 = vsel %vm1305, %v1303, -inf
      %1307 = vmax.xlane.f32.xlu0 %v1306
      %v1308 = vpop.xlane.xlu0 %1307
      %v1309 = vsel %vm1305, %v1304, -inf
      %1310 = vmax.xlane.f32.xlu0 %v1309
      %v1311 = vpop.xlane.xlu0 %1310
      %v1312 = vsub.f32 %v1303, %v1308
      %v1313 = vsub.f32 %v1304, %v1311
      %v1314 = vmul.f32 %v1312, 1.442695
      %v1315 = vpow.pop %v1314
      %v1316 = vmul.f32 %v1313, 1.442695
      %v1317 = vpow.pop %v1316
      %v1318 = vsel %vm1305, %v1315, 0.0
      %1319 = vadd.xlane.f32.xlu0 %v1318
      %v1320 = vpop.xlane.xlu0 %1319
      %v1321 = vsel %vm1305, %v1317, 0.0
      %1322 = vadd.xlane.f32.xlu0 %v1321
      %v1323 = vpop.xlane.xlu0 %1322
      %v1324 = vrcp.pop %v1320
      %v1325 = vrcp.pop %v1323
      %v1326 = vmul.f32 %v1315, %v1324
      %v1327 = vmul.f32 %v1317, %v1325
      %v1329 = vsel %vm1305, %v1326, 0
      %v1332 = vsel %vm1305, %v1327, 0
      %1334 = vmatprep.subr.mxu0 0.0
      %1335 = vmatpush1.msra.mxu0 %v1117
      %1336 = vmatprep.subr.mxu0 0.0
      %1337 = vmatpush1.msra.mxu0 %v1122
      %1338 = vmatprep.subr.mxu0 0.0
      %1339 = vmatpush1.msra.mxu0 0.0
      %1340 = vmatprep.subr.mxu0 0.0
      %1341 = vmatpush1.msra.mxu0 0.0
      %1342 = vmatprep.subr.mxu0 0.0
      %1343 = vmatpush1.msra.mxu0 0.0
      %1344 = vmatprep.subr.mxu0 0.0
      %1345 = vmatpush1.msra.mxu0 0.0
      %1346 = vmatprep.subr.mxu0 0.0
      %1347 = vmatpush1.msra.mxu0 0.0
      %1348 = vmatprep.subr.mxu0 0.0
      %1349 = vmatpush1.msra.mxu0 0.0
      %1350 = vmatprep.subr.mxu0 0.0
      %1351 = vmatpush1.msra.mxu0 0.0
      %1352 = vmatprep.subr.mxu0 0.0
      %1353 = vmatpush1.msra.mxu0 0.0
      %1354 = vmatprep.subr.mxu0 0.0
      %1355 = vmatpush1.msra.mxu0 0.0
      %1356 = vmatprep.subr.mxu0 0.0
      %1357 = vmatpush1.msra.mxu0 0.0
      %1358 = vmatprep.subr.mxu0 0.0
      %1359 = vmatpush1.msra.mxu0 0.0
      %1360 = vmatprep.subr.mxu0 0.0
      %1361 = vmatpush1.msra.mxu0 0.0
      %1362 = vmatprep.subr.mxu0 0.0
      %1363 = vmatpush1.msra.mxu0 0.0
      %1364 = vmatprep.subr.mxu0 0.0
      %1365 = vmatpush1.msra.mxu0 0.0
      %1366 = vmatprep.subr.mxu0 0.0
      %1367 = vmatpush1.msra.mxu0 0.0
      %1368 = vmatprep.subr.mxu0 0.0
      %1369 = vmatpush1.msra.mxu0 0.0
      %1370 = vmatprep.subr.mxu0 0.0
      %1371 = vmatpush1.msra.mxu0 0.0
      %1372 = vmatprep.subr.mxu0 0.0
      %1373 = vmatpush1.msra.mxu0 0.0
      %1374 = vmatprep.subr.mxu0 0.0
      %1375 = vmatpush1.msra.mxu0 0.0
      %1376 = vmatprep.subr.mxu0 0.0
      %1377 = vmatpush1.msra.mxu0 0.0
      %1378 = vmatprep.subr.mxu0 0.0
      %1379 = vmatpush1.msra.mxu0 0.0
      %1380 = vmatprep.subr.mxu0 0.0
      %1381 = vmatpush1.msra.mxu0 0.0
      %1382 = vmatprep.subr.mxu0 0.0
      %1383 = vmatpush1.msra.mxu0 0.0
      %1384 = vmatprep.subr.mxu0 0.0
      %1385 = vmatpush1.msra.mxu0 0.0
      %1386 = vmatprep.subr.mxu0 0.0
      %1387 = vmatpush1.msra.mxu0 0.0
      %1388 = vmatprep.subr.mxu0 0.0
      %1389 = vmatpush1.msra.mxu0 0.0
      %1390 = vmatprep.subr.mxu0 0.0
      %1391 = vmatpush1.msra.mxu0 0.0
      %1392 = vmatprep.subr.mxu0 0.0
      %1393 = vmatpush1.msra.mxu0 0.0
      %1394 = vmatprep.subr.mxu0 0.0
      %1395 = vmatpush1.msra.mxu0 0.0
      %1396 = vmatprep.subr.mxu0 0.0
      %1397 = vmatpush1.msra.mxu0 0.0
      %1398 = vmatprep.mubr.f32.mxu0 0.0
      %1399 = vmatmul.mubr.f32.gmra.mrb[0].mxu0 %v1329
      %v1400 = vpop.f32.mrb[0].mxu0
      %v1401 = vadd.f32 0.0, %v1400
      %v1402 = vpop.f32.mrb[0].mxu0
      %1403 = vmatprep.mubr.f32.mxu0 0.0
      %1404 = vmatmul.mubr.f32.gmra.mrb[0].mxu0 %v1332
      %v1405 = vpop.f32.mrb[0].mxu0
      %v1406 = vadd.f32 0.0, %v1405
      %v1407 = vpop.f32.mrb[0].mxu0
      %1408 = vdwg.mxu0
      %1411 = vrot.lane.b32.xlu0 %v1030, 96
      %v1412 = vpop.permute.xlu0 %1411
      %1413 = vrot.lane.b32.xlu0 %v1035, 96
      %v1414 = vpop.permute.xlu0 %1413
      %v1415 = vsel %vm875, %v1030, 0
      %v1417 = vsel %vm875, %v1035, 0
      %v1419 = vsel %vm875, %v1412, 0
      %v1421 = vsel %vm875, %v1414, 0
      %1423 = vmatprep.subr.mxu0 0.0
      %1424 = vmatpush1.xpose.msra.mxu0 %v1419
      %1425 = vmatprep.subr.mxu0 0.0
      %1426 = vmatpush1.xpose.msra.mxu0 %v1421
      %1427 = vmatprep.subr.mxu0 0.0
      %1428 = vmatpush1.xpose.msra.mxu0 0.0
      %1429 = vmatprep.subr.mxu0 0.0
      %1430 = vmatpush1.xpose.msra.mxu0 0.0
      %1431 = vmatprep.subr.mxu0 0.0
      %1432 = vmatpush1.xpose.msra.mxu0 0.0
      %1433 = vmatprep.subr.mxu0 0.0
      %1434 = vmatpush1.xpose.msra.mxu0 0.0
      %1435 = vmatprep.subr.mxu0 0.0
      %1436 = vmatpush1.xpose.msra.mxu0 0.0
      %1437 = vmatprep.subr.mxu0 0.0
      %1438 = vmatpush1.xpose.msra.mxu0 0.0
      %1439 = vmatprep.subr.mxu0 0.0
      %1440 = vmatpush1.xpose.msra.mxu0 0.0
      %1441 = vmatprep.subr.mxu0 0.0
      %1442 = vmatpush1.xpose.msra.mxu0 0.0
      %1443 = vmatprep.subr.mxu0 0.0
      %1444 = vmatpush1.xpose.msra.mxu0 0.0
      %1445 = vmatprep.subr.mxu0 0.0
      %1446 = vmatpush1.xpose.msra.mxu0 0.0
      %1447 = vmatprep.subr.mxu0 0.0
      %1448 = vmatpush1.xpose.msra.mxu0 0.0
      %1449 = vmatprep.subr.mxu0 0.0
      %1450 = vmatpush1.xpose.msra.mxu0 0.0
      %1451 = vmatprep.subr.mxu0 0.0
      %1452 = vmatpush1.xpose.msra.mxu0 0.0
      %1453 = vmatprep.subr.mxu0 0.0
      %1454 = vmatpush1.xpose.msra.mxu0 0.0
      %1455 = vmatprep.subr.mxu0 0.0
      %1456 = vmatpush1.xpose.msra.mxu0 0.0
      %1457 = vmatprep.subr.mxu0 0.0
      %1458 = vmatpush1.xpose.msra.mxu0 0.0
      %1459 = vmatprep.subr.mxu0 0.0
      %1460 = vmatpush1.xpose.msra.mxu0 0.0
      %1461 = vmatprep.subr.mxu0 0.0
      %1462 = vmatpush1.xpose.msra.mxu0 0.0
      %1463 = vmatprep.subr.mxu0 0.0
      %1464 = vmatpush1.xpose.msra.mxu0 0.0
      %1465 = vmatprep.subr.mxu0 0.0
      %1466 = vmatpush1.xpose.msra.mxu0 0.0
      %1467 = vmatprep.subr.mxu0 0.0
      %1468 = vmatpush1.xpose.msra.mxu0 0.0
      %1469 = vmatprep.subr.mxu0 0.0
      %1470 = vmatpush1.xpose.msra.mxu0 0.0
      %1471 = vmatprep.subr.mxu0 0.0
      %1472 = vmatpush1.xpose.msra.mxu0 0.0
      %1473 = vmatprep.subr.mxu0 0.0
      %1474 = vmatpush1.xpose.msra.mxu0 0.0
      %1475 = vmatprep.subr.mxu0 0.0
      %1476 = vmatpush1.xpose.msra.mxu0 0.0
      %1477 = vmatprep.subr.mxu0 0.0
      %1478 = vmatpush1.xpose.msra.mxu0 0.0
      %1479 = vmatprep.subr.mxu0 0.0
      %1480 = vmatpush1.xpose.msra.mxu0 0.0
      %1481 = vmatprep.subr.mxu0 0.0
      %1482 = vmatpush1.xpose.msra.mxu0 0.0
      %1483 = vmatprep.subr.mxu0 0.0
      %1484 = vmatpush1.xpose.msra.mxu0 0.0
      %1485 = vmatprep.subr.mxu0 0.0
      %1486 = vmatpush1.xpose.msra.mxu0 0.0
      %1487 = vmatprep.mubr.f32.mxu0 0.0
      %1488 = vmatmul.mubr.f32.gmra.mrb[0].mxu0 %v1415
      %v1489 = vpop.f32.mrb[0].mxu0
      %v1490 = vadd.f32 0.0, %v1489
      %v1491 = vpop.f32.mrb[0].mxu0
      %1492 = vmatprep.mubr.f32.mxu0 0.0
      %1493 = vmatmul.mubr.f32.gmra.mrb[0].mxu0 %v1417
      %v1494 = vpop.f32.mrb[0].mxu0
      %v1495 = vadd.f32 0.0, %v1494
      %v1496 = vpop.f32.mrb[0].mxu0
      %1497 = vdwg.mxu0
      %v1498 = vmul.f32 %v1490, 0.17677669
      %v1499 = vmul.f32 %v1495, 0.17677669
      %v1501 = vlaneseq
      %v1502 = vshrl.u32 %v1501, 7
      %v1503 = vsub.s32 0, %v1502
      %v1504 = vrot.slane %v848, %v1503
      %v1506 = vadd.f32 %v1498, %v1504
      %v1507 = vadd.f32 %v1499, %v1504
      %v1508 = vsel %vm1305, %v1506, -inf
      %1509 = vmax.xlane.f32.xlu0 %v1508
      %v1510 = vpop.xlane.xlu0 %1509
      %v1511 = vsel %vm1305, %v1507, -inf
      %1512 = vmax.xlane.f32.xlu0 %v1511
      %v1513 = vpop.xlane.xlu0 %1512
      %v1514 = vsub.f32 %v1506, %v1510
      %v1515 = vsub.f32 %v1507, %v1513
      %v1516 = vmul.f32 %v1514, 1.442695
      %v1517 = vpow.pop %v1516
      %v1518 = vmul.f32 %v1515, 1.442695
      %v1519 = vpow.pop %v1518
      %v1520 = vsel %vm1305, %v1517, 0.0
      %1521 = vadd.xlane.f32.xlu0 %v1520
      %v1522 = vpop.xlane.xlu0 %1521
      %v1523 = vsel %vm1305, %v1519, 0.0
      %1524 = vadd.xlane.f32.xlu0 %v1523
      %v1525 = vpop.xlane.xlu0 %1524
      %v1526 = vrcp.pop %v1522
      %v1527 = vrcp.pop %v1525
      %v1528 = vmul.f32 %v1517, %v1526
      %v1529 = vmul.f32 %v1519, %v1527
      %v1531 = vsel %vm1305, %v1528, 0
      %v1534 = vsel %vm1305, %v1529, 0
      %1536 = vmatprep.subr.mxu0 0.0
      %1537 = vmatpush1.msra.mxu0 %v1198
      %1538 = vmatprep.subr.mxu0 0.0
      %1539 = vmatpush1.msra.mxu0 %v1203
      %1540 = vmatprep.subr.mxu0 0.0
      %1541 = vmatpush1.msra.mxu0 0.0
      %1542 = vmatprep.subr.mxu0 0.0
      %1543 = vmatpush1.msra.mxu0 0.0
      %1544 = vmatprep.subr.mxu0 0.0
      %1545 = vmatpush1.msra.mxu0 0.0
      %1546 = vmatprep.subr.mxu0 0.0
      %1547 = vmatpush1.msra.mxu0 0.0
      %1548 = vmatprep.subr.mxu0 0.0
      %1549 = vmatpush1.msra.mxu0 0.0
      %1550 = vmatprep.subr.mxu0 0.0
      %1551 = vmatpush1.msra.mxu0 0.0
      %1552 = vmatprep.subr.mxu0 0.0
      %1553 = vmatpush1.msra.mxu0 0.0
      %1554 = vmatprep.subr.mxu0 0.0
      %1555 = vmatpush1.msra.mxu0 0.0
      %1556 = vmatprep.subr.mxu0 0.0
      %1557 = vmatpush1.msra.mxu0 0.0
      %1558 = vmatprep.subr.mxu0 0.0
      %1559 = vmatpush1.msra.mxu0 0.0
      %1560 = vmatprep.subr.mxu0 0.0
      %1561 = vmatpush1.msra.mxu0 0.0
      %1562 = vmatprep.subr.mxu0 0.0
      %1563 = vmatpush1.msra.mxu0 0.0
      %1564 = vmatprep.subr.mxu0 0.0
      %1565 = vmatpush1.msra.mxu0 0.0
      %1566 = vmatprep.subr.mxu0 0.0
      %1567 = vmatpush1.msra.mxu0 0.0
      %1568 = vmatprep.subr.mxu0 0.0
      %1569 = vmatpush1.msra.mxu0 0.0
      %1570 = vmatprep.subr.mxu0 0.0
      %1571 = vmatpush1.msra.mxu0 0.0
      %1572 = vmatprep.subr.mxu0 0.0
      %1573 = vmatpush1.msra.mxu0 0.0
      %1574 = vmatprep.subr.mxu0 0.0
      %1575 = vmatpush1.msra.mxu0 0.0
      %1576 = vmatprep.subr.mxu0 0.0
      %1577 = vmatpush1.msra.mxu0 0.0
      %1578 = vmatprep.subr.mxu0 0.0
      %1579 = vmatpush1.msra.mxu0 0.0
      %1580 = vmatprep.subr.mxu0 0.0
      %1581 = vmatpush1.msra.mxu0 0.0
      %1582 = vmatprep.subr.mxu0 0.0
      %1583 = vmatpush1.msra.mxu0 0.0
      %1584 = vmatprep.subr.mxu0 0.0
      %1585 = vmatpush1.msra.mxu0 0.0
      %1586 = vmatprep.subr.mxu0 0.0
      %1587 = vmatpush1.msra.mxu0 0.0
      %1588 = vmatprep.subr.mxu0 0.0
      %1589 = vmatpush1.msra.mxu0 0.0
      %1590 = vmatprep.subr.mxu0 0.0
      %1591 = vmatpush1.msra.mxu0 0.0
      %1592 = vmatprep.subr.mxu0 0.0
      %1593 = vmatpush1.msra.mxu0 0.0
      %1594 = vmatprep.subr.mxu0 0.0
      %1595 = vmatpush1.msra.mxu0 0.0
      %1596 = vmatprep.subr.mxu0 0.0
      %1597 = vmatpush1.msra.mxu0 0.0
      %1598 = vmatprep.subr.mxu0 0.0
      %1599 = vmatpush1.msra.mxu0 0.0
      %1600 = vmatprep.mubr.f32.mxu0 0.0
      %1601 = vmatmul.mubr.f32.gmra.mrb[0].mxu0 %v1531
      %v1602 = vpop.f32.mrb[0].mxu0
      %v1603 = vadd.f32 0.0, %v1602
      %v1604 = vpop.f32.mrb[0].mxu0
      %1605 = vmatprep.mubr.f32.mxu0 0.0
      %1606 = vmatmul.mubr.f32.gmra.mrb[0].mxu0 %v1534
      %v1607 = vpop.f32.mrb[0].mxu0
      %v1608 = vadd.f32 0.0, %v1607
      %v1609 = vpop.f32.mrb[0].mxu0
      %1610 = vdwg.mxu0
      %v1612 = vlaneseq
      %v1613 = vshrl.u32 %v1612, 7
      %v1614 = vsub.s32 0, %v1613
      %v1615 = vrot.slane %v864, %v1614
      %v1618 = vsel %vm875, %v1401, 0
      %v1621 = vsel %vm875, %v1406, 0
      %1623 = vmatprep.subr.mxu0 0.0
      %1624 = vmatpush1.msra.mxu0 %v860
      %1625 = vmatprep.subr.mxu0 0.0
      %1626 = vmatpush1.msra.mxu0 %v861
      %1627 = vmatprep.subr.mxu0 0.0
      %1628 = vmatpush1.msra.mxu0 %v862
      %1629 = vmatprep.subr.mxu0 0.0
      %1630 = vmatpush1.msra.mxu0 %v863
      %1631 = vmatprep.subr.mxu0 0.0
      %1632 = vmatpush1.msra.mxu0 0.0
      %1633 = vmatprep.subr.mxu0 0.0
      %1634 = vmatpush1.msra.mxu0 0.0
      %1635 = vmatprep.subr.mxu0 0.0
      %1636 = vmatpush1.msra.mxu0 0.0
      %1637 = vmatprep.subr.mxu0 0.0
      %1638 = vmatpush1.msra.mxu0 0.0
      %1639 = vmatprep.subr.mxu0 0.0
      %1640 = vmatpush1.msra.mxu0 0.0
      %1641 = vmatprep.subr.mxu0 0.0
      %1642 = vmatpush1.msra.mxu0 0.0
      %1643 = vmatprep.subr.mxu0 0.0
      %1644 = vmatpush1.msra.mxu0 0.0
      %1645 = vmatprep.subr.mxu0 0.0
      %1646 = vmatpush1.msra.mxu0 0.0
      %1647 = vmatprep.subr.mxu0 0.0
      %1648 = vmatpush1.msra.mxu0 0.0
      %1649 = vmatprep.subr.mxu0 0.0
      %1650 = vmatpush1.msra.mxu0 0.0
      %1651 = vmatprep.subr.mxu0 0.0
      %1652 = vmatpush1.msra.mxu0 0.0
      %1653 = vmatprep.subr.mxu0 0.0
      %1654 = vmatpush1.msra.mxu0 0.0
      %1655 = vmatprep.subr.mxu0 0.0
      %1656 = vmatpush1.msra.mxu0 0.0
      %1657 = vmatprep.subr.mxu0 0.0
      %1658 = vmatpush1.msra.mxu0 0.0
      %1659 = vmatprep.subr.mxu0 0.0
      %1660 = vmatpush1.msra.mxu0 0.0
      %1661 = vmatprep.subr.mxu0 0.0
      %1662 = vmatpush1.msra.mxu0 0.0
      %1663 = vmatprep.subr.mxu0 0.0
      %1664 = vmatpush1.msra.mxu0 0.0
      %1665 = vmatprep.subr.mxu0 0.0
      %1666 = vmatpush1.msra.mxu0 0.0
      %1667 = vmatprep.subr.mxu0 0.0
      %1668 = vmatpush1.msra.mxu0 0.0
      %1669 = vmatprep.subr.mxu0 0.0
      %1670 = vmatpush1.msra.mxu0 0.0
      %1671 = vmatprep.subr.mxu0 0.0
      %1672 = vmatpush1.msra.mxu0 0.0
      %1673 = vmatprep.subr.mxu0 0.0
      %1674 = vmatpush1.msra.mxu0 0.0
      %1675 = vmatprep.subr.mxu0 0.0
      %1676 = vmatpush1.msra.mxu0 0.0
      %1677 = vmatprep.subr.mxu0 0.0
      %1678 = vmatpush1.msra.mxu0 0.0
      %1679 = vmatprep.subr.mxu0 0.0
      %1680 = vmatpush1.msra.mxu0 0.0
      %1681 = vmatprep.subr.mxu0 0.0
      %1682 = vmatpush1.msra.mxu0 0.0
      %1683 = vmatprep.subr.mxu0 0.0
      %1684 = vmatpush1.msra.mxu0 0.0
      %1685 = vmatprep.subr.mxu0 0.0
      %1686 = vmatpush1.msra.mxu0 0.0
      %1687 = vmatprep.mubr.f32.mxu0 0.0
      %1688 = vmatmul.mubr.f32.gmra.mrb[0].mxu0 %v1618
      %v1689 = vpop.f32.mrb[0].mxu0
      %v1690 = vadd.f32 %v1615, %v1689
      %v1691 = vpop.f32.mrb[0].mxu0
      %1692 = vmatprep.mubr.f32.mxu0 0.0
      %1693 = vmatmul.mubr.f32.gmra.mrb[0].mxu0 %v1621
      %v1694 = vpop.f32.mrb[0].mxu0
      %v1695 = vadd.f32 %v1615, %v1694
      %v1696 = vpop.f32.mrb[0].mxu0
      %1697 = vdwg.mxu0
      %v1699 = vsel %vm875, %v1603, 0
      %v1702 = vsel %vm875, %v1608, 0
      %1704 = vmatprep.subr.mxu0 0.0
      %1705 = vmatpush1.msra.mxu0 %v860
      %1706 = vmatprep.subr.mxu0 0.0
      %1707 = vmatpush1.msra.mxu0 %v861
      %1708 = vmatprep.subr.mxu0 0.0
      %1709 = vmatpush1.msra.mxu0 %v862
      %1710 = vmatprep.subr.mxu0 0.0
      %1711 = vmatpush1.msra.mxu0 %v863
      %1712 = vmatprep.subr.mxu0 0.0
      %1713 = vmatpush1.msra.mxu0 0.0
      %1714 = vmatprep.subr.mxu0 0.0
      %1715 = vmatpush1.msra.mxu0 0.0
      %1716 = vmatprep.subr.mxu0 0.0
      %1717 = vmatpush1.msra.mxu0 0.0
      %1718 = vmatprep.subr.mxu0 0.0
      %1719 = vmatpush1.msra.mxu0 0.0
      %1720 = vmatprep.subr.mxu0 0.0
      %1721 = vmatpush1.msra.mxu0 0.0
      %1722 = vmatprep.subr.mxu0 0.0
      %1723 = vmatpush1.msra.mxu0 0.0
      %1724 = vmatprep.subr.mxu0 0.0
      %1725 = vmatpush1.msra.mxu0 0.0
      %1726 = vmatprep.subr.mxu0 0.0
      %1727 = vmatpush1.msra.mxu0 0.0
      %1728 = vmatprep.subr.mxu0 0.0
      %1729 = vmatpush1.msra.mxu0 0.0
      %1730 = vmatprep.subr.mxu0 0.0
      %1731 = vmatpush1.msra.mxu0 0.0
      %1732 = vmatprep.subr.mxu0 0.0
      %1733 = vmatpush1.msra.mxu0 0.0
      %1734 = vmatprep.subr.mxu0 0.0
      %1735 = vmatpush1.msra.mxu0 0.0
      %1736 = vmatprep.subr.mxu0 0.0
      %1737 = vmatpush1.msra.mxu0 0.0
      %1738 = vmatprep.subr.mxu0 0.0
      %1739 = vmatpush1.msra.mxu0 0.0
      %1740 = vmatprep.subr.mxu0 0.0
      %1741 = vmatpush1.msra.mxu0 0.0
      %1742 = vmatprep.subr.mxu0 0.0
      %1743 = vmatpush1.msra.mxu0 0.0
      %1744 = vmatprep.subr.mxu0 0.0
      %1745 = vmatpush1.msra.mxu0 0.0
      %1746 = vmatprep.subr.mxu0 0.0
      %1747 = vmatpush1.msra.mxu0 0.0
      %1748 = vmatprep.subr.mxu0 0.0
      %1749 = vmatpush1.msra.mxu0 0.0
      %1750 = vmatprep.subr.mxu0 0.0
      %1751 = vmatpush1.msra.mxu0 0.0
      %1752 = vmatprep.subr.mxu0 0.0
      %1753 = vmatpush1.msra.mxu0 0.0
      %1754 = vmatprep.subr.mxu0 0.0
      %1755 = vmatpush1.msra.mxu0 0.0
      %1756 = vmatprep.subr.mxu0 0.0
      %1757 = vmatpush1.msra.mxu0 0.0
      %1758 = vmatprep.subr.mxu0 0.0
      %1759 = vmatpush1.msra.mxu0 0.0
      %1760 = vmatprep.subr.mxu0 0.0
      %1761 = vmatpush1.msra.mxu0 0.0
      %1762 = vmatprep.subr.mxu0 0.0
      %1763 = vmatpush1.msra.mxu0 0.0
      %1764 = vmatprep.subr.mxu0 0.0
      %1765 = vmatpush1.msra.mxu0 0.0
      %1766 = vmatprep.subr.mxu0 0.0
      %1767 = vmatpush1.msra.mxu0 0.0
      %1768 = vmatprep.mubr.f32.mxu0 0.0
      %1769 = vmatmul.mubr.f32.gmra.mrb[0].mxu0 %v1699
      %v1770 = vpop.f32.mrb[0].mxu0
      %v1771 = vadd.f32 %v1615, %v1770
      %v1772 = vpop.f32.mrb[0].mxu0
      %1773 = vmatprep.mubr.f32.mxu0 0.0
      %1774 = vmatmul.mubr.f32.gmra.mrb[0].mxu0 %v1702
      %v1775 = vpop.f32.mrb[0].mxu0
      %v1776 = vadd.f32 %v1615, %v1775
      %v1777 = vpop.f32.mrb[0].mxu0
      %1778 = vdwg.mxu0
      %v1779 = vadd.f32 %v839, %v1690
      %v1780 = vadd.f32 %v840, %v1695
      %v1781 = vsel %vm875, %v1779, 0.0
      %1782 = vadd.xlane.f32.xlu0 %v1781
      %v1783 = vpop.xlane.xlu0 %1782
      %v1784 = vsel %vm875, %v1780, 0.0
      %1785 = vadd.xlane.f32.xlu0 %v1784
      %v1786 = vpop.xlane.xlu0 %1785
      %v1787 = vrcp.pop 32.0
      %v1788 = vmul.f32 %v1783, %v1787
      %v1789 = vmul.f32 %v1786, %v1787
      %v1790 = vsub.f32 %v1779, %v1788
      %v1791 = vsub.f32 %v1780, %v1789
      %v1792 = vmul.f32 %v1790, %v1790
      %v1793 = vmul.f32 %v1791, %v1791
      %v1794 = vsel %vm875, %v1792, 0.0
      %1795 = vadd.xlane.f32.xlu0 %v1794
      %v1796 = vpop.xlane.xlu0 %1795
      %v1797 = vsel %vm875, %v1793, 0.0
      %1798 = vadd.xlane.f32.xlu0 %v1797
      %v1799 = vpop.xlane.xlu0 %1798
      %v1800 = vmul.f32 %v1796, %v1787
      %v1801 = vmul.f32 %v1799, %v1787
      %v1802 = vadd.f32 %v1800, 1e-05
      %v1803 = vadd.f32 %v1801, 1e-05
      %v1804 = vrsqrt.pop %v1802
      %v1805 = vrsqrt.pop %v1803
      %v1806 = vmul.f32 %v1790, %v1804
      %v1807 = vmul.f32 %v1791, %v1805
      %v1808 = vlaneseq
      %v1809 = vshrl.u32 %v1808, 7
      %v1810 = vsub.s32 0, %v1809
      %v1811 = vrot.slane %v849, %v1810
      %v1812 = vmul.f32 %v1806, %v1811
      %v1813 = vmul.f32 %v1807, %v1811
      %v1814 = vlaneseq
      %v1815 = vshrl.u32 %v1814, 7
      %v1816 = vsub.s32 1, %v1815
      %v1817 = vrot.slane %v849, %v1816
      %v1818 = vadd.f32 %v1812, %v1817
      %v1819 = vadd.f32 %v1813, %v1817
      %v1820 = vadd.f32 %v841, %v1771
      %v1821 = vadd.f32 %v842, %v1776
      %v1822 = vsel %vm875, %v1820, 0.0
      %1823 = vadd.xlane.f32.xlu0 %v1822
      %v1824 = vpop.xlane.xlu0 %1823
      %v1825 = vsel %vm875, %v1821, 0.0
      %1826 = vadd.xlane.f32.xlu0 %v1825
      %v1827 = vpop.xlane.xlu0 %1826
      %v1828 = vmul.f32 %v1824, %v1787
      %v1829 = vmul.f32 %v1827, %v1787
      %v1830 = vsub.f32 %v1820, %v1828
      %v1831 = vsub.f32 %v1821, %v1829
      %v1832 = vmul.f32 %v1830, %v1830
      %v1833 = vmul.f32 %v1831, %v1831
      %v1834 = vsel %vm875, %v1832, 0.0
      %1835 = vadd.xlane.f32.xlu0 %v1834
      %v1836 = vpop.xlane.xlu0 %1835
      %v1837 = vsel %vm875, %v1833, 0.0
      %1838 = vadd.xlane.f32.xlu0 %v1837
      %v1839 = vpop.xlane.xlu0 %1838
      %v1840 = vmul.f32 %v1836, %v1787
      %v1841 = vmul.f32 %v1839, %v1787
      %v1842 = vadd.f32 %v1840, 1e-05
      %v1843 = vadd.f32 %v1841, 1e-05
      %v1844 = vrsqrt.pop %v1842
      %v1845 = vrsqrt.pop %v1843
      %v1846 = vmul.f32 %v1830, %v1844
      %v1847 = vmul.f32 %v1831, %v1845
      %v1848 = vmul.f32 %v1846, %v1811
      %v1849 = vmul.f32 %v1847, %v1811
      %v1850 = vadd.f32 %v1848, %v1817
      %v1851 = vadd.f32 %v1849, %v1817
      %v1852 = vld [vmem:[%s12] sm:$0xff]
      %v1853 = vld [vmem:[%s12 + $0x8] sm:$0xff]
      %v1854 = vld [vmem:[%s12 + $0x10] sm:$0xff]
      %v1855 = vld [vmem:[%s12 + $0x18] sm:$0xff]
      %v1856 = vld [vmem:[%s13] sm:$0x1]
      %v1857 = vld [vmem:[%s14] sm:$0xff]
      %v1858 = vld [vmem:[%s14 + $0x8] sm:$0xff]
      %v1859 = vld [vmem:[%s14 + $0x10] sm:$0xff]
      %v1860 = vld [vmem:[%s14 + $0x18] sm:$0xff]
      %v1861 = vld [vmem:[%s15] sm:$0x1]
      %v1862 = vld [vmem:[%s16] sm:$0xff]
      %v1863 = vld [vmem:[%s16 + $0x8] sm:$0xff]
      %v1864 = vld [vmem:[%s16 + $0x10] sm:$0xff]
      %v1865 = vld [vmem:[%s16 + $0x18] sm:$0xff]
      %v1866 = vld [vmem:[%s17] sm:$0x1]
      %v1867 = vadd.f32 %v1818, %v843
      %v1868 = vadd.f32 %v1819, %v844
      %v1869 = vadd.f32 %v1850, %v845
      %v1870 = vadd.f32 %v1851, %v846
      %v1872 = vlaneseq
      %v1873 = vshrl.u32 %v1872, 7
      %v1874 = vsub.s32 0, %v1873
      %v1875 = vrot.slane %v1856, %v1874
      %v1878 = vsel %vm875, %v1867, 0
      %v1881 = vsel %vm875, %v1868, 0
      %1883 = vmatprep.subr.mxu0 0.0
      %1884 = vmatpush1.msra.mxu0 %v1852
      %1885 = vmatprep.subr.mxu0 0.0
      %1886 = vmatpush1.msra.mxu0 %v1853
      %1887 = vmatprep.subr.mxu0 0.0
      %1888 = vmatpush1.msra.mxu0 %v1854
      %1889 = vmatprep.subr.mxu0 0.0
      %1890 = vmatpush1.msra.mxu0 %v1855
      %1891 = vmatprep.subr.mxu0 0.0
      %1892 = vmatpush1.msra.mxu0 0.0
      %1893 = vmatprep.subr.mxu0 0.0
      %1894 = vmatpush1.msra.mxu0 0.0
      %1895 = vmatprep.subr.mxu0 0.0
      %1896 = vmatpush1.msra.mxu0 0.0
      %1897 = vmatprep.subr.mxu0 0.0
      %1898 = vmatpush1.msra.mxu0 0.0
      %1899 = vmatprep.subr.mxu0 0.0
      %1900 = vmatpush1.msra.mxu0 0.0
      %1901 = vmatprep.subr.mxu0 0.0
      %1902 = vmatpush1.msra.mxu0 0.0
      %1903 = vmatprep.subr.mxu0 0.0
      %1904 = vmatpush1.msra.mxu0 0.0
      %1905 = vmatprep.subr.mxu0 0.0
      %1906 = vmatpush1.msra.mxu0 0.0
      %1907 = vmatprep.subr.mxu0 0.0
      %1908 = vmatpush1.msra.mxu0 0.0
      %1909 = vmatprep.subr.mxu0 0.0
      %1910 = vmatpush1.msra.mxu0 0.0
      %1911 = vmatprep.subr.mxu0 0.0
      %1912 = vmatpush1.msra.mxu0 0.0
      %1913 = vmatprep.subr.mxu0 0.0
      %1914 = vmatpush1.msra.mxu0 0.0
      %1915 = vmatprep.subr.mxu0 0.0
      %1916 = vmatpush1.msra.mxu0 0.0
      %1917 = vmatprep.subr.mxu0 0.0
      %1918 = vmatpush1.msra.mxu0 0.0
      %1919 = vmatprep.subr.mxu0 0.0
      %1920 = vmatpush1.msra.mxu0 0.0
      %1921 = vmatprep.subr.mxu0 0.0
      %1922 = vmatpush1.msra.mxu0 0.0
      %1923 = vmatprep.subr.mxu0 0.0
      %1924 = vmatpush1.msra.mxu0 0.0
      %1925 = vmatprep.subr.mxu0 0.0
      %1926 = vmatpush1.msra.mxu0 0.0
      %1927 = vmatprep.subr.mxu0 0.0
      %1928 = vmatpush1.msra.mxu0 0.0
      %1929 = vmatprep.subr.mxu0 0.0
      %1930 = vmatpush1.msra.mxu0 0.0
      %1931 = vmatprep.subr.mxu0 0.0
      %1932 = vmatpush1.msra.mxu0 0.0
      %1933 = vmatprep.subr.mxu0 0.0
      %1934 = vmatpush1.msra.mxu0 0.0
      %1935 = vmatprep.subr.mxu0 0.0
      %1936 = vmatpush1.msra.mxu0 0.0
      %1937 = vmatprep.subr.mxu0 0.0
      %1938 = vmatpush1.msra.mxu0 0.0
      %1939 = vmatprep.subr.mxu0 0.0
      %1940 = vmatpush1.msra.mxu0 0.0
      %1941 = vmatprep.subr.mxu0 0.0
      %1942 = vmatpush1.msra.mxu0 0.0
      %1943 = vmatprep.subr.mxu0 0.0
      %1944 = vmatpush1.msra.mxu0 0.0
      %1945 = vmatprep.subr.mxu0 0.0
      %1946 = vmatpush1.msra.mxu0 0.0
      %1947 = vmatprep.mubr.f32.mxu0 0.0
      %1948 = vmatmul.mubr.f32.gmra.mrb[0].mxu0 %v1878
      %v1949 = vpop.f32.mrb[0].mxu0
      %v1950 = vadd.f32 %v1875, %v1949
      %v1951 = vpop.f32.mrb[0].mxu0
      %1952 = vmatprep.mubr.f32.mxu0 0.0
      %1953 = vmatmul.mubr.f32.gmra.mrb[0].mxu0 %v1881
      %v1954 = vpop.f32.mrb[0].mxu0
      %v1955 = vadd.f32 %v1875, %v1954
      %v1956 = vpop.f32.mrb[0].mxu0
      %1957 = vdwg.mxu0
      %v1959 = vsel %vm875, %v1869, 0
      %v1962 = vsel %vm875, %v1870, 0
      %1964 = vmatprep.subr.mxu0 0.0
      %1965 = vmatpush1.msra.mxu0 %v1852
      %1966 = vmatprep.subr.mxu0 0.0
      %1967 = vmatpush1.msra.mxu0 %v1853
      %1968 = vmatprep.subr.mxu0 0.0
      %1969 = vmatpush1.msra.mxu0 %v1854
      %1970 = vmatprep.subr.mxu0 0.0
      %1971 = vmatpush1.msra.mxu0 %v1855
      %1972 = vmatprep.subr.mxu0 0.0
      %1973 = vmatpush1.msra.mxu0 0.0
      %1974 = vmatprep.subr.mxu0 0.0
      %1975 = vmatpush1.msra.mxu0 0.0
      %1976 = vmatprep.subr.mxu0 0.0
      %1977 = vmatpush1.msra.mxu0 0.0
      %1978 = vmatprep.subr.mxu0 0.0
      %1979 = vmatpush1.msra.mxu0 0.0
      %1980 = vmatprep.subr.mxu0 0.0
      %1981 = vmatpush1.msra.mxu0 0.0
      %1982 = vmatprep.subr.mxu0 0.0
      %1983 = vmatpush1.msra.mxu0 0.0
      %1984 = vmatprep.subr.mxu0 0.0
      %1985 = vmatpush1.msra.mxu0 0.0
      %1986 = vmatprep.subr.mxu0 0.0
      %1987 = vmatpush1.msra.mxu0 0.0
      %1988 = vmatprep.subr.mxu0 0.0
      %1989 = vmatpush1.msra.mxu0 0.0
      %1990 = vmatprep.subr.mxu0 0.0
      %1991 = vmatpush1.msra.mxu0 0.0
      %1992 = vmatprep.subr.mxu0 0.0
      %1993 = vmatpush1.msra.mxu0 0.0
      %1994 = vmatprep.subr.mxu0 0.0
      %1995 = vmatpush1.msra.mxu0 0.0
      %1996 = vmatprep.subr.mxu0 0.0
      %1997 = vmatpush1.msra.mxu0 0.0
      %1998 = vmatprep.subr.mxu0 0.0
      %1999 = vmatpush1.msra.mxu0 0.0
      %2000 = vmatprep.subr.mxu0 0.0
      %2001 = vmatpush1.msra.mxu0 0.0
      %2002 = vmatprep.subr.mxu0 0.0
      %2003 = vmatpush1.msra.mxu0 0.0
      %2004 = vmatprep.subr.mxu0 0.0
      %2005 = vmatpush1.msra.mxu0 0.0
      %2006 = vmatprep.subr.mxu0 0.0
      %2007 = vmatpush1.msra.mxu0 0.0
      %2008 = vmatprep.subr.mxu0 0.0
      %2009 = vmatpush1.msra.mxu0 0.0
      %2010 = vmatprep.subr.mxu0 0.0
      %2011 = vmatpush1.msra.mxu0 0.0
      %2012 = vmatprep.subr.mxu0 0.0
      %2013 = vmatpush1.msra.mxu0 0.0
      %2014 = vmatprep.subr.mxu0 0.0
      %2015 = vmatpush1.msra.mxu0 0.0
      %2016 = vmatprep.subr.mxu0 0.0
      %2017 = vmatpush1.msra.mxu0 0.0
      %2018 = vmatprep.subr.mxu0 0.0
      %2019 = vmatpush1.msra.mxu0 0.0
      %2020 = vmatprep.subr.mxu0 0.0
      %2021 = vmatpush1.msra.mxu0 0.0
      %2022 = vmatprep.subr.mxu0 0.0
      %2023 = vmatpush1.msra.mxu0 0.0
      %2024 = vmatprep.subr.mxu0 0.0
      %2025 = vmatpush1.msra.mxu0 0.0
      %2026 = vmatprep.subr.mxu0 0.0
      %2027 = vmatpush1.msra.mxu0 0.0
      %2028 = vmatprep.mubr.f32.mxu0 0.0
      %2029 = vmatmul.mubr.f32.gmra.mrb[0].mxu0 %v1959
      %v2030 = vpop.f32.mrb[0].mxu0
      %v2031 = vadd.f32 %v1875, %v2030
      %v2032 = vpop.f32.mrb[0].mxu0
      %2033 = vmatprep.mubr.f32.mxu0 0.0
      %2034 = vmatmul.mubr.f32.gmra.mrb[0].mxu0 %v1962
      %v2035 = vpop.f32.mrb[0].mxu0
      %v2036 = vadd.f32 %v1875, %v2035
      %v2037 = vpop.f32.mrb[0].mxu0
      %2038 = vdwg.mxu0
      %v2040 = vlaneseq
      %v2041 = vshrl.u32 %v2040, 7
      %v2042 = vsub.s32 0, %v2041
      %v2043 = vrot.slane %v1861, %v2042
      %v2046 = vsel %vm875, %v1818, 0
      %v2049 = vsel %vm875, %v1819, 0
      %2051 = vmatprep.subr.mxu0 0.0
      %2052 = vmatpush1.msra.mxu0 %v1857
      %2053 = vmatprep.subr.mxu0 0.0
      %2054 = vmatpush1.msra.mxu0 %v1858
      %2055 = vmatprep.subr.mxu0 0.0
      %2056 = vmatpush1.msra.mxu0 %v1859
      %2057 = vmatprep.subr.mxu0 0.0
      %2058 = vmatpush1.msra.mxu0 %v1860
      %2059 = vmatprep.subr.mxu0 0.0
      %2060 = vmatpush1.msra.mxu0 0.0
      %2061 = vmatprep.subr.mxu0 0.0
      %2062 = vmatpush1.msra.mxu0 0.0
      %2063 = vmatprep.subr.mxu0 0.0
      %2064 = vmatpush1.msra.mxu0 0.0
      %2065 = vmatprep.subr.mxu0 0.0
      %2066 = vmatpush1.msra.mxu0 0.0
      %2067 = vmatprep.subr.mxu0 0.0
      %2068 = vmatpush1.msra.mxu0 0.0
      %2069 = vmatprep.subr.mxu0 0.0
      %2070 = vmatpush1.msra.mxu0 0.0
      %2071 = vmatprep.subr.mxu0 0.0
      %2072 = vmatpush1.msra.mxu0 0.0
      %2073 = vmatprep.subr.mxu0 0.0
      %2074 = vmatpush1.msra.mxu0 0.0
      %2075 = vmatprep.subr.mxu0 0.0
      %2076 = vmatpush1.msra.mxu0 0.0
      %2077 = vmatprep.subr.mxu0 0.0
      %2078 = vmatpush1.msra.mxu0 0.0
      %2079 = vmatprep.subr.mxu0 0.0
      %2080 = vmatpush1.msra.mxu0 0.0
      %2081 = vmatprep.subr.mxu0 0.0
      %2082 = vmatpush1.msra.mxu0 0.0
      %2083 = vmatprep.subr.mxu0 0.0
      %2084 = vmatpush1.msra.mxu0 0.0
      %2085 = vmatprep.subr.mxu0 0.0
      %2086 = vmatpush1.msra.mxu0 0.0
      %2087 = vmatprep.subr.mxu0 0.0
      %2088 = vmatpush1.msra.mxu0 0.0
      %2089 = vmatprep.subr.mxu0 0.0
      %2090 = vmatpush1.msra.mxu0 0.0
      %2091 = vmatprep.subr.mxu0 0.0
      %2092 = vmatpush1.msra.mxu0 0.0
      %2093 = vmatprep.subr.mxu0 0.0
      %2094 = vmatpush1.msra.mxu0 0.0
      %2095 = vmatprep.subr.mxu0 0.0
      %2096 = vmatpush1.msra.mxu0 0.0
      %2097 = vmatprep.subr.mxu0 0.0
      %2098 = vmatpush1.msra.mxu0 0.0
      %2099 = vmatprep.subr.mxu0 0.0
      %2100 = vmatpush1.msra.mxu0 0.0
      %2101 = vmatprep.subr.mxu0 0.0
      %2102 = vmatpush1.msra.mxu0 0.0
      %2103 = vmatprep.subr.mxu0 0.0
      %2104 = vmatpush1.msra.mxu0 0.0
      %2105 = vmatprep.subr.mxu0 0.0
      %2106 = vmatpush1.msra.mxu0 0.0
      %2107 = vmatprep.subr.mxu0 0.0
      %2108 = vmatpush1.msra.mxu0 0.0
      %2109 = vmatprep.subr.mxu0 0.0
      %2110 = vmatpush1.msra.mxu0 0.0
      %2111 = vmatprep.subr.mxu0 0.0
      %2112 = vmatpush1.msra.mxu0 0.0
      %2113 = vmatprep.subr.mxu0 0.0
      %2114 = vmatpush1.msra.mxu0 0.0
      %2115 = vmatprep.mubr.f32.mxu0 0.0
      %2116 = vmatmul.mubr.f32.gmra.mrb[0].mxu0 %v2046
      %v2117 = vpop.f32.mrb[0].mxu0
      %v2118 = vadd.f32 %v2043, %v2117
      %v2119 = vpop.f32.mrb[0].mxu0
      %2120 = vmatprep.mubr.f32.mxu0 0.0
      %2121 = vmatmul.mubr.f32.gmra.mrb[0].mxu0 %v2049
      %v2122 = vpop.f32.mrb[0].mxu0
      %v2123 = vadd.f32 %v2043, %v2122
      %v2124 = vpop.f32.mrb[0].mxu0
      %2125 = vdwg.mxu0
      %v2127 = vsel %vm875, %v1850, 0
      %v2130 = vsel %vm875, %v1851, 0
      %2132 = vmatprep.subr.mxu0 0.0
      %2133 = vmatpush1.msra.mxu0 %v1857
      %2134 = vmatprep.subr.mxu0 0.0
      %2135 = vmatpush1.msra.mxu0 %v1858
      %2136 = vmatprep.subr.mxu0 0.0
      %2137 = vmatpush1.msra.mxu0 %v1859
      %2138 = vmatprep.subr.mxu0 0.0
      %2139 = vmatpush1.msra.mxu0 %v1860
      %2140 = vmatprep.subr.mxu0 0.0
      %2141 = vmatpush1.msra.mxu0 0.0
      %2142 = vmatprep.subr.mxu0 0.0
      %2143 = vmatpush1.msra.mxu0 0.0
      %2144 = vmatprep.subr.mxu0 0.0
      %2145 = vmatpush1.msra.mxu0 0.0
      %2146 = vmatprep.subr.mxu0 0.0
      %2147 = vmatpush1.msra.mxu0 0.0
      %2148 = vmatprep.subr.mxu0 0.0
      %2149 = vmatpush1.msra.mxu0 0.0
      %2150 = vmatprep.subr.mxu0 0.0
      %2151 = vmatpush1.msra.mxu0 0.0
      %2152 = vmatprep.subr.mxu0 0.0
      %2153 = vmatpush1.msra.mxu0 0.0
      %2154 = vmatprep.subr.mxu0 0.0
      %2155 = vmatpush1.msra.mxu0 0.0
      %2156 = vmatprep.subr.mxu0 0.0
      %2157 = vmatpush1.msra.mxu0 0.0
      %2158 = vmatprep.subr.mxu0 0.0
      %2159 = vmatpush1.msra.mxu0 0.0
      %2160 = vmatprep.subr.mxu0 0.0
      %2161 = vmatpush1.msra.mxu0 0.0
      %2162 = vmatprep.subr.mxu0 0.0
      %2163 = vmatpush1.msra.mxu0 0.0
      %2164 = vmatprep.subr.mxu0 0.0
      %2165 = vmatpush1.msra.mxu0 0.0
      %2166 = vmatprep.subr.mxu0 0.0
      %2167 = vmatpush1.msra.mxu0 0.0
      %2168 = vmatprep.subr.mxu0 0.0
      %2169 = vmatpush1.msra.mxu0 0.0
      %2170 = vmatprep.subr.mxu0 0.0
      %2171 = vmatpush1.msra.mxu0 0.0
      %2172 = vmatprep.subr.mxu0 0.0
      %2173 = vmatpush1.msra.mxu0 0.0
      %2174 = vmatprep.subr.mxu0 0.0
      %2175 = vmatpush1.msra.mxu0 0.0
      %2176 = vmatprep.subr.mxu0 0.0
      %2177 = vmatpush1.msra.mxu0 0.0
      %2178 = vmatprep.subr.mxu0 0.0
      %2179 = vmatpush1.msra.mxu0 0.0
      %2180 = vmatprep.subr.mxu0 0.0
      %2181 = vmatpush1.msra.mxu0 0.0
      %2182 = vmatprep.subr.mxu0 0.0
      %2183 = vmatpush1.msra.mxu0 0.0
      %2184 = vmatprep.subr.mxu0 0.0
      %2185 = vmatpush1.msra.mxu0 0.0
      %2186 = vmatprep.subr.mxu0 0.0
      %2187 = vmatpush1.msra.mxu0 0.0
      %2188 = vmatprep.subr.mxu0 0.0
      %2189 = vmatpush1.msra.mxu0 0.0
      %2190 = vmatprep.subr.mxu0 0.0
      %2191 = vmatpush1.msra.mxu0 0.0
      %2192 = vmatprep.subr.mxu0 0.0
      %2193 = vmatpush1.msra.mxu0 0.0
      %2194 = vmatprep.subr.mxu0 0.0
      %2195 = vmatpush1.msra.mxu0 0.0
      %2196 = vmatprep.mubr.f32.mxu0 0.0
      %2197 = vmatmul.mubr.f32.gmra.mrb[0].mxu0 %v2127
      %v2198 = vpop.f32.mrb[0].mxu0
      %v2199 = vadd.f32 %v2043, %v2198
      %v2200 = vpop.f32.mrb[0].mxu0
      %2201 = vmatprep.mubr.f32.mxu0 0.0
      %2202 = vmatmul.mubr.f32.gmra.mrb[0].mxu0 %v2130
      %v2203 = vpop.f32.mrb[0].mxu0
      %v2204 = vadd.f32 %v2043, %v2203
      %v2205 = vpop.f32.mrb[0].mxu0
      %2206 = vdwg.mxu0
      %2209 = vrot.lane.b32.xlu0 %v2031, 96
      %v2210 = vpop.permute.xlu0 %2209
      %2211 = vrot.lane.b32.xlu0 %v2036, 96
      %v2212 = vpop.permute.xlu0 %2211
      %v2214 = vsel %vm875, %v1950, 0
      %v2217 = vsel %vm875, %v1955, 0
      %v2219 = vsel %vm875, %v2210, 0
      %v2221 = vsel %vm875, %v2212, 0
      %2223 = vmatprep.subr.mxu0 0.0
      %2224 = vmatpush1.xpose.msra.mxu0 %v2219
      %2225 = vmatprep.subr.mxu0 0.0
      %2226 = vmatpush1.xpose.msra.mxu0 %v2221
      %2227 = vmatprep.subr.mxu0 0.0
      %2228 = vmatpush1.xpose.msra.mxu0 0.0
      %2229 = vmatprep.subr.mxu0 0.0
      %2230 = vmatpush1.xpose.msra.mxu0 0.0
      %2231 = vmatprep.subr.mxu0 0.0
      %2232 = vmatpush1.xpose.msra.mxu0 0.0
      %2233 = vmatprep.subr.mxu0 0.0
      %2234 = vmatpush1.xpose.msra.mxu0 0.0
      %2235 = vmatprep.subr.mxu0 0.0
      %2236 = vmatpush1.xpose.msra.mxu0 0.0
      %2237 = vmatprep.subr.mxu0 0.0
      %2238 = vmatpush1.xpose.msra.mxu0 0.0
      %2239 = vmatprep.subr.mxu0 0.0
      %2240 = vmatpush1.xpose.msra.mxu0 0.0
      %2241 = vmatprep.subr.mxu0 0.0
      %2242 = vmatpush1.xpose.msra.mxu0 0.0
      %2243 = vmatprep.subr.mxu0 0.0
      %2244 = vmatpush1.xpose.msra.mxu0 0.0
      %2245 = vmatprep.subr.mxu0 0.0
      %2246 = vmatpush1.xpose.msra.mxu0 0.0
      %2247 = vmatprep.subr.mxu0 0.0
      %2248 = vmatpush1.xpose.msra.mxu0 0.0
      %2249 = vmatprep.subr.mxu0 0.0
      %2250 = vmatpush1.xpose.msra.mxu0 0.0
      %2251 = vmatprep.subr.mxu0 0.0
      %2252 = vmatpush1.xpose.msra.mxu0 0.0
      %2253 = vmatprep.subr.mxu0 0.0
      %2254 = vmatpush1.xpose.msra.mxu0 0.0
      %2255 = vmatprep.subr.mxu0 0.0
      %2256 = vmatpush1.xpose.msra.mxu0 0.0
      %2257 = vmatprep.subr.mxu0 0.0
      %2258 = vmatpush1.xpose.msra.mxu0 0.0
      %2259 = vmatprep.subr.mxu0 0.0
      %2260 = vmatpush1.xpose.msra.mxu0 0.0
      %2261 = vmatprep.subr.mxu0 0.0
      %2262 = vmatpush1.xpose.msra.mxu0 0.0
      %2263 = vmatprep.subr.mxu0 0.0
      %2264 = vmatpush1.xpose.msra.mxu0 0.0
      %2265 = vmatprep.subr.mxu0 0.0
      %2266 = vmatpush1.xpose.msra.mxu0 0.0
      %2267 = vmatprep.subr.mxu0 0.0
      %2268 = vmatpush1.xpose.msra.mxu0 0.0
      %2269 = vmatprep.subr.mxu0 0.0
      %2270 = vmatpush1.xpose.msra.mxu0 0.0
      %2271 = vmatprep.subr.mxu0 0.0
      %2272 = vmatpush1.xpose.msra.mxu0 0.0
      %2273 = vmatprep.subr.mxu0 0.0
      %2274 = vmatpush1.xpose.msra.mxu0 0.0
      %2275 = vmatprep.subr.mxu0 0.0
      %2276 = vmatpush1.xpose.msra.mxu0 0.0
      %2277 = vmatprep.subr.mxu0 0.0
      %2278 = vmatpush1.xpose.msra.mxu0 0.0
      %2279 = vmatprep.subr.mxu0 0.0
      %2280 = vmatpush1.xpose.msra.mxu0 0.0
      %2281 = vmatprep.subr.mxu0 0.0
      %2282 = vmatpush1.xpose.msra.mxu0 0.0
      %2283 = vmatprep.subr.mxu0 0.0
      %2284 = vmatpush1.xpose.msra.mxu0 0.0
      %2285 = vmatprep.subr.mxu0 0.0
      %2286 = vmatpush1.xpose.msra.mxu0 0.0
      %2287 = vmatprep.mubr.f32.mxu0 0.0
      %2288 = vmatmul.mubr.f32.gmra.mrb[0].mxu0 %v2214
      %v2289 = vpop.f32.mrb[0].mxu0
      %v2290 = vadd.f32 0.0, %v2289
      %v2291 = vpop.f32.mrb[0].mxu0
      %2292 = vmatprep.mubr.f32.mxu0 0.0
      %2293 = vmatmul.mubr.f32.gmra.mrb[0].mxu0 %v2217
      %v2294 = vpop.f32.mrb[0].mxu0
      %v2295 = vadd.f32 0.0, %v2294
      %v2296 = vpop.f32.mrb[0].mxu0
      %2297 = vdwg.mxu0
      %v2298 = vmul.f32 %v2290, 0.17677669
      %v2299 = vmul.f32 %v2295, 0.17677669
      %v2300 = vadd.f32 %v2298, %v1504
      %v2301 = vadd.f32 %v2299, %v1504
      %v2302 = vsel %vm1305, %v2300, -inf
      %2303 = vmax.xlane.f32.xlu0 %v2302
      %v2304 = vpop.xlane.xlu0 %2303
      %v2305 = vsel %vm1305, %v2301, -inf
      %2306 = vmax.xlane.f32.xlu0 %v2305
      %v2307 = vpop.xlane.xlu0 %2306
      %v2308 = vsub.f32 %v2300, %v2304
      %v2309 = vsub.f32 %v2301, %v2307
      %v2310 = vmul.f32 %v2308, 1.442695
      %v2311 = vpow.pop %v2310
      %v2312 = vmul.f32 %v2309, 1.442695
      %v2313 = vpow.pop %v2312
      %v2314 = vsel %vm1305, %v2311, 0.0
      %2315 = vadd.xlane.f32.xlu0 %v2314
      %v2316 = vpop.xlane.xlu0 %2315
      %v2317 = vsel %vm1305, %v2313, 0.0
      %2318 = vadd.xlane.f32.xlu0 %v2317
      %v2319 = vpop.xlane.xlu0 %2318
      %v2320 = vrcp.pop %v2316
      %v2321 = vrcp.pop %v2319
      %v2322 = vmul.f32 %v2311, %v2320
      %v2323 = vmul.f32 %v2313, %v2321
      %v2325 = vsel %vm1305, %v2322, 0
      %v2328 = vsel %vm1305, %v2323, 0
      %2330 = vmatprep.subr.mxu0 0.0
      %2331 = vmatpush1.msra.mxu0 %v2199
      %2332 = vmatprep.subr.mxu0 0.0
      %2333 = vmatpush1.msra.mxu0 %v2204
      %2334 = vmatprep.subr.mxu0 0.0
      %2335 = vmatpush1.msra.mxu0 0.0
      %2336 = vmatprep.subr.mxu0 0.0
      %2337 = vmatpush1.msra.mxu0 0.0
      %2338 = vmatprep.subr.mxu0 0.0
      %2339 = vmatpush1.msra.mxu0 0.0
      %2340 = vmatprep.subr.mxu0 0.0
      %2341 = vmatpush1.msra.mxu0 0.0
      %2342 = vmatprep.subr.mxu0 0.0
      %2343 = vmatpush1.msra.mxu0 0.0
      %2344 = vmatprep.subr.mxu0 0.0
      %2345 = vmatpush1.msra.mxu0 0.0
      %2346 = vmatprep.subr.mxu0 0.0
      %2347 = vmatpush1.msra.mxu0 0.0
      %2348 = vmatprep.subr.mxu0 0.0
      %2349 = vmatpush1.msra.mxu0 0.0
      %2350 = vmatprep.subr.mxu0 0.0
      %2351 = vmatpush1.msra.mxu0 0.0
      %2352 = vmatprep.subr.mxu0 0.0
      %2353 = vmatpush1.msra.mxu0 0.0
      %2354 = vmatprep.subr.mxu0 0.0
      %2355 = vmatpush1.msra.mxu0 0.0
      %2356 = vmatprep.subr.mxu0 0.0
      %2357 = vmatpush1.msra.mxu0 0.0
      %2358 = vmatprep.subr.mxu0 0.0
      %2359 = vmatpush1.msra.mxu0 0.0
      %2360 = vmatprep.subr.mxu0 0.0
      %2361 = vmatpush1.msra.mxu0 0.0
      %2362 = vmatprep.subr.mxu0 0.0
      %2363 = vmatpush1.msra.mxu0 0.0
      %2364 = vmatprep.subr.mxu0 0.0
      %2365 = vmatpush1.msra.mxu0 0.0
      %2366 = vmatprep.subr.mxu0 0.0
      %2367 = vmatpush1.msra.mxu0 0.0
      %2368 = vmatprep.subr.mxu0 0.0
      %2369 = vmatpush1.msra.mxu0 0.0
      %2370 = vmatprep.subr.mxu0 0.0
      %2371 = vmatpush1.msra.mxu0 0.0
      %2372 = vmatprep.subr.mxu0 0.0
      %2373 = vmatpush1.msra.mxu0 0.0
      %2374 = vmatprep.subr.mxu0 0.0
      %2375 = vmatpush1.msra.mxu0 0.0
      %2376 = vmatprep.subr.mxu0 0.0
      %2377 = vmatpush1.msra.mxu0 0.0
      %2378 = vmatprep.subr.mxu0 0.0
      %2379 = vmatpush1.msra.mxu0 0.0
      %2380 = vmatprep.subr.mxu0 0.0
      %2381 = vmatpush1.msra.mxu0 0.0
      %2382 = vmatprep.subr.mxu0 0.0
      %2383 = vmatpush1.msra.mxu0 0.0
      %2384 = vmatprep.subr.mxu0 0.0
      %2385 = vmatpush1.msra.mxu0 0.0
      %2386 = vmatprep.subr.mxu0 0.0
      %2387 = vmatpush1.msra.mxu0 0.0
      %2388 = vmatprep.subr.mxu0 0.0
      %2389 = vmatpush1.msra.mxu0 0.0
      %2390 = vmatprep.subr.mxu0 0.0
      %2391 = vmatpush1.msra.mxu0 0.0
      %2392 = vmatprep.subr.mxu0 0.0
      %2393 = vmatpush1.msra.mxu0 0.0
      %2394 = vmatprep.mubr.f32.mxu0 0.0
      %2395 = vmatmul.mubr.f32.gmra.mrb[0].mxu0 %v2325
      %v2396 = vpop.f32.mrb[0].mxu0
      %v2397 = vadd.f32 0.0, %v2396
      %v2398 = vpop.f32.mrb[0].mxu0
      %2399 = vmatprep.mubr.f32.mxu0 0.0
      %2400 = vmatmul.mubr.f32.gmra.mrb[0].mxu0 %v2328
      %v2401 = vpop.f32.mrb[0].mxu0
      %v2402 = vadd.f32 0.0, %v2401
      %v2403 = vpop.f32.mrb[0].mxu0
      %2404 = vdwg.mxu0
      %2405 = vrot.lane.b32.xlu0 %v1950, 96
      %v2406 = vpop.permute.xlu0 %2405
      %2407 = vrot.lane.b32.xlu0 %v1955, 96
      %v2408 = vpop.permute.xlu0 %2407
      %v2409 = vsel %vm875, %v2031, 0
      %v2411 = vsel %vm875, %v2036, 0
      %v2413 = vsel %vm875, %v2406, 0
      %v2415 = vsel %vm875, %v2408, 0
      %2417 = vmatprep.subr.mxu0 0.0
      %2418 = vmatpush1.xpose.msra.mxu0 %v2413
      %2419 = vmatprep.subr.mxu0 0.0
      %2420 = vmatpush1.xpose.msra.mxu0 %v2415
      %2421 = vmatprep.subr.mxu0 0.0
      %2422 = vmatpush1.xpose.msra.mxu0 0.0
      %2423 = vmatprep.subr.mxu0 0.0
      %2424 = vmatpush1.xpose.msra.mxu0 0.0
      %2425 = vmatprep.subr.mxu0 0.0
      %2426 = vmatpush1.xpose.msra.mxu0 0.0
      %2427 = vmatprep.subr.mxu0 0.0
      %2428 = vmatpush1.xpose.msra.mxu0 0.0
      %2429 = vmatprep.subr.mxu0 0.0
      %2430 = vmatpush1.xpose.msra.mxu0 0.0
      %2431 = vmatprep.subr.mxu0 0.0
      %2432 = vmatpush1.xpose.msra.mxu0 0.0
      %2433 = vmatprep.subr.mxu0 0.0
      %2434 = vmatpush1.xpose.msra.mxu0 0.0
      %2435 = vmatprep.subr.mxu0 0.0
      %2436 = vmatpush1.xpose.msra.mxu0 0.0
      %2437 = vmatprep.subr.mxu0 0.0
      %2438 = vmatpush1.xpose.msra.mxu0 0.0
      %2439 = vmatprep.subr.mxu0 0.0
      %2440 = vmatpush1.xpose.msra.mxu0 0.0
      %2441 = vmatprep.subr.mxu0 0.0
      %2442 = vmatpush1.xpose.msra.mxu0 0.0
      %2443 = vmatprep.subr.mxu0 0.0
      %2444 = vmatpush1.xpose.msra.mxu0 0.0
      %2445 = vmatprep.subr.mxu0 0.0
      %2446 = vmatpush1.xpose.msra.mxu0 0.0
      %2447 = vmatprep.subr.mxu0 0.0
      %2448 = vmatpush1.xpose.msra.mxu0 0.0
      %2449 = vmatprep.subr.mxu0 0.0
      %2450 = vmatpush1.xpose.msra.mxu0 0.0
      %2451 = vmatprep.subr.mxu0 0.0
      %2452 = vmatpush1.xpose.msra.mxu0 0.0
      %2453 = vmatprep.subr.mxu0 0.0
      %2454 = vmatpush1.xpose.msra.mxu0 0.0
      %2455 = vmatprep.subr.mxu0 0.0
      %2456 = vmatpush1.xpose.msra.mxu0 0.0
      %2457 = vmatprep.subr.mxu0 0.0
      %2458 = vmatpush1.xpose.msra.mxu0 0.0
      %2459 = vmatprep.subr.mxu0 0.0
      %2460 = vmatpush1.xpose.msra.mxu0 0.0
      %2461 = vmatprep.subr.mxu0 0.0
      %2462 = vmatpush1.xpose.msra.mxu0 0.0
      %2463 = vmatprep.subr.mxu0 0.0
      %2464 = vmatpush1.xpose.msra.mxu0 0.0
      %2465 = vmatprep.subr.mxu0 0.0
      %2466 = vmatpush1.xpose.msra.mxu0 0.0
      %2467 = vmatprep.subr.mxu0 0.0
      %2468 = vmatpush1.xpose.msra.mxu0 0.0
      %2469 = vmatprep.subr.mxu0 0.0
      %2470 = vmatpush1.xpose.msra.mxu0 0.0
      %2471 = vmatprep.subr.mxu0 0.0
      %2472 = vmatpush1.xpose.msra.mxu0 0.0
      %2473 = vmatprep.subr.mxu0 0.0
      %2474 = vmatpush1.xpose.msra.mxu0 0.0
      %2475 = vmatprep.subr.mxu0 0.0
      %2476 = vmatpush1.xpose.msra.mxu0 0.0
      %2477 = vmatprep.subr.mxu0 0.0
      %2478 = vmatpush1.xpose.msra.mxu0 0.0
      %2479 = vmatprep.subr.mxu0 0.0
      %2480 = vmatpush1.xpose.msra.mxu0 0.0
      %2481 = vmatprep.mubr.f32.mxu0 0.0
      %2482 = vmatmul.mubr.f32.gmra.mrb[0].mxu0 %v2409
      %v2483 = vpop.f32.mrb[0].mxu0
      %v2484 = vadd.f32 0.0, %v2483
      %v2485 = vpop.f32.mrb[0].mxu0
      %2486 = vmatprep.mubr.f32.mxu0 0.0
      %2487 = vmatmul.mubr.f32.gmra.mrb[0].mxu0 %v2411
      %v2488 = vpop.f32.mrb[0].mxu0
      %v2489 = vadd.f32 0.0, %v2488
      %v2490 = vpop.f32.mrb[0].mxu0
      %2491 = vdwg.mxu0
      %v2492 = vmul.f32 %v2484, 0.17677669
      %v2493 = vmul.f32 %v2489, 0.17677669
      %v2494 = vadd.f32 %v2492, %v1301
      %v2495 = vadd.f32 %v2493, %v1301
      %v2496 = vsel %vm1305, %v2494, -inf
      %2497 = vmax.xlane.f32.xlu0 %v2496
      %v2498 = vpop.xlane.xlu0 %2497
      %v2499 = vsel %vm1305, %v2495, -inf
      %2500 = vmax.xlane.f32.xlu0 %v2499
      %v2501 = vpop.xlane.xlu0 %2500
      %v2502 = vsub.f32 %v2494, %v2498
      %v2503 = vsub.f32 %v2495, %v2501
      %v2504 = vmul.f32 %v2502, 1.442695
      %v2505 = vpow.pop %v2504
      %v2506 = vmul.f32 %v2503, 1.442695
      %v2507 = vpow.pop %v2506
      %v2508 = vsel %vm1305, %v2505, 0.0
      %2509 = vadd.xlane.f32.xlu0 %v2508
      %v2510 = vpop.xlane.xlu0 %2509
      %v2511 = vsel %vm1305, %v2507, 0.0
      %2512 = vadd.xlane.f32.xlu0 %v2511
      %v2513 = vpop.xlane.xlu0 %2512
      %v2514 = vrcp.pop %v2510
      %v2515 = vrcp.pop %v2513
      %v2516 = vmul.f32 %v2505, %v2514
      %v2517 = vmul.f32 %v2507, %v2515
      %v2519 = vsel %vm1305, %v2516, 0
      %v2522 = vsel %vm1305, %v2517, 0
      %2524 = vmatprep.subr.mxu0 0.0
      %2525 = vmatpush1.msra.mxu0 %v2118
      %2526 = vmatprep.subr.mxu0 0.0
      %2527 = vmatpush1.msra.mxu0 %v2123
      %2528 = vmatprep.subr.mxu0 0.0
      %2529 = vmatpush1.msra.mxu0 0.0
      %2530 = vmatprep.subr.mxu0 0.0
      %2531 = vmatpush1.msra.mxu0 0.0
      %2532 = vmatprep.subr.mxu0 0.0
      %2533 = vmatpush1.msra.mxu0 0.0
      %2534 = vmatprep.subr.mxu0 0.0
      %2535 = vmatpush1.msra.mxu0 0.0
      %2536 = vmatprep.subr.mxu0 0.0
      %2537 = vmatpush1.msra.mxu0 0.0
      %2538 = vmatprep.subr.mxu0 0.0
      %2539 = vmatpush1.msra.mxu0 0.0
      %2540 = vmatprep.subr.mxu0 0.0
      %2541 = vmatpush1.msra.mxu0 0.0
      %2542 = vmatprep.subr.mxu0 0.0
      %2543 = vmatpush1.msra.mxu0 0.0
      %2544 = vmatprep.subr.mxu0 0.0
      %2545 = vmatpush1.msra.mxu0 0.0
      %2546 = vmatprep.subr.mxu0 0.0
      %2547 = vmatpush1.msra.mxu0 0.0
      %2548 = vmatprep.subr.mxu0 0.0
      %2549 = vmatpush1.msra.mxu0 0.0
      %2550 = vmatprep.subr.mxu0 0.0
      %2551 = vmatpush1.msra.mxu0 0.0
      %2552 = vmatprep.subr.mxu0 0.0
      %2553 = vmatpush1.msra.mxu0 0.0
      %2554 = vmatprep.subr.mxu0 0.0
      %2555 = vmatpush1.msra.mxu0 0.0
      %2556 = vmatprep.subr.mxu0 0.0
      %2557 = vmatpush1.msra.mxu0 0.0
      %2558 = vmatprep.subr.mxu0 0.0
      %2559 = vmatpush1.msra.mxu0 0.0
      %2560 = vmatprep.subr.mxu0 0.0
      %2561 = vmatpush1.msra.mxu0 0.0
      %2562 = vmatprep.subr.mxu0 0.0
      %2563 = vmatpush1.msra.mxu0 0.0
      %2564 = vmatprep.subr.mxu0 0.0
      %2565 = vmatpush1.msra.mxu0 0.0
      %2566 = vmatprep.subr.mxu0 0.0
      %2567 = vmatpush1.msra.mxu0 0.0
      %2568 = vmatprep.subr.mxu0 0.0
      %2569 = vmatpush1.msra.mxu0 0.0
      %2570 = vmatprep.subr.mxu0 0.0
      %2571 = vmatpush1.msra.mxu0 0.0
      %2572 = vmatprep.subr.mxu0 0.0
      %2573 = vmatpush1.msra.mxu0 0.0
      %2574 = vmatprep.subr.mxu0 0.0
      %2575 = vmatpush1.msra.mxu0 0.0
      %2576 = vmatprep.subr.mxu0 0.0
      %2577 = vmatpush1.msra.mxu0 0.0
      %2578 = vmatprep.subr.mxu0 0.0
      %2579 = vmatpush1.msra.mxu0 0.0
      %2580 = vmatprep.subr.mxu0 0.0
      %2581 = vmatpush1.msra.mxu0 0.0
      %2582 = vmatprep.subr.mxu0 0.0
      %2583 = vmatpush1.msra.mxu0 0.0
      %2584 = vmatprep.subr.mxu0 0.0
      %2585 = vmatpush1.msra.mxu0 0.0
      %2586 = vmatprep.subr.mxu0 0.0
      %2587 = vmatpush1.msra.mxu0 0.0
      %2588 = vmatprep.mubr.f32.mxu0 0.0
      %2589 = vmatmul.mubr.f32.gmra.mrb[0].mxu0 %v2519
      %v2590 = vpop.f32.mrb[0].mxu0
      %v2591 = vadd.f32 0.0, %v2590
      %v2592 = vpop.f32.mrb[0].mxu0
      %2593 = vmatprep.mubr.f32.mxu0 0.0
      %2594 = vmatmul.mubr.f32.gmra.mrb[0].mxu0 %v2522
      %v2595 = vpop.f32.mrb[0].mxu0
      %v2596 = vadd.f32 0.0, %v2595
      %v2597 = vpop.f32.mrb[0].mxu0
      %2598 = vdwg.mxu0
      %v2600 = vlaneseq
      %v2601 = vshrl.u32 %v2600, 7
      %v2602 = vsub.s32 0, %v2601
      %v2603 = vrot.slane %v1866, %v2602
      %v2606 = vsel %vm875, %v2397, 0
      %v2609 = vsel %vm875, %v2402, 0
      %2611 = vmatprep.subr.mxu0 0.0
      %2612 = vmatpush1.msra.mxu0 %v1862
      %2613 = vmatprep.subr.mxu0 0.0
      %2614 = vmatpush1.msra.mxu0 %v1863
      %2615 = vmatprep.subr.mxu0 0.0
      %2616 = vmatpush1.msra.mxu0 %v1864
      %2617 = vmatprep.subr.mxu0 0.0
      %2618 = vmatpush1.msra.mxu0 %v1865
      %2619 = vmatprep.subr.mxu0 0.0
      %2620 = vmatpush1.msra.mxu0 0.0
      %2621 = vmatprep.subr.mxu0 0.0
      %2622 = vmatpush1.msra.mxu0 0.0
      %2623 = vmatprep.subr.mxu0 0.0
      %2624 = vmatpush1.msra.mxu0 0.0
      %2625 = vmatprep.subr.mxu0 0.0
      %2626 = vmatpush1.msra.mxu0 0.0
      %2627 = vmatprep.subr.mxu0 0.0
      %2628 = vmatpush1.msra.mxu0 0.0
      %2629 = vmatprep.subr.mxu0 0.0
      %2630 = vmatpush1.msra.mxu0 0.0
      %2631 = vmatprep.subr.mxu0 0.0
      %2632 = vmatpush1.msra.mxu0 0.0
      %2633 = vmatprep.subr.mxu0 0.0
      %2634 = vmatpush1.msra.mxu0 0.0
      %2635 = vmatprep.subr.mxu0 0.0
      %2636 = vmatpush1.msra.mxu0 0.0
      %2637 = vmatprep.subr.mxu0 0.0
      %2638 = vmatpush1.msra.mxu0 0.0
      %2639 = vmatprep.subr.mxu0 0.0
      %2640 = vmatpush1.msra.mxu0 0.0
      %2641 = vmatprep.subr.mxu0 0.0
      %2642 = vmatpush1.msra.mxu0 0.0
      %2643 = vmatprep.subr.mxu0 0.0
      %2644 = vmatpush1.msra.mxu0 0.0
      %2645 = vmatprep.subr.mxu0 0.0
      %2646 = vmatpush1.msra.mxu0 0.0
      %2647 = vmatprep.subr.mxu0 0.0
      %2648 = vmatpush1.msra.mxu0 0.0
      %2649 = vmatprep.subr.mxu0 0.0
      %2650 = vmatpush1.msra.mxu0 0.0
      %2651 = vmatprep.subr.mxu0 0.0
      %2652 = vmatpush1.msra.mxu0 0.0
      %2653 = vmatprep.subr.mxu0 0.0
      %2654 = vmatpush1.msra.mxu0 0.0
      %2655 = vmatprep.subr.mxu0 0.0
      %2656 = vmatpush1.msra.mxu0 0.0
      %2657 = vmatprep.subr.mxu0 0.0
      %2658 = vmatpush1.msra.mxu0 0.0
      %2659 = vmatprep.subr.mxu0 0.0
      %2660 = vmatpush1.msra.mxu0 0.0
      %2661 = vmatprep.subr.mxu0 0.0
      %2662 = vmatpush1.msra.mxu0 0.0
      %2663 = vmatprep.subr.mxu0 0.0
      %2664 = vmatpush1.msra.mxu0 0.0
      %2665 = vmatprep.subr.mxu0 0.0
      %2666 = vmatpush1.msra.mxu0 0.0
      %2667 = vmatprep.subr.mxu0 0.0
      %2668 = vmatpush1.msra.mxu0 0.0
      %2669 = vmatprep.subr.mxu0 0.0
      %2670 = vmatpush1.msra.mxu0 0.0
      %2671 = vmatprep.subr.mxu0 0.0
      %2672 = vmatpush1.msra.mxu0 0.0
      %2673 = vmatprep.subr.mxu0 0.0
      %2674 = vmatpush1.msra.mxu0 0.0
      %2675 = vmatprep.mubr.f32.mxu0 0.0
      %2676 = vmatmul.mubr.f32.gmra.mrb[0].mxu0 %v2606
      %v2677 = vpop.f32.mrb[0].mxu0
      %v2678 = vadd.f32 %v2603, %v2677
      %v2679 = vpop.f32.mrb[0].mxu0
      %2680 = vmatprep.mubr.f32.mxu0 0.0
      %2681 = vmatmul.mubr.f32.gmra.mrb[0].mxu0 %v2609
      %v2682 = vpop.f32.mrb[0].mxu0
      %v2683 = vadd.f32 %v2603, %v2682
      %v2684 = vpop.f32.mrb[0].mxu0
      %2685 = vdwg.mxu0
      %v2687 = vsel %vm875, %v2591, 0
      %v2690 = vsel %vm875, %v2596, 0
      %2692 = vmatprep.subr.mxu0 0.0
      %2693 = vmatpush1.msra.mxu0 %v1862
      %2694 = vmatprep.subr.mxu0 0.0
      %2695 = vmatpush1.msra.mxu0 %v1863
      %2696 = vmatprep.subr.mxu0 0.0
      %2697 = vmatpush1.msra.mxu0 %v1864
      %2698 = vmatprep.subr.mxu0 0.0
      %2699 = vmatpush1.msra.mxu0 %v1865
      %2700 = vmatprep.subr.mxu0 0.0
      %2701 = vmatpush1.msra.mxu0 0.0
      %2702 = vmatprep.subr.mxu0 0.0
      %2703 = vmatpush1.msra.mxu0 0.0
      %2704 = vmatprep.subr.mxu0 0.0
      %2705 = vmatpush1.msra.mxu0 0.0
      %2706 = vmatprep.subr.mxu0 0.0
      %2707 = vmatpush1.msra.mxu0 0.0
      %2708 = vmatprep.subr.mxu0 0.0
      %2709 = vmatpush1.msra.mxu0 0.0
      %2710 = vmatprep.subr.mxu0 0.0
      %2711 = vmatpush1.msra.mxu0 0.0
      %2712 = vmatprep.subr.mxu0 0.0
      %2713 = vmatpush1.msra.mxu0 0.0
      %2714 = vmatprep.subr.mxu0 0.0
      %2715 = vmatpush1.msra.mxu0 0.0
      %2716 = vmatprep.subr.mxu0 0.0
      %2717 = vmatpush1.msra.mxu0 0.0
      %2718 = vmatprep.subr.mxu0 0.0
      %2719 = vmatpush1.msra.mxu0 0.0
      %2720 = vmatprep.subr.mxu0 0.0
      %2721 = vmatpush1.msra.mxu0 0.0
      %2722 = vmatprep.subr.mxu0 0.0
      %2723 = vmatpush1.msra.mxu0 0.0
      %2724 = vmatprep.subr.mxu0 0.0
      %2725 = vmatpush1.msra.mxu0 0.0
      %2726 = vmatprep.subr.mxu0 0.0
      %2727 = vmatpush1.msra.mxu0 0.0
      %2728 = vmatprep.subr.mxu0 0.0
      %2729 = vmatpush1.msra.mxu0 0.0
      %2730 = vmatprep.subr.mxu0 0.0
      %2731 = vmatpush1.msra.mxu0 0.0
      %2732 = vmatprep.subr.mxu0 0.0
      %2733 = vmatpush1.msra.mxu0 0.0
      %2734 = vmatprep.subr.mxu0 0.0
      %2735 = vmatpush1.msra.mxu0 0.0
      %2736 = vmatprep.subr.mxu0 0.0
      %2737 = vmatpush1.msra.mxu0 0.0
      %2738 = vmatprep.subr.mxu0 0.0
      %2739 = vmatpush1.msra.mxu0 0.0
      %2740 = vmatprep.subr.mxu0 0.0
      %2741 = vmatpush1.msra.mxu0 0.0
      %2742 = vmatprep.subr.mxu0 0.0
      %2743 = vmatpush1.msra.mxu0 0.0
      %2744 = vmatprep.subr.mxu0 0.0
      %2745 = vmatpush1.msra.mxu0 0.0
      %2746 = vmatprep.subr.mxu0 0.0
      %2747 = vmatpush1.msra.mxu0 0.0
      %2748 = vmatprep.subr.mxu0 0.0
      %2749 = vmatpush1.msra.mxu0 0.0
      %2750 = vmatprep.subr.mxu0 0.0
      %2751 = vmatpush1.msra.mxu0 0.0
      %2752 = vmatprep.subr.mxu0 0.0
      %2753 = vmatpush1.msra.mxu0 0.0
      %2754 = vmatprep.subr.mxu0 0.0
      %2755 = vmatpush1.msra.mxu0 0.0
      %2756 = vmatprep.mubr.f32.mxu0 0.0
      %2757 = vmatmul.mubr.f32.gmra.mrb[0].mxu0 %v2687
      %v2758 = vpop.f32.mrb[0].mxu0
      %v2759 = vadd.f32 %v2603, %v2758
      %v2760 = vpop.f32.mrb[0].mxu0
      %2761 = vmatprep.mubr.f32.mxu0 0.0
      %2762 = vmatmul.mubr.f32.gmra.mrb[0].mxu0 %v2690
      %v2763 = vpop.f32.mrb[0].mxu0
      %v2764 = vadd.f32 %v2603, %v2763
      %v2765 = vpop.f32.mrb[0].mxu0
      %2766 = vdwg.mxu0
      %v2767 = vadd.f32 %v1818, %v2678
      %v2768 = vadd.f32 %v1819, %v2683
      %v2769 = vsel %vm875, %v2767, 0.0
      %2770 = vadd.xlane.f32.xlu0 %v2769
      %v2771 = vpop.xlane.xlu0 %2770
      %v2772 = vsel %vm875, %v2768, 0.0
      %2773 = vadd.xlane.f32.xlu0 %v2772
      %v2774 = vpop.xlane.xlu0 %2773
      %v2775 = vmul.f32 %v2771, %v1787
      %v2776 = vmul.f32 %v2774, %v1787
      %v2777 = vsub.f32 %v2767, %v2775
      %v2778 = vsub.f32 %v2768, %v2776
      %v2779 = vmul.f32 %v2777, %v2777
      %v2780 = vmul.f32 %v2778, %v2778
      %v2781 = vsel %vm875, %v2779, 0.0
      %2782 = vadd.xlane.f32.xlu0 %v2781
      %v2783 = vpop.xlane.xlu0 %2782
      %v2784 = vsel %vm875, %v2780, 0.0
      %2785 = vadd.xlane.f32.xlu0 %v2784
      %v2786 = vpop.xlane.xlu0 %2785
      %v2787 = vmul.f32 %v2783, %v1787
      %v2788 = vmul.f32 %v2786, %v1787
      %v2789 = vadd.f32 %v2787, 1e-05
      %v2790 = vadd.f32 %v2788, 1e-05
      %v2791 = vrsqrt.pop %v2789
      %v2792 = vrsqrt.pop %v2790
      %v2793 = vmul.f32 %v2777, %v2791
      %v2794 = vmul.f32 %v2778, %v2792
      %v2795 = vlaneseq
      %v2796 = vshrl.u32 %v2795, 7
      %v2797 = vsub.s32 2, %v2796
      %v2798 = vrot.slane %v849, %v2797
      %v2799 = vmul.f32 %v2793, %v2798
      %v2800 = vmul.f32 %v2794, %v2798
      %v2801 = vlaneseq
      %v2802 = vshrl.u32 %v2801, 7
      %v2803 = vsub.s32 3, %v2802
      %v2804 = vrot.slane %v849, %v2803
      %v2805 = vadd.f32 %v2799, %v2804
      %v2806 = vadd.f32 %v2800, %v2804
      %v2807 = vadd.f32 %v1850, %v2759
      %v2808 = vadd.f32 %v1851, %v2764
      %v2809 = vsel %vm875, %v2807, 0.0
      %2810 = vadd.xlane.f32.xlu0 %v2809
      %v2811 = vpop.xlane.xlu0 %2810
      %v2812 = vsel %vm875, %v2808, 0.0
      %2813 = vadd.xlane.f32.xlu0 %v2812
      %v2814 = vpop.xlane.xlu0 %2813
      %v2815 = vmul.f32 %v2811, %v1787
      %v2816 = vmul.f32 %v2814, %v1787
      %v2817 = vsub.f32 %v2807, %v2815
      %v2818 = vsub.f32 %v2808, %v2816
      %v2819 = vmul.f32 %v2817, %v2817
      %v2820 = vmul.f32 %v2818, %v2818
      %v2821 = vsel %vm875, %v2819, 0.0
      %2822 = vadd.xlane.f32.xlu0 %v2821
      %v2823 = vpop.xlane.xlu0 %2822
      %v2824 = vsel %vm875, %v2820, 0.0
      %2825 = vadd.xlane.f32.xlu0 %v2824
      %v2826 = vpop.xlane.xlu0 %2825
      %v2827 = vmul.f32 %v2823, %v1787
      %v2828 = vmul.f32 %v2826, %v1787
      %v2829 = vadd.f32 %v2827, 1e-05
      %v2830 = vadd.f32 %v2828, 1e-05
      %v2831 = vrsqrt.pop %v2829
      %v2832 = vrsqrt.pop %v2830
      %v2833 = vmul.f32 %v2817, %v2831
      %v2834 = vmul.f32 %v2818, %v2832
      %v2835 = vmul.f32 %v2833, %v2798
      %v2836 = vmul.f32 %v2834, %v2798
      %v2837 = vadd.f32 %v2835, %v2804
      %v2838 = vadd.f32 %v2836, %v2804
      %v2839 = vld [vmem:[%s18] sm:$0xff]
      %v2840 = vld [vmem:[%s18 + $0x8] sm:$0xff]
      %v2841 = vld [vmem:[%s18 + $0x10] sm:$0xff]
      %v2842 = vld [vmem:[%s18 + $0x18] sm:$0xff]
      %v2843 = vld [vmem:[%s19] sm:$0x1]
      %v2844 = vld [vmem:[%s20] sm:$0xff]
      %v2845 = vld [vmem:[%s20 + $0x8] sm:$0xff]
      %v2846 = vld [vmem:[%s20 + $0x10] sm:$0xff]
      %v2847 = vld [vmem:[%s20 + $0x18] sm:$0xff]
      %v2848 = vld [vmem:[%s20 + $0x20] sm:$0xff]
      %v2849 = vld [vmem:[%s20 + $0x28] sm:$0xff]
      %v2850 = vld [vmem:[%s20 + $0x30] sm:$0xff]
      %v2851 = vld [vmem:[%s20 + $0x38] sm:$0xff]
      %v2852 = vld [vmem:[%s21] sm:$0x1]
      %v2854 = vlaneseq
      %v2855 = vshrl.u32 %v2854, 7
      %v2856 = vsub.s32 0, %v2855
      %v2857 = vrot.slane %v2843, %v2856
      %v2860 = vsel %vm875, %v2805, 0
      %v2863 = vsel %vm875, %v2806, 0
      %2865 = vmatprep.subr.mxu0 0.0
      %2866 = vmatpush1.msra.mxu0 %v2839
      %2867 = vmatprep.subr.mxu0 0.0
      %2868 = vmatpush1.msra.mxu0 %v2840
      %2869 = vmatprep.subr.mxu0 0.0
      %2870 = vmatpush1.msra.mxu0 %v2841
      %2871 = vmatprep.subr.mxu0 0.0
      %2872 = vmatpush1.msra.mxu0 %v2842
      %2873 = vmatprep.subr.mxu0 0.0
      %2874 = vmatpush1.msra.mxu0 0.0
      %2875 = vmatprep.subr.mxu0 0.0
      %2876 = vmatpush1.msra.mxu0 0.0
      %2877 = vmatprep.subr.mxu0 0.0
      %2878 = vmatpush1.msra.mxu0 0.0
      %2879 = vmatprep.subr.mxu0 0.0
      %2880 = vmatpush1.msra.mxu0 0.0
      %2881 = vmatprep.subr.mxu0 0.0
      %2882 = vmatpush1.msra.mxu0 0.0
      %2883 = vmatprep.subr.mxu0 0.0
      %2884 = vmatpush1.msra.mxu0 0.0
      %2885 = vmatprep.subr.mxu0 0.0
      %2886 = vmatpush1.msra.mxu0 0.0
      %2887 = vmatprep.subr.mxu0 0.0
      %2888 = vmatpush1.msra.mxu0 0.0
      %2889 = vmatprep.subr.mxu0 0.0
      %2890 = vmatpush1.msra.mxu0 0.0
      %2891 = vmatprep.subr.mxu0 0.0
      %2892 = vmatpush1.msra.mxu0 0.0
      %2893 = vmatprep.subr.mxu0 0.0
      %2894 = vmatpush1.msra.mxu0 0.0
      %2895 = vmatprep.subr.mxu0 0.0
      %2896 = vmatpush1.msra.mxu0 0.0
      %2897 = vmatprep.subr.mxu0 0.0
      %2898 = vmatpush1.msra.mxu0 0.0
      %2899 = vmatprep.subr.mxu0 0.0
      %2900 = vmatpush1.msra.mxu0 0.0
      %2901 = vmatprep.subr.mxu0 0.0
      %2902 = vmatpush1.msra.mxu0 0.0
      %2903 = vmatprep.subr.mxu0 0.0
      %2904 = vmatpush1.msra.mxu0 0.0
      %2905 = vmatprep.subr.mxu0 0.0
      %2906 = vmatpush1.msra.mxu0 0.0
      %2907 = vmatprep.subr.mxu0 0.0
      %2908 = vmatpush1.msra.mxu0 0.0
      %2909 = vmatprep.subr.mxu0 0.0
      %2910 = vmatpush1.msra.mxu0 0.0
      %2911 = vmatprep.subr.mxu0 0.0
      %2912 = vmatpush1.msra.mxu0 0.0
      %2913 = vmatprep.subr.mxu0 0.0
      %2914 = vmatpush1.msra.mxu0 0.0
      %2915 = vmatprep.subr.mxu0 0.0
      %2916 = vmatpush1.msra.mxu0 0.0
      %2917 = vmatprep.subr.mxu0 0.0
      %2918 = vmatpush1.msra.mxu0 0.0
      %2919 = vmatprep.subr.mxu0 0.0
      %2920 = vmatpush1.msra.mxu0 0.0
      %2921 = vmatprep.subr.mxu0 0.0
      %2922 = vmatpush1.msra.mxu0 0.0
      %2923 = vmatprep.subr.mxu0 0.0
      %2924 = vmatpush1.msra.mxu0 0.0
      %2925 = vmatprep.subr.mxu0 0.0
      %2926 = vmatpush1.msra.mxu0 0.0
      %2927 = vmatprep.subr.mxu0 0.0
      %2928 = vmatpush1.msra.mxu0 0.0
      %2929 = vmatprep.mubr.f32.mxu0 0.0
      %2930 = vmatmul.mubr.f32.gmra.mrb[0].mxu0 %v2860
      %v2931 = vpop.f32.mrb[0].mxu0
      %v2932 = vadd.f32 %v2857, %v2931
      %v2933 = vpop.f32.mrb[0].mxu0
      %2934 = vmatprep.mubr.f32.mxu0 0.0
      %2935 = vmatmul.mubr.f32.gmra.mrb[0].mxu0 %v2863
      %v2936 = vpop.f32.mrb[0].mxu0
      %v2937 = vadd.f32 %v2857, %v2936
      %v2938 = vpop.f32.mrb[0].mxu0
      %2939 = vdwg.mxu0
      %v2940 = vmax.f32 %v2932, 0.0
      %v2941 = vmax.f32 %v2937, 0.0
      %v2943 = vlaneseq
      %v2944 = vshrl.u32 %v2943, 7
      %v2945 = vsub.s32 0, %v2944
      %v2946 = vrot.slane %v2852, %v2945
      %vm2948 = vcmask 523264
      %v2950 = vsel %vm2948, %v2940, 0
      %v2953 = vsel %vm2948, %v2941, 0
      %2955 = vmatprep.subr.mxu0 0.0
      %2956 = vmatpush1.msra.mxu0 %v2844
      %2957 = vmatprep.subr.mxu0 0.0
      %2958 = vmatpush1.msra.mxu0 %v2845
      %2959 = vmatprep.subr.mxu0 0.0
      %2960 = vmatpush1.msra.mxu0 %v2846
      %2961 = vmatprep.subr.mxu0 0.0
      %2962 = vmatpush1.msra.mxu0 %v2847
      %2963 = vmatprep.subr.mxu0 0.0
      %2964 = vmatpush1.msra.mxu0 %v2848
      %2965 = vmatprep.subr.mxu0 0.0
      %2966 = vmatpush1.msra.mxu0 %v2849
      %2967 = vmatprep.subr.mxu0 0.0
      %2968 = vmatpush1.msra.mxu0 %v2850
      %2969 = vmatprep.subr.mxu0 0.0
      %2970 = vmatpush1.msra.mxu0 %v2851
      %2971 = vmatprep.subr.mxu0 0.0
      %2972 = vmatpush1.msra.mxu0 0.0
      %2973 = vmatprep.subr.mxu0 0.0
      %2974 = vmatpush1.msra.mxu0 0.0
      %2975 = vmatprep.subr.mxu0 0.0
      %2976 = vmatpush1.msra.mxu0 0.0
      %2977 = vmatprep.subr.mxu0 0.0
      %2978 = vmatpush1.msra.mxu0 0.0
      %2979 = vmatprep.subr.mxu0 0.0
      %2980 = vmatpush1.msra.mxu0 0.0
      %2981 = vmatprep.subr.mxu0 0.0
      %2982 = vmatpush1.msra.mxu0 0.0
      %2983 = vmatprep.subr.mxu0 0.0
      %2984 = vmatpush1.msra.mxu0 0.0
      %2985 = vmatprep.subr.mxu0 0.0
      %2986 = vmatpush1.msra.mxu0 0.0
      %2987 = vmatprep.subr.mxu0 0.0
      %2988 = vmatpush1.msra.mxu0 0.0
      %2989 = vmatprep.subr.mxu0 0.0
      %2990 = vmatpush1.msra.mxu0 0.0
      %2991 = vmatprep.subr.mxu0 0.0
      %2992 = vmatpush1.msra.mxu0 0.0
      %2993 = vmatprep.subr.mxu0 0.0
      %2994 = vmatpush1.msra.mxu0 0.0
      %2995 = vmatprep.subr.mxu0 0.0
      %2996 = vmatpush1.msra.mxu0 0.0
      %2997 = vmatprep.subr.mxu0 0.0
      %2998 = vmatpush1.msra.mxu0 0.0
      %2999 = vmatprep.subr.mxu0 0.0
      %3000 = vmatpush1.msra.mxu0 0.0
      %3001 = vmatprep.subr.mxu0 0.0
      %3002 = vmatpush1.msra.mxu0 0.0
      %3003 = vmatprep.subr.mxu0 0.0
      %3004 = vmatpush1.msra.mxu0 0.0
      %3005 = vmatprep.subr.mxu0 0.0
      %3006 = vmatpush1.msra.mxu0 0.0
      %3007 = vmatprep.subr.mxu0 0.0
      %3008 = vmatpush1.msra.mxu0 0.0
      %3009 = vmatprep.subr.mxu0 0.0
      %3010 = vmatpush1.msra.mxu0 0.0
      %3011 = vmatprep.subr.mxu0 0.0
      %3012 = vmatpush1.msra.mxu0 0.0
      %3013 = vmatprep.subr.mxu0 0.0
      %3014 = vmatpush1.msra.mxu0 0.0
      %3015 = vmatprep.subr.mxu0 0.0
      %3016 = vmatpush1.msra.mxu0 0.0
      %3017 = vmatprep.subr.mxu0 0.0
      %3018 = vmatpush1.msra.mxu0 0.0
      %3019 = vmatprep.mubr.f32.mxu0 0.0
      %3020 = vmatmul.mubr.f32.gmra.mrb[0].mxu0 %v2950
      %v3021 = vpop.f32.mrb[0].mxu0
      %v3022 = vadd.f32 %v2946, %v3021
      %v3023 = vpop.f32.mrb[0].mxu0
      %3024 = vmatprep.mubr.f32.mxu0 0.0
      %3025 = vmatmul.mubr.f32.gmra.mrb[0].mxu0 %v2953
      %v3026 = vpop.f32.mrb[0].mxu0
      %v3027 = vadd.f32 %v2946, %v3026
      %v3028 = vpop.f32.mrb[0].mxu0
      %3029 = vdwg.mxu0
      %v3030 = vadd.f32 %v2805, %v3022
      %v3031 = vadd.f32 %v2806, %v3027
      %v3032 = vsel %vm875, %v3030, 0.0
      %3033 = vadd.xlane.f32.xlu0 %v3032
      %v3034 = vpop.xlane.xlu0 %3033
      %v3035 = vsel %vm875, %v3031, 0.0
      %3036 = vadd.xlane.f32.xlu0 %v3035
      %v3037 = vpop.xlane.xlu0 %3036
      %v3038 = vmul.f32 %v3034, %v1787
      %v3039 = vmul.f32 %v3037, %v1787
      %v3040 = vsub.f32 %v3030, %v3038
      %v3041 = vsub.f32 %v3031, %v3039
      %v3042 = vmul.f32 %v3040, %v3040
      %v3043 = vmul.f32 %v3041, %v3041
      %v3044 = vsel %vm875, %v3042, 0.0
      %3045 = vadd.xlane.f32.xlu0 %v3044
      %v3046 = vpop.xlane.xlu0 %3045
      %v3047 = vsel %vm875, %v3043, 0.0
      %3048 = vadd.xlane.f32.xlu0 %v3047
      %v3049 = vpop.xlane.xlu0 %3048
      %v3050 = vmul.f32 %v3046, %v1787
      %v3051 = vmul.f32 %v3049, %v1787
      %v3052 = vadd.f32 %v3050, 1e-05
      %v3053 = vadd.f32 %v3051, 1e-05
      %v3054 = vrsqrt.pop %v3052
      %v3055 = vrsqrt.pop %v3053
      %v3056 = vmul.f32 %v3040, %v3054
      %v3057 = vmul.f32 %v3041, %v3055
      %v3058 = vlaneseq
      %v3059 = vshrl.u32 %v3058, 7
      %v3060 = vsub.s32 4, %v3059
      %v3061 = vrot.slane %v849, %v3060
      %v3062 = vmul.f32 %v3056, %v3061
      %v3063 = vmul.f32 %v3057, %v3061
      %v3064 = vlaneseq
      %v3065 = vshrl.u32 %v3064, 7
      %v3066 = vsub.s32 5, %v3065
      %v3067 = vrot.slane %v849, %v3066
      %v3068 = vadd.f32 %v3062, %v3067
      %v3069 = vadd.f32 %v3063, %v3067
      %v3071 = vsel %vm875, %v2837, 0
      %v3074 = vsel %vm875, %v2838, 0
      %3076 = vmatprep.subr.mxu0 0.0
      %3077 = vmatpush1.msra.mxu0 %v2839
      %3078 = vmatprep.subr.mxu0 0.0
      %3079 = vmatpush1.msra.mxu0 %v2840
      %3080 = vmatprep.subr.mxu0 0.0
      %3081 = vmatpush1.msra.mxu0 %v2841
      %3082 = vmatprep.subr.mxu0 0.0
      %3083 = vmatpush1.msra.mxu0 %v2842
      %3084 = vmatprep.subr.mxu0 0.0
      %3085 = vmatpush1.msra.mxu0 0.0
      %3086 = vmatprep.subr.mxu0 0.0
      %3087 = vmatpush1.msra.mxu0 0.0
      %3088 = vmatprep.subr.mxu0 0.0
      %3089 = vmatpush1.msra.mxu0 0.0
      %3090 = vmatprep.subr.mxu0 0.0
      %3091 = vmatpush1.msra.mxu0 0.0
      %3092 = vmatprep.subr.mxu0 0.0
      %3093 = vmatpush1.msra.mxu0 0.0
      %3094 = vmatprep.subr.mxu0 0.0
      %3095 = vmatpush1.msra.mxu0 0.0
      %3096 = vmatprep.subr.mxu0 0.0
      %3097 = vmatpush1.msra.mxu0 0.0
      %3098 = vmatprep.subr.mxu0 0.0
      %3099 = vmatpush1.msra.mxu0 0.0
      %3100 = vmatprep.subr.mxu0 0.0
      %3101 = vmatpush1.msra.mxu0 0.0
      %3102 = vmatprep.subr.mxu0 0.0
      %3103 = vmatpush1.msra.mxu0 0.0
      %3104 = vmatprep.subr.mxu0 0.0
      %3105 = vmatpush1.msra.mxu0 0.0
      %3106 = vmatprep.subr.mxu0 0.0
      %3107 = vmatpush1.msra.mxu0 0.0
      %3108 = vmatprep.subr.mxu0 0.0
      %3109 = vmatpush1.msra.mxu0 0.0
      %3110 = vmatprep.subr.mxu0 0.0
      %3111 = vmatpush1.msra.mxu0 0.0
      %3112 = vmatprep.subr.mxu0 0.0
      %3113 = vmatpush1.msra.mxu0 0.0
      %3114 = vmatprep.subr.mxu0 0.0
      %3115 = vmatpush1.msra.mxu0 0.0
      %3116 = vmatprep.subr.mxu0 0.0
      %3117 = vmatpush1.msra.mxu0 0.0
      %3118 = vmatprep.subr.mxu0 0.0
      %3119 = vmatpush1.msra.mxu0 0.0
      %3120 = vmatprep.subr.mxu0 0.0
      %3121 = vmatpush1.msra.mxu0 0.0
      %3122 = vmatprep.subr.mxu0 0.0
      %3123 = vmatpush1.msra.mxu0 0.0
      %3124 = vmatprep.subr.mxu0 0.0
      %3125 = vmatpush1.msra.mxu0 0.0
      %3126 = vmatprep.subr.mxu0 0.0
      %3127 = vmatpush1.msra.mxu0 0.0
      %3128 = vmatprep.subr.mxu0 0.0
      %3129 = vmatpush1.msra.mxu0 0.0
      %3130 = vmatprep.subr.mxu0 0.0
      %3131 = vmatpush1.msra.mxu0 0.0
      %3132 = vmatprep.subr.mxu0 0.0
      %3133 = vmatpush1.msra.mxu0 0.0
      %3134 = vmatprep.subr.mxu0 0.0
      %3135 = vmatpush1.msra.mxu0 0.0
      %3136 = vmatprep.subr.mxu0 0.0
      %3137 = vmatpush1.msra.mxu0 0.0
      %3138 = vmatprep.subr.mxu0 0.0
      %3139 = vmatpush1.msra.mxu0 0.0
      %3140 = vmatprep.mubr.f32.mxu0 0.0
      %3141 = vmatmul.mubr.f32.gmra.mrb[0].mxu0 %v3071
      %v3142 = vpop.f32.mrb[0].mxu0
      %v3143 = vadd.f32 %v2857, %v3142
      %v3144 = vpop.f32.mrb[0].mxu0
      %3145 = vmatprep.mubr.f32.mxu0 0.0
      %3146 = vmatmul.mubr.f32.gmra.mrb[0].mxu0 %v3074
      %v3147 = vpop.f32.mrb[0].mxu0
      %v3148 = vadd.f32 %v2857, %v3147
      %v3149 = vpop.f32.mrb[0].mxu0
      %3150 = vdwg.mxu0
      %v3151 = vmax.f32 %v3143, 0.0
      %v3152 = vmax.f32 %v3148, 0.0
      %v3154 = vsel %vm2948, %v3151, 0
      %v3157 = vsel %vm2948, %v3152, 0
      %3159 = vmatprep.subr.mxu0 0.0
      %3160 = vmatpush1.msra.mxu0 %v2844
      %3161 = vmatprep.subr.mxu0 0.0
      %3162 = vmatpush1.msra.mxu0 %v2845
      %3163 = vmatprep.subr.mxu0 0.0
      %3164 = vmatpush1.msra.mxu0 %v2846
      %3165 = vmatprep.subr.mxu0 0.0
      %3166 = vmatpush1.msra.mxu0 %v2847
      %3167 = vmatprep.subr.mxu0 0.0
      %3168 = vmatpush1.msra.mxu0 %v2848
      %3169 = vmatprep.subr.mxu0 0.0
      %3170 = vmatpush1.msra.mxu0 %v2849
      %3171 = vmatprep.subr.mxu0 0.0
      %3172 = vmatpush1.msra.mxu0 %v2850
      %3173 = vmatprep.subr.mxu0 0.0
      %3174 = vmatpush1.msra.mxu0 %v2851
      %3175 = vmatprep.subr.mxu0 0.0
      %3176 = vmatpush1.msra.mxu0 0.0
      %3177 = vmatprep.subr.mxu0 0.0
      %3178 = vmatpush1.msra.mxu0 0.0
      %3179 = vmatprep.subr.mxu0 0.0
      %3180 = vmatpush1.msra.mxu0 0.0
      %3181 = vmatprep.subr.mxu0 0.0
      %3182 = vmatpush1.msra.mxu0 0.0
      %3183 = vmatprep.subr.mxu0 0.0
      %3184 = vmatpush1.msra.mxu0 0.0
      %3185 = vmatprep.subr.mxu0 0.0
      %3186 = vmatpush1.msra.mxu0 0.0
      %3187 = vmatprep.subr.mxu0 0.0
      %3188 = vmatpush1.msra.mxu0 0.0
      %3189 = vmatprep.subr.mxu0 0.0
      %3190 = vmatpush1.msra.mxu0 0.0
      %3191 = vmatprep.subr.mxu0 0.0
      %3192 = vmatpush1.msra.mxu0 0.0
      %3193 = vmatprep.subr.mxu0 0.0
      %3194 = vmatpush1.msra.mxu0 0.0
      %3195 = vmatprep.subr.mxu0 0.0
      %3196 = vmatpush1.msra.mxu0 0.0
      %3197 = vmatprep.subr.mxu0 0.0
      %3198 = vmatpush1.msra.mxu0 0.0
      %3199 = vmatprep.subr.mxu0 0.0
      %3200 = vmatpush1.msra.mxu0 0.0
      %3201 = vmatprep.subr.mxu0 0.0
      %3202 = vmatpush1.msra.mxu0 0.0
      %3203 = vmatprep.subr.mxu0 0.0
      %3204 = vmatpush1.msra.mxu0 0.0
      %3205 = vmatprep.subr.mxu0 0.0
      %3206 = vmatpush1.msra.mxu0 0.0
      %3207 = vmatprep.subr.mxu0 0.0
      %3208 = vmatpush1.msra.mxu0 0.0
      %3209 = vmatprep.subr.mxu0 0.0
      %3210 = vmatpush1.msra.mxu0 0.0
      %3211 = vmatprep.subr.mxu0 0.0
      %3212 = vmatpush1.msra.mxu0 0.0
      %3213 = vmatprep.subr.mxu0 0.0
      %3214 = vmatpush1.msra.mxu0 0.0
      %3215 = vmatprep.subr.mxu0 0.0
      %3216 = vmatpush1.msra.mxu0 0.0
      %3217 = vmatprep.subr.mxu0 0.0
      %3218 = vmatpush1.msra.mxu0 0.0
      %3219 = vmatprep.subr.mxu0 0.0
      %3220 = vmatpush1.msra.mxu0 0.0
      %3221 = vmatprep.subr.mxu0 0.0
      %3222 = vmatpush1.msra.mxu0 0.0
      %3223 = vmatprep.mubr.f32.mxu0 0.0
      %3224 = vmatmul.mubr.f32.gmra.mrb[0].mxu0 %v3154
      %v3225 = vpop.f32.mrb[0].mxu0
      %v3226 = vadd.f32 %v2946, %v3225
      %v3227 = vpop.f32.mrb[0].mxu0
      %3228 = vmatprep.mubr.f32.mxu0 0.0
      %3229 = vmatmul.mubr.f32.gmra.mrb[0].mxu0 %v3157
      %v3230 = vpop.f32.mrb[0].mxu0
      %v3231 = vadd.f32 %v2946, %v3230
      %v3232 = vpop.f32.mrb[0].mxu0
      %3233 = vdwg.mxu0
      %v3234 = vadd.f32 %v2837, %v3226
      %v3235 = vadd.f32 %v2838, %v3231
      %v3236 = vsel %vm875, %v3234, 0.0
      %3237 = vadd.xlane.f32.xlu0 %v3236
      %v3238 = vpop.xlane.xlu0 %3237
      %v3239 = vsel %vm875, %v3235, 0.0
      %3240 = vadd.xlane.f32.xlu0 %v3239
      %v3241 = vpop.xlane.xlu0 %3240
      %v3242 = vmul.f32 %v3238, %v1787
      %v3243 = vmul.f32 %v3241, %v1787
      %v3244 = vsub.f32 %v3234, %v3242
      %v3245 = vsub.f32 %v3235, %v3243
      %v3246 = vmul.f32 %v3244, %v3244
      %v3247 = vmul.f32 %v3245, %v3245
      %v3248 = vsel %vm875, %v3246, 0.0
      %3249 = vadd.xlane.f32.xlu0 %v3248
      %v3250 = vpop.xlane.xlu0 %3249
      %v3251 = vsel %vm875, %v3247, 0.0
      %3252 = vadd.xlane.f32.xlu0 %v3251
      %v3253 = vpop.xlane.xlu0 %3252
      %v3254 = vmul.f32 %v3250, %v1787
      %v3255 = vmul.f32 %v3253, %v1787
      %v3256 = vadd.f32 %v3254, 1e-05
      %v3257 = vadd.f32 %v3255, 1e-05
      %v3258 = vrsqrt.pop %v3256
      %v3259 = vrsqrt.pop %v3257
      %v3260 = vmul.f32 %v3244, %v3258
      %v3261 = vmul.f32 %v3245, %v3259
      %v3262 = vmul.f32 %v3260, %v3061
      %v3263 = vmul.f32 %v3261, %v3061
      %v3264 = vadd.f32 %v3262, %v3067
      %v3265 = vadd.f32 %v3263, %v3067
      %3266 = vst.msk [vmem:[%s833] sm:$0xff] %vm875, %v3068
      %3267 = vst.msk [vmem:[%s833 + $0x8] sm:$0xff] %vm875, %v3069
      %3268 = vst.msk [vmem:[%s838] sm:$0xff] %vm875, %v3264
      %3269 = vst.msk [vmem:[%s838 + $0x8] sm:$0xff] %vm875, %v3265
      %p3270 = scmp.lt.s32.totalorder %s36, 1
      %s3271 = scalar_select %p3270, %s36, 1
      %s3272 = smul.addr %s3271, 2
      %s3273 = smul.addr %s3272, 8
      %s3274 = scalar_lea.vmem %s23, %s3273
      %p3275 = scmp.lt.s32.totalorder %s36, 1
      %s3276 = scalar_select %p3275, %s36, 1
      %s3277 = smul.addr %s3276, 2
      %s3278 = smul.addr %s3277, 8
      %s3279 = scalar_lea.vmem %s24, %s3278
      // Predicated region
      $region113: #{decoder_train_forward.6} parent=111 // pred_check
        %p3280 = pneg %p567
      $region114: #{decoder_train_forward.6} parent=111 // pred_check_branch
        %3282 = sbr.rel (%p3280) target = $region116
      $region115: #{decoder_train_forward.6} parent=111 // pred_region
        _
      $region116: #{decoder_train_forward.6} parent=111 // pred_fallthru
        _
      // Predicated region
      $region117: #{decoder_train_forward.6} parent=111 // pred_check
        %p3283 = pneg %p593
      $region118: #{decoder_train_forward.6} parent=111 // pred_check_branch
        %3285 = sbr.rel (%p3283) target = $region120
      $region119: #{decoder_train_forward.6} parent=111 // pred_region
        _
      $region120: #{decoder_train_forward.6} parent=111 // pred_fallthru
        _
    $region112: #{decoder_train_forward.6} parent=5 // pred_fallthru
      _
    %p3286 = scmp.le.s32.totalorder 2, %s31
    // Predicated region
    $region121: #{decoder_train_forward.6} parent=5 // pred_check
      %p3287 = pneg %p3286
    $region122: #{decoder_train_forward.6} parent=5 // pred_check_branch
      %3289 = sbr.rel (%p3287) target = $region124
    $region123: #{decoder_train_forward.6} parent=5 // pred_region
      %s3290 = ssub.s32 %s31, 2
      // Predicated region
      $region125: #{decoder_train_forward.6} parent=123 // pred_check
        %p3291 = pneg %p573
      $region126: #{decoder_train_forward.6} parent=123 // pred_check_branch
        %3293 = sbr.rel (%p3291) target = $region128
      $region127: #{decoder_train_forward.6} parent=123 // pred_region
        %p3294 = scmp.lt.s32.totalorder %s37, 1
        %s3295 = scalar_select %p3294, %s37, 1
        %s3296 = smul.addr %s3295, 2
        %s3297 = smul.addr %s3296, 8
        %s3298 = scalar_lea.vmem %s23, %s3297
      $region128: #{decoder_train_forward.6} parent=123 // pred_fallthru
        _
      // Predicated region
      $region129: #{decoder_train_forward.6} parent=123 // pred_check
        %p3299 = pneg %p599
      $region130: #{decoder_train_forward.6} parent=123 // pred_check_branch
        %3301 = sbr.rel (%p3299) target = $region132
      $region131: #{decoder_train_forward.6} parent=123 // pred_region
        %p3302 = scmp.lt.s32.totalorder %s37, 1
        %s3303 = scalar_select %p3302, %s37, 1
        %s3304 = smul.addr %s3303, 2
        %s3305 = smul.addr %s3304, 8
        %s3306 = scalar_lea.vmem %s24, %s3305
      $region132: #{decoder_train_forward.6} parent=123 // pred_fallthru
        _
    $region124: #{decoder_train_forward.6} parent=5 // pred_fallthru
      _
  $region6: #{decoder_train_forward.6} parent=0 // loop_footer
    %s35 = sadd.s32 1, %s31
  $region7: #{decoder_train_forward.6} parent=0 // loop_footer_branch
    %30 = sbr.rel target = $region3
  $region8: #{decoder_train_forward.6} parent=0 // loop_exit
    _

// kernel: decoder_train_forward.9
$region0: #{decoder_train_forward.9}
  #allocation0 [shape = 'u32[]', space=smem, size = 0x4, offset = 0x4, fixed_abs, tag = 'smem constant byte address 0x4 - core index']
  #allocation1 [shape = 'u32[144,128]{1,0:T(1,128)}', space=vmem, size = 0x12000, scoped, tag = 'internal scratch']
  %s0 = inlined_call_operand.vmem [shape: f32[33,3], index: 0, kind: input, shape index: {}]
  %s1 = inlined_call_operand.vmem [shape: f32[2,16,32], index: 1, kind: input, shape index: {}]
  %s2 = inlined_call_operand.vmem [shape: f32[2,16,32], index: 2, kind: input, shape index: {}]
  %s3 = inlined_call_operand.vmem [shape: f32[2,32,16], index: 3, kind: input, shape index: {}]
  %s4 = inlined_call_operand.vmem [shape: f32[2,32,16], index: 4, kind: input, shape index: {}]
  %s5 = inlined_call_operand.vmem [shape: f32[2,16,8], index: 5, kind: input, shape index: {}]
  %s6 = inlined_call_operand.vmem [shape: f32[2,8,16], index: 6, kind: input, shape index: {}]
  %s7 = inlined_call_operand.hbm [shape: f32[2,3,16,16], index: 7, kind: output, shape index: {0}]
  %s8 = inlined_call_operand.hbm [shape: f32[2,3,16,16], index: 8, kind: output, shape index: {1}]
  %9 = xla_tuple %s7, %s8
  %s10 = sld [smem:[#allocation0]]
  $region73: #{decoder_train_forward.9} parent=0
    _
  %s12 = ssub.s32 1, %s10
  %s13 = scalar_select 0, %s12, %s10
  $region1: #{decoder_train_forward.9} parent=0
    #allocation2 [shape = 'u8[20480]{0}', space=smem, size = 0x5000, scoped, tag = 'input window, operand 0, single buffered']
    #allocation3 [shape = 's32[2]{0}', space=sflag, size = 0x8, scoped, tag = 'scoped memory for decoder_train_forward.9']
    #allocation4 [shape = 's32[2]{0}', space=sflag, size = 0x8, scoped, tag = 'scoped memory for decoder_train_forward.9']
    #allocation5 [shape = 'u8[49152]{0}', space=vmem, size = 0xc000, scoped, tag = 'output window, operand 0']
    #allocation6 [shape = 'u8[49152]{0}', space=vmem, size = 0xc000, scoped, tag = 'output window, operand 1']
    #allocation7 [shape = 's32[2]{0}', space=sflag, size = 0x8, scoped, tag = 'scoped memory for decoder_train_forward.9']
    %14 = vsyncpa [#allocation4], 0
    %15 = vsyncpa [#allocation3], 0
    %s16 = scalar_lea.sflag [#allocation3], 1
    %17 = vsyncpa %s16, 0
    %18 = vsyncpa [#allocation7], 0
    %s19 = scalar_lea.sflag [#allocation7], 1
    %20 = vsyncpa %s19, 0
    loop: start=0, step=1, limit=4
    $region2: #{decoder_train_forward.9} parent=1 // loop_pre_header
      _
    $region3: #{decoder_train_forward.9} parent=1 // loop_header
      %s22 = sphi 0, %s26
      %p23 = scmp.ge.s32.totalorder %s22, 4
      %s29 = sphi 0, %s48
      %s30 = sphi 0, %s44
      %s31 = sphi 0, %s40
      %s32 = sphi 0, %s29
      %s33 = sphi 0, %s30
      %s34 = sphi 0, %s31
      %s35 = sphi 0, %s32
      %s36 = sphi 0, %s33
      %s37 = sphi 0, %s34
      %s49 = sphi 0, %s49
      %s51 = sphi 0, %s49
      %s52 = sphi 0, %s51
      %s66 = sphi 0, %s52
      %s74 = sphi 0, %s76
      %s77 = sphi 0, %s74
      %s78 = sphi 0, %s77
      %s94 = sphi 0, %s78
      %s102 = sphi 0, %s104
      %s105 = sphi 0, %s102
      %s106 = sphi 0, %s105
      %s122 = sphi 0, %s106
      %s130 = sphi 0, %s132
      %s133 = sphi 0, %s130
      %s134 = sphi 0, %s133
      %s150 = sphi 0, %s134
      %s158 = sphi 0, %s160
      %s161 = sphi 0, %s158
      %s162 = sphi 0, %s161
      %s178 = sphi 0, %s162
      %s186 = sphi 0, %s188
      %s189 = sphi 0, %s186
      %s190 = sphi 0, %s189
      %s206 = sphi 0, %s190
      %s214 = sphi 0, %s216
      %s217 = sphi 0, %s214
      %s218 = sphi 0, %s217
      %s234 = sphi 0, %s218
      %s244 = sphi 0, %s246
      %s247 = sphi 0, %s244
      %s248 = sphi 0, %s247
      %s264 = sphi 0, %s248
      %s274 = sphi 0, %s276
      %s277 = sphi 0, %s274
      %s278 = sphi 0, %s277
      %s294 = sphi 0, %s278
    $region4: #{decoder_train_forward.9} parent=1 // loop_header_branch
      %25 = sbr.rel (%p23) target = $region8
    $region5: #{decoder_train_forward.9} parent=1 // loop_body
      %s27 = ssub.s32 %s22, 1
      %s28 = ssub.s32 %s22, 2
      %s38 = sadd.s32 1, %s31
      %p39 = scmp.ge.s32.totalorder %s38, 1
      %s40 = scalar_select %p39, 0, %s38
      %s41 = sadd.s32 1, %s30
      %s42 = scalar_select %p39, %s41, %s30
      %p43 = scmp.ge.s32.totalorder %s42, 1
      %s44 = scalar_select %p43, 0, %s42
      %s45 = sadd.s32 1, %s29
      %s46 = scalar_select %p43, %s45, %s29
      %p47 = scmp.ge.s32.totalorder %s46, 2
      %s48 = scalar_select %p47, 0, %s46
      %s50 = sadd.s32 %s49, 1
      %p53 = scmp.eq.s32.totalorder %s22, 1
      %p54 = scmp.ne.s32.totalorder %s49, %s51
      %p55 = scmp.eq.s32.totalorder %s22, 0
      %p56 = por %p54, %p55
      %p57 = scmp.ne.s32.totalorder %s49, %s51
      %p58 = scmp.eq.s32.totalorder %s27, 1
      %p59 = por %p57, %p58
      %p60 = scmp.ne.s32.totalorder %s51, %s52
      %p61 = scmp.eq.s32.totalorder %s27, 0
      %p62 = por %p60, %p61
      %p63 = scmp.ne.s32.totalorder %s51, %s52
      %p64 = scmp.eq.s32.totalorder %s28, 1
      %p65 = por %p63, %p64
      %p67 = scmp.ne.s32.totalorder %s52, %s66
      %p68 = scmp.eq.s32.totalorder %s28, 0
      %p69 = por %p67, %p68
      %s70 = ssub.s32 %s29, %s48
      %s71 = ssub.s32 %s30, %s44
      %s72 = sor.u32 %s70, %s71
      %p73 = scmp.eq.s32.totalorder %s72, 0
      %s75 = sadd.s32 %s74, 1
      %s76 = scalar_select %p73, %s74, %s75
      %p79 = pneg %p73
      %p80 = scmp.eq.s32.totalorder %s22, 1
      %p81 = por %p79, %p80
      %p82 = scmp.ne.s32.totalorder %s74, %s77
      %p83 = scmp.eq.s32.totalorder %s22, 0
      %p84 = por %p82, %p83
      %p85 = scmp.ne.s32.totalorder %s74, %s77
      %p86 = scmp.eq.s32.totalorder %s27, 1
      %p87 = por %p85, %p86
      %p88 = scmp.ne.s32.totalorder %s77, %s78
      %p89 = scmp.eq.s32.totalorder %s27, 0
      %p90 = por %p88, %p89
      %p91 = scmp.ne.s32.totalorder %s77, %s78
      %p92 = scmp.eq.s32.totalorder %s28, 1
      %p93 = por %p91, %p92
      %p95 = scmp.ne.s32.totalorder %s78, %s94
      %p96 = scmp.eq.s32.totalorder %s28, 0
      %p97 = por %p95, %p96
      %s98 = ssub.s32 %s29, %s48
      %s99 = ssub.s32 %s30, %s44
      %s100 = sor.u32 %s98, %s99
      %p101 = scmp.eq.s32.totalorder %s100, 0
      %s103 = sadd.s32 %s102, 1
      %s104 = scalar_select %p101, %s102, %s103
      %p107 = pneg %p101
      %p108 = scmp.eq.s32.totalorder %s22, 1
      %p109 = por %p107, %p108
      %p110 = scmp.ne.s32.totalorder %s102, %s105
      %p111 = scmp.eq.s32.totalorder %s22, 0
      %p112 = por %p110, %p111
      %p113 = scmp.ne.s32.totalorder %s102, %s105
      %p114 = scmp.eq.s32.totalorder %s27, 1
      %p115 = por %p113, %p114
      %p116 = scmp.ne.s32.totalorder %s105, %s106
      %p117 = scmp.eq.s32.totalorder %s27, 0
      %p118 = por %p116, %p117
      %p119 = scmp.ne.s32.totalorder %s105, %s106
      %p120 = scmp.eq.s32.totalorder %s28, 1
      %p121 = por %p119, %p120
      %p123 = scmp.ne.s32.totalorder %s106, %s122
      %p124 = scmp.eq.s32.totalorder %s28, 0
      %p125 = por %p123, %p124
      %s126 = ssub.s32 %s29, %s48
      %s127 = ssub.s32 %s31, %s40
      %s128 = sor.u32 %s126, %s127
      %p129 = scmp.eq.s32.totalorder %s128, 0
      %s131 = sadd.s32 %s130, 1
      %s132 = scalar_select %p129, %s130, %s131
      %p135 = pneg %p129
      %p136 = scmp.eq.s32.totalorder %s22, 1
      %p137 = por %p135, %p136
      %p138 = scmp.ne.s32.totalorder %s130, %s133
      %p139 = scmp.eq.s32.totalorder %s22, 0
      %p140 = por %p138, %p139
      %p141 = scmp.ne.s32.totalorder %s130, %s133
      %p142 = scmp.eq.s32.totalorder %s27, 1
      %p143 = por %p141, %p142
      %p144 = scmp.ne.s32.totalorder %s133, %s134
      %p145 = scmp.eq.s32.totalorder %s27, 0
      %p146 = por %p144, %p145
      %p147 = scmp.ne.s32.totalorder %s133, %s134
      %p148 = scmp.eq.s32.totalorder %s28, 1
      %p149 = por %p147, %p148
      %p151 = scmp.ne.s32.totalorder %s134, %s150
      %p152 = scmp.eq.s32.totalorder %s28, 0
      %p153 = por %p151, %p152
      %s154 = ssub.s32 %s29, %s48
      %s155 = ssub.s32 %s31, %s40
      %s156 = sor.u32 %s154, %s155
      %p157 = scmp.eq.s32.totalorder %s156, 0
      %s159 = sadd.s32 %s158, 1
      %s160 = scalar_select %p157, %s158, %s159
      %p163 = pneg %p157
      %p164 = scmp.eq.s32.totalorder %s22, 1
      %p165 = por %p163, %p164
      %p166 = scmp.ne.s32.totalorder %s158, %s161
      %p167 = scmp.eq.s32.totalorder %s22, 0
      %p168 = por %p166, %p167
      %p169 = scmp.ne.s32.totalorder %s158, %s161
      %p170 = scmp.eq.s32.totalorder %s27, 1
      %p171 = por %p169, %p170
      %p172 = scmp.ne.s32.totalorder %s161, %s162
      %p173 = scmp.eq.s32.totalorder %s27, 0
      %p174 = por %p172, %p173
      %p175 = scmp.ne.s32.totalorder %s161, %s162
      %p176 = scmp.eq.s32.totalorder %s28, 1
      %p177 = por %p175, %p176
      %p179 = scmp.ne.s32.totalorder %s162, %s178
      %p180 = scmp.eq.s32.totalorder %s28, 0
      %p181 = por %p179, %p180
      %s182 = ssub.s32 %s29, %s48
      %s183 = ssub.s32 %s30, %s44
      %s184 = sor.u32 %s182, %s183
      %p185 = scmp.eq.s32.totalorder %s184, 0
      %s187 = sadd.s32 %s186, 1
      %s188 = scalar_select %p185, %s186, %s187
      %p191 = pneg %p185
      %p192 = scmp.eq.s32.totalorder %s22, 1
      %p193 = por %p191, %p192
      %p194 = scmp.ne.s32.totalorder %s186, %s189
      %p195 = scmp.eq.s32.totalorder %s22, 0
      %p196 = por %p194, %p195
      %p197 = scmp.ne.s32.totalorder %s186, %s189
      %p198 = scmp.eq.s32.totalorder %s27, 1
      %p199 = por %p197, %p198
      %p200 = scmp.ne.s32.totalorder %s189, %s190
      %p201 = scmp.eq.s32.totalorder %s27, 0
      %p202 = por %p200, %p201
      %p203 = scmp.ne.s32.totalorder %s189, %s190
      %p204 = scmp.eq.s32.totalorder %s28, 1
      %p205 = por %p203, %p204
      %p207 = scmp.ne.s32.totalorder %s190, %s206
      %p208 = scmp.eq.s32.totalorder %s28, 0
      %p209 = por %p207, %p208
      %s210 = ssub.s32 %s29, %s48
      %s211 = ssub.s32 %s31, %s40
      %s212 = sor.u32 %s210, %s211
      %p213 = scmp.eq.s32.totalorder %s212, 0
      %s215 = sadd.s32 %s214, 1
      %s216 = scalar_select %p213, %s214, %s215
      %p219 = pneg %p213
      %p220 = scmp.eq.s32.totalorder %s22, 1
      %p221 = por %p219, %p220
      %p222 = scmp.ne.s32.totalorder %s214, %s217
      %p223 = scmp.eq.s32.totalorder %s22, 0
      %p224 = por %p222, %p223
      %p225 = scmp.ne.s32.totalorder %s214, %s217
      %p226 = scmp.eq.s32.totalorder %s27, 1
      %p227 = por %p225, %p226
      %p228 = scmp.ne.s32.totalorder %s217, %s218
      %p229 = scmp.eq.s32.totalorder %s27, 0
      %p230 = por %p228, %p229
      %p231 = scmp.ne.s32.totalorder %s217, %s218
      %p232 = scmp.eq.s32.totalorder %s28, 1
      %p233 = por %p231, %p232
      %p235 = scmp.ne.s32.totalorder %s218, %s234
      %p236 = scmp.eq.s32.totalorder %s28, 0
      %p237 = por %p235, %p236
      %s238 = ssub.s32 %s29, %s48
      %s239 = ssub.s32 %s30, %s44
      %s240 = sor.u32 %s238, %s239
      %s241 = ssub.s32 %s31, %s40
      %s242 = sor.u32 %s240, %s241
      %p243 = scmp.eq.s32.totalorder %s242, 0
      %s245 = sadd.s32 %s244, 1
      %s246 = scalar_select %p243, %s244, %s245
      %p249 = pneg %p243
      %p250 = scmp.eq.s32.totalorder %s22, 1
      %p251 = por %p249, %p250
      %p252 = scmp.ne.s32.totalorder %s244, %s247
      %p253 = scmp.eq.s32.totalorder %s22, 0
      %p254 = por %p252, %p253
      %p255 = scmp.ne.s32.totalorder %s244, %s247
      %p256 = scmp.eq.s32.totalorder %s27, 1
      %p257 = por %p255, %p256
      %p258 = scmp.ne.s32.totalorder %s247, %s248
      %p259 = scmp.eq.s32.totalorder %s27, 0
      %p260 = por %p258, %p259
      %p261 = scmp.ne.s32.totalorder %s247, %s248
      %p262 = scmp.eq.s32.totalorder %s28, 1
      %p263 = por %p261, %p262
      %p265 = scmp.ne.s32.totalorder %s248, %s264
      %p266 = scmp.eq.s32.totalorder %s28, 0
      %p267 = por %p265, %p266
      %s268 = ssub.s32 %s29, %s48
      %s269 = ssub.s32 %s30, %s44
      %s270 = sor.u32 %s268, %s269
      %s271 = ssub.s32 %s31, %s40
      %s272 = sor.u32 %s270, %s271
      %p273 = scmp.eq.s32.totalorder %s272, 0
      %s275 = sadd.s32 %s274, 1
      %s276 = scalar_select %p273, %s274, %s275
      %p279 = pneg %p273
      %p280 = scmp.eq.s32.totalorder %s22, 1
      %p281 = por %p279, %p280
      %p282 = scmp.ne.s32.totalorder %s274, %s277
      %p283 = scmp.eq.s32.totalorder %s22, 0
      %p284 = por %p282, %p283
      %p285 = scmp.ne.s32.totalorder %s274, %s277
      %p286 = scmp.eq.s32.totalorder %s27, 1
      %p287 = por %p285, %p286
      %p288 = scmp.ne.s32.totalorder %s277, %s278
      %p289 = scmp.eq.s32.totalorder %s27, 0
      %p290 = por %p288, %p289
      %p291 = scmp.ne.s32.totalorder %s277, %s278
      %p292 = scmp.eq.s32.totalorder %s28, 1
      %p293 = por %p291, %p292
      %p295 = scmp.ne.s32.totalorder %s278, %s294
      %p296 = scmp.eq.s32.totalorder %s28, 0
      %p297 = por %p295, %p296
      %p298 = scmp.le.s32.totalorder 1, %s22
      %p299 = scmp.lt.s32.totalorder %s22, 3
      %p300 = pnand %p298, %p299
      %p301 = pneg %p300
      // Predicated region
      $region9: #{decoder_train_forward.9} parent=5 // pred_check
        _
      $region10: #{decoder_train_forward.9} parent=5 // pred_check_branch
        %303 = sbr.rel (%p300) target = $region12
      $region11: #{decoder_train_forward.9} parent=5 // pred_region
        %s304 = ssub.s32 %s22, 1
        // Predicated region
        $region13: #{decoder_train_forward.9} parent=11 // pred_check
          %p305 = pneg %p62
        $region14: #{decoder_train_forward.9} parent=11 // pred_check_branch
          %307 = sbr.rel (%p305) target = $region16
        $region15: #{decoder_train_forward.9} parent=11 // pred_region
          %s309 = ssub.s32 640, 640
          %310 = vsyncadd [#allocation4], %s309
          %s311 = sshll.u32 %s0, 4
          %s312 = int_to_ptr.vmem [resolvable:$true] %s311
          %317 = dma.vmem_to_smem %s312, 640, [#allocation2], [#allocation4], 128, 128, 8
        $region16: #{decoder_train_forward.9} parent=11 // pred_fallthru
          _
      $region12: #{decoder_train_forward.9} parent=5 // pred_fallthru
        _
      %p318 = scmp.lt.s32.totalorder %s22, 2
      // Predicated region
      $region17: #{decoder_train_forward.9} parent=5 // pred_check
        %p319 = pneg %p318
      $region18: #{decoder_train_forward.9} parent=5 // pred_check_branch
        %321 = sbr.rel (%p319) target = $region20
      $region19: #{decoder_train_forward.9} parent=5 // pred_region
        // Predicated region
        $region21: #{decoder_train_forward.9} parent=19 // pred_check
          %p322 = pneg %p84
        $region22: #{decoder_train_forward.9} parent=19 // pred_check_branch
          %324 = sbr.rel (%p322) target = $region24
        $region23: #{decoder_train_forward.9} parent=19 // pred_region
          %s325 = smul.u32 2, %s30
          %p326 = scmp.lt.s32.totalorder %s29, 1
          %s327 = scalar_select %p326, %s29, 1
          %p328 = scmp.lt.s32.totalorder %s325, 1
          %s329 = scalar_select %p328, %s325, 1
          %s330 = smul.addr %s327, 2
          %s331 = sadd.s32 %s329, %s330
          %s332 = smul.addr %s331, 8
          %s333 = scalar_lea.vmem %s1, %s332
          %s334 = smul.u32 2, %s30
        $region24: #{decoder_train_forward.9} parent=19 // pred_fallthru
          _
        // Predicated region
        $region25: #{decoder_train_forward.9} parent=19 // pred_check
          %p335 = pneg %p112
        $region26: #{decoder_train_forward.9} parent=19 // pred_check_branch
          %337 = sbr.rel (%p335) target = $region28
        $region27: #{decoder_train_forward.9} parent=19 // pred_region
          %s338 = smul.u32 2, %s30
          %p339 = scmp.lt.s32.totalorder %s29, 1
          %s340 = scalar_select %p339, %s29, 1
          %p341 = scmp.lt.s32.totalorder %s338, 1
          %s342 = scalar_select %p341, %s338, 1
          %s343 = smul.addr %s340, 2
          %s344 = sadd.s32 %s342, %s343
          %s345 = smul.addr %s344, 8
          %s346 = scalar_lea.vmem %s2, %s345
          %s347 = smul.u32 2, %s30
        $region28: #{decoder_train_forward.9} parent=19 // pred_fallthru
          _
        // Predicated region
        $region29: #{decoder_train_forward.9} parent=19 // pred_check
          %p348 = pneg %p140
        $region30: #{decoder_train_forward.9} parent=19 // pred_check_branch
          %350 = sbr.rel (%p348) target = $region32
        $region31: #{decoder_train_forward.9} parent=19 // pred_region
          %p351 = scmp.lt.s32.totalorder %s29, 1
          %s352 = scalar_select %p351, %s29, 1
          %p353 = scmp.lt.s32.totalorder %s31, 0
          %s354 = scalar_select %p353, %s31, 0
          %s355 = smul.addr %s352, 4
          %s356 = sadd.s32 %s354, %s355
          %s357 = smul.addr %s356, 8
          %s358 = scalar_lea.vmem %s3, %s357
        $region32: #{decoder_train_forward.9} parent=19 // pred_fallthru
          _
        // Predicated region
        $region33: #{decoder_train_forward.9} parent=19 // pred_check
          %p359 = pneg %p168
        $region34: #{decoder_train_forward.9} parent=19 // pred_check_branch
          %361 = sbr.rel (%p359) target = $region36
        $region35: #{decoder_train_forward.9} parent=19 // pred_region
          %p362 = scmp.lt.s32.totalorder %s29, 1
          %s363 = scalar_select %p362, %s29, 1
          %p364 = scmp.lt.s32.totalorder %s31, 0
          %s365 = scalar_select %p364, %s31, 0
          %s366 = smul.addr %s363, 4
          %s367 = sadd.s32 %s365, %s366
          %s368 = smul.addr %s367, 8
          %s369 = scalar_lea.vmem %s4, %s368
        $region36: #{decoder_train_forward.9} parent=19 // pred_fallthru
          _
        // Predicated region
        $region37: #{decoder_train_forward.9} parent=19 // pred_check
          %p370 = pneg %p196
        $region38: #{decoder_train_forward.9} parent=19 // pred_check_branch
          %372 = sbr.rel (%p370) target = $region40
        $region39: #{decoder_train_forward.9} parent=19 // pred_region
          %s373 = smul.u32 2, %s30
          %p374 = scmp.lt.s32.totalorder %s29, 1
          %s375 = scalar_select %p374, %s29, 1
          %p376 = scmp.lt.s32.totalorder %s373, 1
          %s377 = scalar_select %p376, %s373, 1
          %s378 = smul.addr %s375, 2
          %s379 = sadd.s32 %s377, %s378
          %s380 = smul.addr %s379, 8
          %s381 = scalar_lea.vmem %s5, %s380
          %s382 = smul.u32 2, %s30
        $region40: #{decoder_train_forward.9} parent=19 // pred_fallthru
          _
        // Predicated region
        $region41: #{decoder_train_forward.9} parent=19 // pred_check
          %p383 = pneg %p224
        $region42: #{decoder_train_forward.9} parent=19 // pred_check_branch
          %385 = sbr.rel (%p383) target = $region44
        $region43: #{decoder_train_forward.9} parent=19 // pred_region
          %p386 = scmp.lt.s32.totalorder %s29, 1
          %s387 = scalar_select %p386, %s29, 1
          %p388 = scmp.lt.s32.totalorder %s31, 0
          %s389 = scalar_select %p388, %s31, 0
          %s390 = sadd.s32 %s389, %s387
          %s391 = smul.addr %s390, 8
          %s392 = scalar_lea.vmem %s6, %s391
        $region44: #{decoder_train_forward.9} parent=19 // pred_fallthru
          _
      $region20: #{decoder_train_forward.9} parent=5 // pred_fallthru
        _
      %p393 = scmp.le.s32.totalorder 1, %s22
      %p394 = scmp.lt.s32.totalorder %s22, 3
      %p395 = pnand %p393, %p394
      %p396 = pneg %p395
      // Predicated region
      $region45: #{decoder_train_forward.9} parent=5 // pred_check
        _
      $region46: #{decoder_train_forward.9} parent=5 // pred_check_branch
        %398 = sbr.rel (%p395) target = $region48
      $region47: #{decoder_train_forward.9} parent=5 // pred_region
        %s399 = ssub.s32 %s22, 1
        // Predicated region
        $region49: #{decoder_train_forward.9} parent=47 // pred_check
          %p400 = pneg %p62
        $region50: #{decoder_train_forward.9} parent=47 // pred_check_branch
          %402 = sbr.rel (%p400) target = $region52
        $region51: #{decoder_train_forward.9} parent=47 // pred_region
          %403 = dma.done [#allocation4], 640
        $region52: #{decoder_train_forward.9} parent=47 // pred_fallthru
          _
        %404 = sfence
        %p405 = pneg %p62
        %p406 = pneg %p59
        %s407 = smul.u32 2, %s33
        %p408 = scmp.lt.s32.totalorder %s32, 1
        %s409 = scalar_select %p408, %s32, 1
        %p410 = scmp.lt.s32.totalorder %s407, 1
        %s411 = scalar_select %p410, %s407, 1
        %s412 = smul.addr %s409, 2
        %s413 = sadd.s32 %s411, %s412
        %s414 = smul.addr %s413, 8
        %s415 = scalar_lea.vmem %s1, %s414
        %p416 = pneg %p90
        %p417 = pneg %p87
        %s418 = smul.u32 2, %s33
        %p419 = scmp.lt.s32.totalorder %s32, 1
        %s420 = scalar_select %p419, %s32, 1
        %p421 = scmp.lt.s32.totalorder %s418, 1
        %s422 = scalar_select %p421, %s418, 1
        %s423 = smul.addr %s420, 2
        %s424 = sadd.s32 %s422, %s423
        %s425 = smul.addr %s424, 8
        %s426 = scalar_lea.vmem %s2, %s425
        %p427 = pneg %p118
        %p428 = pneg %p115
        %p429 = scmp.lt.s32.totalorder %s32, 1
        %s430 = scalar_select %p429, %s32, 1
        %p431 = scmp.lt.s32.totalorder %s34, 0
        %s432 = scalar_select %p431, %s34, 0
        %s433 = smul.addr %s430, 4
        %s434 = sadd.s32 %s432, %s433
        %s435 = smul.addr %s434, 8
        %s436 = scalar_lea.vmem %s3, %s435
        %p437 = pneg %p146
        %p438 = pneg %p143
        %p439 = scmp.lt.s32.totalorder %s32, 1
        %s440 = scalar_select %p439, %s32, 1
        %p441 = scmp.lt.s32.totalorder %s34, 0
        %s442 = scalar_select %p441, %s34, 0
        %s443 = smul.addr %s440, 4
        %s444 = sadd.s32 %s442, %s443
        %s445 = smul.addr %s444, 8
        %s446 = scalar_lea.vmem %s4, %s445
        %p447 = pneg %p174
        %p448 = pneg %p171
        %s449 = smul.u32 2, %s33
        %p450 = scmp.lt.s32.totalorder %s32, 1
        %s451 = scalar_select %p450, %s32, 1
        %p452 = scmp.lt.s32.totalorder %s449, 1
        %s453 = scalar_select %p452, %s449, 1
        %s454 = smul.addr %s451, 2
        %s455 = sadd.s32 %s453, %s454
        %s456 = smul.addr %s455, 8
        %s457 = scalar_lea.vmem %s5, %s456
        %p458 = pneg %p202
        %p459 = pneg %p199
        %p460 = scmp.lt.s32.totalorder %s32, 1
        %s461 = scalar_select %p460, %s32, 1
        %p462 = scmp.lt.s32.totalorder %s34, 0
        %s463 = scalar_select %p462, %s34, 0
        %s464 = sadd.s32 %s463, %s461
        %s465 = smul.addr %s464, 8
        %s466 = scalar_lea.vmem %s6, %s465
        %p467 = pneg %p230
        %p468 = pneg %p227
        %p469 = pneg %p260
        %p470 = pneg %p257
        %s471 = sand.u32 %s247, 1
        %s472 = scalar_lea.sflag [#allocation3], %s471
        %s473 = sand.u32 %s247, 1
        %s474 = smul.addr %s473, 48
        %s475 = scalar_lea.vmem [#allocation5], %s474
        %p476 = pneg %p290
        %p477 = pneg %p287
        %s478 = sand.u32 %s277, 1
        %s479 = scalar_lea.sflag [#allocation7], %s478
        %s480 = sand.u32 %s277, 1
        %s481 = smul.addr %s480, 48
        %s482 = scalar_lea.vmem [#allocation6], %s481
        %s483 = smul.u32 2, %s33
        %p484 = scmp.lt.s32.totalorder %s32, 1
        %s485 = scalar_select %p484, %s32, 1
        %p486 = scmp.lt.s32.totalorder %s483, 1
        %s487 = scalar_select %p486, %s483, 1
        %s488 = smul.addr %s485, 2
        %s489 = sadd.s32 %s487, %s488
        %s490 = smul.addr %s489, 8
        %s491 = scalar_lea.vmem %s1, %s490
        %s492 = smul.u32 2, %s33
        %s493 = smul.u32 2, %s33
        %p494 = scmp.lt.s32.totalorder %s32, 1
        %s495 = scalar_select %p494, %s32, 1
        %p496 = scmp.lt.s32.totalorder %s493, 1
        %s497 = scalar_select %p496, %s493, 1
        %s498 = smul.addr %s495, 2
        %s499 = sadd.s32 %s497, %s498
        %s500 = smul.addr %s499, 8
        %s501 = scalar_lea.vmem %s2, %s500
        %s502 = smul.u32 2, %s33
        %p503 = scmp.lt.s32.totalorder %s32, 1
        %s504 = scalar_select %p503, %s32, 1
        %p505 = scmp.lt.s32.totalorder %s34, 0
        %s506 = scalar_select %p505, %s34, 0
        %s507 = smul.addr %s504, 4
        %s508 = sadd.s32 %s506, %s507
        %s509 = smul.addr %s508, 8
        %s510 = scalar_lea.vmem %s3, %s509
        %p511 = scmp.lt.s32.totalorder %s32, 1
        %s512 = scalar_select %p511, %s32, 1
        %p513 = scmp.lt.s32.totalorder %s34, 0
        %s514 = scalar_select %p513, %s34, 0
        %s515 = smul.addr %s512, 4
        %s516 = sadd.s32 %s514, %s515
        %s517 = smul.addr %s516, 8
        %s518 = scalar_lea.vmem %s4, %s517
        %s519 = smul.u32 2, %s33
        %p520 = scmp.lt.s32.totalorder %s32, 1
        %s521 = scalar_select %p520, %s32, 1
        %p522 = scmp.lt.s32.totalorder %s519, 1
        %s523 = scalar_select %p522, %s519, 1
        %s524 = smul.addr %s521, 2
        %s525 = sadd.s32 %s523, %s524
        %s526 = smul.addr %s525, 8
        %s527 = scalar_lea.vmem %s5, %s526
        %s528 = smul.u32 2, %s33
        %p529 = scmp.lt.s32.totalorder %s32, 1
        %s530 = scalar_select %p529, %s32, 1
        %p531 = scmp.lt.s32.totalorder %s34, 0
        %s532 = scalar_select %p531, %s34, 0
        %s533 = sadd.s32 %s532, %s530
        %s534 = smul.addr %s533, 8
        %s535 = scalar_lea.vmem %s6, %s534
        %s536 = smul.u32 2, %s33
        %s537 = smul.u32 2, %s33
        %v538 = vld [vmem:[%s491] sm:$0xff]
        %v539 = vld [vmem:[%s491 + $0x8] sm:$0xff]
        %v540 = vld [vmem:[%s501] sm:$0xff]
        %v541 = vld [vmem:[%s501 + $0x8] sm:$0xff]
        %v542 = vld [vmem:[%s510] sm:$0xff]
        %v543 = vld [vmem:[%s510 + $0x8] sm:$0xff]
        %v544 = vld [vmem:[%s510 + $0x10] sm:$0xff]
        %v545 = vld [vmem:[%s510 + $0x18] sm:$0xff]
        %v546 = vld [vmem:[%s518] sm:$0xff]
        %v547 = vld [vmem:[%s518 + $0x8] sm:$0xff]
        %v548 = vld [vmem:[%s518 + $0x10] sm:$0xff]
        %v549 = vld [vmem:[%s518 + $0x18] sm:$0xff]
        %v550 = vld [vmem:[%s527] sm:$0xff]
        %v551 = vld [vmem:[%s527 + $0x8] sm:$0xff]
        %v552 = vld [vmem:[%s535] sm:$0xff]
        %v553 = vlaneseq
        %v554 = vshrl.u32 %v553, 7
        %v555 = vsub.s32 0, %v554
        %v556 = vrot.slane %v552, %v555
        %558 = vset.pattern.permute.xlu0 0
        %559 = vperm.xlu0 %558, %v550
        %v560 = vpop.permute.xlu0 %559
        %563 = vset.pattern.permute.xlu0 0
        %564 = vperm.xlu0 %563, %v551
        %v565 = vpop.permute.xlu0 %564
        %v567 = vsub.f32 %v556, %v560
        %v568 = vsub.f32 %v556, %v565
        %v569 = vlaneseq
        %v570 = vshrl.u32 %v569, 7
        %v571 = vsub.s32 1, %v570
        %v572 = vrot.slane %v552, %v571
        %573 = vset.pattern.permute.xlu0 1
        %574 = vperm.xlu0 %573, %v550
        %v575 = vpop.permute.xlu0 %574
        %577 = vset.pattern.permute.xlu0 1
        %578 = vperm.xlu0 %577, %v551
        %v579 = vpop.permute.xlu0 %578
        %v581 = vsub.f32 %v572, %v575
        %v582 = vsub.f32 %v572, %v579
        %v583 = vlaneseq
        %v584 = vshrl.u32 %v583, 7
        %v585 = vsub.s32 2, %v584
        %v586 = vrot.slane %v552, %v585
        %587 = vset.pattern.permute.xlu0 2
        %588 = vperm.xlu0 %587, %v550
        %v589 = vpop.permute.xlu0 %588
        %591 = vset.pattern.permute.xlu0 2
        %592 = vperm.xlu0 %591, %v551
        %v593 = vpop.permute.xlu0 %592
        %v595 = vsub.f32 %v586, %v589
        %v596 = vsub.f32 %v586, %v593
        %v597 = vlaneseq
        %v598 = vshrl.u32 %v597, 7
        %v599 = vsub.s32 3, %v598
        %v600 = vrot.slane %v552, %v599
        %601 = vset.pattern.permute.xlu0 3
        %602 = vperm.xlu0 %601, %v550
        %v603 = vpop.permute.xlu0 %602
        %605 = vset.pattern.permute.xlu0 3
        %606 = vperm.xlu0 %605, %v551
        %v607 = vpop.permute.xlu0 %606
        %v609 = vsub.f32 %v600, %v603
        %v610 = vsub.f32 %v600, %v607
        %v611 = vlaneseq
        %v612 = vshrl.u32 %v611, 7
        %v613 = vsub.s32 4, %v612
        %v614 = vrot.slane %v552, %v613
        %615 = vset.pattern.permute.xlu0 4
        %616 = vperm.xlu0 %615, %v550
        %v617 = vpop.permute.xlu0 %616
        %619 = vset.pattern.permute.xlu0 4
        %620 = vperm.xlu0 %619, %v551
        %v621 = vpop.permute.xlu0 %620
        %v623 = vsub.f32 %v614, %v617
        %v624 = vsub.f32 %v614, %v621
        %v625 = vlaneseq
        %v626 = vshrl.u32 %v625, 7
        %v627 = vsub.s32 5, %v626
        %v628 = vrot.slane %v552, %v627
        %629 = vset.pattern.permute.xlu0 5
        %630 = vperm.xlu0 %629, %v550
        %v631 = vpop.permute.xlu0 %630
        %633 = vset.pattern.permute.xlu0 5
        %634 = vperm.xlu0 %633, %v551
        %v635 = vpop.permute.xlu0 %634
        %v637 = vsub.f32 %v628, %v631
        %v638 = vsub.f32 %v628, %v635
        %v639 = vmul.f32 %v567, %v567
        %v640 = vmul.f32 %v568, %v568
        %v641 = vmul.f32 %v581, %v581
        %v642 = vmul.f32 %v582, %v582
        %v643 = vadd.f32 %v639, %v641
        %v644 = vadd.f32 %v640, %v642
        %v645 = vmul.f32 %v595, %v595
        %v646 = vmul.f32 %v596, %v596
        %v647 = vadd.f32 %v643, %v645
        %v648 = vadd.f32 %v644, %v646
        %vm649 = vcmp.le.f32.partialorder %v647, 1.0
        %vm650 = vcmp.le.f32.partialorder %v648, 1.0
        %vm651 = vcmp.gt.f32.partialorder %v550, 0.5
        %vm652 = vcmp.gt.f32.partialorder %v551, 0.5
        %v653 = vsel %vm651, 1, 0
        %v654 = vsel %vm652, 1, 0
        %655 = vset.pattern.permute.xlu0 6
        %656 = vperm.xlu0 %655, %v653
        %v657 = vpop.permute.xlu0 %656
        %658 = vset.pattern.permute.xlu0 6
        %659 = vperm.xlu0 %658, %v654
        %v660 = vpop.permute.xlu0 %659
        %vm661 = vcmp.eq.s32.totalorder %v657, 1
        %vm662 = vcmp.eq.s32.totalorder %v660, 1
        %vm663 = vmand %vm649, %vm661
        %vm664 = vmand %vm650, %vm662
        %vm665 = vcmp.gt.f32.partialorder %v552, 0.5
        %v666 = vsel %vm665, 1, 0
        %v667 = vlaneseq
        %v668 = vshrl.u32 %v667, 7
        %v669 = vsub.s32 6, %v668
        %v670 = vrot.slane %v666, %v669
        %vm671 = vcmp.eq.s32.totalorder %v670, 1
        %vm672 = vmand %vm663, %vm671
        %vm673 = vmand %vm664, %vm671
        %675 = vset.pattern.permute.xlu0 0
        %676 = vperm.xlu0 %675, %v538
        %v677 = vpop.permute.xlu0 %676
        %680 = vset.pattern.permute.xlu0 0
        %681 = vperm.xlu0 %680, %v539
        %v682 = vpop.permute.xlu0 %681
        %v684 = vlaneseq
        %v685 = vshrl.u32 %v684, 7
        %v686 = vsub.s32 0, %v685
        %v687 = vrot.slane %v546, %v686
        %v688 = vadd.f32 %v677, %v687
        %v689 = vadd.f32 %v682, %v687
        %v690 = vmax.f32 %v688, 0.0
        %v691 = vmax.f32 %v689, 0.0
        %693 = vset.pattern.permute.xlu0 0
        %694 = vperm.xlu0 %693, %v540
        %v695 = vpop.permute.xlu0 %694
        %698 = vset.pattern.permute.xlu0 0
        %699 = vperm.xlu0 %698, %v541
        %v700 = vpop.permute.xlu0 %699
        %v702 = vlaneseq
        %v703 = vshrl.u32 %v702, 7
        %v704 = vsub.s32 0, %v703
        %v705 = vrot.slane %v542, %v704
        %v706 = vadd.f32 %v695, %v705
        %v707 = vadd.f32 %v700, %v705
        %v708 = vmax.f32 %v706, 0.0
        %v709 = vmax.f32 %v707, 0.0
        %s710 = sld [smem:[#allocation2]]
        %v711 = vstv %s710
        %v712 = vmul.f32 %v690, %v711
        %v713 = vmul.f32 %v691, %v711
        %v714 = vadd.f32 %v712, 0.0
        %v715 = vadd.f32 %v713, 0.0
        %v716 = vmul.f32 %v708, %v711
        %v717 = vmul.f32 %v709, %v711
        %v718 = vadd.f32 %v716, 0.0
        %v719 = vadd.f32 %v717, 0.0
        %s720 = sld [smem:[#allocation2 + $0x1]]
        %v721 = vstv %s720
        %v722 = vmul.f32 %v690, %v721
        %v723 = vmul.f32 %v691, %v721
        %v724 = vadd.f32 %v722, 0.0
        %v725 = vadd.f32 %v723, 0.0
        %v726 = vmul.f32 %v708, %v721
        %v727 = vmul.f32 %v709, %v721
        %v728 = vadd.f32 %v726, 0.0
        %v729 = vadd.f32 %v727, 0.0
        %s730 = sld [smem:[#allocation2 + $0x2]]
        %v731 = vstv %s730
        %v732 = vmul.f32 %v690, %v731
        %v733 = vmul.f32 %v691, %v731
        %v734 = vadd.f32 %v732, 0.0
        %v735 = vadd.f32 %v733, 0.0
        %v736 = vmul.f32 %v708, %v731
        %v737 = vmul.f32 %v709, %v731
        %v738 = vadd.f32 %v736, 0.0
        %v739 = vadd.f32 %v737, 0.0
        %740 = vset.pattern.permute.xlu0 1
        %741 = vperm.xlu0 %740, %v538
        %v742 = vpop.permute.xlu0 %741
        %744 = vset.pattern.permute.xlu0 1
        %745 = vperm.xlu0 %744, %v539
        %v746 = vpop.permute.xlu0 %745
        %v748 = vlaneseq
        %v749 = vshrl.u32 %v748, 7
        %v750 = vsub.s32 1, %v749
        %v751 = vrot.slane %v546, %v750
        %v752 = vadd.f32 %v742, %v751
        %v753 = vadd.f32 %v746, %v751
        %v754 = vmax.f32 %v752, 0.0
        %v755 = vmax.f32 %v753, 0.0
        %756 = vset.pattern.permute.xlu0 1
        %757 = vperm.xlu0 %756, %v540
        %v758 = vpop.permute.xlu0 %757
        %760 = vset.pattern.permute.xlu0 1
        %761 = vperm.xlu0 %760, %v541
        %v762 = vpop.permute.xlu0 %761
        %v764 = vlaneseq
        %v765 = vshrl.u32 %v764, 7
        %v766 = vsub.s32 1, %v765
        %v767 = vrot.slane %v542, %v766
        %v768 = vadd.f32 %v758, %v767
        %v769 = vadd.f32 %v762, %v767
        %v770 = vmax.f32 %v768, 0.0
        %v771 = vmax.f32 %v769, 0.0
        %s772 = sld [smem:[#allocation2 + $0x80]]
        %v773 = vstv %s772
        %v774 = vmul.f32 %v754, %v773
        %v775 = vmul.f32 %v755, %v773
        %v776 = vadd.f32 %v714, %v774
        %v777 = vadd.f32 %v715, %v775
        %v778 = vmul.f32 %v770, %v773
        %v779 = vmul.f32 %v771, %v773
        %v780 = vadd.f32 %v718, %v778
        %v781 = vadd.f32 %v719, %v779
        %s782 = sld [smem:[#allocation2 + $0x81]]
        %v783 = vstv %s782
        %v784 = vmul.f32 %v754, %v783
        %v785 = vmul.f32 %v755, %v783
        %v786 = vadd.f32 %v724, %v784
        %v787 = vadd.f32 %v725, %v785
        %v788 = vmul.f32 %v770, %v783
        %v789 = vmul.f32 %v771, %v783
        %v790 = vadd.f32 %v728, %v788
        %v791 = vadd.f32 %v729, %v789
        %s792 = sld [smem:[#allocation2 + $0x82]]
        %v793 = vstv %s792
        %v794 = vmul.f32 %v754, %v793
        %v795 = vmul.f32 %v755, %v793
        %v796 = vadd.f32 %v734, %v794
        %v797 = vadd.f32 %v735, %v795
        %v798 = vmul.f32 %v770, %v793
        %v799 = vmul.f32 %v771, %v793
        %v800 = vadd.f32 %v738, %v798
        %v801 = vadd.f32 %v739, %v799
        %802 = vset.pattern.permute.xlu0 2
        %803 = vperm.xlu0 %802, %v538
        %v804 = vpop.permute.xlu0 %803
        %806 = vset.pattern.permute.xlu0 2
        %807 = vperm.xlu0 %806, %v539
        %v808 = vpop.permute.xlu0 %807
        %v810 = vlaneseq
        %v811 = vshrl.u32 %v810, 7
        %v812 = vsub.s32 2, %v811
        %v813 = vrot.slane %v546, %v812
        %v814 = vadd.f32 %v804, %v813
        %v815 = vadd.f32 %v808, %v813
        %v816 = vmax.f32 %v814, 0.0
        %v817 = vmax.f32 %v815, 0.0
        %818 = vset.pattern.permute.xlu0 2
        %819 = vperm.xlu0 %818, %v540
        %v820 = vpop.permute.xlu0 %819
        %822 = vset.pattern.permute.xlu0 2
        %823 = vperm.xlu0 %822, %v541
        %v824 = vpop.permute.xlu0 %823
        %v826 = vlaneseq
        %v827 = vshrl.u32 %v826, 7
        %v828 = vsub.s32 2, %v827
        %v829 = vrot.slane %v542, %v828
        %v830 = vadd.f32 %v820, %v829
        %v831 = vadd.f32 %v824, %v829
        %v832 = vmax.f32 %v830, 0.0
        %v833 = vmax.f32 %v831, 0.0
        %s834 = sld [smem:[#allocation2 + $0x100]]
        %v835 = vstv %s834
        %v836 = vmul.f32 %v816, %v835
        %v837 = vmul.f32 %v817, %v835
        %v838 = vadd.f32 %v776, %v836
        %v839 = vadd.f32 %v777, %v837
        %v840 = vmul.f32 %v832, %v835
        %v841 = vmul.f32 %v833, %v835
        %v842 = vadd.f32 %v780, %v840
        %v843 = vadd.f32 %v781, %v841
        %s844 = sld [smem:[#allocation2 + $0x101]]
        %v845 = vstv %s844
        %v846 = vmul.f32 %v816, %v845
        %v847 = vmul.f32 %v817, %v845
        %v848 = vadd.f32 %v786, %v846
        %v849 = vadd.f32 %v787, %v847
        %v850 = vmul.f32 %v832, %v845
        %v851 = vmul.f32 %v833, %v845
        %v852 = vadd.f32 %v790, %v850
        %v853 = vadd.f32 %v791, %v851
        %s854 = sld [smem:[#allocation2 + $0x102]]
        %v855 = vstv %s854
        %v856 = vmul.f32 %v816, %v855
        %v857 = vmul.f32 %v817, %v855
        %v858 = vadd.f32 %v796, %v856
        %v859 = vadd.f32 %v797, %v857
        %v860 = vmul.f32 %v832, %v855
        %v861 = vmul.f32 %v833, %v855
        %v862 = vadd.f32 %v800, %v860
        %v863 = vadd.f32 %v801, %v861
        %864 = vset.pattern.permute.xlu0 3
        %865 = vperm.xlu0 %864, %v538
        %v866 = vpop.permute.xlu0 %865
        %868 = vset.pattern.permute.xlu0 3
        %869 = vperm.xlu0 %868, %v539
        %v870 = vpop.permute.xlu0 %869
        %v872 = vlaneseq
        %v873 = vshrl.u32 %v872, 7
        %v874 = vsub.s32 3, %v873
        %v875 = vrot.slane %v546, %v874
        %v876 = vadd.f32 %v866, %v875
        %v877 = vadd.f32 %v870, %v875
        %v878 = vmax.f32 %v876, 0.0
        %v879 = vmax.f32 %v877, 0.0
        %880 = vset.pattern.permute.xlu0 3
        %881 = vperm.xlu0 %880, %v540
        %v882 = vpop.permute.xlu0 %881
        %884 = vset.pattern.permute.xlu0 3
        %885 = vperm.xlu0 %884, %v541
        %v886 = vpop.permute.xlu0 %885
        %v888 = vlaneseq
        %v889 = vshrl.u32 %v888, 7
        %v890 = vsub.s32 3, %v889
        %v891 = vrot.slane %v542, %v890
        %v892 = vadd.f32 %v882, %v891
        %v893 = vadd.f32 %v886, %v891
        %v894 = vmax.f32 %v892, 0.0
        %v895 = vmax.f32 %v893, 0.0
        %s896 = sld [smem:[#allocation2 + $0x180]]
        %v897 = vstv %s896
        %v898 = vmul.f32 %v878, %v897
        %v899 = vmul.f32 %v879, %v897
        %v900 = vadd.f32 %v838, %v898
        %v901 = vadd.f32 %v839, %v899
        %v902 = vmul.f32 %v894, %v897
        %v903 = vmul.f32 %v895, %v897
        %v904 = vadd.f32 %v842, %v902
        %v905 = vadd.f32 %v843, %v903
        %s906 = sld [smem:[#allocation2 + $0x181]]
        %v907 = vstv %s906
        %v908 = vmul.f32 %v878, %v907
        %v909 = vmul.f32 %v879, %v907
        %v910 = vadd.f32 %v848, %v908
        %v911 = vadd.f32 %v849, %v909
        %v912 = vmul.f32 %v894, %v907
        %v913 = vmul.f32 %v895, %v907
        %v914 = vadd.f32 %v852, %v912
        %v915 = vadd.f32 %v853, %v913
        %s916 = sld [smem:[#allocation2 + $0x182]]
        %v917 = vstv %s916
        %v918 = vmul.f32 %v878, %v917
        %v919 = vmul.f32 %v879, %v917
        %v920 = vadd.f32 %v858, %v918
        %v921 = vadd.f32 %v859, %v919
        %v922 = vmul.f32 %v894, %v917
        %v923 = vmul.f32 %v895, %v917
        %v924 = vadd.f32 %v862, %v922
        %v925 = vadd.f32 %v863, %v923
        %926 = vset.pattern.permute.xlu0 4
        %927 = vperm.xlu0 %926, %v538
        %v928 = vpop.permute.xlu0 %927
        %930 = vset.pattern.permute.xlu0 4
        %931 = vperm.xlu0 %930, %v539
        %v932 = vpop.permute.xlu0 %931
        %v934 = vlaneseq
        %v935 = vshrl.u32 %v934, 7
        %v936 = vsub.s32 4, %v935
        %v937 = vrot.slane %v546, %v936
        %v938 = vadd.f32 %v928, %v937
        %v939 = vadd.f32 %v932, %v937
        %v940 = vmax.f32 %v938, 0.0
        %v941 = vmax.f32 %v939, 0.0
        %942 = vset.pattern.permute.xlu0 4
        %943 = vperm.xlu0 %942, %v540
        %v944 = vpop.permute.xlu0 %943
        %946 = vset.pattern.permute.xlu0 4
        %947 = vperm.xlu0 %946, %v541
        %v948 = vpop.permute.xlu0 %947
        %v950 = vlaneseq
        %v951 = vshrl.u32 %v950, 7
        %v952 = vsub.s32 4, %v951
        %v953 = vrot.slane %v542, %v952
        %v954 = vadd.f32 %v944, %v953
        %v955 = vadd.f32 %v948, %v953
        %v956 = vmax.f32 %v954, 0.0
        %v957 = vmax.f32 %v955, 0.0
        %s958 = sld [smem:[#allocation2 + $0x200]]
        %v959 = vstv %s958
        %v960 = vmul.f32 %v940, %v959
        %v961 = vmul.f32 %v941, %v959
        %v962 = vadd.f32 %v900, %v960
        %v963 = vadd.f32 %v901, %v961
        %v964 = vmul.f32 %v956, %v959
        %v965 = vmul.f32 %v957, %v959
        %v966 = vadd.f32 %v904, %v964
        %v967 = vadd.f32 %v905, %v965
        %s968 = sld [smem:[#allocation2 + $0x201]]
        %v969 = vstv %s968
        %v970 = vmul.f32 %v940, %v969
        %v971 = vmul.f32 %v941, %v969
        %v972 = vadd.f32 %v910, %v970
        %v973 = vadd.f32 %v911, %v971
        %v974 = vmul.f32 %v956, %v969
        %v975 = vmul.f32 %v957, %v969
        %v976 = vadd.f32 %v914, %v974
        %v977 = vadd.f32 %v915, %v975
        %s978 = sld [smem:[#allocation2 + $0x202]]
        %v979 = vstv %s978
        %v980 = vmul.f32 %v940, %v979
        %v981 = vmul.f32 %v941, %v979
        %v982 = vadd.f32 %v920, %v980
        %v983 = vadd.f32 %v921, %v981
        %v984 = vmul.f32 %v956, %v979
        %v985 = vmul.f32 %v957, %v979
        %v986 = vadd.f32 %v924, %v984
        %v987 = vadd.f32 %v925, %v985
        %988 = vset.pattern.permute.xlu0 5
        %989 = vperm.xlu0 %988, %v538
        %v990 = vpop.permute.xlu0 %989
        %992 = vset.pattern.permute.xlu0 5
        %993 = vperm.xlu0 %992, %v539
        %v994 = vpop.permute.xlu0 %993
        %v996 = vlaneseq
        %v997 = vshrl.u32 %v996, 7
        %v998 = vsub.s32 5, %v997
        %v999 = vrot.slane %v546, %v998
        %v1000 = vadd.f32 %v990, %v999
        %v1001 = vadd.f32 %v994, %v999
        %v1002 = vmax.f32 %v1000, 0.0
        %v1003 = vmax.f32 %v1001, 0.0
        %1004 = vset.pattern.permute.xlu0 5
        %1005 = vperm.xlu0 %1004, %v540
        %v1006 = vpop.permute.xlu0 %1005
        %1008 = vset.pattern.permute.xlu0 5
        %1009 = vperm.xlu0 %1008, %v541
        %v1010 = vpop.permute.xlu0 %1009
        %v1012 = vlaneseq
        %v1013 = vshrl.u32 %v1012, 7
        %v1014 = vsub.s32 5, %v1013
        %v1015 = vrot.slane %v542, %v1014
        %v1016 = vadd.f32 %v1006, %v1015
        %v1017 = vadd.f32 %v1010, %v1015
        %v1018 = vmax.f32 %v1016, 0.0
        %v1019 = vmax.f32 %v1017, 0.0
        %s1020 = sld [smem:[#allocation2 + $0x280]]
        %v1021 = vstv %s1020
        %v1022 = vmul.f32 %v1002, %v1021
        %v1023 = vmul.f32 %v1003, %v1021
        %v1024 = vadd.f32 %v962, %v1022
        %v1025 = vadd.f32 %v963, %v1023
        %v1026 = vmul.f32 %v1018, %v1021
        %v1027 = vmul.f32 %v1019, %v1021
        %v1028 = vadd.f32 %v966, %v1026
        %v1029 = vadd.f32 %v967, %v1027
        %s1030 = sld [smem:[#allocation2 + $0x281]]
        %v1031 = vstv %s1030
        %v1032 = vmul.f32 %v1002, %v1031
        %v1033 = vmul.f32 %v1003, %v1031
        %v1034 = vadd.f32 %v972, %v1032
        %v1035 = vadd.f32 %v973, %v1033
        %v1036 = vmul.f32 %v1018, %v1031
        %v1037 = vmul.f32 %v1019, %v1031
        %v1038 = vadd.f32 %v976, %v1036
        %v1039 = vadd.f32 %v977, %v1037
        %s1040 = sld [smem:[#allocation2 + $0x282]]
        %v1041 = vstv %s1040
        %v1042 = vmul.f32 %v1002, %v1041
        %v1043 = vmul.f32 %v1003, %v1041
        %v1044 = vadd.f32 %v982, %v1042
        %v1045 = vadd.f32 %v983, %v1043
        %v1046 = vmul.f32 %v1018, %v1041
        %v1047 = vmul.f32 %v1019, %v1041
        %v1048 = vadd.f32 %v986, %v1046
        %v1049 = vadd.f32 %v987, %v1047
        %1050 = vset.pattern.permute.xlu0 6
        %1051 = vperm.xlu0 %1050, %v538
        %v1052 = vpop.permute.xlu0 %1051
        %1054 = vset.pattern.permute.xlu0 6
        %1055 = vperm.xlu0 %1054, %v539
        %v1056 = vpop.permute.xlu0 %1055
        %v1058 = vlaneseq
        %v1059 = vshrl.u32 %v1058, 7
        %v1060 = vsub.s32 6, %v1059
        %v1061 = vrot.slane %v546, %v1060
        %v1062 = vadd.f32 %v1052, %v1061
        %v1063 = vadd.f32 %v1056, %v1061
        %v1064 = vmax.f32 %v1062, 0.0
        %v1065 = vmax.f32 %v1063, 0.0
        %1066 = vset.pattern.permute.xlu0 6
        %1067 = vperm.xlu0 %1066, %v540
        %v1068 = vpop.permute.xlu0 %1067
        %1070 = vset.pattern.permute.xlu0 6
        %1071 = vperm.xlu0 %1070, %v541
        %v1072 = vpop.permute.xlu0 %1071
        %v1074 = vlaneseq
        %v1075 = vshrl.u32 %v1074, 7
        %v1076 = vsub.s32 6, %v1075
        %v1077 = vrot.slane %v542, %v1076
        %v1078 = vadd.f32 %v1068, %v1077
        %v1079 = vadd.f32 %v1072, %v1077
        %v1080 = vmax.f32 %v1078, 0.0
        %v1081 = vmax.f32 %v1079, 0.0
        %s1082 = sld [smem:[#allocation2 + $0x300]]
        %v1083 = vstv %s1082
        %v1084 = vmul.f32 %v1064, %v1083
        %v1085 = vmul.f32 %v1065, %v1083
        %v1086 = vadd.f32 %v1024, %v1084
        %v1087 = vadd.f32 %v1025, %v1085
        %v1088 = vmul.f32 %v1080, %v1083
        %v1089 = vmul.f32 %v1081, %v1083
        %v1090 = vadd.f32 %v1028, %v1088
        %v1091 = vadd.f32 %v1029, %v1089
        %s1092 = sld [smem:[#allocation2 + $0x301]]
        %v1093 = vstv %s1092
        %v1094 = vmul.f32 %v1064, %v1093
        %v1095 = vmul.f32 %v1065, %v1093
        %v1096 = vadd.f32 %v1034, %v1094
        %v1097 = vadd.f32 %v1035, %v1095
        %v1098 = vmul.f32 %v1080, %v1093
        %v1099 = vmul.f32 %v1081, %v1093
        %v1100 = vadd.f32 %v1038, %v1098
        %v1101 = vadd.f32 %v1039, %v1099
        %s1102 = sld [smem:[#allocation2 + $0x302]]
        %v1103 = vstv %s1102
        %v1104 = vmul.f32 %v1064, %v1103
        %v1105 = vmul.f32 %v1065, %v1103
        %v1106 = vadd.f32 %v1044, %v1104
        %v1107 = vadd.f32 %v1045, %v1105
        %v1108 = vmul.f32 %v1080, %v1103
        %v1109 = vmul.f32 %v1081, %v1103
        %v1110 = vadd.f32 %v1048, %v1108
        %v1111 = vadd.f32 %v1049, %v1109
        %1112 = vset.pattern.permute.xlu0 7
        %1113 = vperm.xlu0 %1112, %v538
        %v1114 = vpop.permute.xlu0 %1113
        %1116 = vset.pattern.permute.xlu0 7
        %1117 = vperm.xlu0 %1116, %v539
        %v1118 = vpop.permute.xlu0 %1117
        %v1120 = vlaneseq
        %v1121 = vshrl.u32 %v1120, 7
        %v1122 = vsub.s32 7, %v1121
        %v1123 = vrot.slane %v546, %v1122
        %v1124 = vadd.f32 %v1114, %v1123
        %v1125 = vadd.f32 %v1118, %v1123
        %v1126 = vmax.f32 %v1124, 0.0
        %v1127 = vmax.f32 %v1125, 0.0
        %1128 = vset.pattern.permute.xlu0 7
        %1129 = vperm.xlu0 %1128, %v540
        %v1130 = vpop.permute.xlu0 %1129
        %1132 = vset.pattern.permute.xlu0 7
        %1133 = vperm.xlu0 %1132, %v541
        %v1134 = vpop.permute.xlu0 %1133
        %v1136 = vlaneseq
        %v1137 = vshrl.u32 %v1136, 7
        %v1138 = vsub.s32 7, %v1137
        %v1139 = vrot.slane %v542, %v1138
        %v1140 = vadd.f32 %v1130, %v1139
        %v1141 = vadd.f32 %v1134, %v1139
        %v1142 = vmax.f32 %v1140, 0.0
        %v1143 = vmax.f32 %v1141, 0.0
        %s1144 = sld [smem:[#allocation2 + $0x380]]
        %v1145 = vstv %s1144
        %v1146 = vmul.f32 %v1126, %v1145
        %v1147 = vmul.f32 %v1127, %v1145
        %v1148 = vadd.f32 %v1086, %v1146
        %v1149 = vadd.f32 %v1087, %v1147
        %v1150 = vmul.f32 %v1142, %v1145
        %v1151 = vmul.f32 %v1143, %v1145
        %v1152 = vadd.f32 %v1090, %v1150
        %v1153 = vadd.f32 %v1091, %v1151
        %s1154 = sld [smem:[#allocation2 + $0x381]]
        %v1155 = vstv %s1154
        %v1156 = vmul.f32 %v1126, %v1155
        %v1157 = vmul.f32 %v1127, %v1155
        %v1158 = vadd.f32 %v1096, %v1156
        %v1159 = vadd.f32 %v1097, %v1157
        %v1160 = vmul.f32 %v1142, %v1155
        %v1161 = vmul.f32 %v1143, %v1155
        %v1162 = vadd.f32 %v1100, %v1160
        %v1163 = vadd.f32 %v1101, %v1161
        %s1164 = sld [smem:[#allocation2 + $0x382]]
        %v1165 = vstv %s1164
        %v1166 = vmul.f32 %v1126, %v1165
        %v1167 = vmul.f32 %v1127, %v1165
        %v1168 = vadd.f32 %v1106, %v1166
        %v1169 = vadd.f32 %v1107, %v1167
        %v1170 = vmul.f32 %v1142, %v1165
        %v1171 = vmul.f32 %v1143, %v1165
        %v1172 = vadd.f32 %v1110, %v1170
        %v1173 = vadd.f32 %v1111, %v1171
        %1174 = vset.pattern.permute.xlu0 8
        %1175 = vperm.xlu0 %1174, %v538
        %v1176 = vpop.permute.xlu0 %1175
        %1178 = vset.pattern.permute.xlu0 8
        %1179 = vperm.xlu0 %1178, %v539
        %v1180 = vpop.permute.xlu0 %1179
        %v1182 = vlaneseq
        %v1183 = vshrl.u32 %v1182, 7
        %v1184 = vsub.s32 0, %v1183
        %v1185 = vrot.slane %v547, %v1184
        %v1186 = vadd.f32 %v1176, %v1185
        %v1187 = vadd.f32 %v1180, %v1185
        %v1188 = vmax.f32 %v1186, 0.0
        %v1189 = vmax.f32 %v1187, 0.0
        %1190 = vset.pattern.permute.xlu0 8
        %1191 = vperm.xlu0 %1190, %v540
        %v1192 = vpop.permute.xlu0 %1191
        %1194 = vset.pattern.permute.xlu0 8
        %1195 = vperm.xlu0 %1194, %v541
        %v1196 = vpop.permute.xlu0 %1195
        %v1198 = vlaneseq
        %v1199 = vshrl.u32 %v1198, 7
        %v1200 = vsub.s32 0, %v1199
        %v1201 = vrot.slane %v543, %v1200
        %v1202 = vadd.f32 %v1192, %v1201
        %v1203 = vadd.f32 %v1196, %v1201
        %v1204 = vmax.f32 %v1202, 0.0
        %v1205 = vmax.f32 %v1203, 0.0
        %s1206 = sld [smem:[#allocation2 + $0x400]]
        %v1207 = vstv %s1206
        %v1208 = vmul.f32 %v1188, %v1207
        %v1209 = vmul.f32 %v1189, %v1207
        %v1210 = vadd.f32 %v1148, %v1208
        %v1211 = vadd.f32 %v1149, %v1209
        %v1212 = vmul.f32 %v1204, %v1207
        %v1213 = vmul.f32 %v1205, %v1207
        %v1214 = vadd.f32 %v1152, %v1212
        %v1215 = vadd.f32 %v1153, %v1213
        %s1216 = sld [smem:[#allocation2 + $0x401]]
        %v1217 = vstv %s1216
        %v1218 = vmul.f32 %v1188, %v1217
        %v1219 = vmul.f32 %v1189, %v1217
        %v1220 = vadd.f32 %v1158, %v1218
        %v1221 = vadd.f32 %v1159, %v1219
        %v1222 = vmul.f32 %v1204, %v1217
        %v1223 = vmul.f32 %v1205, %v1217
        %v1224 = vadd.f32 %v1162, %v1222
        %v1225 = vadd.f32 %v1163, %v1223
        %s1226 = sld [smem:[#allocation2 + $0x402]]
        %v1227 = vstv %s1226
        %v1228 = vmul.f32 %v1188, %v1227
        %v1229 = vmul.f32 %v1189, %v1227
        %v1230 = vadd.f32 %v1168, %v1228
        %v1231 = vadd.f32 %v1169, %v1229
        %v1232 = vmul.f32 %v1204, %v1227
        %v1233 = vmul.f32 %v1205, %v1227
        %v1234 = vadd.f32 %v1172, %v1232
        %v1235 = vadd.f32 %v1173, %v1233
        %1236 = vset.pattern.permute.xlu0 9
        %1237 = vperm.xlu0 %1236, %v538
        %v1238 = vpop.permute.xlu0 %1237
        %1240 = vset.pattern.permute.xlu0 9
        %1241 = vperm.xlu0 %1240, %v539
        %v1242 = vpop.permute.xlu0 %1241
        %v1244 = vlaneseq
        %v1245 = vshrl.u32 %v1244, 7
        %v1246 = vsub.s32 1, %v1245
        %v1247 = vrot.slane %v547, %v1246
        %v1248 = vadd.f32 %v1238, %v1247
        %v1249 = vadd.f32 %v1242, %v1247
        %v1250 = vmax.f32 %v1248, 0.0
        %v1251 = vmax.f32 %v1249, 0.0
        %1252 = vset.pattern.permute.xlu0 9
        %1253 = vperm.xlu0 %1252, %v540
        %v1254 = vpop.permute.xlu0 %1253
        %1256 = vset.pattern.permute.xlu0 9
        %1257 = vperm.xlu0 %1256, %v541
        %v1258 = vpop.permute.xlu0 %1257
        %v1260 = vlaneseq
        %v1261 = vshrl.u32 %v1260, 7
        %v1262 = vsub.s32 1, %v1261
        %v1263 = vrot.slane %v543, %v1262
        %v1264 = vadd.f32 %v1254, %v1263
        %v1265 = vadd.f32 %v1258, %v1263
        %v1266 = vmax.f32 %v1264, 0.0
        %v1267 = vmax.f32 %v1265, 0.0
        %s1268 = sld [smem:[#allocation2 + $0x480]]
        %v1269 = vstv %s1268
        %v1270 = vmul.f32 %v1250, %v1269
        %v1271 = vmul.f32 %v1251, %v1269
        %v1272 = vadd.f32 %v1210, %v1270
        %v1273 = vadd.f32 %v1211, %v1271
        %v1274 = vmul.f32 %v1266, %v1269
        %v1275 = vmul.f32 %v1267, %v1269
        %v1276 = vadd.f32 %v1214, %v1274
        %v1277 = vadd.f32 %v1215, %v1275
        %s1278 = sld [smem:[#allocation2 + $0x481]]
        %v1279 = vstv %s1278
        %v1280 = vmul.f32 %v1250, %v1279
        %v1281 = vmul.f32 %v1251, %v1279
        %v1282 = vadd.f32 %v1220, %v1280
        %v1283 = vadd.f32 %v1221, %v1281
        %v1284 = vmul.f32 %v1266, %v1279
        %v1285 = vmul.f32 %v1267, %v1279
        %v1286 = vadd.f32 %v1224, %v1284
        %v1287 = vadd.f32 %v1225, %v1285
        %s1288 = sld [smem:[#allocation2 + $0x482]]
        %v1289 = vstv %s1288
        %v1290 = vmul.f32 %v1250, %v1289
        %v1291 = vmul.f32 %v1251, %v1289
        %v1292 = vadd.f32 %v1230, %v1290
        %v1293 = vadd.f32 %v1231, %v1291
        %v1294 = vmul.f32 %v1266, %v1289
        %v1295 = vmul.f32 %v1267, %v1289
        %v1296 = vadd.f32 %v1234, %v1294
        %v1297 = vadd.f32 %v1235, %v1295
        %1298 = vset.pattern.permute.xlu0 10
        %1299 = vperm.xlu0 %1298, %v538
        %v1300 = vpop.permute.xlu0 %1299
        %1302 = vset.pattern.permute.xlu0 10
        %1303 = vperm.xlu0 %1302, %v539
        %v1304 = vpop.permute.xlu0 %1303
        %v1306 = vlaneseq
        %v1307 = vshrl.u32 %v1306, 7
        %v1308 = vsub.s32 2, %v1307
        %v1309 = vrot.slane %v547, %v1308
        %v1310 = vadd.f32 %v1300, %v1309
        %v1311 = vadd.f32 %v1304, %v1309
        %v1312 = vmax.f32 %v1310, 0.0
        %v1313 = vmax.f32 %v1311, 0.0
        %1314 = vset.pattern.permute.xlu0 10
        %1315 = vperm.xlu0 %1314, %v540
        %v1316 = vpop.permute.xlu0 %1315
        %1318 = vset.pattern.permute.xlu0 10
        %1319 = vperm.xlu0 %1318, %v541
        %v1320 = vpop.permute.xlu0 %1319
        %v1322 = vlaneseq
        %v1323 = vshrl.u32 %v1322, 7
        %v1324 = vsub.s32 2, %v1323
        %v1325 = vrot.slane %v543, %v1324
        %v1326 = vadd.f32 %v1316, %v1325
        %v1327 = vadd.f32 %v1320, %v1325
        %v1328 = vmax.f32 %v1326, 0.0
        %v1329 = vmax.f32 %v1327, 0.0
        %s1330 = sld [smem:[#allocation2 + $0x500]]
        %v1331 = vstv %s1330
        %v1332 = vmul.f32 %v1312, %v1331
        %v1333 = vmul.f32 %v1313, %v1331
        %v1334 = vadd.f32 %v1272, %v1332
        %v1335 = vadd.f32 %v1273, %v1333
        %v1336 = vmul.f32 %v1328, %v1331
        %v1337 = vmul.f32 %v1329, %v1331
        %v1338 = vadd.f32 %v1276, %v1336
        %v1339 = vadd.f32 %v1277, %v1337
        %s1340 = sld [smem:[#allocation2 + $0x501]]
        %v1341 = vstv %s1340
        %v1342 = vmul.f32 %v1312, %v1341
        %v1343 = vmul.f32 %v1313, %v1341
        %v1344 = vadd.f32 %v1282, %v1342
        %v1345 = vadd.f32 %v1283, %v1343
        %v1346 = vmul.f32 %v1328, %v1341
        %v1347 = vmul.f32 %v1329, %v1341
        %v1348 = vadd.f32 %v1286, %v1346
        %v1349 = vadd.f32 %v1287, %v1347
        %s1350 = sld [smem:[#allocation2 + $0x502]]
        %v1351 = vstv %s1350
        %v1352 = vmul.f32 %v1312, %v1351
        %v1353 = vmul.f32 %v1313, %v1351
        %v1354 = vadd.f32 %v1292, %v1352
        %v1355 = vadd.f32 %v1293, %v1353
        %v1356 = vmul.f32 %v1328, %v1351
        %v1357 = vmul.f32 %v1329, %v1351
        %v1358 = vadd.f32 %v1296, %v1356
        %v1359 = vadd.f32 %v1297, %v1357
        %1360 = vset.pattern.permute.xlu0 11
        %1361 = vperm.xlu0 %1360, %v538
        %v1362 = vpop.permute.xlu0 %1361
        %1364 = vset.pattern.permute.xlu0 11
        %1365 = vperm.xlu0 %1364, %v539
        %v1366 = vpop.permute.xlu0 %1365
        %v1368 = vlaneseq
        %v1369 = vshrl.u32 %v1368, 7
        %v1370 = vsub.s32 3, %v1369
        %v1371 = vrot.slane %v547, %v1370
        %v1372 = vadd.f32 %v1362, %v1371
        %v1373 = vadd.f32 %v1366, %v1371
        %v1374 = vmax.f32 %v1372, 0.0
        %v1375 = vmax.f32 %v1373, 0.0
        %1376 = vset.pattern.permute.xlu0 11
        %1377 = vperm.xlu0 %1376, %v540
        %v1378 = vpop.permute.xlu0 %1377
        %1380 = vset.pattern.permute.xlu0 11
        %1381 = vperm.xlu0 %1380, %v541
        %v1382 = vpop.permute.xlu0 %1381
        %v1384 = vlaneseq
        %v1385 = vshrl.u32 %v1384, 7
        %v1386 = vsub.s32 3, %v1385
        %v1387 = vrot.slane %v543, %v1386
        %v1388 = vadd.f32 %v1378, %v1387
        %v1389 = vadd.f32 %v1382, %v1387
        %v1390 = vmax.f32 %v1388, 0.0
        %v1391 = vmax.f32 %v1389, 0.0
        %s1392 = sld [smem:[#allocation2 + $0x580]]
        %v1393 = vstv %s1392
        %v1394 = vmul.f32 %v1374, %v1393
        %v1395 = vmul.f32 %v1375, %v1393
        %v1396 = vadd.f32 %v1334, %v1394
        %v1397 = vadd.f32 %v1335, %v1395
        %v1398 = vmul.f32 %v1390, %v1393
        %v1399 = vmul.f32 %v1391, %v1393
        %v1400 = vadd.f32 %v1338, %v1398
        %v1401 = vadd.f32 %v1339, %v1399
        %s1402 = sld [smem:[#allocation2 + $0x581]]
        %v1403 = vstv %s1402
        %v1404 = vmul.f32 %v1374, %v1403
        %v1405 = vmul.f32 %v1375, %v1403
        %v1406 = vadd.f32 %v1344, %v1404
        %v1407 = vadd.f32 %v1345, %v1405
        %v1408 = vmul.f32 %v1390, %v1403
        %v1409 = vmul.f32 %v1391, %v1403
        %v1410 = vadd.f32 %v1348, %v1408
        %v1411 = vadd.f32 %v1349, %v1409
        %s1412 = sld [smem:[#allocation2 + $0x582]]
        %v1413 = vstv %s1412
        %v1414 = vmul.f32 %v1374, %v1413
        %v1415 = vmul.f32 %v1375, %v1413
        %v1416 = vadd.f32 %v1354, %v1414
        %v1417 = vadd.f32 %v1355, %v1415
        %v1418 = vmul.f32 %v1390, %v1413
        %v1419 = vmul.f32 %v1391, %v1413
        %v1420 = vadd.f32 %v1358, %v1418
        %v1421 = vadd.f32 %v1359, %v1419
        %1422 = vset.pattern.permute.xlu0 12
        %1423 = vperm.xlu0 %1422, %v538
        %v1424 = vpop.permute.xlu0 %1423
        %1426 = vset.pattern.permute.xlu0 12
        %1427 = vperm.xlu0 %1426, %v539
        %v1428 = vpop.permute.xlu0 %1427
        %v1430 = vlaneseq
        %v1431 = vshrl.u32 %v1430, 7
        %v1432 = vsub.s32 4, %v1431
        %v1433 = vrot.slane %v547, %v1432
        %v1434 = vadd.f32 %v1424, %v1433
        %v1435 = vadd.f32 %v1428, %v1433
        %v1436 = vmax.f32 %v1434, 0.0
        %v1437 = vmax.f32 %v1435, 0.0
        %1438 = vset.pattern.permute.xlu0 12
        %1439 = vperm.xlu0 %1438, %v540
        %v1440 = vpop.permute.xlu0 %1439
        %1442 = vset.pattern.permute.xlu0 12
        %1443 = vperm.xlu0 %1442, %v541
        %v1444 = vpop.permute.xlu0 %1443
        %v1446 = vlaneseq
        %v1447 = vshrl.u32 %v1446, 7
        %v1448 = vsub.s32 4, %v1447
        %v1449 = vrot.slane %v543, %v1448
        %v1450 = vadd.f32 %v1440, %v1449
        %v1451 = vadd.f32 %v1444, %v1449
        %v1452 = vmax.f32 %v1450, 0.0
        %v1453 = vmax.f32 %v1451, 0.0
        %s1454 = sld [smem:[#allocation2 + $0x600]]
        %v1455 = vstv %s1454
        %v1456 = vmul.f32 %v1436, %v1455
        %v1457 = vmul.f32 %v1437, %v1455
        %v1458 = vadd.f32 %v1396, %v1456
        %v1459 = vadd.f32 %v1397, %v1457
        %v1460 = vmul.f32 %v1452, %v1455
        %v1461 = vmul.f32 %v1453, %v1455
        %v1462 = vadd.f32 %v1400, %v1460
        %v1463 = vadd.f32 %v1401, %v1461
        %s1464 = sld [smem:[#allocation2 + $0x601]]
        %v1465 = vstv %s1464
        %v1466 = vmul.f32 %v1436, %v1465
        %v1467 = vmul.f32 %v1437, %v1465
        %v1468 = vadd.f32 %v1406, %v1466
        %v1469 = vadd.f32 %v1407, %v1467
        %v1470 = vmul.f32 %v1452, %v1465
        %v1471 = vmul.f32 %v1453, %v1465
        %v1472 = vadd.f32 %v1410, %v1470
        %v1473 = vadd.f32 %v1411, %v1471
        %s1474 = sld [smem:[#allocation2 + $0x602]]
        %v1475 = vstv %s1474
        %v1476 = vmul.f32 %v1436, %v1475
        %v1477 = vmul.f32 %v1437, %v1475
        %v1478 = vadd.f32 %v1416, %v1476
        %v1479 = vadd.f32 %v1417, %v1477
        %v1480 = vmul.f32 %v1452, %v1475
        %v1481 = vmul.f32 %v1453, %v1475
        %v1482 = vadd.f32 %v1420, %v1480
        %v1483 = vadd.f32 %v1421, %v1481
        %1484 = vset.pattern.permute.xlu0 13
        %1485 = vperm.xlu0 %1484, %v538
        %v1486 = vpop.permute.xlu0 %1485
        %1488 = vset.pattern.permute.xlu0 13
        %1489 = vperm.xlu0 %1488, %v539
        %v1490 = vpop.permute.xlu0 %1489
        %v1492 = vlaneseq
        %v1493 = vshrl.u32 %v1492, 7
        %v1494 = vsub.s32 5, %v1493
        %v1495 = vrot.slane %v547, %v1494
        %v1496 = vadd.f32 %v1486, %v1495
        %v1497 = vadd.f32 %v1490, %v1495
        %v1498 = vmax.f32 %v1496, 0.0
        %v1499 = vmax.f32 %v1497, 0.0
        %1500 = vset.pattern.permute.xlu0 13
        %1501 = vperm.xlu0 %1500, %v540
        %v1502 = vpop.permute.xlu0 %1501
        %1504 = vset.pattern.permute.xlu0 13
        %1505 = vperm.xlu0 %1504, %v541
        %v1506 = vpop.permute.xlu0 %1505
        %v1508 = vlaneseq
        %v1509 = vshrl.u32 %v1508, 7
        %v1510 = vsub.s32 5, %v1509
        %v1511 = vrot.slane %v543, %v1510
        %v1512 = vadd.f32 %v1502, %v1511
        %v1513 = vadd.f32 %v1506, %v1511
        %v1514 = vmax.f32 %v1512, 0.0
        %v1515 = vmax.f32 %v1513, 0.0
        %s1516 = sld [smem:[#allocation2 + $0x680]]
        %v1517 = vstv %s1516
        %v1518 = vmul.f32 %v1498, %v1517
        %v1519 = vmul.f32 %v1499, %v1517
        %v1520 = vadd.f32 %v1458, %v1518
        %v1521 = vadd.f32 %v1459, %v1519
        %v1522 = vmul.f32 %v1514, %v1517
        %v1523 = vmul.f32 %v1515, %v1517
        %v1524 = vadd.f32 %v1462, %v1522
        %v1525 = vadd.f32 %v1463, %v1523
        %s1526 = sld [smem:[#allocation2 + $0x681]]
        %v1527 = vstv %s1526
        %v1528 = vmul.f32 %v1498, %v1527
        %v1529 = vmul.f32 %v1499, %v1527
        %v1530 = vadd.f32 %v1468, %v1528
        %v1531 = vadd.f32 %v1469, %v1529
        %v1532 = vmul.f32 %v1514, %v1527
        %v1533 = vmul.f32 %v1515, %v1527
        %v1534 = vadd.f32 %v1472, %v1532
        %v1535 = vadd.f32 %v1473, %v1533
        %s1536 = sld [smem:[#allocation2 + $0x682]]
        %v1537 = vstv %s1536
        %v1538 = vmul.f32 %v1498, %v1537
        %v1539 = vmul.f32 %v1499, %v1537
        %v1540 = vadd.f32 %v1478, %v1538
        %v1541 = vadd.f32 %v1479, %v1539
        %v1542 = vmul.f32 %v1514, %v1537
        %v1543 = vmul.f32 %v1515, %v1537
        %v1544 = vadd.f32 %v1482, %v1542
        %v1545 = vadd.f32 %v1483, %v1543
        %1546 = vset.pattern.permute.xlu0 14
        %1547 = vperm.xlu0 %1546, %v538
        %v1548 = vpop.permute.xlu0 %1547
        %1550 = vset.pattern.permute.xlu0 14
        %1551 = vperm.xlu0 %1550, %v539
        %v1552 = vpop.permute.xlu0 %1551
        %v1554 = vlaneseq
        %v1555 = vshrl.u32 %v1554, 7
        %v1556 = vsub.s32 6, %v1555
        %v1557 = vrot.slane %v547, %v1556
        %v1558 = vadd.f32 %v1548, %v1557
        %v1559 = vadd.f32 %v1552, %v1557
        %v1560 = vmax.f32 %v1558, 0.0
        %v1561 = vmax.f32 %v1559, 0.0
        %1562 = vset.pattern.permute.xlu0 14
        %1563 = vperm.xlu0 %1562, %v540
        %v1564 = vpop.permute.xlu0 %1563
        %1566 = vset.pattern.permute.xlu0 14
        %1567 = vperm.xlu0 %1566, %v541
        %v1568 = vpop.permute.xlu0 %1567
        %v1570 = vlaneseq
        %v1571 = vshrl.u32 %v1570, 7
        %v1572 = vsub.s32 6, %v1571
        %v1573 = vrot.slane %v543, %v1572
        %v1574 = vadd.f32 %v1564, %v1573
        %v1575 = vadd.f32 %v1568, %v1573
        %v1576 = vmax.f32 %v1574, 0.0
        %v1577 = vmax.f32 %v1575, 0.0
        %s1578 = sld [smem:[#allocation2 + $0x700]]
        %v1579 = vstv %s1578
        %v1580 = vmul.f32 %v1560, %v1579
        %v1581 = vmul.f32 %v1561, %v1579
        %v1582 = vadd.f32 %v1520, %v1580
        %v1583 = vadd.f32 %v1521, %v1581
        %v1584 = vmul.f32 %v1576, %v1579
        %v1585 = vmul.f32 %v1577, %v1579
        %v1586 = vadd.f32 %v1524, %v1584
        %v1587 = vadd.f32 %v1525, %v1585
        %s1588 = sld [smem:[#allocation2 + $0x701]]
        %v1589 = vstv %s1588
        %v1590 = vmul.f32 %v1560, %v1589
        %v1591 = vmul.f32 %v1561, %v1589
        %v1592 = vadd.f32 %v1530, %v1590
        %v1593 = vadd.f32 %v1531, %v1591
        %v1594 = vmul.f32 %v1576, %v1589
        %v1595 = vmul.f32 %v1577, %v1589
        %v1596 = vadd.f32 %v1534, %v1594
        %v1597 = vadd.f32 %v1535, %v1595
        %s1598 = sld [smem:[#allocation2 + $0x702]]
        %v1599 = vstv %s1598
        %v1600 = vmul.f32 %v1560, %v1599
        %v1601 = vmul.f32 %v1561, %v1599
        %v1602 = vadd.f32 %v1540, %v1600
        %v1603 = vadd.f32 %v1541, %v1601
        %v1604 = vmul.f32 %v1576, %v1599
        %v1605 = vmul.f32 %v1577, %v1599
        %v1606 = vadd.f32 %v1544, %v1604
        %v1607 = vadd.f32 %v1545, %v1605
        %1608 = vset.pattern.permute.xlu0 15
        %1609 = vperm.xlu0 %1608, %v538
        %v1610 = vpop.permute.xlu0 %1609
        %1612 = vset.pattern.permute.xlu0 15
        %1613 = vperm.xlu0 %1612, %v539
        %v1614 = vpop.permute.xlu0 %1613
        %v1616 = vlaneseq
        %v1617 = vshrl.u32 %v1616, 7
        %v1618 = vsub.s32 7, %v1617
        %v1619 = vrot.slane %v547, %v1618
        %v1620 = vadd.f32 %v1610, %v1619
        %v1621 = vadd.f32 %v1614, %v1619
        %v1622 = vmax.f32 %v1620, 0.0
        %v1623 = vmax.f32 %v1621, 0.0
        %1624 = vset.pattern.permute.xlu0 15
        %1625 = vperm.xlu0 %1624, %v540
        %v1626 = vpop.permute.xlu0 %1625
        %1628 = vset.pattern.permute.xlu0 15
        %1629 = vperm.xlu0 %1628, %v541
        %v1630 = vpop.permute.xlu0 %1629
        %v1632 = vlaneseq
        %v1633 = vshrl.u32 %v1632, 7
        %v1634 = vsub.s32 7, %v1633
        %v1635 = vrot.slane %v543, %v1634
        %v1636 = vadd.f32 %v1626, %v1635
        %v1637 = vadd.f32 %v1630, %v1635
        %v1638 = vmax.f32 %v1636, 0.0
        %v1639 = vmax.f32 %v1637, 0.0
        %s1640 = sld [smem:[#allocation2 + $0x780]]
        %v1641 = vstv %s1640
        %v1642 = vmul.f32 %v1622, %v1641
        %v1643 = vmul.f32 %v1623, %v1641
        %v1644 = vadd.f32 %v1582, %v1642
        %v1645 = vadd.f32 %v1583, %v1643
        %v1646 = vmul.f32 %v1638, %v1641
        %v1647 = vmul.f32 %v1639, %v1641
        %v1648 = vadd.f32 %v1586, %v1646
        %v1649 = vadd.f32 %v1587, %v1647
        %s1650 = sld [smem:[#allocation2 + $0x781]]
        %v1651 = vstv %s1650
        %v1652 = vmul.f32 %v1622, %v1651
        %v1653 = vmul.f32 %v1623, %v1651
        %v1654 = vadd.f32 %v1592, %v1652
        %v1655 = vadd.f32 %v1593, %v1653
        %v1656 = vmul.f32 %v1638, %v1651
        %v1657 = vmul.f32 %v1639, %v1651
        %v1658 = vadd.f32 %v1596, %v1656
        %v1659 = vadd.f32 %v1597, %v1657
        %s1660 = sld [smem:[#allocation2 + $0x782]]
        %v1661 = vstv %s1660
        %v1662 = vmul.f32 %v1622, %v1661
        %v1663 = vmul.f32 %v1623, %v1661
        %v1664 = vadd.f32 %v1602, %v1662
        %v1665 = vadd.f32 %v1603, %v1663
        %v1666 = vmul.f32 %v1638, %v1661
        %v1667 = vmul.f32 %v1639, %v1661
        %v1668 = vadd.f32 %v1606, %v1666
        %v1669 = vadd.f32 %v1607, %v1667
        %1670 = vset.pattern.permute.xlu0 16
        %1671 = vperm.xlu0 %1670, %v538
        %v1672 = vpop.permute.xlu0 %1671
        %1674 = vset.pattern.permute.xlu0 16
        %1675 = vperm.xlu0 %1674, %v539
        %v1676 = vpop.permute.xlu0 %1675
        %v1678 = vlaneseq
        %v1679 = vshrl.u32 %v1678, 7
        %v1680 = vsub.s32 0, %v1679
        %v1681 = vrot.slane %v548, %v1680
        %v1682 = vadd.f32 %v1672, %v1681
        %v1683 = vadd.f32 %v1676, %v1681
        %v1684 = vmax.f32 %v1682, 0.0
        %v1685 = vmax.f32 %v1683, 0.0
        %1686 = vset.pattern.permute.xlu0 16
        %1687 = vperm.xlu0 %1686, %v540
        %v1688 = vpop.permute.xlu0 %1687
        %1690 = vset.pattern.permute.xlu0 16
        %1691 = vperm.xlu0 %1690, %v541
        %v1692 = vpop.permute.xlu0 %1691
        %v1694 = vlaneseq
        %v1695 = vshrl.u32 %v1694, 7
        %v1696 = vsub.s32 0, %v1695
        %v1697 = vrot.slane %v544, %v1696
        %v1698 = vadd.f32 %v1688, %v1697
        %v1699 = vadd.f32 %v1692, %v1697
        %v1700 = vmax.f32 %v1698, 0.0
        %v1701 = vmax.f32 %v1699, 0.0
        %s1702 = sld [smem:[#allocation2 + $0x800]]
        %v1703 = vstv %s1702
        %v1704 = vmul.f32 %v1684, %v1703
        %v1705 = vmul.f32 %v1685, %v1703
        %v1706 = vadd.f32 %v1644, %v1704
        %v1707 = vadd.f32 %v1645, %v1705
        %v1708 = vmul.f32 %v1700, %v1703
        %v1709 = vmul.f32 %v1701, %v1703
        %v1710 = vadd.f32 %v1648, %v1708
        %v1711 = vadd.f32 %v1649, %v1709
        %s1712 = sld [smem:[#allocation2 + $0x801]]
        %v1713 = vstv %s1712
        %v1714 = vmul.f32 %v1684, %v1713
        %v1715 = vmul.f32 %v1685, %v1713
        %v1716 = vadd.f32 %v1654, %v1714
        %v1717 = vadd.f32 %v1655, %v1715
        %v1718 = vmul.f32 %v1700, %v1713
        %v1719 = vmul.f32 %v1701, %v1713
        %v1720 = vadd.f32 %v1658, %v1718
        %v1721 = vadd.f32 %v1659, %v1719
        %s1722 = sld [smem:[#allocation2 + $0x802]]
        %v1723 = vstv %s1722
        %v1724 = vmul.f32 %v1684, %v1723
        %v1725 = vmul.f32 %v1685, %v1723
        %v1726 = vadd.f32 %v1664, %v1724
        %v1727 = vadd.f32 %v1665, %v1725
        %v1728 = vmul.f32 %v1700, %v1723
        %v1729 = vmul.f32 %v1701, %v1723
        %v1730 = vadd.f32 %v1668, %v1728
        %v1731 = vadd.f32 %v1669, %v1729
        %1732 = vset.pattern.permute.xlu0 17
        %1733 = vperm.xlu0 %1732, %v538
        %v1734 = vpop.permute.xlu0 %1733
        %1736 = vset.pattern.permute.xlu0 17
        %1737 = vperm.xlu0 %1736, %v539
        %v1738 = vpop.permute.xlu0 %1737
        %v1740 = vlaneseq
        %v1741 = vshrl.u32 %v1740, 7
        %v1742 = vsub.s32 1, %v1741
        %v1743 = vrot.slane %v548, %v1742
        %v1744 = vadd.f32 %v1734, %v1743
        %v1745 = vadd.f32 %v1738, %v1743
        %v1746 = vmax.f32 %v1744, 0.0
        %v1747 = vmax.f32 %v1745, 0.0
        %1748 = vset.pattern.permute.xlu0 17
        %1749 = vperm.xlu0 %1748, %v540
        %v1750 = vpop.permute.xlu0 %1749
        %1752 = vset.pattern.permute.xlu0 17
        %1753 = vperm.xlu0 %1752, %v541
        %v1754 = vpop.permute.xlu0 %1753
        %v1756 = vlaneseq
        %v1757 = vshrl.u32 %v1756, 7
        %v1758 = vsub.s32 1, %v1757
        %v1759 = vrot.slane %v544, %v1758
        %v1760 = vadd.f32 %v1750, %v1759
        %v1761 = vadd.f32 %v1754, %v1759
        %v1762 = vmax.f32 %v1760, 0.0
        %v1763 = vmax.f32 %v1761, 0.0
        %s1764 = sld [smem:[#allocation2 + $0x880]]
        %v1765 = vstv %s1764
        %v1766 = vmul.f32 %v1746, %v1765
        %v1767 = vmul.f32 %v1747, %v1765
        %v1768 = vadd.f32 %v1706, %v1766
        %v1769 = vadd.f32 %v1707, %v1767
        %v1770 = vmul.f32 %v1762, %v1765
        %v1771 = vmul.f32 %v1763, %v1765
        %v1772 = vadd.f32 %v1710, %v1770
        %v1773 = vadd.f32 %v1711, %v1771
        %s1774 = sld [smem:[#allocation2 + $0x881]]
        %v1775 = vstv %s1774
        %v1776 = vmul.f32 %v1746, %v1775
        %v1777 = vmul.f32 %v1747, %v1775
        %v1778 = vadd.f32 %v1716, %v1776
        %v1779 = vadd.f32 %v1717, %v1777
        %v1780 = vmul.f32 %v1762, %v1775
        %v1781 = vmul.f32 %v1763, %v1775
        %v1782 = vadd.f32 %v1720, %v1780
        %v1783 = vadd.f32 %v1721, %v1781
        %s1784 = sld [smem:[#allocation2 + $0x882]]
        %v1785 = vstv %s1784
        %v1786 = vmul.f32 %v1746, %v1785
        %v1787 = vmul.f32 %v1747, %v1785
        %v1788 = vadd.f32 %v1726, %v1786
        %v1789 = vadd.f32 %v1727, %v1787
        %v1790 = vmul.f32 %v1762, %v1785
        %v1791 = vmul.f32 %v1763, %v1785
        %v1792 = vadd.f32 %v1730, %v1790
        %v1793 = vadd.f32 %v1731, %v1791
        %1794 = vset.pattern.permute.xlu0 18
        %1795 = vperm.xlu0 %1794, %v538
        %v1796 = vpop.permute.xlu0 %1795
        %1798 = vset.pattern.permute.xlu0 18
        %1799 = vperm.xlu0 %1798, %v539
        %v1800 = vpop.permute.xlu0 %1799
        %v1802 = vlaneseq
        %v1803 = vshrl.u32 %v1802, 7
        %v1804 = vsub.s32 2, %v1803
        %v1805 = vrot.slane %v548, %v1804
        %v1806 = vadd.f32 %v1796, %v1805
        %v1807 = vadd.f32 %v1800, %v1805
        %v1808 = vmax.f32 %v1806, 0.0
        %v1809 = vmax.f32 %v1807, 0.0
        %1810 = vset.pattern.permute.xlu0 18
        %1811 = vperm.xlu0 %1810, %v540
        %v1812 = vpop.permute.xlu0 %1811
        %1814 = vset.pattern.permute.xlu0 18
        %1815 = vperm.xlu0 %1814, %v541
        %v1816 = vpop.permute.xlu0 %1815
        %v1818 = vlaneseq
        %v1819 = vshrl.u32 %v1818, 7
        %v1820 = vsub.s32 2, %v1819
        %v1821 = vrot.slane %v544, %v1820
        %v1822 = vadd.f32 %v1812, %v1821
        %v1823 = vadd.f32 %v1816, %v1821
        %v1824 = vmax.f32 %v1822, 0.0
        %v1825 = vmax.f32 %v1823, 0.0
        %s1826 = sld [smem:[#allocation2 + $0x900]]
        %v1827 = vstv %s1826
        %v1828 = vmul.f32 %v1808, %v1827
        %v1829 = vmul.f32 %v1809, %v1827
        %v1830 = vadd.f32 %v1768, %v1828
        %v1831 = vadd.f32 %v1769, %v1829
        %v1832 = vmul.f32 %v1824, %v1827
        %v1833 = vmul.f32 %v1825, %v1827
        %v1834 = vadd.f32 %v1772, %v1832
        %v1835 = vadd.f32 %v1773, %v1833
        %s1836 = sld [smem:[#allocation2 + $0x901]]
        %v1837 = vstv %s1836
        %v1838 = vmul.f32 %v1808, %v1837
        %v1839 = vmul.f32 %v1809, %v1837
        %v1840 = vadd.f32 %v1778, %v1838
        %v1841 = vadd.f32 %v1779, %v1839
        %v1842 = vmul.f32 %v1824, %v1837
        %v1843 = vmul.f32 %v1825, %v1837
        %v1844 = vadd.f32 %v1782, %v1842
        %v1845 = vadd.f32 %v1783, %v1843
        %s1846 = sld [smem:[#allocation2 + $0x902]]
        %v1847 = vstv %s1846
        %v1848 = vmul.f32 %v1808, %v1847
        %v1849 = vmul.f32 %v1809, %v1847
        %v1850 = vadd.f32 %v1788, %v1848
        %v1851 = vadd.f32 %v1789, %v1849
        %v1852 = vmul.f32 %v1824, %v1847
        %v1853 = vmul.f32 %v1825, %v1847
        %v1854 = vadd.f32 %v1792, %v1852
        %v1855 = vadd.f32 %v1793, %v1853
        %1856 = vset.pattern.permute.xlu0 19
        %1857 = vperm.xlu0 %1856, %v538
        %v1858 = vpop.permute.xlu0 %1857
        %1860 = vset.pattern.permute.xlu0 19
        %1861 = vperm.xlu0 %1860, %v539
        %v1862 = vpop.permute.xlu0 %1861
        %v1864 = vlaneseq
        %v1865 = vshrl.u32 %v1864, 7
        %v1866 = vsub.s32 3, %v1865
        %v1867 = vrot.slane %v548, %v1866
        %v1868 = vadd.f32 %v1858, %v1867
        %v1869 = vadd.f32 %v1862, %v1867
        %v1870 = vmax.f32 %v1868, 0.0
        %v1871 = vmax.f32 %v1869, 0.0
        %1872 = vset.pattern.permute.xlu0 19
        %1873 = vperm.xlu0 %1872, %v540
        %v1874 = vpop.permute.xlu0 %1873
        %1876 = vset.pattern.permute.xlu0 19
        %1877 = vperm.xlu0 %1876, %v541
        %v1878 = vpop.permute.xlu0 %1877
        %v1880 = vlaneseq
        %v1881 = vshrl.u32 %v1880, 7
        %v1882 = vsub.s32 3, %v1881
        %v1883 = vrot.slane %v544, %v1882
        %v1884 = vadd.f32 %v1874, %v1883
        %v1885 = vadd.f32 %v1878, %v1883
        %v1886 = vmax.f32 %v1884, 0.0
        %v1887 = vmax.f32 %v1885, 0.0
        %s1888 = sld [smem:[#allocation2 + $0x980]]
        %v1889 = vstv %s1888
        %v1890 = vmul.f32 %v1870, %v1889
        %v1891 = vmul.f32 %v1871, %v1889
        %v1892 = vadd.f32 %v1830, %v1890
        %v1893 = vadd.f32 %v1831, %v1891
        %v1894 = vmul.f32 %v1886, %v1889
        %v1895 = vmul.f32 %v1887, %v1889
        %v1896 = vadd.f32 %v1834, %v1894
        %v1897 = vadd.f32 %v1835, %v1895
        %s1898 = sld [smem:[#allocation2 + $0x981]]
        %v1899 = vstv %s1898
        %v1900 = vmul.f32 %v1870, %v1899
        %v1901 = vmul.f32 %v1871, %v1899
        %v1902 = vadd.f32 %v1840, %v1900
        %v1903 = vadd.f32 %v1841, %v1901
        %v1904 = vmul.f32 %v1886, %v1899
        %v1905 = vmul.f32 %v1887, %v1899
        %v1906 = vadd.f32 %v1844, %v1904
        %v1907 = vadd.f32 %v1845, %v1905
        %s1908 = sld [smem:[#allocation2 + $0x982]]
        %v1909 = vstv %s1908
        %v1910 = vmul.f32 %v1870, %v1909
        %v1911 = vmul.f32 %v1871, %v1909
        %v1912 = vadd.f32 %v1850, %v1910
        %v1913 = vadd.f32 %v1851, %v1911
        %v1914 = vmul.f32 %v1886, %v1909
        %v1915 = vmul.f32 %v1887, %v1909
        %v1916 = vadd.f32 %v1854, %v1914
        %v1917 = vadd.f32 %v1855, %v1915
        %1918 = vset.pattern.permute.xlu0 20
        %1919 = vperm.xlu0 %1918, %v538
        %v1920 = vpop.permute.xlu0 %1919
        %1922 = vset.pattern.permute.xlu0 20
        %1923 = vperm.xlu0 %1922, %v539
        %v1924 = vpop.permute.xlu0 %1923
        %v1926 = vlaneseq
        %v1927 = vshrl.u32 %v1926, 7
        %v1928 = vsub.s32 4, %v1927
        %v1929 = vrot.slane %v548, %v1928
        %v1930 = vadd.f32 %v1920, %v1929
        %v1931 = vadd.f32 %v1924, %v1929
        %v1932 = vmax.f32 %v1930, 0.0
        %v1933 = vmax.f32 %v1931, 0.0
        %1934 = vset.pattern.permute.xlu0 20
        %1935 = vperm.xlu0 %1934, %v540
        %v1936 = vpop.permute.xlu0 %1935
        %1938 = vset.pattern.permute.xlu0 20
        %1939 = vperm.xlu0 %1938, %v541
        %v1940 = vpop.permute.xlu0 %1939
        %v1942 = vlaneseq
        %v1943 = vshrl.u32 %v1942, 7
        %v1944 = vsub.s32 4, %v1943
        %v1945 = vrot.slane %v544, %v1944
        %v1946 = vadd.f32 %v1936, %v1945
        %v1947 = vadd.f32 %v1940, %v1945
        %v1948 = vmax.f32 %v1946, 0.0
        %v1949 = vmax.f32 %v1947, 0.0
        %s1950 = sld [smem:[#allocation2 + $0xa00]]
        %v1951 = vstv %s1950
        %v1952 = vmul.f32 %v1932, %v1951
        %v1953 = vmul.f32 %v1933, %v1951
        %v1954 = vadd.f32 %v1892, %v1952
        %v1955 = vadd.f32 %v1893, %v1953
        %v1956 = vmul.f32 %v1948, %v1951
        %v1957 = vmul.f32 %v1949, %v1951
        %v1958 = vadd.f32 %v1896, %v1956
        %v1959 = vadd.f32 %v1897, %v1957
        %s1960 = sld [smem:[#allocation2 + $0xa01]]
        %v1961 = vstv %s1960
        %v1962 = vmul.f32 %v1932, %v1961
        %v1963 = vmul.f32 %v1933, %v1961
        %v1964 = vadd.f32 %v1902, %v1962
        %v1965 = vadd.f32 %v1903, %v1963
        %v1966 = vmul.f32 %v1948, %v1961
        %v1967 = vmul.f32 %v1949, %v1961
        %v1968 = vadd.f32 %v1906, %v1966
        %v1969 = vadd.f32 %v1907, %v1967
        %s1970 = sld [smem:[#allocation2 + $0xa02]]
        %v1971 = vstv %s1970
        %v1972 = vmul.f32 %v1932, %v1971
        %v1973 = vmul.f32 %v1933, %v1971
        %v1974 = vadd.f32 %v1912, %v1972
        %v1975 = vadd.f32 %v1913, %v1973
        %v1976 = vmul.f32 %v1948, %v1971
        %v1977 = vmul.f32 %v1949, %v1971
        %v1978 = vadd.f32 %v1916, %v1976
        %v1979 = vadd.f32 %v1917, %v1977
        %1980 = vset.pattern.permute.xlu0 21
        %1981 = vperm.xlu0 %1980, %v538
        %v1982 = vpop.permute.xlu0 %1981
        %1984 = vset.pattern.permute.xlu0 21
        %1985 = vperm.xlu0 %1984, %v539
        %v1986 = vpop.permute.xlu0 %1985
        %v1988 = vlaneseq
        %v1989 = vshrl.u32 %v1988, 7
        %v1990 = vsub.s32 5, %v1989
        %v1991 = vrot.slane %v548, %v1990
        %v1992 = vadd.f32 %v1982, %v1991
        %v1993 = vadd.f32 %v1986, %v1991
        %v1994 = vmax.f32 %v1992, 0.0
        %v1995 = vmax.f32 %v1993, 0.0
        %1996 = vset.pattern.permute.xlu0 21
        %1997 = vperm.xlu0 %1996, %v540
        %v1998 = vpop.permute.xlu0 %1997
        %2000 = vset.pattern.permute.xlu0 21
        %2001 = vperm.xlu0 %2000, %v541
        %v2002 = vpop.permute.xlu0 %2001
        %v2004 = vlaneseq
        %v2005 = vshrl.u32 %v2004, 7
        %v2006 = vsub.s32 5, %v2005
        %v2007 = vrot.slane %v544, %v2006
        %v2008 = vadd.f32 %v1998, %v2007
        %v2009 = vadd.f32 %v2002, %v2007
        %v2010 = vmax.f32 %v2008, 0.0
        %v2011 = vmax.f32 %v2009, 0.0
        %s2012 = sld [smem:[#allocation2 + $0xa80]]
        %v2013 = vstv %s2012
        %v2014 = vmul.f32 %v1994, %v2013
        %v2015 = vmul.f32 %v1995, %v2013
        %v2016 = vadd.f32 %v1954, %v2014
        %v2017 = vadd.f32 %v1955, %v2015
        %v2018 = vmul.f32 %v2010, %v2013
        %v2019 = vmul.f32 %v2011, %v2013
        %v2020 = vadd.f32 %v1958, %v2018
        %v2021 = vadd.f32 %v1959, %v2019
        %s2022 = sld [smem:[#allocation2 + $0xa81]]
        %v2023 = vstv %s2022
        %v2024 = vmul.f32 %v1994, %v2023
        %v2025 = vmul.f32 %v1995, %v2023
        %v2026 = vadd.f32 %v1964, %v2024
        %v2027 = vadd.f32 %v1965, %v2025
        %v2028 = vmul.f32 %v2010, %v2023
        %v2029 = vmul.f32 %v2011, %v2023
        %v2030 = vadd.f32 %v1968, %v2028
        %v2031 = vadd.f32 %v1969, %v2029
        %s2032 = sld [smem:[#allocation2 + $0xa82]]
        %v2033 = vstv %s2032
        %v2034 = vmul.f32 %v1994, %v2033
        %v2035 = vmul.f32 %v1995, %v2033
        %v2036 = vadd.f32 %v1974, %v2034
        %v2037 = vadd.f32 %v1975, %v2035
        %v2038 = vmul.f32 %v2010, %v2033
        %v2039 = vmul.f32 %v2011, %v2033
        %v2040 = vadd.f32 %v1978, %v2038
        %v2041 = vadd.f32 %v1979, %v2039
        %2042 = vset.pattern.permute.xlu0 22
        %2043 = vperm.xlu0 %2042, %v538
        %v2044 = vpop.permute.xlu0 %2043
        %2046 = vset.pattern.permute.xlu0 22
        %2047 = vperm.xlu0 %2046, %v539
        %v2048 = vpop.permute.xlu0 %2047
        %v2050 = vlaneseq
        %v2051 = vshrl.u32 %v2050, 7
        %v2052 = vsub.s32 6, %v2051
        %v2053 = vrot.slane %v548, %v2052
        %v2054 = vadd.f32 %v2044, %v2053
        %v2055 = vadd.f32 %v2048, %v2053
        %v2056 = vmax.f32 %v2054, 0.0
        %v2057 = vmax.f32 %v2055, 0.0
        %2058 = vset.pattern.permute.xlu0 22
        %2059 = vperm.xlu0 %2058, %v540
        %v2060 = vpop.permute.xlu0 %2059
        %2062 = vset.pattern.permute.xlu0 22
        %2063 = vperm.xlu0 %2062, %v541
        %v2064 = vpop.permute.xlu0 %2063
        %v2066 = vlaneseq
        %v2067 = vshrl.u32 %v2066, 7
        %v2068 = vsub.s32 6, %v2067
        %v2069 = vrot.slane %v544, %v2068
        %v2070 = vadd.f32 %v2060, %v2069
        %v2071 = vadd.f32 %v2064, %v2069
        %v2072 = vmax.f32 %v2070, 0.0
        %v2073 = vmax.f32 %v2071, 0.0
        %s2074 = sld [smem:[#allocation2 + $0xb00]]
        %v2075 = vstv %s2074
        %v2076 = vmul.f32 %v2056, %v2075
        %v2077 = vmul.f32 %v2057, %v2075
        %v2078 = vadd.f32 %v2016, %v2076
        %v2079 = vadd.f32 %v2017, %v2077
        %v2080 = vmul.f32 %v2072, %v2075
        %v2081 = vmul.f32 %v2073, %v2075
        %v2082 = vadd.f32 %v2020, %v2080
        %v2083 = vadd.f32 %v2021, %v2081
        %s2084 = sld [smem:[#allocation2 + $0xb01]]
        %v2085 = vstv %s2084
        %v2086 = vmul.f32 %v2056, %v2085
        %v2087 = vmul.f32 %v2057, %v2085
        %v2088 = vadd.f32 %v2026, %v2086
        %v2089 = vadd.f32 %v2027, %v2087
        %v2090 = vmul.f32 %v2072, %v2085
        %v2091 = vmul.f32 %v2073, %v2085
        %v2092 = vadd.f32 %v2030, %v2090
        %v2093 = vadd.f32 %v2031, %v2091
        %s2094 = sld [smem:[#allocation2 + $0xb02]]
        %v2095 = vstv %s2094
        %v2096 = vmul.f32 %v2056, %v2095
        %v2097 = vmul.f32 %v2057, %v2095
        %v2098 = vadd.f32 %v2036, %v2096
        %v2099 = vadd.f32 %v2037, %v2097
        %v2100 = vmul.f32 %v2072, %v2095
        %v2101 = vmul.f32 %v2073, %v2095
        %v2102 = vadd.f32 %v2040, %v2100
        %v2103 = vadd.f32 %v2041, %v2101
        %2104 = vset.pattern.permute.xlu0 23
        %2105 = vperm.xlu0 %2104, %v538
        %v2106 = vpop.permute.xlu0 %2105
        %2108 = vset.pattern.permute.xlu0 23
        %2109 = vperm.xlu0 %2108, %v539
        %v2110 = vpop.permute.xlu0 %2109
        %v2112 = vlaneseq
        %v2113 = vshrl.u32 %v2112, 7
        %v2114 = vsub.s32 7, %v2113
        %v2115 = vrot.slane %v548, %v2114
        %v2116 = vadd.f32 %v2106, %v2115
        %v2117 = vadd.f32 %v2110, %v2115
        %v2118 = vmax.f32 %v2116, 0.0
        %v2119 = vmax.f32 %v2117, 0.0
        %2120 = vset.pattern.permute.xlu0 23
        %2121 = vperm.xlu0 %2120, %v540
        %v2122 = vpop.permute.xlu0 %2121
        %2124 = vset.pattern.permute.xlu0 23
        %2125 = vperm.xlu0 %2124, %v541
        %v2126 = vpop.permute.xlu0 %2125
        %v2128 = vlaneseq
        %v2129 = vshrl.u32 %v2128, 7
        %v2130 = vsub.s32 7, %v2129
        %v2131 = vrot.slane %v544, %v2130
        %v2132 = vadd.f32 %v2122, %v2131
        %v2133 = vadd.f32 %v2126, %v2131
        %v2134 = vmax.f32 %v2132, 0.0
        %v2135 = vmax.f32 %v2133, 0.0
        %s2136 = sld [smem:[#allocation2 + $0xb80]]
        %v2137 = vstv %s2136
        %v2138 = vmul.f32 %v2118, %v2137
        %v2139 = vmul.f32 %v2119, %v2137
        %v2140 = vadd.f32 %v2078, %v2138
        %v2141 = vadd.f32 %v2079, %v2139
        %v2142 = vmul.f32 %v2134, %v2137
        %v2143 = vmul.f32 %v2135, %v2137
        %v2144 = vadd.f32 %v2082, %v2142
        %v2145 = vadd.f32 %v2083, %v2143
        %s2146 = sld [smem:[#allocation2 + $0xb81]]
        %v2147 = vstv %s2146
        %v2148 = vmul.f32 %v2118, %v2147
        %v2149 = vmul.f32 %v2119, %v2147
        %v2150 = vadd.f32 %v2088, %v2148
        %v2151 = vadd.f32 %v2089, %v2149
        %v2152 = vmul.f32 %v2134, %v2147
        %v2153 = vmul.f32 %v2135, %v2147
        %v2154 = vadd.f32 %v2092, %v2152
        %v2155 = vadd.f32 %v2093, %v2153
        %s2156 = sld [smem:[#allocation2 + $0xb82]]
        %v2157 = vstv %s2156
        %v2158 = vmul.f32 %v2118, %v2157
        %v2159 = vmul.f32 %v2119, %v2157
        %v2160 = vadd.f32 %v2098, %v2158
        %v2161 = vadd.f32 %v2099, %v2159
        %v2162 = vmul.f32 %v2134, %v2157
        %v2163 = vmul.f32 %v2135, %v2157
        %v2164 = vadd.f32 %v2102, %v2162
        %v2165 = vadd.f32 %v2103, %v2163
        %2166 = vset.pattern.permute.xlu0 24
        %2167 = vperm.xlu0 %2166, %v538
        %v2168 = vpop.permute.xlu0 %2167
        %2170 = vset.pattern.permute.xlu0 24
        %2171 = vperm.xlu0 %2170, %v539
        %v2172 = vpop.permute.xlu0 %2171
        %v2174 = vlaneseq
        %v2175 = vshrl.u32 %v2174, 7
        %v2176 = vsub.s32 0, %v2175
        %v2177 = vrot.slane %v549, %v2176
        %v2178 = vadd.f32 %v2168, %v2177
        %v2179 = vadd.f32 %v2172, %v2177
        %v2180 = vmax.f32 %v2178, 0.0
        %v2181 = vmax.f32 %v2179, 0.0
        %2182 = vset.pattern.permute.xlu0 24
        %2183 = vperm.xlu0 %2182, %v540
        %v2184 = vpop.permute.xlu0 %2183
        %2186 = vset.pattern.permute.xlu0 24
        %2187 = vperm.xlu0 %2186, %v541
        %v2188 = vpop.permute.xlu0 %2187
        %v2190 = vlaneseq
        %v2191 = vshrl.u32 %v2190, 7
        %v2192 = vsub.s32 0, %v2191
        %v2193 = vrot.slane %v545, %v2192
        %v2194 = vadd.f32 %v2184, %v2193
        %v2195 = vadd.f32 %v2188, %v2193
        %v2196 = vmax.f32 %v2194, 0.0
        %v2197 = vmax.f32 %v2195, 0.0
        %s2198 = sld [smem:[#allocation2 + $0xc00]]
        %v2199 = vstv %s2198
        %v2200 = vmul.f32 %v2180, %v2199
        %v2201 = vmul.f32 %v2181, %v2199
        %v2202 = vadd.f32 %v2140, %v2200
        %v2203 = vadd.f32 %v2141, %v2201
        %v2204 = vmul.f32 %v2196, %v2199
        %v2205 = vmul.f32 %v2197, %v2199
        %v2206 = vadd.f32 %v2144, %v2204
        %v2207 = vadd.f32 %v2145, %v2205
        %s2208 = sld [smem:[#allocation2 + $0xc01]]
        %v2209 = vstv %s2208
        %v2210 = vmul.f32 %v2180, %v2209
        %v2211 = vmul.f32 %v2181, %v2209
        %v2212 = vadd.f32 %v2150, %v2210
        %v2213 = vadd.f32 %v2151, %v2211
        %v2214 = vmul.f32 %v2196, %v2209
        %v2215 = vmul.f32 %v2197, %v2209
        %v2216 = vadd.f32 %v2154, %v2214
        %v2217 = vadd.f32 %v2155, %v2215
        %s2218 = sld [smem:[#allocation2 + $0xc02]]
        %v2219 = vstv %s2218
        %v2220 = vmul.f32 %v2180, %v2219
        %v2221 = vmul.f32 %v2181, %v2219
        %v2222 = vadd.f32 %v2160, %v2220
        %v2223 = vadd.f32 %v2161, %v2221
        %v2224 = vmul.f32 %v2196, %v2219
        %v2225 = vmul.f32 %v2197, %v2219
        %v2226 = vadd.f32 %v2164, %v2224
        %v2227 = vadd.f32 %v2165, %v2225
        %2228 = vset.pattern.permute.xlu0 25
        %2229 = vperm.xlu0 %2228, %v538
        %v2230 = vpop.permute.xlu0 %2229
        %2232 = vset.pattern.permute.xlu0 25
        %2233 = vperm.xlu0 %2232, %v539
        %v2234 = vpop.permute.xlu0 %2233
        %v2236 = vlaneseq
        %v2237 = vshrl.u32 %v2236, 7
        %v2238 = vsub.s32 1, %v2237
        %v2239 = vrot.slane %v549, %v2238
        %v2240 = vadd.f32 %v2230, %v2239
        %v2241 = vadd.f32 %v2234, %v2239
        %v2242 = vmax.f32 %v2240, 0.0
        %v2243 = vmax.f32 %v2241, 0.0
        %2244 = vset.pattern.permute.xlu0 25
        %2245 = vperm.xlu0 %2244, %v540
        %v2246 = vpop.permute.xlu0 %2245
        %2248 = vset.pattern.permute.xlu0 25
        %2249 = vperm.xlu0 %2248, %v541
        %v2250 = vpop.permute.xlu0 %2249
        %v2252 = vlaneseq
        %v2253 = vshrl.u32 %v2252, 7
        %v2254 = vsub.s32 1, %v2253
        %v2255 = vrot.slane %v545, %v2254
        %v2256 = vadd.f32 %v2246, %v2255
        %v2257 = vadd.f32 %v2250, %v2255
        %v2258 = vmax.f32 %v2256, 0.0
        %v2259 = vmax.f32 %v2257, 0.0
        %s2260 = sld [smem:[#allocation2 + $0xc80]]
        %v2261 = vstv %s2260
        %v2262 = vmul.f32 %v2242, %v2261
        %v2263 = vmul.f32 %v2243, %v2261
        %v2264 = vadd.f32 %v2202, %v2262
        %v2265 = vadd.f32 %v2203, %v2263
        %v2266 = vmul.f32 %v2258, %v2261
        %v2267 = vmul.f32 %v2259, %v2261
        %v2268 = vadd.f32 %v2206, %v2266
        %v2269 = vadd.f32 %v2207, %v2267
        %s2270 = sld [smem:[#allocation2 + $0xc81]]
        %v2271 = vstv %s2270
        %v2272 = vmul.f32 %v2242, %v2271
        %v2273 = vmul.f32 %v2243, %v2271
        %v2274 = vadd.f32 %v2212, %v2272
        %v2275 = vadd.f32 %v2213, %v2273
        %v2276 = vmul.f32 %v2258, %v2271
        %v2277 = vmul.f32 %v2259, %v2271
        %v2278 = vadd.f32 %v2216, %v2276
        %v2279 = vadd.f32 %v2217, %v2277
        %s2280 = sld [smem:[#allocation2 + $0xc82]]
        %v2281 = vstv %s2280
        %v2282 = vmul.f32 %v2242, %v2281
        %v2283 = vmul.f32 %v2243, %v2281
        %v2284 = vadd.f32 %v2222, %v2282
        %v2285 = vadd.f32 %v2223, %v2283
        %v2286 = vmul.f32 %v2258, %v2281
        %v2287 = vmul.f32 %v2259, %v2281
        %v2288 = vadd.f32 %v2226, %v2286
        %v2289 = vadd.f32 %v2227, %v2287
        %2290 = vset.pattern.permute.xlu0 26
        %2291 = vperm.xlu0 %2290, %v538
        %v2292 = vpop.permute.xlu0 %2291
        %2294 = vset.pattern.permute.xlu0 26
        %2295 = vperm.xlu0 %2294, %v539
        %v2296 = vpop.permute.xlu0 %2295
        %v2298 = vlaneseq
        %v2299 = vshrl.u32 %v2298, 7
        %v2300 = vsub.s32 2, %v2299
        %v2301 = vrot.slane %v549, %v2300
        %v2302 = vadd.f32 %v2292, %v2301
        %v2303 = vadd.f32 %v2296, %v2301
        %v2304 = vmax.f32 %v2302, 0.0
        %v2305 = vmax.f32 %v2303, 0.0
        %2306 = vset.pattern.permute.xlu0 26
        %2307 = vperm.xlu0 %2306, %v540
        %v2308 = vpop.permute.xlu0 %2307
        %2310 = vset.pattern.permute.xlu0 26
        %2311 = vperm.xlu0 %2310, %v541
        %v2312 = vpop.permute.xlu0 %2311
        %v2314 = vlaneseq
        %v2315 = vshrl.u32 %v2314, 7
        %v2316 = vsub.s32 2, %v2315
        %v2317 = vrot.slane %v545, %v2316
        %v2318 = vadd.f32 %v2308, %v2317
        %v2319 = vadd.f32 %v2312, %v2317
        %v2320 = vmax.f32 %v2318, 0.0
        %v2321 = vmax.f32 %v2319, 0.0
        %s2322 = sld [smem:[#allocation2 + $0xd00]]
        %v2323 = vstv %s2322
        %v2324 = vmul.f32 %v2304, %v2323
        %v2325 = vmul.f32 %v2305, %v2323
        %v2326 = vadd.f32 %v2264, %v2324
        %v2327 = vadd.f32 %v2265, %v2325
        %v2328 = vmul.f32 %v2320, %v2323
        %v2329 = vmul.f32 %v2321, %v2323
        %v2330 = vadd.f32 %v2268, %v2328
        %v2331 = vadd.f32 %v2269, %v2329
        %s2332 = sld [smem:[#allocation2 + $0xd01]]
        %v2333 = vstv %s2332
        %v2334 = vmul.f32 %v2304, %v2333
        %v2335 = vmul.f32 %v2305, %v2333
        %v2336 = vadd.f32 %v2274, %v2334
        %v2337 = vadd.f32 %v2275, %v2335
        %v2338 = vmul.f32 %v2320, %v2333
        %v2339 = vmul.f32 %v2321, %v2333
        %v2340 = vadd.f32 %v2278, %v2338
        %v2341 = vadd.f32 %v2279, %v2339
        %s2342 = sld [smem:[#allocation2 + $0xd02]]
        %v2343 = vstv %s2342
        %v2344 = vmul.f32 %v2304, %v2343
        %v2345 = vmul.f32 %v2305, %v2343
        %v2346 = vadd.f32 %v2284, %v2344
        %v2347 = vadd.f32 %v2285, %v2345
        %v2348 = vmul.f32 %v2320, %v2343
        %v2349 = vmul.f32 %v2321, %v2343
        %v2350 = vadd.f32 %v2288, %v2348
        %v2351 = vadd.f32 %v2289, %v2349
        %2352 = vset.pattern.permute.xlu0 27
        %2353 = vperm.xlu0 %2352, %v538
        %v2354 = vpop.permute.xlu0 %2353
        %2356 = vset.pattern.permute.xlu0 27
        %2357 = vperm.xlu0 %2356, %v539
        %v2358 = vpop.permute.xlu0 %2357
        %v2360 = vlaneseq
        %v2361 = vshrl.u32 %v2360, 7
        %v2362 = vsub.s32 3, %v2361
        %v2363 = vrot.slane %v549, %v2362
        %v2364 = vadd.f32 %v2354, %v2363
        %v2365 = vadd.f32 %v2358, %v2363
        %v2366 = vmax.f32 %v2364, 0.0
        %v2367 = vmax.f32 %v2365, 0.0
        %2368 = vset.pattern.permute.xlu0 27
        %2369 = vperm.xlu0 %2368, %v540
        %v2370 = vpop.permute.xlu0 %2369
        %2372 = vset.pattern.permute.xlu0 27
        %2373 = vperm.xlu0 %2372, %v541
        %v2374 = vpop.permute.xlu0 %2373
        %v2376 = vlaneseq
        %v2377 = vshrl.u32 %v2376, 7
        %v2378 = vsub.s32 3, %v2377
        %v2379 = vrot.slane %v545, %v2378
        %v2380 = vadd.f32 %v2370, %v2379
        %v2381 = vadd.f32 %v2374, %v2379
        %v2382 = vmax.f32 %v2380, 0.0
        %v2383 = vmax.f32 %v2381, 0.0
        %s2384 = sld [smem:[#allocation2 + $0xd80]]
        %v2385 = vstv %s2384
        %v2386 = vmul.f32 %v2366, %v2385
        %v2387 = vmul.f32 %v2367, %v2385
        %v2388 = vadd.f32 %v2326, %v2386
        %v2389 = vadd.f32 %v2327, %v2387
        %v2390 = vmul.f32 %v2382, %v2385
        %v2391 = vmul.f32 %v2383, %v2385
        %v2392 = vadd.f32 %v2330, %v2390
        %v2393 = vadd.f32 %v2331, %v2391
        %s2394 = sld [smem:[#allocation2 + $0xd81]]
        %v2395 = vstv %s2394
        %v2396 = vmul.f32 %v2366, %v2395
        %v2397 = vmul.f32 %v2367, %v2395
        %v2398 = vadd.f32 %v2336, %v2396
        %v2399 = vadd.f32 %v2337, %v2397
        %v2400 = vmul.f32 %v2382, %v2395
        %v2401 = vmul.f32 %v2383, %v2395
        %v2402 = vadd.f32 %v2340, %v2400
        %v2403 = vadd.f32 %v2341, %v2401
        %s2404 = sld [smem:[#allocation2 + $0xd82]]
        %v2405 = vstv %s2404
        %v2406 = vmul.f32 %v2366, %v2405
        %v2407 = vmul.f32 %v2367, %v2405
        %v2408 = vadd.f32 %v2346, %v2406
        %v2409 = vadd.f32 %v2347, %v2407
        %v2410 = vmul.f32 %v2382, %v2405
        %v2411 = vmul.f32 %v2383, %v2405
        %v2412 = vadd.f32 %v2350, %v2410
        %v2413 = vadd.f32 %v2351, %v2411
        %2414 = vset.pattern.permute.xlu0 28
        %2415 = vperm.xlu0 %2414, %v538
        %v2416 = vpop.permute.xlu0 %2415
        %2418 = vset.pattern.permute.xlu0 28
        %2419 = vperm.xlu0 %2418, %v539
        %v2420 = vpop.permute.xlu0 %2419
        %v2422 = vlaneseq
        %v2423 = vshrl.u32 %v2422, 7
        %v2424 = vsub.s32 4, %v2423
        %v2425 = vrot.slane %v549, %v2424
        %v2426 = vadd.f32 %v2416, %v2425
        %v2427 = vadd.f32 %v2420, %v2425
        %v2428 = vmax.f32 %v2426, 0.0
        %v2429 = vmax.f32 %v2427, 0.0
        %2430 = vset.pattern.permute.xlu0 28
        %2431 = vperm.xlu0 %2430, %v540
        %v2432 = vpop.permute.xlu0 %2431
        %2434 = vset.pattern.permute.xlu0 28
        %2435 = vperm.xlu0 %2434, %v541
        %v2436 = vpop.permute.xlu0 %2435
        %v2438 = vlaneseq
        %v2439 = vshrl.u32 %v2438, 7
        %v2440 = vsub.s32 4, %v2439
        %v2441 = vrot.slane %v545, %v2440
        %v2442 = vadd.f32 %v2432, %v2441
        %v2443 = vadd.f32 %v2436, %v2441
        %v2444 = vmax.f32 %v2442, 0.0
        %v2445 = vmax.f32 %v2443, 0.0
        %s2446 = sld [smem:[#allocation2 + $0xe00]]
        %v2447 = vstv %s2446
        %v2448 = vmul.f32 %v2428, %v2447
        %v2449 = vmul.f32 %v2429, %v2447
        %v2450 = vadd.f32 %v2388, %v2448
        %v2451 = vadd.f32 %v2389, %v2449
        %v2452 = vmul.f32 %v2444, %v2447
        %v2453 = vmul.f32 %v2445, %v2447
        %v2454 = vadd.f32 %v2392, %v2452
        %v2455 = vadd.f32 %v2393, %v2453
        %s2456 = sld [smem:[#allocation2 + $0xe01]]
        %v2457 = vstv %s2456
        %v2458 = vmul.f32 %v2428, %v2457
        %v2459 = vmul.f32 %v2429, %v2457
        %v2460 = vadd.f32 %v2398, %v2458
        %v2461 = vadd.f32 %v2399, %v2459
        %v2462 = vmul.f32 %v2444, %v2457
        %v2463 = vmul.f32 %v2445, %v2457
        %v2464 = vadd.f32 %v2402, %v2462
        %v2465 = vadd.f32 %v2403, %v2463
        %s2466 = sld [smem:[#allocation2 + $0xe02]]
        %v2467 = vstv %s2466
        %v2468 = vmul.f32 %v2428, %v2467
        %v2469 = vmul.f32 %v2429, %v2467
        %v2470 = vadd.f32 %v2408, %v2468
        %v2471 = vadd.f32 %v2409, %v2469
        %v2472 = vmul.f32 %v2444, %v2467
        %v2473 = vmul.f32 %v2445, %v2467
        %v2474 = vadd.f32 %v2412, %v2472
        %v2475 = vadd.f32 %v2413, %v2473
        %2476 = vset.pattern.permute.xlu0 29
        %2477 = vperm.xlu0 %2476, %v538
        %v2478 = vpop.permute.xlu0 %2477
        %2480 = vset.pattern.permute.xlu0 29
        %2481 = vperm.xlu0 %2480, %v539
        %v2482 = vpop.permute.xlu0 %2481
        %v2484 = vlaneseq
        %v2485 = vshrl.u32 %v2484, 7
        %v2486 = vsub.s32 5, %v2485
        %v2487 = vrot.slane %v549, %v2486
        %v2488 = vadd.f32 %v2478, %v2487
        %v2489 = vadd.f32 %v2482, %v2487
        %v2490 = vmax.f32 %v2488, 0.0
        %v2491 = vmax.f32 %v2489, 0.0
        %2492 = vset.pattern.permute.xlu0 29
        %2493 = vperm.xlu0 %2492, %v540
        %v2494 = vpop.permute.xlu0 %2493
        %2496 = vset.pattern.permute.xlu0 29
        %2497 = vperm.xlu0 %2496, %v541
        %v2498 = vpop.permute.xlu0 %2497
        %v2500 = vlaneseq
        %v2501 = vshrl.u32 %v2500, 7
        %v2502 = vsub.s32 5, %v2501
        %v2503 = vrot.slane %v545, %v2502
        %v2504 = vadd.f32 %v2494, %v2503
        %v2505 = vadd.f32 %v2498, %v2503
        %v2506 = vmax.f32 %v2504, 0.0
        %v2507 = vmax.f32 %v2505, 0.0
        %s2508 = sld [smem:[#allocation2 + $0xe80]]
        %v2509 = vstv %s2508
        %v2510 = vmul.f32 %v2490, %v2509
        %v2511 = vmul.f32 %v2491, %v2509
        %v2512 = vadd.f32 %v2450, %v2510
        %v2513 = vadd.f32 %v2451, %v2511
        %v2514 = vmul.f32 %v2506, %v2509
        %v2515 = vmul.f32 %v2507, %v2509
        %v2516 = vadd.f32 %v2454, %v2514
        %v2517 = vadd.f32 %v2455, %v2515
        %s2518 = sld [smem:[#allocation2 + $0xe81]]
        %v2519 = vstv %s2518
        %v2520 = vmul.f32 %v2490, %v2519
        %v2521 = vmul.f32 %v2491, %v2519
        %v2522 = vadd.f32 %v2460, %v2520
        %v2523 = vadd.f32 %v2461, %v2521
        %v2524 = vmul.f32 %v2506, %v2519
        %v2525 = vmul.f32 %v2507, %v2519
        %v2526 = vadd.f32 %v2464, %v2524
        %v2527 = vadd.f32 %v2465, %v2525
        %s2528 = sld [smem:[#allocation2 + $0xe82]]
        %v2529 = vstv %s2528
        %v2530 = vmul.f32 %v2490, %v2529
        %v2531 = vmul.f32 %v2491, %v2529
        %v2532 = vadd.f32 %v2470, %v2530
        %v2533 = vadd.f32 %v2471, %v2531
        %v2534 = vmul.f32 %v2506, %v2529
        %v2535 = vmul.f32 %v2507, %v2529
        %v2536 = vadd.f32 %v2474, %v2534
        %v2537 = vadd.f32 %v2475, %v2535
        %2538 = vset.pattern.permute.xlu0 30
        %2539 = vperm.xlu0 %2538, %v538
        %v2540 = vpop.permute.xlu0 %2539
        %2542 = vset.pattern.permute.xlu0 30
        %2543 = vperm.xlu0 %2542, %v539
        %v2544 = vpop.permute.xlu0 %2543
        %v2546 = vlaneseq
        %v2547 = vshrl.u32 %v2546, 7
        %v2548 = vsub.s32 6, %v2547
        %v2549 = vrot.slane %v549, %v2548
        %v2550 = vadd.f32 %v2540, %v2549
        %v2551 = vadd.f32 %v2544, %v2549
        %v2552 = vmax.f32 %v2550, 0.0
        %v2553 = vmax.f32 %v2551, 0.0
        %2554 = vset.pattern.permute.xlu0 30
        %2555 = vperm.xlu0 %2554, %v540
        %v2556 = vpop.permute.xlu0 %2555
        %2558 = vset.pattern.permute.xlu0 30
        %2559 = vperm.xlu0 %2558, %v541
        %v2560 = vpop.permute.xlu0 %2559
        %v2562 = vlaneseq
        %v2563 = vshrl.u32 %v2562, 7
        %v2564 = vsub.s32 6, %v2563
        %v2565 = vrot.slane %v545, %v2564
        %v2566 = vadd.f32 %v2556, %v2565
        %v2567 = vadd.f32 %v2560, %v2565
        %v2568 = vmax.f32 %v2566, 0.0
        %v2569 = vmax.f32 %v2567, 0.0
        %s2570 = sld [smem:[#allocation2 + $0xf00]]
        %v2571 = vstv %s2570
        %v2572 = vmul.f32 %v2552, %v2571
        %v2573 = vmul.f32 %v2553, %v2571
        %v2574 = vadd.f32 %v2512, %v2572
        %v2575 = vadd.f32 %v2513, %v2573
        %v2576 = vmul.f32 %v2568, %v2571
        %v2577 = vmul.f32 %v2569, %v2571
        %v2578 = vadd.f32 %v2516, %v2576
        %v2579 = vadd.f32 %v2517, %v2577
        %s2580 = sld [smem:[#allocation2 + $0xf01]]
        %v2581 = vstv %s2580
        %v2582 = vmul.f32 %v2552, %v2581
        %v2583 = vmul.f32 %v2553, %v2581
        %v2584 = vadd.f32 %v2522, %v2582
        %v2585 = vadd.f32 %v2523, %v2583
        %v2586 = vmul.f32 %v2568, %v2581
        %v2587 = vmul.f32 %v2569, %v2581
        %v2588 = vadd.f32 %v2526, %v2586
        %v2589 = vadd.f32 %v2527, %v2587
        %s2590 = sld [smem:[#allocation2 + $0xf02]]
        %v2591 = vstv %s2590
        %v2592 = vmul.f32 %v2552, %v2591
        %v2593 = vmul.f32 %v2553, %v2591
        %v2594 = vadd.f32 %v2532, %v2592
        %v2595 = vadd.f32 %v2533, %v2593
        %v2596 = vmul.f32 %v2568, %v2591
        %v2597 = vmul.f32 %v2569, %v2591
        %v2598 = vadd.f32 %v2536, %v2596
        %v2599 = vadd.f32 %v2537, %v2597
        %2600 = vset.pattern.permute.xlu0 31
        %2601 = vperm.xlu0 %2600, %v538
        %v2602 = vpop.permute.xlu0 %2601
        %2604 = vset.pattern.permute.xlu0 31
        %2605 = vperm.xlu0 %2604, %v539
        %v2606 = vpop.permute.xlu0 %2605
        %v2608 = vlaneseq
        %v2609 = vshrl.u32 %v2608, 7
        %v2610 = vsub.s32 7, %v2609
        %v2611 = vrot.slane %v549, %v2610
        %v2612 = vadd.f32 %v2602, %v2611
        %v2613 = vadd.f32 %v2606, %v2611
        %v2614 = vmax.f32 %v2612, 0.0
        %v2615 = vmax.f32 %v2613, 0.0
        %2616 = vset.pattern.permute.xlu0 31
        %2617 = vperm.xlu0 %2616, %v540
        %v2618 = vpop.permute.xlu0 %2617
        %2620 = vset.pattern.permute.xlu0 31
        %2621 = vperm.xlu0 %2620, %v541
        %v2622 = vpop.permute.xlu0 %2621
        %v2624 = vlaneseq
        %v2625 = vshrl.u32 %v2624, 7
        %v2626 = vsub.s32 7, %v2625
        %v2627 = vrot.slane %v545, %v2626
        %v2628 = vadd.f32 %v2618, %v2627
        %v2629 = vadd.f32 %v2622, %v2627
        %v2630 = vmax.f32 %v2628, 0.0
        %v2631 = vmax.f32 %v2629, 0.0
        %s2632 = sld [smem:[#allocation2 + $0xf80]]
        %v2633 = vstv %s2632
        %v2634 = vmul.f32 %v2614, %v2633
        %v2635 = vmul.f32 %v2615, %v2633
        %v2636 = vadd.f32 %v2574, %v2634
        %v2637 = vadd.f32 %v2575, %v2635
        %v2638 = vmul.f32 %v2630, %v2633
        %v2639 = vmul.f32 %v2631, %v2633
        %v2640 = vadd.f32 %v2578, %v2638
        %v2641 = vadd.f32 %v2579, %v2639
        %s2642 = sld [smem:[#allocation2 + $0xf81]]
        %v2643 = vstv %s2642
        %v2644 = vmul.f32 %v2614, %v2643
        %v2645 = vmul.f32 %v2615, %v2643
        %v2646 = vadd.f32 %v2584, %v2644
        %v2647 = vadd.f32 %v2585, %v2645
        %v2648 = vmul.f32 %v2630, %v2643
        %v2649 = vmul.f32 %v2631, %v2643
        %v2650 = vadd.f32 %v2588, %v2648
        %v2651 = vadd.f32 %v2589, %v2649
        %s2652 = sld [smem:[#allocation2 + $0xf82]]
        %v2653 = vstv %s2652
        %v2654 = vmul.f32 %v2614, %v2653
        %v2655 = vmul.f32 %v2615, %v2653
        %v2656 = vadd.f32 %v2594, %v2654
        %v2657 = vadd.f32 %v2595, %v2655
        %v2658 = vmul.f32 %v2630, %v2653
        %v2659 = vmul.f32 %v2631, %v2653
        %v2660 = vadd.f32 %v2598, %v2658
        %v2661 = vadd.f32 %v2599, %v2659
        %s2662 = sld [smem:[#allocation2 + $0x1000]]
        %v2663 = vstv %s2662
        %v2664 = vadd.f32 %v2636, %v2663
        %v2665 = vadd.f32 %v2637, %v2663
        %v2666 = vsub.f32 %v2664, %v609
        %v2667 = vsub.f32 %v2665, %v610
        %v2668 = vsel %vm672, %v2666, 0.0
        %v2669 = vsel %vm673, %v2667, 0.0
        %vm2670 = vcmask 130048
        %2671 = vst.msk [vmem:[%s475] sm:$0xff] %vm2670, %v2668
        %2672 = vst.msk [vmem:[%s475 + $0x8] sm:$0xff] %vm2670, %v2669
        %v2673 = vadd.f32 %v2640, %v2663
        %v2674 = vadd.f32 %v2641, %v2663
        %v2675 = vadd.f32 %v2673, %v567
        %v2676 = vadd.f32 %v2674, %v568
        %v2677 = vsel %vm672, %v2675, 0.0
        %v2678 = vsel %vm673, %v2676, 0.0
        %2679 = vst.msk [vmem:[%s482] sm:$0xff] %vm2670, %v2677
        %2680 = vst.msk [vmem:[%s482 + $0x8] sm:$0xff] %vm2670, %v2678
        %s2681 = sld [smem:[#allocation2 + $0x1001]]
        %v2682 = vstv %s2681
        %v2683 = vadd.f32 %v2646, %v2682
        %v2684 = vadd.f32 %v2647, %v2682
        %v2685 = vsub.f32 %v2683, %v623
        %v2686 = vsub.f32 %v2684, %v624
        %v2687 = vsel %vm672, %v2685, 0.0
        %v2688 = vsel %vm673, %v2686, 0.0
        %s2689 = scalar_lea.vmem %s475, 16 [#allocation5]
        %2690 = vst.msk [vmem:[%s2689] sm:$0xff] %vm2670, %v2687
        %2691 = vst.msk [vmem:[%s2689 + $0x8] sm:$0xff] %vm2670, %v2688
        %v2692 = vadd.f32 %v2650, %v2682
        %v2693 = vadd.f32 %v2651, %v2682
        %v2694 = vadd.f32 %v2692, %v581
        %v2695 = vadd.f32 %v2693, %v582
        %v2696 = vsel %vm672, %v2694, 0.0
        %v2697 = vsel %vm673, %v2695, 0.0
        %s2698 = scalar_lea.vmem %s482, 16 [#allocation6]
        %2699 = vst.msk [vmem:[%s2698] sm:$0xff] %vm2670, %v2696
        %2700 = vst.msk [vmem:[%s2698 + $0x8] sm:$0xff] %vm2670, %v2697
        %s2701 = sld [smem:[#allocation2 + $0x1002]]
        %v2702 = vstv %s2701
        %v2703 = vadd.f32 %v2656, %v2702
        %v2704 = vadd.f32 %v2657, %v2702
        %v2705 = vsub.f32 %v2703, %v637
        %v2706 = vsub.f32 %v2704, %v638
        %v2707 = vsel %vm672, %v2705, 0.0
        %v2708 = vsel %vm673, %v2706, 0.0
        %s2709 = scalar_lea.vmem %s475, 32 [#allocation5]
        %2710 = vst.msk [vmem:[%s2709] sm:$0xff] %vm2670, %v2707
        %2711 = vst.msk [vmem:[%s2709 + $0x8] sm:$0xff] %vm2670, %v2708
        %v2712 = vadd.f32 %v2660, %v2702
        %v2713 = vadd.f32 %v2661, %v2702
        %v2714 = vadd.f32 %v2712, %v595
        %v2715 = vadd.f32 %v2713, %v596
        %v2716 = vsel %vm672, %v2714, 0.0
        %v2717 = vsel %vm673, %v2715, 0.0
        %s2718 = scalar_lea.vmem %s482, 32 [#allocation6]
        %2719 = vst.msk [vmem:[%s2718] sm:$0xff] %vm2670, %v2716
        %2720 = vst.msk [vmem:[%s2718 + $0x8] sm:$0xff] %vm2670, %v2717
        %s2721 = sand.u32 %s247, 1
        %s2722 = scalar_lea.sflag [#allocation3], %s2721
        %s2723 = sand.u32 %s247, 1
        %s2724 = smul.addr %s2723, 48
        %s2725 = scalar_lea.vmem [#allocation5], %s2724
        %s2726 = sand.u32 %s277, 1
        %s2727 = scalar_lea.sflag [#allocation7], %s2726
        %s2728 = sand.u32 %s277, 1
        %s2729 = smul.addr %s2728, 48
        %s2730 = scalar_lea.vmem [#allocation6], %s2729
        // Predicated region
        $region53: #{decoder_train_forward.9} parent=47 // pred_check
          %p2731 = pneg %p257
        $region54: #{decoder_train_forward.9} parent=47 // pred_check_branch
          %2733 = sbr.rel (%p2731) target = $region56
        $region55: #{decoder_train_forward.9} parent=47 // pred_region
          %s2734 = smul.u32 2, %s33
          %s2736 = ssub.s32 768, 768
          %2737 = vsyncadd %s2722, %s2736
          %s2738 = sadd.s32 %s34, %s2734
          %s2739 = smul.addr %s32, 6
          %s2740 = sadd.s32 %s2738, %s2739
          %s2741 = smul.addr %s2740, 128
          %s2742 = scalar_lea.hbm %s7, %s2741
          %s2743 = sshll.u32 %s2725, 4
          %s2744 = int_to_ptr.vmem [resolvable:$true] %s2743
          %2749 = dma.vmem_to_hbm [thread:$0]  %s2744, 768, %s2742, %s2722, 128, 128, 8
        $region56: #{decoder_train_forward.9} parent=47 // pred_fallthru
          _
        // Predicated region
        $region57: #{decoder_train_forward.9} parent=47 // pred_check
          %p2750 = pneg %p287
        $region58: #{decoder_train_forward.9} parent=47 // pred_check_branch
          %2752 = sbr.rel (%p2750) target = $region60
        $region59: #{decoder_train_forward.9} parent=47 // pred_region
          %s2753 = smul.u32 2, %s33
          %s2755 = ssub.s32 768, 768
          %2756 = vsyncadd %s2727, %s2755
          %s2757 = sadd.s32 %s34, %s2753
          %s2758 = smul.addr %s32, 6
          %s2759 = sadd.s32 %s2757, %s2758
          %s2760 = smul.addr %s2759, 128
          %s2761 = scalar_lea.hbm %s8, %s2760
          %s2762 = sshll.u32 %s2730, 4
          %s2763 = int_to_ptr.vmem [resolvable:$true] %s2762
          %2768 = dma.vmem_to_hbm [thread:$0]  %s2763, 768, %s2761, %s2727, 128, 128, 8
        $region60: #{decoder_train_forward.9} parent=47 // pred_fallthru
          _
      $region48: #{decoder_train_forward.9} parent=5 // pred_fallthru
        _
      %p2769 = scmp.le.s32.totalorder 2, %s22
      // Predicated region
      $region61: #{decoder_train_forward.9} parent=5 // pred_check
        %p2770 = pneg %p2769
      $region62: #{decoder_train_forward.9} parent=5 // pred_check_branch
        %2772 = sbr.rel (%p2770) target = $region64
      $region63: #{decoder_train_forward.9} parent=5 // pred_region
        %s2773 = ssub.s32 %s22, 2
        // Predicated region
        $region65: #{decoder_train_forward.9} parent=63 // pred_check
          %p2774 = pneg %p263
        $region66: #{decoder_train_forward.9} parent=63 // pred_check_branch
          %2776 = sbr.rel (%p2774) target = $region68
        $region67: #{decoder_train_forward.9} parent=63 // pred_region
          %s2777 = sand.u32 %s248, 1
          %s2778 = scalar_lea.sflag [#allocation3], %s2777
          %s2779 = sand.u32 %s248, 1
          %s2780 = smul.addr %s2779, 48
          %s2781 = scalar_lea.vmem [#allocation5], %s2780
          %2782 = dma.done %s2778, 768
        $region68: #{decoder_train_forward.9} parent=63 // pred_fallthru
          _
        // Predicated region
        $region69: #{decoder_train_forward.9} parent=63 // pred_check
          %p2783 = pneg %p293
        $region70: #{decoder_train_forward.9} parent=63 // pred_check_branch
          %2785 = sbr.rel (%p2783) target = $region72
        $region71: #{decoder_train_forward.9} parent=63 // pred_region
          %s2786 = sand.u32 %s278, 1
          %s2787 = scalar_lea.sflag [#allocation7], %s2786
          %s2788 = sand.u32 %s278, 1
          %s2789 = smul.addr %s2788, 48
          %s2790 = scalar_lea.vmem [#allocation6], %s2789
          %2791 = dma.done %s2787, 768
        $region72: #{decoder_train_forward.9} parent=63 // pred_fallthru
          _
      $region64: #{decoder_train_forward.9} parent=5 // pred_fallthru
        _
    $region6: #{decoder_train_forward.9} parent=1 // loop_footer
      %s26 = sadd.s32 1, %s22
    $region7: #{decoder_train_forward.9} parent=1 // loop_footer_branch
      %21 = sbr.rel target = $region3
    $region8: #{decoder_train_forward.9} parent=1 // loop_exit
      _
    %2792 = vsyncpa [#allocation3], 1
    %s2793 = scalar_lea.sflag [#allocation3], 1
    %2794 = vsyncpa %s2793, 1
    %2795 = vsyncpa [#allocation7], 1
    %s2796 = scalar_lea.sflag [#allocation7], 1
    %2797 = vsyncpa %s2796, 1
    %2798 = vsyncpa [#allocation4], 1
    %s2799 = scalar_lea.sflag [#allocation4], 1
    %2800 = vsyncpa %s2799, 1

</llo_original>
